<compile_context>
chip_gen: v6e
topology: v6e:2x2x1
jax: 0.10.0
libtpu: 0.0.40
codegen_flags: <defaults>
</compile_context>

<pallas_src>
import jax
import jax.numpy as jnp
from jax import lax
from jax.experimental import pallas as pl
from jax.experimental.pallas import tpu as pltpu

EPS = 1e-5  # nn.LayerNorm default


def transformer_block_kernel(x_ref, g_ref, beta_ref, w1_ref, b1_ref, w2_ref,
                             b2_ref, o_ref):
    """Processes a block of `bt` batch samples in channel-major layout.

    x_ref:    (bt, C, HW) input samples (channel-major)
    g_ref:    (C, HW)     LayerNorm gamma (free reshape of (C, H, W))
    beta_ref: (C, HW)     LayerNorm beta
    w1_ref:   (C, C)      linear1 weight, PyTorch (out, in) layout
    b1_ref:   (C, 1)      linear1 bias
    w2_ref:   (C, C)      linear2 weight, PyTorch (out, in) layout
    b2_ref:   (C, 1)      linear2 bias
    o_ref:    (bt, C, HW) output samples (channel-major)
    """
    bt, n_chan, hw = x_ref.shape
    inv_n = 1.0 / (n_chan * hw)

    # Hoist loop-invariant operands once per grid step (tiny; gamma/beta are
    # one vreg-row set each, weights/biases are a few KiB).
    g = g_ref[...]
    beta = beta_ref[...]
    w1 = w1_ref[...]
    b1 = b1_ref[...]
    w2 = w2_ref[...]
    b2 = b2_ref[...]

    def process_sample(s, carry):
        x = x_ref[s].astype(jnp.float32)                    # (C, HW)

        # --- LayerNorm: two-pass, mean-subtracted statistics (biased var,
        # matching torch).  (1, 1)-shaped stats broadcast over (C, HW).
        mean = jnp.sum(x, keepdims=True) * inv_n            # (1, 1)
        d = x - mean
        var = jnp.sum(d * d, keepdims=True) * inv_n         # (1, 1)
        t = d * lax.rsqrt(var + EPS) * g + beta             # (C, HW)

        # --- linear1 + ReLU on the MXU: (C, C) @ (C, HW).  K is on sublanes,
        # N = HW on lanes (natural layout, no transpose).  HIGHEST precision
        # keeps the f32 semantics of the reference within 1e-4.
        h = jnp.dot(w1, t, preferred_element_type=jnp.float32,
                    precision=lax.Precision.HIGHEST) + b1
        h = jnp.maximum(h, 0.0)

        # --- linear2 on the MXU.
        y = jnp.dot(w2, h, preferred_element_type=jnp.float32,
                    precision=lax.Precision.HIGHEST) + b2

        o_ref[s] = y.astype(o_ref.dtype)
        return carry

    if bt <= 8:
        # Small block: fully static loop (constant indices, best scheduling).
        for s in range(bt):
            process_sample(s, 0)
    else:
        # Large block: bound live ranges to ~one sample's vregs at a time.
        lax.fori_loop(0, bt, process_sample, 0, unroll=4)


def transformer_block(x, gamma, beta, w1, b1, w2, b2):
    """x: (B, C, H, W) NCHW.  gamma/beta: (C, H, W).  w*: (out, in), b*: (C,)."""
    B, C, H, W = x.shape
    HW = H * W

    # Channel-major views: all reshapes below are layout-free (no transposes),
    # and the PyTorch (out, in) weight layout is exactly what the kernel wants.
    x_cm = x.reshape(B, C, HW)
    g_cm = gamma.reshape(C, HW)
    beta_cm = beta.reshape(C, HW)
    b1_cm = b1.reshape(C, 1)
    b2_cm = b2.reshape(C, 1)

    # Block sizing: aim for ~1 MiB of input per grid step so BlockSpec
    # double-buffering has several steps per TensorCore to overlap DMA with
    # compute at large B, capped at 64 samples (in+out, double-buffered,
    # stays well inside v5e's 16 MiB scoped default and v7x's 64 MiB VMEM).
    # For small B (e.g. the B=2 test) this collapses to a single full block.
    bytes_per_sample = C * HW * x.dtype.itemsize
    block_b = max(1, min(B, max(1, (1 << 20) // bytes_per_sample), 64))
    grid = (pl.cdiv(B, block_b),)

    # Note: the constant operands (gamma/beta/weights/biases) are small enough
    # that default double-buffering costs <200 KiB; single-buffering them via
    # pipeline_mode is left out for lowering simplicity.
    out_cm = pl.pallas_call(
        transformer_block_kernel,
        out_shape=jax.ShapeDtypeStruct((B, C, HW), x.dtype),
        grid=grid,
        in_specs=[
            pl.BlockSpec((block_b, C, HW), lambda b: (b, 0, 0)),  # x
            pl.BlockSpec((C, HW), lambda b: (0, 0)),              # gamma
            pl.BlockSpec((C, HW), lambda b: (0, 0)),              # beta
            pl.BlockSpec((C, C), lambda b: (0, 0)),               # w1
            pl.BlockSpec((C, 1), lambda b: (0, 0)),               # b1
            pl.BlockSpec((C, C), lambda b: (0, 0)),               # w2
            pl.BlockSpec((C, 1), lambda b: (0, 0)),               # b2
        ],
        out_specs=pl.BlockSpec((block_b, C, HW), lambda b: (b, 0, 0)),
        compiler_params=pltpu.CompilerParams(
            dimension_semantics=("parallel",)),
    )(x_cm, g_cm, beta_cm, w1, b1_cm, w2, b2_cm)

    return out_cm.reshape(B, C, H, W)  # free reshape back to NCHW


def _reference(x, gamma, beta, w1, b1, w2, b2):
    """Pure-JAX reference of the intended semantics."""
    B, C, H, W = x.shape
    HW = H * W
    xf = x.reshape(B, -1).astype(jnp.float32)
    mean = jnp.mean(xf, axis=1).reshape(B, 1, 1, 1)
    var = jnp.var(xf, axis=1).reshape(B, 1, 1, 1)
    xn = (x - mean) * lax.rsqrt(var + EPS)
    xn = xn * gamma[None] + beta[None]                        # (B, C, H, W)
    t = jnp.transpose(xn.reshape(B, C, HW), (0, 2, 1))        # (B, HW, C)
    h = jnp.maximum(jnp.einsum('btc,oc->bto', t, w1) + b1, 0.0)
    y = jnp.einsum('btc,oc->bto', h, w2) + b2
    return jnp.transpose(y, (0, 2, 1)).reshape(B, C, H, W)


if __name__ == "__main__":
    B, C, H, W = 2, 8, 32, 32  # H, W fixed at 32 by the LayerNorm definition
    key = jax.random.PRNGKey(0)
    ks = jax.random.split(key, 7)

    x = jax.random.normal(ks[0], (B, C, H, W), jnp.float32)
    gamma = 1.0 + 0.1 * jax.random.normal(ks[1], (C, H, W), jnp.float32)
    beta = 0.1 * jax.random.normal(ks[2], (C, H, W), jnp.float32)
    lim = 1.0 / (C ** 0.5)
    w1 = jax.random.uniform(ks[3], (C, C), jnp.float32, -lim, lim)
    b1 = jax.random.uniform(ks[4], (C,), jnp.float32, -lim, lim)
    w2 = jax.random.uniform(ks[5], (C, C), jnp.float32, -lim, lim)
    b2 = jax.random.uniform(ks[6], (C,), jnp.float32, -lim, lim)

    out = jax.block_until_ready(
        transformer_block(x, gamma, beta, w1, b1, w2, b2))
    ref = jax.block_until_ready(_reference(x, gamma, beta, w1, b1, w2, b2))

    assert out.shape == (B, C, H, W), out.shape
    assert jnp.allclose(out, ref, atol=1e-4, rtol=1e-4), (
        float(jnp.max(jnp.abs(out - ref))))
    print("KERNEL_OK")
</pallas_src>

<mosaic_0001>
module attributes {stable_mosaic.version = 11 : i64} {
  func.func @transformer_block_kernel(%arg0: i32, %arg1: memref<2x8x1024xf32, #tpu.memory_space<vmem>>, %arg2: memref<8x1024xf32, #tpu.memory_space<vmem>>, %arg3: memref<8x1024xf32, #tpu.memory_space<vmem>>, %arg4: memref<8x8xf32, #tpu.memory_space<vmem>>, %arg5: memref<8x1xf32, #tpu.memory_space<vmem>>, %arg6: memref<8x8xf32, #tpu.memory_space<vmem>>, %arg7: memref<8x1xf32, #tpu.memory_space<vmem>>, %arg8: memref<2x8x1024xf32, #tpu.memory_space<vmem>>) attributes {dimension_semantics = [#tpu.dimension_semantics<parallel>], iteration_bounds = array<i64: 1>, scalar_prefetch = 0 : i64, scratch_operands = 0 : i64, tpu.core_type = #tpu.core_type<tc>, window_params = [{transform_indices = @transform_0, window_bounds = array<i64: 2, 8, 1024>}, {pipeline_mode = #tpu.pipeline_mode<synchronous>, transform_indices = @transform_1, window_bounds = array<i64: 8, 1024>}, {pipeline_mode = #tpu.pipeline_mode<synchronous>, transform_indices = @transform_2, window_bounds = array<i64: 8, 1024>}, {pipeline_mode = #tpu.pipeline_mode<synchronous>, transform_indices = @transform_3, window_bounds = array<i64: 8, 8>}, {pipeline_mode = #tpu.pipeline_mode<synchronous>, transform_indices = @transform_4, window_bounds = array<i64: 8, 1>}, {pipeline_mode = #tpu.pipeline_mode<synchronous>, transform_indices = @transform_5, window_bounds = array<i64: 8, 8>}, {pipeline_mode = #tpu.pipeline_mode<synchronous>, transform_indices = @transform_6, window_bounds = array<i64: 8, 1>}, {transform_indices = @transform_7, window_bounds = array<i64: 2, 8, 1024>}]} {
    %c0 = arith.constant 0 : index
    %c0_0 = arith.constant 0 : index
    %0 = vector.load %arg2[%c0, %c0_0] : memref<8x1024xf32, #tpu.memory_space<vmem>>, vector<8x1024xf32>
    %c0_1 = arith.constant 0 : index
    %c0_2 = arith.constant 0 : index
    %1 = vector.load %arg3[%c0_1, %c0_2] : memref<8x1024xf32, #tpu.memory_space<vmem>>, vector<8x1024xf32>
    %c0_3 = arith.constant 0 : index
    %c0_4 = arith.constant 0 : index
    %2 = vector.load %arg4[%c0_3, %c0_4] : memref<8x8xf32, #tpu.memory_space<vmem>>, vector<8x8xf32>
    %c0_5 = arith.constant 0 : index
    %c0_6 = arith.constant 0 : index
    %3 = vector.load %arg5[%c0_5, %c0_6] : memref<8x1xf32, #tpu.memory_space<vmem>>, vector<8x1xf32>
    %c0_7 = arith.constant 0 : index
    %c0_8 = arith.constant 0 : index
    %4 = vector.load %arg6[%c0_7, %c0_8] : memref<8x8xf32, #tpu.memory_space<vmem>>, vector<8x8xf32>
    %c0_9 = arith.constant 0 : index
    %c0_10 = arith.constant 0 : index
    %5 = vector.load %arg7[%c0_9, %c0_10] : memref<8x1xf32, #tpu.memory_space<vmem>>, vector<8x1xf32>
    %c0_11 = arith.constant 0 : index
    %c0_12 = arith.constant 0 : index
    %c0_13 = arith.constant 0 : index
    %6 = vector.load %arg1[%c0_11, %c0_12, %c0_13] : memref<2x8x1024xf32, #tpu.memory_space<vmem>>, vector<1x8x1024xf32>
    %7 = vector.shape_cast %6 : vector<1x8x1024xf32> to vector<8x1024xf32>
    %8 = vector.shape_cast %7 : vector<8x1024xf32> to vector<1x8x1024xf32>
    %cst = arith.constant dense<0.000000e+00> : vector<1xf32>
    %9 = vector.multi_reduction <add>, %8, %cst [1, 2] : vector<1x8x1024xf32> to vector<1xf32>
    %10 = vector.shape_cast %9 : vector<1xf32> to vector<1x1x1xf32>
    %11 = vector.extract %10[0, 0, 0] : f32 from vector<1x1x1xf32>
    %12 = vector.broadcast %11 : f32 to vector<1x1xf32>
    %cst_14 = arith.constant 1.22070313E-4 : f32
    %13 = vector.broadcast %cst_14 : f32 to vector<1x1xf32>
    %14 = arith.mulf %12, %13 : vector<1x1xf32>
    %15 = vector.broadcast %14 : vector<1x1xf32> to vector<8x1024xf32>
    %16 = arith.subf %7, %15 : vector<8x1024xf32>
    %17 = arith.mulf %16, %16 : vector<8x1024xf32>
    %18 = vector.shape_cast %17 : vector<8x1024xf32> to vector<1x8x1024xf32>
    %cst_15 = arith.constant dense<0.000000e+00> : vector<1xf32>
    %19 = vector.multi_reduction <add>, %18, %cst_15 [1, 2] : vector<1x8x1024xf32> to vector<1xf32>
    %20 = vector.shape_cast %19 : vector<1xf32> to vector<1x1x1xf32>
    %21 = vector.extract %20[0, 0, 0] : f32 from vector<1x1x1xf32>
    %22 = vector.broadcast %21 : f32 to vector<1x1xf32>
    %cst_16 = arith.constant 1.22070313E-4 : f32
    %23 = vector.broadcast %cst_16 : f32 to vector<1x1xf32>
    %24 = arith.mulf %22, %23 : vector<1x1xf32>
    %cst_17 = arith.constant 9.99999974E-6 : f32
    %25 = vector.broadcast %cst_17 : f32 to vector<1x1xf32>
    %26 = arith.addf %24, %25 : vector<1x1xf32>
    %27 = math.rsqrt %26 : vector<1x1xf32>
    %28 = vector.broadcast %27 : vector<1x1xf32> to vector<8x1024xf32>
    %29 = arith.mulf %16, %28 : vector<8x1024xf32>
    %30 = arith.mulf %29, %0 : vector<8x1024xf32>
    %31 = arith.addf %30, %1 : vector<8x1024xf32>
    %cst_18 = arith.constant dense<0.000000e+00> : vector<8x1024xf32>
    %32 = tpu.matmul %2, %31, %cst_18 {dimension_numbers = #tpu.dot_dimension_numbers<[1], [0], [0], [1], [0, 0, 1, 1], [], []>, precision = #tpu.contract_precision<fp32>} : vector<8x8xf32>, vector<8x1024xf32>, vector<8x1024xf32> -> vector<8x1024xf32>
    %33 = vector.broadcast %3 : vector<8x1xf32> to vector<8x1024xf32>
    %34 = arith.addf %32, %33 : vector<8x1024xf32>
    %cst_19 = arith.constant 0.000000e+00 : f32
    %35 = vector.broadcast %cst_19 : f32 to vector<8x1024xf32>
    %36 = arith.maximumf %34, %35 : vector<8x1024xf32>
    %cst_20 = arith.constant dense<0.000000e+00> : vector<8x1024xf32>
    %37 = tpu.matmul %4, %36, %cst_20 {dimension_numbers = #tpu.dot_dimension_numbers<[1], [0], [0], [1], [0, 0, 1, 1], [], []>, precision = #tpu.contract_precision<fp32>} : vector<8x8xf32>, vector<8x1024xf32>, vector<8x1024xf32> -> vector<8x1024xf32>
    %38 = vector.broadcast %5 : vector<8x1xf32> to vector<8x1024xf32>
    %39 = arith.addf %37, %38 : vector<8x1024xf32>
    %c0_21 = arith.constant 0 : index
    %c0_22 = arith.constant 0 : index
    %c0_23 = arith.constant 0 : index
    %40 = vector.load %arg8[%c0_21, %c0_22, %c0_23] : memref<2x8x1024xf32, #tpu.memory_space<vmem>>, vector<1x8x1024xf32>
    %41 = vector.shape_cast %40 : vector<1x8x1024xf32> to vector<8x1024xf32>
    %42 = vector.shape_cast %39 : vector<8x1024xf32> to vector<1x8x1024xf32>
    tpu.vector_store %arg8[%c0_21, %c0_22, %c0_23], %42 {strides = array<i32>} : memref<2x8x1024xf32, #tpu.memory_space<vmem>>, vector<1x8x1024xf32>,
    %c1 = arith.constant 1 : index
    %c0_24 = arith.constant 0 : index
    %c0_25 = arith.constant 0 : index
    %43 = vector.load %arg1[%c1, %c0_24, %c0_25] : memref<2x8x1024xf32, #tpu.memory_space<vmem>>, vector<1x8x1024xf32>
    %44 = vector.shape_cast %43 : vector<1x8x1024xf32> to vector<8x1024xf32>
    %45 = vector.shape_cast %44 : vector<8x1024xf32> to vector<1x8x1024xf32>
    %cst_26 = arith.constant dense<0.000000e+00> : vector<1xf32>
    %46 = vector.multi_reduction <add>, %45, %cst_26 [1, 2] : vector<1x8x1024xf32> to vector<1xf32>
    %47 = vector.shape_cast %46 : vector<1xf32> to vector<1x1x1xf32>
    %48 = vector.extract %47[0, 0, 0] : f32 from vector<1x1x1xf32>
    %49 = vector.broadcast %48 : f32 to vector<1x1xf32>
    %cst_27 = arith.constant 1.22070313E-4 : f32
    %50 = vector.broadcast %cst_27 : f32 to vector<1x1xf32>
    %51 = arith.mulf %49, %50 : vector<1x1xf32>
    %52 = vector.broadcast %51 : vector<1x1xf32> to vector<8x1024xf32>
    %53 = arith.subf %44, %52 : vector<8x1024xf32>
    %54 = arith.mulf %53, %53 : vector<8x1024xf32>
    %55 = vector.shape_cast %54 : vector<8x1024xf32> to vector<1x8x1024xf32>
    %cst_28 = arith.constant dense<0.000000e+00> : vector<1xf32>
    %56 = vector.multi_reduction <add>, %55, %cst_28 [1, 2] : vector<1x8x1024xf32> to vector<1xf32>
    %57 = vector.shape_cast %56 : vector<1xf32> to vector<1x1x1xf32>
    %58 = vector.extract %57[0, 0, 0] : f32 from vector<1x1x1xf32>
    %59 = vector.broadcast %58 : f32 to vector<1x1xf32>
    %cst_29 = arith.constant 1.22070313E-4 : f32
    %60 = vector.broadcast %cst_29 : f32 to vector<1x1xf32>
    %61 = arith.mulf %59, %60 : vector<1x1xf32>
    %cst_30 = arith.constant 9.99999974E-6 : f32
    %62 = vector.broadcast %cst_30 : f32 to vector<1x1xf32>
    %63 = arith.addf %61, %62 : vector<1x1xf32>
    %64 = math.rsqrt %63 : vector<1x1xf32>
    %65 = vector.broadcast %64 : vector<1x1xf32> to vector<8x1024xf32>
    %66 = arith.mulf %53, %65 : vector<8x1024xf32>
    %67 = arith.mulf %66, %0 : vector<8x1024xf32>
    %68 = arith.addf %67, %1 : vector<8x1024xf32>
    %cst_31 = arith.constant dense<0.000000e+00> : vector<8x1024xf32>
    %69 = tpu.matmul %2, %68, %cst_31 {dimension_numbers = #tpu.dot_dimension_numbers<[1], [0], [0], [1], [0, 0, 1, 1], [], []>, precision = #tpu.contract_precision<fp32>} : vector<8x8xf32>, vector<8x1024xf32>, vector<8x1024xf32> -> vector<8x1024xf32>
    %70 = vector.broadcast %3 : vector<8x1xf32> to vector<8x1024xf32>
    %71 = arith.addf %69, %70 : vector<8x1024xf32>
    %cst_32 = arith.constant 0.000000e+00 : f32
    %72 = vector.broadcast %cst_32 : f32 to vector<8x1024xf32>
    %73 = arith.maximumf %71, %72 : vector<8x1024xf32>
    %cst_33 = arith.constant dense<0.000000e+00> : vector<8x1024xf32>
    %74 = tpu.matmul %4, %73, %cst_33 {dimension_numbers = #tpu.dot_dimension_numbers<[1], [0], [0], [1], [0, 0, 1, 1], [], []>, precision = #tpu.contract_precision<fp32>} : vector<8x8xf32>, vector<8x1024xf32>, vector<8x1024xf32> -> vector<8x1024xf32>
    %75 = vector.broadcast %5 : vector<8x1xf32> to vector<8x1024xf32>
    %76 = arith.addf %74, %75 : vector<8x1024xf32>
    %c1_34 = arith.constant 1 : index
    %c0_35 = arith.constant 0 : index
    %c0_36 = arith.constant 0 : index
    %77 = vector.load %arg8[%c1_34, %c0_35, %c0_36] : memref<2x8x1024xf32, #tpu.memory_space<vmem>>, vector<1x8x1024xf32>
    %78 = vector.shape_cast %77 : vector<1x8x1024xf32> to vector<8x1024xf32>
    %79 = vector.shape_cast %76 : vector<8x1024xf32> to vector<1x8x1024xf32>
    tpu.vector_store %arg8[%c1_34, %c0_35, %c0_36], %79 {strides = array<i32>} : memref<2x8x1024xf32, #tpu.memory_space<vmem>>, vector<1x8x1024xf32>,
    return
  }
  func.func @transform_0(%arg0: i32) -> (i32, i32, i32) {
    %c0_i32 = arith.constant 0 : i32
    %c0_i32_0 = arith.constant 0 : i32
    %c0_i32_1 = arith.constant 0 : i32
    return %arg0, %c0_i32, %c0_i32_0 : i32, i32, i32
  }
  func.func @transform_1(%arg0: i32) -> (i32, i32) {
    %c0_i32 = arith.constant 0 : i32
    %c0_i32_0 = arith.constant 0 : i32
    %c0_i32_1 = arith.constant 0 : i32
    return %c0_i32, %c0_i32_0 : i32, i32
  }
  func.func @transform_2(%arg0: i32) -> (i32, i32) {
    %c0_i32 = arith.constant 0 : i32
    %c0_i32_0 = arith.constant 0 : i32
    %c0_i32_1 = arith.constant 0 : i32
    return %c0_i32, %c0_i32_0 : i32, i32
  }
  func.func @transform_3(%arg0: i32) -> (i32, i32) {
    %c0_i32 = arith.constant 0 : i32
    %c0_i32_0 = arith.constant 0 : i32
    %c0_i32_1 = arith.constant 0 : i32
    return %c0_i32, %c0_i32_0 : i32, i32
  }
  func.func @transform_4(%arg0: i32) -> (i32, i32) {
    %c0_i32 = arith.constant 0 : i32
    %c0_i32_0 = arith.constant 0 : i32
    %c0_i32_1 = arith.constant 0 : i32
    return %c0_i32, %c0_i32_0 : i32, i32
  }
  func.func @transform_5(%arg0: i32) -> (i32, i32) {
    %c0_i32 = arith.constant 0 : i32
    %c0_i32_0 = arith.constant 0 : i32
    %c0_i32_1 = arith.constant 0 : i32
    return %c0_i32, %c0_i32_0 : i32, i32
  }
  func.func @transform_6(%arg0: i32) -> (i32, i32) {
    %c0_i32 = arith.constant 0 : i32
    %c0_i32_0 = arith.constant 0 : i32
    %c0_i32_1 = arith.constant 0 : i32
    return %c0_i32, %c0_i32_0 : i32, i32
  }
  func.func @transform_7(%arg0: i32) -> (i32, i32, i32) {
    %c0_i32 = arith.constant 0 : i32
    %c0_i32_0 = arith.constant 0 : i32
    %c0_i32_1 = arith.constant 0 : i32
    return %arg0, %c0_i32, %c0_i32_0 : i32, i32, i32
  }
}

</mosaic_0001>

<llo_original>
// kernel: tpu_custom_call.1
$region0: #{tpu_custom_call.1}
  #allocation0 [shape = 'u32[]', space=smem, size = 0x4, offset = 0x4, fixed_abs, tag = 'smem constant byte address 0x4 - core index']
  #allocation1 [shape = 'u32[144,128]{1,0:T(1,128)}', space=vmem, size = 0x12000, scoped, tag = 'internal scratch']
  %s0 = inlined_call_operand.hbm [shape: f32[2,8,1024], index: 0, kind: input, shape index: {}]
  %s1 = inlined_call_operand.hbm [shape: f32[8,1024], index: 1, kind: input, shape index: {}]
  %s2 = inlined_call_operand.hbm [shape: f32[8,1024], index: 2, kind: input, shape index: {}]
  %s3 = inlined_call_operand.vmem [shape: f32[8,8], index: 3, kind: input, shape index: {}]
  %s4 = inlined_call_operand.vmem [shape: f32[8,1], index: 4, kind: input, shape index: {}]
  %s5 = inlined_call_operand.vmem [shape: f32[8,8], index: 5, kind: input, shape index: {}]
  %s6 = inlined_call_operand.vmem [shape: f32[8,1], index: 6, kind: input, shape index: {}]
  %s7 = inlined_call_operand.hbm [shape: f32[2,8,1024], index: 7, kind: output, shape index: {}]
  %s8 = sld [smem:[#allocation0]]
  $region50: #{tpu_custom_call.1} parent=0
    _
  %s10 = ssub.s32 1, %s8
  %s11 = scalar_select 0, %s10, %s8
  $region1: #{tpu_custom_call.1} parent=0
    #allocation2 [shape = 'u8[65536]{0}', space=vmem, size = 0x10000, scoped, tag = 'input window, operand 0, single buffered']
    #allocation3 [shape = 's32[1]{0}', space=sflag, size = 0x4, scoped, tag = 'scoped memory for tpu_custom_call.1']
    #allocation4 [shape = 's32[1]{0}', space=sflag, size = 0x4, scoped, tag = 'scoped memory for tpu_custom_call.1']
    #allocation5 [shape = 'u8[32768]{0}', space=vmem, size = 0x8000, scoped, tag = 'input window, operand 1, single buffered']
    #allocation6 [shape = 's32[1]{0}', space=sflag, size = 0x4, scoped, tag = 'scoped memory for tpu_custom_call.1']
    #allocation7 [shape = 'u8[32768]{0}', space=vmem, size = 0x8000, scoped, tag = 'input window, operand 2, single buffered']
    #allocation8 [shape = 'u8[65536]{0}', space=vmem, size = 0x10000, scoped, tag = 'output window, operand 0, single buffered']
    %12 = vsyncpa [#allocation3], 0
    %13 = vsyncpa [#allocation6], 0
    %14 = vsyncpa [#allocation4], 0
    // Predicated region
    $region2: #{tpu_custom_call.1} parent=1 // pred_check
      _
    $region3: #{tpu_custom_call.1} parent=1 // pred_check_branch
      %16 = sbr.rel (0) target = $region5
    $region4: #{tpu_custom_call.1} parent=1 // pred_region
      %s18 = ssub.s32 2048, 2048
      %19 = vsyncadd [#allocation3], %s18
      %s20 = sshll.u32 [#allocation2], 4
      %s21 = int_to_ptr.vmem [resolvable:$true] %s20
      %26 = dma.hbm_to_vmem [thread:$0]  %s0, 2048, %s21, [#allocation3], 1024, 1024, 64
    $region5: #{tpu_custom_call.1} parent=1 // pred_fallthru
      _
    // Predicated region
    $region6: #{tpu_custom_call.1} parent=1 // pred_check
      _
    $region7: #{tpu_custom_call.1} parent=1 // pred_check_branch
      %28 = sbr.rel (0) target = $region9
    $region8: #{tpu_custom_call.1} parent=1 // pred_region
      %s30 = ssub.s32 1024, 1024
      %31 = vsyncadd [#allocation6], %s30
      %s33 = sshll.u32 [#allocation5], 4
      %s34 = int_to_ptr.vmem [resolvable:$true] %s33
      %36 = dma.hbm_to_vmem [thread:$0]  %s1, 1024, %s34, [#allocation6]
    $region9: #{tpu_custom_call.1} parent=1 // pred_fallthru
      _
    // Predicated region
    $region10: #{tpu_custom_call.1} parent=1 // pred_check
      _
    $region11: #{tpu_custom_call.1} parent=1 // pred_check_branch
      %38 = sbr.rel (0) target = $region13
    $region12: #{tpu_custom_call.1} parent=1 // pred_region
      %s40 = ssub.s32 1024, 1024
      %41 = vsyncadd [#allocation6], %s40
      %s43 = sshll.u32 [#allocation7], 4
      %s44 = int_to_ptr.vmem [resolvable:$true] %s43
      %46 = dma.hbm_to_vmem [thread:$0]  %s2, 1024, %s44, [#allocation6]
    $region13: #{tpu_custom_call.1} parent=1 // pred_fallthru
      _
    // Predicated region
    $region14: #{tpu_custom_call.1} parent=1 // pred_check
      _
    $region15: #{tpu_custom_call.1} parent=1 // pred_check_branch
      %48 = sbr.rel (0) target = $region17
    $region16: #{tpu_custom_call.1} parent=1 // pred_region
      _
    $region17: #{tpu_custom_call.1} parent=1 // pred_fallthru
      _
    // Predicated region
    $region18: #{tpu_custom_call.1} parent=1 // pred_check
      _
    $region19: #{tpu_custom_call.1} parent=1 // pred_check_branch
      %50 = sbr.rel (0) target = $region21
    $region20: #{tpu_custom_call.1} parent=1 // pred_region
      _
    $region21: #{tpu_custom_call.1} parent=1 // pred_fallthru
      _
    // Predicated region
    $region22: #{tpu_custom_call.1} parent=1 // pred_check
      _
    $region23: #{tpu_custom_call.1} parent=1 // pred_check_branch
      %52 = sbr.rel (0) target = $region25
    $region24: #{tpu_custom_call.1} parent=1 // pred_region
      _
    $region25: #{tpu_custom_call.1} parent=1 // pred_fallthru
      _
    // Predicated region
    $region26: #{tpu_custom_call.1} parent=1 // pred_check
      _
    $region27: #{tpu_custom_call.1} parent=1 // pred_check_branch
      %54 = sbr.rel (0) target = $region29
    $region28: #{tpu_custom_call.1} parent=1 // pred_region
      _
    $region29: #{tpu_custom_call.1} parent=1 // pred_fallthru
      _
    // Predicated region
    $region30: #{tpu_custom_call.1} parent=1 // pred_check
      _
    $region31: #{tpu_custom_call.1} parent=1 // pred_check_branch
      %56 = sbr.rel (0) target = $region33
    $region32: #{tpu_custom_call.1} parent=1 // pred_region
      %57 = dma.done [#allocation3], 2048
    $region33: #{tpu_custom_call.1} parent=1 // pred_fallthru
      _
    // Predicated region
    $region34: #{tpu_custom_call.1} parent=1 // pred_check
      _
    $region35: #{tpu_custom_call.1} parent=1 // pred_check_branch
      %59 = sbr.rel (0) target = $region37
    $region36: #{tpu_custom_call.1} parent=1 // pred_region
      %60 = dma.done [#allocation6], 1024
    $region37: #{tpu_custom_call.1} parent=1 // pred_fallthru
      _
    // Predicated region
    $region38: #{tpu_custom_call.1} parent=1 // pred_check
      _
    $region39: #{tpu_custom_call.1} parent=1 // pred_check_branch
      %62 = sbr.rel (0) target = $region41
    $region40: #{tpu_custom_call.1} parent=1 // pred_region
      %63 = dma.done [#allocation6], 1024
    $region41: #{tpu_custom_call.1} parent=1 // pred_fallthru
      _
    %v64 = vld [vmem:[#allocation5] sm:$0xff]
    %v65 = vld [vmem:[#allocation5 + $0x8] sm:$0xff]
    %v66 = vld [vmem:[#allocation5 + $0x10] sm:$0xff]
    %v67 = vld [vmem:[#allocation5 + $0x18] sm:$0xff]
    %v68 = vld [vmem:[#allocation5 + $0x20] sm:$0xff]
    %v69 = vld [vmem:[#allocation5 + $0x28] sm:$0xff]
    %v70 = vld [vmem:[#allocation5 + $0x30] sm:$0xff]
    %v71 = vld [vmem:[#allocation5 + $0x38] sm:$0xff]
    %v72 = vld [vmem:[#allocation7] sm:$0xff]
    %v73 = vld [vmem:[#allocation7 + $0x8] sm:$0xff]
    %v74 = vld [vmem:[#allocation7 + $0x10] sm:$0xff]
    %v75 = vld [vmem:[#allocation7 + $0x18] sm:$0xff]
    %v76 = vld [vmem:[#allocation7 + $0x20] sm:$0xff]
    %v77 = vld [vmem:[#allocation7 + $0x28] sm:$0xff]
    %v78 = vld [vmem:[#allocation7 + $0x30] sm:$0xff]
    %v79 = vld [vmem:[#allocation7 + $0x38] sm:$0xff]
    %v80 = vld [vmem:[%s3] sm:$0xff]
    %v81 = vld [vmem:[%s4] sm:$0xff]
    %v82 = vld [vmem:[%s5] sm:$0xff]
    %v83 = vld [vmem:[%s6] sm:$0xff]
    %v84 = vld [vmem:[#allocation2] sm:$0xff]
    %v85 = vld [vmem:[#allocation2 + $0x8] sm:$0xff]
    %v86 = vld [vmem:[#allocation2 + $0x10] sm:$0xff]
    %v87 = vld [vmem:[#allocation2 + $0x18] sm:$0xff]
    %v88 = vld [vmem:[#allocation2 + $0x20] sm:$0xff]
    %v89 = vld [vmem:[#allocation2 + $0x28] sm:$0xff]
    %v90 = vld [vmem:[#allocation2 + $0x30] sm:$0xff]
    %v91 = vld [vmem:[#allocation2 + $0x38] sm:$0xff]
    %v92 = vadd.f32 %v84, %v85
    %v93 = vadd.f32 %v92, %v86
    %v94 = vadd.f32 %v93, %v87
    %v95 = vadd.f32 %v94, %v88
    %v96 = vadd.f32 %v95, %v89
    %v97 = vadd.f32 %v96, %v90
    %v98 = vadd.f32 %v97, %v91
    %99 = vadd.xlane.f32.xlu0 %v98
    %v100 = vpop.xlane.xlu0 %99
    %v101 = vrot.slane %v100, 4
    %v102 = vadd.f32 %v100, %v101
    %v103 = vrot.slane %v102, 2
    %v104 = vadd.f32 %v102, %v103
    %v105 = vrot.slane %v104, 1
    %v106 = vadd.f32 %v104, %v105
    %s107 = vtos %v106
    %v108 = vstv %s107
    %v109 = vmul.f32 %v108, 0.00012207031
    %v110 = vsub.f32 %v84, %v109
    %v111 = vsub.f32 %v85, %v109
    %v112 = vsub.f32 %v86, %v109
    %v113 = vsub.f32 %v87, %v109
    %v114 = vsub.f32 %v88, %v109
    %v115 = vsub.f32 %v89, %v109
    %v116 = vsub.f32 %v90, %v109
    %v117 = vsub.f32 %v91, %v109
    %v118 = vmul.f32 %v110, %v110
    %v119 = vmul.f32 %v111, %v111
    %v120 = vmul.f32 %v112, %v112
    %v121 = vmul.f32 %v113, %v113
    %v122 = vmul.f32 %v114, %v114
    %v123 = vmul.f32 %v115, %v115
    %v124 = vmul.f32 %v116, %v116
    %v125 = vmul.f32 %v117, %v117
    %v126 = vadd.f32 %v118, %v119
    %v127 = vadd.f32 %v126, %v120
    %v128 = vadd.f32 %v127, %v121
    %v129 = vadd.f32 %v128, %v122
    %v130 = vadd.f32 %v129, %v123
    %v131 = vadd.f32 %v130, %v124
    %v132 = vadd.f32 %v131, %v125
    %133 = vadd.xlane.f32.xlu0 %v132
    %v134 = vpop.xlane.xlu0 %133
    %v135 = vrot.slane %v134, 4
    %v136 = vadd.f32 %v134, %v135
    %v137 = vrot.slane %v136, 2
    %v138 = vadd.f32 %v136, %v137
    %v139 = vrot.slane %v138, 1
    %v140 = vadd.f32 %v138, %v139
    %s141 = vtos %v140
    %v142 = vstv %s141
    %v143 = vmul.f32 %v142, 0.00012207031
    %v144 = vadd.f32 %v143, 1e-05
    %v145 = vrsqrt.pop %v144
    %v146 = vmul.f32 %v110, %v145
    %v147 = vmul.f32 %v111, %v145
    %v148 = vmul.f32 %v112, %v145
    %v149 = vmul.f32 %v113, %v145
    %v150 = vmul.f32 %v114, %v145
    %v151 = vmul.f32 %v115, %v145
    %v152 = vmul.f32 %v116, %v145
    %v153 = vmul.f32 %v117, %v145
    %v154 = vmul.f32 %v146, %v64
    %v155 = vmul.f32 %v147, %v65
    %v156 = vmul.f32 %v148, %v66
    %v157 = vmul.f32 %v149, %v67
    %v158 = vmul.f32 %v150, %v68
    %v159 = vmul.f32 %v151, %v69
    %v160 = vmul.f32 %v152, %v70
    %v161 = vmul.f32 %v153, %v71
    %v162 = vadd.f32 %v154, %v72
    %v163 = vadd.f32 %v155, %v73
    %v164 = vadd.f32 %v156, %v74
    %v165 = vadd.f32 %v157, %v75
    %v166 = vadd.f32 %v158, %v76
    %v167 = vadd.f32 %v159, %v77
    %v168 = vadd.f32 %v160, %v78
    %v169 = vadd.f32 %v161, %v79
    %171 = vset.pattern.permute.xlu0 0
    %172 = vperm.xlu0 %171, %v81
    %v173 = vpop.permute.xlu0 %172
    %vm175 = vcmask 64512
    %v177 = vsel %vm175, %v80, 0
    %179 = vmatprep.subr.mxu0 0.0
    %180 = vmatpush1.msra.mxu0 0.0
    %181 = vmatprep.subr.mxu0 0.0
    %182 = vmatpush1.msra.mxu0 0.0
    %183 = vmatprep.subr.mxu0 0.0
    %184 = vmatpush1.msra.mxu0 0.0
    %185 = vmatprep.subr.mxu0 0.0
    %186 = vmatpush1.msra.mxu0 0.0
    %187 = vmatprep.subr.mxu0 0.0
    %188 = vmatpush1.msra.mxu0 0.0
    %189 = vmatprep.subr.mxu0 0.0
    %190 = vmatpush1.msra.mxu0 0.0
    %191 = vmatprep.subr.mxu0 0.0
    %192 = vmatpush1.msra.mxu0 0.0
    %193 = vmatprep.subr.mxu0 0.0
    %194 = vmatpush1.msra.mxu0 0.0
    %195 = vmatprep.subr.mxu0 0.0
    %196 = vmatpush1.msra.mxu0 0.0
    %197 = vmatprep.subr.mxu0 0.0
    %198 = vmatpush1.msra.mxu0 0.0
    %199 = vmatprep.subr.mxu0 0.0
    %200 = vmatpush1.msra.mxu0 0.0
    %201 = vmatprep.subr.mxu0 0.0
    %202 = vmatpush1.msra.mxu0 0.0
    %203 = vmatprep.subr.mxu0 0.0
    %204 = vmatpush1.msra.mxu0 0.0
    %205 = vmatprep.subr.mxu0 0.0
    %206 = vmatpush1.msra.mxu0 0.0
    %207 = vmatprep.subr.mxu0 0.0
    %208 = vmatpush1.msra.mxu0 0.0
    %v209 = vand.u32 %v163, 4294901760
    %210 = vmatprep.subr.mxu0 %v209
    %v211 = vand.u32 %v162, 4294901760
    %212 = vmatpush1.msra.mxu0 %v211
    %213 = vmatprep.subr.mxu0 0.0
    %214 = vmatpush2.msra.mxu0 0.0
    %215 = vmatprep.subr.mxu0 0.0
    %216 = vmatpush2.msra.mxu0 0.0
    %217 = vmatprep.subr.mxu0 0.0
    %218 = vmatpush2.msra.mxu0 0.0
    %219 = vmatprep.subr.mxu0 0.0
    %220 = vmatpush2.msra.mxu0 0.0
    %221 = vmatprep.subr.mxu0 0.0
    %222 = vmatpush2.msra.mxu0 0.0
    %223 = vmatprep.subr.mxu0 0.0
    %224 = vmatpush2.msra.mxu0 0.0
    %225 = vmatprep.subr.mxu0 0.0
    %226 = vmatpush2.msra.mxu0 0.0
    %227 = vmatprep.subr.mxu0 0.0
    %228 = vmatpush2.msra.mxu0 0.0
    %229 = vmatprep.subr.mxu0 0.0
    %230 = vmatpush2.msra.mxu0 0.0
    %231 = vmatprep.subr.mxu0 0.0
    %232 = vmatpush2.msra.mxu0 0.0
    %233 = vmatprep.subr.mxu0 0.0
    %234 = vmatpush2.msra.mxu0 0.0
    %235 = vmatprep.subr.mxu0 0.0
    %236 = vmatpush2.msra.mxu0 0.0
    %237 = vmatprep.subr.mxu0 0.0
    %238 = vmatpush2.msra.mxu0 0.0
    %239 = vmatprep.subr.mxu0 0.0
    %240 = vmatpush2.msra.mxu0 0.0
    %241 = vmatprep.subr.mxu0 0.0
    %242 = vmatpush2.msra.mxu0 0.0
    %243 = vmatprep.subr.mxu0 0.0
    %244 = vmatpush2.msra.mxu0 0.0
    %245 = vmatprep.mubr.f32.mxu0 0.0
    %v246 = vand.u32 %v177, 4294901760
    %v247 = vsub.f32 %v177, %v246
    %v248 = vand.u32 %v247, 4294901760
    %v249 = vsub.f32 %v247, %v248
    %v250 = vand.u32 %v249, 4294901760
    %251 = vmatmul.mubr.f32.gmra.mxu0 %v250
    %v252 = vpop.f32.mrf.mxu0
    %v253 = vadd.f32 %v173, %v252
    %v254 = vpop.f32.mrf.mxu0
    %v255 = vadd.f32 %v173, %v254
    %256 = vdwg.mxu0
    %257 = vmatprep.subr.mxu0 0.0
    %258 = vmatpush1.msra.mxu0 0.0
    %259 = vmatprep.subr.mxu0 0.0
    %260 = vmatpush1.msra.mxu0 0.0
    %261 = vmatprep.subr.mxu0 0.0
    %262 = vmatpush1.msra.mxu0 0.0
    %263 = vmatprep.subr.mxu0 0.0
    %264 = vmatpush1.msra.mxu0 0.0
    %265 = vmatprep.subr.mxu0 0.0
    %266 = vmatpush1.msra.mxu0 0.0
    %267 = vmatprep.subr.mxu0 0.0
    %268 = vmatpush1.msra.mxu0 0.0
    %269 = vmatprep.subr.mxu0 0.0
    %270 = vmatpush1.msra.mxu0 0.0
    %271 = vmatprep.subr.mxu0 0.0
    %272 = vmatpush1.msra.mxu0 0.0
    %273 = vmatprep.subr.mxu0 0.0
    %274 = vmatpush1.msra.mxu0 0.0
    %275 = vmatprep.subr.mxu0 0.0
    %276 = vmatpush1.msra.mxu0 0.0
    %277 = vmatprep.subr.mxu0 0.0
    %278 = vmatpush1.msra.mxu0 0.0
    %279 = vmatprep.subr.mxu0 0.0
    %280 = vmatpush1.msra.mxu0 0.0
    %281 = vmatprep.subr.mxu0 0.0
    %282 = vmatpush1.msra.mxu0 0.0
    %283 = vmatprep.subr.mxu0 0.0
    %284 = vmatpush1.msra.mxu0 0.0
    %285 = vmatprep.subr.mxu0 0.0
    %286 = vmatpush1.msra.mxu0 0.0
    %v287 = vand.u32 %v163, 4294901760
    %v288 = vsub.f32 %v163, %v287
    %v289 = vand.u32 %v288, 4294901760
    %v290 = vsub.f32 %v288, %v289
    %v291 = vand.u32 %v290, 4294901760
    %292 = vmatprep.subr.mxu0 %v291
    %v293 = vand.u32 %v162, 4294901760
    %v294 = vsub.f32 %v162, %v293
    %v295 = vand.u32 %v294, 4294901760
    %v296 = vsub.f32 %v294, %v295
    %v297 = vand.u32 %v296, 4294901760
    %298 = vmatpush1.msra.mxu0 %v297
    %299 = vmatprep.subr.mxu0 0.0
    %300 = vmatpush2.msra.mxu0 0.0
    %301 = vmatprep.subr.mxu0 0.0
    %302 = vmatpush2.msra.mxu0 0.0
    %303 = vmatprep.subr.mxu0 0.0
    %304 = vmatpush2.msra.mxu0 0.0
    %305 = vmatprep.subr.mxu0 0.0
    %306 = vmatpush2.msra.mxu0 0.0
    %307 = vmatprep.subr.mxu0 0.0
    %308 = vmatpush2.msra.mxu0 0.0
    %309 = vmatprep.subr.mxu0 0.0
    %310 = vmatpush2.msra.mxu0 0.0
    %311 = vmatprep.subr.mxu0 0.0
    %312 = vmatpush2.msra.mxu0 0.0
    %313 = vmatprep.subr.mxu0 0.0
    %314 = vmatpush2.msra.mxu0 0.0
    %315 = vmatprep.subr.mxu0 0.0
    %316 = vmatpush2.msra.mxu0 0.0
    %317 = vmatprep.subr.mxu0 0.0
    %318 = vmatpush2.msra.mxu0 0.0
    %319 = vmatprep.subr.mxu0 0.0
    %320 = vmatpush2.msra.mxu0 0.0
    %321 = vmatprep.subr.mxu0 0.0
    %322 = vmatpush2.msra.mxu0 0.0
    %323 = vmatprep.subr.mxu0 0.0
    %324 = vmatpush2.msra.mxu0 0.0
    %325 = vmatprep.subr.mxu0 0.0
    %326 = vmatpush2.msra.mxu0 0.0
    %327 = vmatprep.subr.mxu0 0.0
    %328 = vmatpush2.msra.mxu0 0.0
    %329 = vmatprep.subr.mxu0 0.0
    %330 = vmatpush2.msra.mxu0 0.0
    %331 = vmatprep.mubr.f32.mxu0 0.0
    %v332 = vand.u32 %v177, 4294901760
    %333 = vmatmul.mubr.f32.gmra.mxu0 %v332
    %v334 = vpop.f32.mrf.mxu0
    %v335 = vadd.f32 %v253, %v334
    %v336 = vpop.f32.mrf.mxu0
    %v337 = vadd.f32 %v255, %v336
    %338 = vdwg.mxu0
    %339 = vmatprep.subr.mxu0 0.0
    %340 = vmatpush1.msra.mxu0 0.0
    %341 = vmatprep.subr.mxu0 0.0
    %342 = vmatpush1.msra.mxu0 0.0
    %343 = vmatprep.subr.mxu0 0.0
    %344 = vmatpush1.msra.mxu0 0.0
    %345 = vmatprep.subr.mxu0 0.0
    %346 = vmatpush1.msra.mxu0 0.0
    %347 = vmatprep.subr.mxu0 0.0
    %348 = vmatpush1.msra.mxu0 0.0
    %349 = vmatprep.subr.mxu0 0.0
    %350 = vmatpush1.msra.mxu0 0.0
    %351 = vmatprep.subr.mxu0 0.0
    %352 = vmatpush1.msra.mxu0 0.0
    %353 = vmatprep.subr.mxu0 0.0
    %354 = vmatpush1.msra.mxu0 0.0
    %355 = vmatprep.subr.mxu0 0.0
    %356 = vmatpush1.msra.mxu0 0.0
    %357 = vmatprep.subr.mxu0 0.0
    %358 = vmatpush1.msra.mxu0 0.0
    %359 = vmatprep.subr.mxu0 0.0
    %360 = vmatpush1.msra.mxu0 0.0
    %361 = vmatprep.subr.mxu0 0.0
    %362 = vmatpush1.msra.mxu0 0.0
    %363 = vmatprep.subr.mxu0 0.0
    %364 = vmatpush1.msra.mxu0 0.0
    %365 = vmatprep.subr.mxu0 0.0
    %366 = vmatpush1.msra.mxu0 0.0
    %367 = vmatprep.subr.mxu0 0.0
    %368 = vmatpush1.msra.mxu0 0.0
    %v369 = vand.u32 %v163, 4294901760
    %v370 = vsub.f32 %v163, %v369
    %371 = vmatprep.subr.mxu0 %v370
    %v372 = vand.u32 %v162, 4294901760
    %v373 = vsub.f32 %v162, %v372
    %374 = vmatpush1.msra.mxu0 %v373
    %375 = vmatprep.subr.mxu0 0.0
    %376 = vmatpush2.msra.mxu0 0.0
    %377 = vmatprep.subr.mxu0 0.0
    %378 = vmatpush2.msra.mxu0 0.0
    %379 = vmatprep.subr.mxu0 0.0
    %380 = vmatpush2.msra.mxu0 0.0
    %381 = vmatprep.subr.mxu0 0.0
    %382 = vmatpush2.msra.mxu0 0.0
    %383 = vmatprep.subr.mxu0 0.0
    %384 = vmatpush2.msra.mxu0 0.0
    %385 = vmatprep.subr.mxu0 0.0
    %386 = vmatpush2.msra.mxu0 0.0
    %387 = vmatprep.subr.mxu0 0.0
    %388 = vmatpush2.msra.mxu0 0.0
    %389 = vmatprep.subr.mxu0 0.0
    %390 = vmatpush2.msra.mxu0 0.0
    %391 = vmatprep.subr.mxu0 0.0
    %392 = vmatpush2.msra.mxu0 0.0
    %393 = vmatprep.subr.mxu0 0.0
    %394 = vmatpush2.msra.mxu0 0.0
    %395 = vmatprep.subr.mxu0 0.0
    %396 = vmatpush2.msra.mxu0 0.0
    %397 = vmatprep.subr.mxu0 0.0
    %398 = vmatpush2.msra.mxu0 0.0
    %399 = vmatprep.subr.mxu0 0.0
    %400 = vmatpush2.msra.mxu0 0.0
    %401 = vmatprep.subr.mxu0 0.0
    %402 = vmatpush2.msra.mxu0 0.0
    %403 = vmatprep.subr.mxu0 0.0
    %404 = vmatpush2.msra.mxu0 0.0
    %405 = vmatprep.subr.mxu0 0.0
    %406 = vmatpush2.msra.mxu0 0.0
    %407 = vmatprep.mubr.f32.mxu0 0.0
    %v408 = vand.u32 %v177, 4294901760
    %v409 = vsub.f32 %v177, %v408
    %410 = vmatmul.mubr.f32.gmra.mxu0 %v409
    %v411 = vpop.f32.mrf.mxu0
    %v412 = vadd.f32 %v335, %v411
    %v413 = vpop.f32.mrf.mxu0
    %v414 = vadd.f32 %v337, %v413
    %415 = vdwg.mxu0
    %416 = vmatprep.subr.mxu0 0.0
    %417 = vmatpush1.msra.mxu0 0.0
    %418 = vmatprep.subr.mxu0 0.0
    %419 = vmatpush1.msra.mxu0 0.0
    %420 = vmatprep.subr.mxu0 0.0
    %421 = vmatpush1.msra.mxu0 0.0
    %422 = vmatprep.subr.mxu0 0.0
    %423 = vmatpush1.msra.mxu0 0.0
    %424 = vmatprep.subr.mxu0 0.0
    %425 = vmatpush1.msra.mxu0 0.0
    %426 = vmatprep.subr.mxu0 0.0
    %427 = vmatpush1.msra.mxu0 0.0
    %428 = vmatprep.subr.mxu0 0.0
    %429 = vmatpush1.msra.mxu0 0.0
    %430 = vmatprep.subr.mxu0 0.0
    %431 = vmatpush1.msra.mxu0 0.0
    %432 = vmatprep.subr.mxu0 0.0
    %433 = vmatpush1.msra.mxu0 0.0
    %434 = vmatprep.subr.mxu0 0.0
    %435 = vmatpush1.msra.mxu0 0.0
    %436 = vmatprep.subr.mxu0 0.0
    %437 = vmatpush1.msra.mxu0 0.0
    %438 = vmatprep.subr.mxu0 0.0
    %439 = vmatpush1.msra.mxu0 0.0
    %440 = vmatprep.subr.mxu0 0.0
    %441 = vmatpush1.msra.mxu0 0.0
    %442 = vmatprep.subr.mxu0 0.0
    %443 = vmatpush1.msra.mxu0 0.0
    %444 = vmatprep.subr.mxu0 0.0
    %445 = vmatpush1.msra.mxu0 0.0
    %v446 = vand.u32 %v163, 4294901760
    %447 = vmatprep.subr.mxu0 %v446
    %v448 = vand.u32 %v162, 4294901760
    %449 = vmatpush1.msra.mxu0 %v448
    %450 = vmatprep.subr.mxu0 0.0
    %451 = vmatpush2.msra.mxu0 0.0
    %452 = vmatprep.subr.mxu0 0.0
    %453 = vmatpush2.msra.mxu0 0.0
    %454 = vmatprep.subr.mxu0 0.0
    %455 = vmatpush2.msra.mxu0 0.0
    %456 = vmatprep.subr.mxu0 0.0
    %457 = vmatpush2.msra.mxu0 0.0
    %458 = vmatprep.subr.mxu0 0.0
    %459 = vmatpush2.msra.mxu0 0.0
    %460 = vmatprep.subr.mxu0 0.0
    %461 = vmatpush2.msra.mxu0 0.0
    %462 = vmatprep.subr.mxu0 0.0
    %463 = vmatpush2.msra.mxu0 0.0
    %464 = vmatprep.subr.mxu0 0.0
    %465 = vmatpush2.msra.mxu0 0.0
    %466 = vmatprep.subr.mxu0 0.0
    %467 = vmatpush2.msra.mxu0 0.0
    %468 = vmatprep.subr.mxu0 0.0
    %469 = vmatpush2.msra.mxu0 0.0
    %470 = vmatprep.subr.mxu0 0.0
    %471 = vmatpush2.msra.mxu0 0.0
    %472 = vmatprep.subr.mxu0 0.0
    %473 = vmatpush2.msra.mxu0 0.0
    %474 = vmatprep.subr.mxu0 0.0
    %475 = vmatpush2.msra.mxu0 0.0
    %476 = vmatprep.subr.mxu0 0.0
    %477 = vmatpush2.msra.mxu0 0.0
    %478 = vmatprep.subr.mxu0 0.0
    %479 = vmatpush2.msra.mxu0 0.0
    %480 = vmatprep.subr.mxu0 0.0
    %481 = vmatpush2.msra.mxu0 0.0
    %482 = vmatprep.mubr.f32.mxu0 0.0
    %v483 = vand.u32 %v177, 4294901760
    %v484 = vsub.f32 %v177, %v483
    %v485 = vand.u32 %v484, 4294901760
    %486 = vmatmul.mubr.f32.gmra.mxu0 %v485
    %v487 = vpop.f32.mrf.mxu0
    %v488 = vadd.f32 %v412, %v487
    %v489 = vpop.f32.mrf.mxu0
    %v490 = vadd.f32 %v414, %v489
    %491 = vdwg.mxu0
    %492 = vmatprep.subr.mxu0 0.0
    %493 = vmatpush1.msra.mxu0 0.0
    %494 = vmatprep.subr.mxu0 0.0
    %495 = vmatpush1.msra.mxu0 0.0
    %496 = vmatprep.subr.mxu0 0.0
    %497 = vmatpush1.msra.mxu0 0.0
    %498 = vmatprep.subr.mxu0 0.0
    %499 = vmatpush1.msra.mxu0 0.0
    %500 = vmatprep.subr.mxu0 0.0
    %501 = vmatpush1.msra.mxu0 0.0
    %502 = vmatprep.subr.mxu0 0.0
    %503 = vmatpush1.msra.mxu0 0.0
    %504 = vmatprep.subr.mxu0 0.0
    %505 = vmatpush1.msra.mxu0 0.0
    %506 = vmatprep.subr.mxu0 0.0
    %507 = vmatpush1.msra.mxu0 0.0
    %508 = vmatprep.subr.mxu0 0.0
    %509 = vmatpush1.msra.mxu0 0.0
    %510 = vmatprep.subr.mxu0 0.0
    %511 = vmatpush1.msra.mxu0 0.0
    %512 = vmatprep.subr.mxu0 0.0
    %513 = vmatpush1.msra.mxu0 0.0
    %514 = vmatprep.subr.mxu0 0.0
    %515 = vmatpush1.msra.mxu0 0.0
    %516 = vmatprep.subr.mxu0 0.0
    %517 = vmatpush1.msra.mxu0 0.0
    %518 = vmatprep.subr.mxu0 0.0
    %519 = vmatpush1.msra.mxu0 0.0
    %520 = vmatprep.subr.mxu0 0.0
    %521 = vmatpush1.msra.mxu0 0.0
    %v522 = vand.u32 %v163, 4294901760
    %v523 = vsub.f32 %v163, %v522
    %v524 = vand.u32 %v523, 4294901760
    %525 = vmatprep.subr.mxu0 %v524
    %v526 = vand.u32 %v162, 4294901760
    %v527 = vsub.f32 %v162, %v526
    %v528 = vand.u32 %v527, 4294901760
    %529 = vmatpush1.msra.mxu0 %v528
    %530 = vmatprep.subr.mxu0 0.0
    %531 = vmatpush2.msra.mxu0 0.0
    %532 = vmatprep.subr.mxu0 0.0
    %533 = vmatpush2.msra.mxu0 0.0
    %534 = vmatprep.subr.mxu0 0.0
    %535 = vmatpush2.msra.mxu0 0.0
    %536 = vmatprep.subr.mxu0 0.0
    %537 = vmatpush2.msra.mxu0 0.0
    %538 = vmatprep.subr.mxu0 0.0
    %539 = vmatpush2.msra.mxu0 0.0
    %540 = vmatprep.subr.mxu0 0.0
    %541 = vmatpush2.msra.mxu0 0.0
    %542 = vmatprep.subr.mxu0 0.0
    %543 = vmatpush2.msra.mxu0 0.0
    %544 = vmatprep.subr.mxu0 0.0
    %545 = vmatpush2.msra.mxu0 0.0
    %546 = vmatprep.subr.mxu0 0.0
    %547 = vmatpush2.msra.mxu0 0.0
    %548 = vmatprep.subr.mxu0 0.0
    %549 = vmatpush2.msra.mxu0 0.0
    %550 = vmatprep.subr.mxu0 0.0
    %551 = vmatpush2.msra.mxu0 0.0
    %552 = vmatprep.subr.mxu0 0.0
    %553 = vmatpush2.msra.mxu0 0.0
    %554 = vmatprep.subr.mxu0 0.0
    %555 = vmatpush2.msra.mxu0 0.0
    %556 = vmatprep.subr.mxu0 0.0
    %557 = vmatpush2.msra.mxu0 0.0
    %558 = vmatprep.subr.mxu0 0.0
    %559 = vmatpush2.msra.mxu0 0.0
    %560 = vmatprep.subr.mxu0 0.0
    %561 = vmatpush2.msra.mxu0 0.0
    %562 = vmatprep.mubr.f32.mxu0 0.0
    %v563 = vand.u32 %v177, 4294901760
    %564 = vmatmul.mubr.f32.gmra.mxu0 %v563
    %v565 = vpop.f32.mrf.mxu0
    %v566 = vadd.f32 %v488, %v565
    %v567 = vpop.f32.mrf.mxu0
    %v568 = vadd.f32 %v490, %v567
    %569 = vdwg.mxu0
    %570 = vmatprep.subr.mxu0 0.0
    %571 = vmatpush1.msra.mxu0 0.0
    %572 = vmatprep.subr.mxu0 0.0
    %573 = vmatpush1.msra.mxu0 0.0
    %574 = vmatprep.subr.mxu0 0.0
    %575 = vmatpush1.msra.mxu0 0.0
    %576 = vmatprep.subr.mxu0 0.0
    %577 = vmatpush1.msra.mxu0 0.0
    %578 = vmatprep.subr.mxu0 0.0
    %579 = vmatpush1.msra.mxu0 0.0
    %580 = vmatprep.subr.mxu0 0.0
    %581 = vmatpush1.msra.mxu0 0.0
    %582 = vmatprep.subr.mxu0 0.0
    %583 = vmatpush1.msra.mxu0 0.0
    %584 = vmatprep.subr.mxu0 0.0
    %585 = vmatpush1.msra.mxu0 0.0
    %586 = vmatprep.subr.mxu0 0.0
    %587 = vmatpush1.msra.mxu0 0.0
    %588 = vmatprep.subr.mxu0 0.0
    %589 = vmatpush1.msra.mxu0 0.0
    %590 = vmatprep.subr.mxu0 0.0
    %591 = vmatpush1.msra.mxu0 0.0
    %592 = vmatprep.subr.mxu0 0.0
    %593 = vmatpush1.msra.mxu0 0.0
    %594 = vmatprep.subr.mxu0 0.0
    %595 = vmatpush1.msra.mxu0 0.0
    %596 = vmatprep.subr.mxu0 0.0
    %597 = vmatpush1.msra.mxu0 0.0
    %598 = vmatprep.subr.mxu0 0.0
    %599 = vmatpush1.msra.mxu0 0.0
    %v600 = vand.u32 %v163, 4294901760
    %601 = vmatprep.subr.mxu0 %v600
    %v602 = vand.u32 %v162, 4294901760
    %603 = vmatpush1.msra.mxu0 %v602
    %604 = vmatprep.subr.mxu0 0.0
    %605 = vmatpush2.msra.mxu0 0.0
    %606 = vmatprep.subr.mxu0 0.0
    %607 = vmatpush2.msra.mxu0 0.0
    %608 = vmatprep.subr.mxu0 0.0
    %609 = vmatpush2.msra.mxu0 0.0
    %610 = vmatprep.subr.mxu0 0.0
    %611 = vmatpush2.msra.mxu0 0.0
    %612 = vmatprep.subr.mxu0 0.0
    %613 = vmatpush2.msra.mxu0 0.0
    %614 = vmatprep.subr.mxu0 0.0
    %615 = vmatpush2.msra.mxu0 0.0
    %616 = vmatprep.subr.mxu0 0.0
    %617 = vmatpush2.msra.mxu0 0.0
    %618 = vmatprep.subr.mxu0 0.0
    %619 = vmatpush2.msra.mxu0 0.0
    %620 = vmatprep.subr.mxu0 0.0
    %621 = vmatpush2.msra.mxu0 0.0
    %622 = vmatprep.subr.mxu0 0.0
    %623 = vmatpush2.msra.mxu0 0.0
    %624 = vmatprep.subr.mxu0 0.0
    %625 = vmatpush2.msra.mxu0 0.0
    %626 = vmatprep.subr.mxu0 0.0
    %627 = vmatpush2.msra.mxu0 0.0
    %628 = vmatprep.subr.mxu0 0.0
    %629 = vmatpush2.msra.mxu0 0.0
    %630 = vmatprep.subr.mxu0 0.0
    %631 = vmatpush2.msra.mxu0 0.0
    %632 = vmatprep.subr.mxu0 0.0
    %633 = vmatpush2.msra.mxu0 0.0
    %634 = vmatprep.subr.mxu0 0.0
    %635 = vmatpush2.msra.mxu0 0.0
    %636 = vmatprep.mubr.f32.mxu0 0.0
    %v637 = vand.u32 %v177, 4294901760
    %638 = vmatmul.mubr.f32.gmra.mxu0 %v637
    %v639 = vpop.f32.mrf.mxu0
    %v640 = vadd.f32 %v566, %v639
    %v641 = vpop.f32.mrf.mxu0
    %v642 = vadd.f32 %v568, %v641
    %643 = vdwg.mxu0
    %644 = vmatprep.subr.mxu0 0.0
    %645 = vmatpush1.msra.mxu0 0.0
    %646 = vmatprep.subr.mxu0 0.0
    %647 = vmatpush1.msra.mxu0 0.0
    %648 = vmatprep.subr.mxu0 0.0
    %649 = vmatpush1.msra.mxu0 0.0
    %650 = vmatprep.subr.mxu0 0.0
    %651 = vmatpush1.msra.mxu0 0.0
    %652 = vmatprep.subr.mxu0 0.0
    %653 = vmatpush1.msra.mxu0 0.0
    %654 = vmatprep.subr.mxu0 0.0
    %655 = vmatpush1.msra.mxu0 0.0
    %656 = vmatprep.subr.mxu0 0.0
    %657 = vmatpush1.msra.mxu0 0.0
    %658 = vmatprep.subr.mxu0 0.0
    %659 = vmatpush1.msra.mxu0 0.0
    %660 = vmatprep.subr.mxu0 0.0
    %661 = vmatpush1.msra.mxu0 0.0
    %662 = vmatprep.subr.mxu0 0.0
    %663 = vmatpush1.msra.mxu0 0.0
    %664 = vmatprep.subr.mxu0 0.0
    %665 = vmatpush1.msra.mxu0 0.0
    %666 = vmatprep.subr.mxu0 0.0
    %667 = vmatpush1.msra.mxu0 0.0
    %668 = vmatprep.subr.mxu0 0.0
    %669 = vmatpush1.msra.mxu0 0.0
    %670 = vmatprep.subr.mxu0 0.0
    %671 = vmatpush1.msra.mxu0 0.0
    %672 = vmatprep.subr.mxu0 0.0
    %673 = vmatpush1.msra.mxu0 0.0
    %v674 = vand.u32 %v165, 4294901760
    %675 = vmatprep.subr.mxu0 %v674
    %v676 = vand.u32 %v164, 4294901760
    %677 = vmatpush1.msra.mxu0 %v676
    %678 = vmatprep.subr.mxu0 0.0
    %679 = vmatpush2.msra.mxu0 0.0
    %680 = vmatprep.subr.mxu0 0.0
    %681 = vmatpush2.msra.mxu0 0.0
    %682 = vmatprep.subr.mxu0 0.0
    %683 = vmatpush2.msra.mxu0 0.0
    %684 = vmatprep.subr.mxu0 0.0
    %685 = vmatpush2.msra.mxu0 0.0
    %686 = vmatprep.subr.mxu0 0.0
    %687 = vmatpush2.msra.mxu0 0.0
    %688 = vmatprep.subr.mxu0 0.0
    %689 = vmatpush2.msra.mxu0 0.0
    %690 = vmatprep.subr.mxu0 0.0
    %691 = vmatpush2.msra.mxu0 0.0
    %692 = vmatprep.subr.mxu0 0.0
    %693 = vmatpush2.msra.mxu0 0.0
    %694 = vmatprep.subr.mxu0 0.0
    %695 = vmatpush2.msra.mxu0 0.0
    %696 = vmatprep.subr.mxu0 0.0
    %697 = vmatpush2.msra.mxu0 0.0
    %698 = vmatprep.subr.mxu0 0.0
    %699 = vmatpush2.msra.mxu0 0.0
    %700 = vmatprep.subr.mxu0 0.0
    %701 = vmatpush2.msra.mxu0 0.0
    %702 = vmatprep.subr.mxu0 0.0
    %703 = vmatpush2.msra.mxu0 0.0
    %704 = vmatprep.subr.mxu0 0.0
    %705 = vmatpush2.msra.mxu0 0.0
    %706 = vmatprep.subr.mxu0 0.0
    %707 = vmatpush2.msra.mxu0 0.0
    %708 = vmatprep.subr.mxu0 0.0
    %709 = vmatpush2.msra.mxu0 0.0
    %710 = vmatprep.mubr.f32.mxu0 0.0
    %v711 = vand.u32 %v177, 4294901760
    %v712 = vsub.f32 %v177, %v711
    %v713 = vand.u32 %v712, 4294901760
    %v714 = vsub.f32 %v712, %v713
    %v715 = vand.u32 %v714, 4294901760
    %716 = vmatmul.mubr.f32.gmra.mxu0 %v715
    %v717 = vpop.f32.mrf.mxu0
    %v718 = vadd.f32 %v173, %v717
    %v719 = vpop.f32.mrf.mxu0
    %v720 = vadd.f32 %v173, %v719
    %721 = vdwg.mxu0
    %722 = vmatprep.subr.mxu0 0.0
    %723 = vmatpush1.msra.mxu0 0.0
    %724 = vmatprep.subr.mxu0 0.0
    %725 = vmatpush1.msra.mxu0 0.0
    %726 = vmatprep.subr.mxu0 0.0
    %727 = vmatpush1.msra.mxu0 0.0
    %728 = vmatprep.subr.mxu0 0.0
    %729 = vmatpush1.msra.mxu0 0.0
    %730 = vmatprep.subr.mxu0 0.0
    %731 = vmatpush1.msra.mxu0 0.0
    %732 = vmatprep.subr.mxu0 0.0
    %733 = vmatpush1.msra.mxu0 0.0
    %734 = vmatprep.subr.mxu0 0.0
    %735 = vmatpush1.msra.mxu0 0.0
    %736 = vmatprep.subr.mxu0 0.0
    %737 = vmatpush1.msra.mxu0 0.0
    %738 = vmatprep.subr.mxu0 0.0
    %739 = vmatpush1.msra.mxu0 0.0
    %740 = vmatprep.subr.mxu0 0.0
    %741 = vmatpush1.msra.mxu0 0.0
    %742 = vmatprep.subr.mxu0 0.0
    %743 = vmatpush1.msra.mxu0 0.0
    %744 = vmatprep.subr.mxu0 0.0
    %745 = vmatpush1.msra.mxu0 0.0
    %746 = vmatprep.subr.mxu0 0.0
    %747 = vmatpush1.msra.mxu0 0.0
    %748 = vmatprep.subr.mxu0 0.0
    %749 = vmatpush1.msra.mxu0 0.0
    %750 = vmatprep.subr.mxu0 0.0
    %751 = vmatpush1.msra.mxu0 0.0
    %v752 = vand.u32 %v165, 4294901760
    %v753 = vsub.f32 %v165, %v752
    %v754 = vand.u32 %v753, 4294901760
    %v755 = vsub.f32 %v753, %v754
    %v756 = vand.u32 %v755, 4294901760
    %757 = vmatprep.subr.mxu0 %v756
    %v758 = vand.u32 %v164, 4294901760
    %v759 = vsub.f32 %v164, %v758
    %v760 = vand.u32 %v759, 4294901760
    %v761 = vsub.f32 %v759, %v760
    %v762 = vand.u32 %v761, 4294901760
    %763 = vmatpush1.msra.mxu0 %v762
    %764 = vmatprep.subr.mxu0 0.0
    %765 = vmatpush2.msra.mxu0 0.0
    %766 = vmatprep.subr.mxu0 0.0
    %767 = vmatpush2.msra.mxu0 0.0
    %768 = vmatprep.subr.mxu0 0.0
    %769 = vmatpush2.msra.mxu0 0.0
    %770 = vmatprep.subr.mxu0 0.0
    %771 = vmatpush2.msra.mxu0 0.0
    %772 = vmatprep.subr.mxu0 0.0
    %773 = vmatpush2.msra.mxu0 0.0
    %774 = vmatprep.subr.mxu0 0.0
    %775 = vmatpush2.msra.mxu0 0.0
    %776 = vmatprep.subr.mxu0 0.0
    %777 = vmatpush2.msra.mxu0 0.0
    %778 = vmatprep.subr.mxu0 0.0
    %779 = vmatpush2.msra.mxu0 0.0
    %780 = vmatprep.subr.mxu0 0.0
    %781 = vmatpush2.msra.mxu0 0.0
    %782 = vmatprep.subr.mxu0 0.0
    %783 = vmatpush2.msra.mxu0 0.0
    %784 = vmatprep.subr.mxu0 0.0
    %785 = vmatpush2.msra.mxu0 0.0
    %786 = vmatprep.subr.mxu0 0.0
    %787 = vmatpush2.msra.mxu0 0.0
    %788 = vmatprep.subr.mxu0 0.0
    %789 = vmatpush2.msra.mxu0 0.0
    %790 = vmatprep.subr.mxu0 0.0
    %791 = vmatpush2.msra.mxu0 0.0
    %792 = vmatprep.subr.mxu0 0.0
    %793 = vmatpush2.msra.mxu0 0.0
    %794 = vmatprep.subr.mxu0 0.0
    %795 = vmatpush2.msra.mxu0 0.0
    %796 = vmatprep.mubr.f32.mxu0 0.0
    %v797 = vand.u32 %v177, 4294901760
    %798 = vmatmul.mubr.f32.gmra.mxu0 %v797
    %v799 = vpop.f32.mrf.mxu0
    %v800 = vadd.f32 %v718, %v799
    %v801 = vpop.f32.mrf.mxu0
    %v802 = vadd.f32 %v720, %v801
    %803 = vdwg.mxu0
    %804 = vmatprep.subr.mxu0 0.0
    %805 = vmatpush1.msra.mxu0 0.0
    %806 = vmatprep.subr.mxu0 0.0
    %807 = vmatpush1.msra.mxu0 0.0
    %808 = vmatprep.subr.mxu0 0.0
    %809 = vmatpush1.msra.mxu0 0.0
    %810 = vmatprep.subr.mxu0 0.0
    %811 = vmatpush1.msra.mxu0 0.0
    %812 = vmatprep.subr.mxu0 0.0
    %813 = vmatpush1.msra.mxu0 0.0
    %814 = vmatprep.subr.mxu0 0.0
    %815 = vmatpush1.msra.mxu0 0.0
    %816 = vmatprep.subr.mxu0 0.0
    %817 = vmatpush1.msra.mxu0 0.0
    %818 = vmatprep.subr.mxu0 0.0
    %819 = vmatpush1.msra.mxu0 0.0
    %820 = vmatprep.subr.mxu0 0.0
    %821 = vmatpush1.msra.mxu0 0.0
    %822 = vmatprep.subr.mxu0 0.0
    %823 = vmatpush1.msra.mxu0 0.0
    %824 = vmatprep.subr.mxu0 0.0
    %825 = vmatpush1.msra.mxu0 0.0
    %826 = vmatprep.subr.mxu0 0.0
    %827 = vmatpush1.msra.mxu0 0.0
    %828 = vmatprep.subr.mxu0 0.0
    %829 = vmatpush1.msra.mxu0 0.0
    %830 = vmatprep.subr.mxu0 0.0
    %831 = vmatpush1.msra.mxu0 0.0
    %832 = vmatprep.subr.mxu0 0.0
    %833 = vmatpush1.msra.mxu0 0.0
    %v834 = vand.u32 %v165, 4294901760
    %v835 = vsub.f32 %v165, %v834
    %836 = vmatprep.subr.mxu0 %v835
    %v837 = vand.u32 %v164, 4294901760
    %v838 = vsub.f32 %v164, %v837
    %839 = vmatpush1.msra.mxu0 %v838
    %840 = vmatprep.subr.mxu0 0.0
    %841 = vmatpush2.msra.mxu0 0.0
    %842 = vmatprep.subr.mxu0 0.0
    %843 = vmatpush2.msra.mxu0 0.0
    %844 = vmatprep.subr.mxu0 0.0
    %845 = vmatpush2.msra.mxu0 0.0
    %846 = vmatprep.subr.mxu0 0.0
    %847 = vmatpush2.msra.mxu0 0.0
    %848 = vmatprep.subr.mxu0 0.0
    %849 = vmatpush2.msra.mxu0 0.0
    %850 = vmatprep.subr.mxu0 0.0
    %851 = vmatpush2.msra.mxu0 0.0
    %852 = vmatprep.subr.mxu0 0.0
    %853 = vmatpush2.msra.mxu0 0.0
    %854 = vmatprep.subr.mxu0 0.0
    %855 = vmatpush2.msra.mxu0 0.0
    %856 = vmatprep.subr.mxu0 0.0
    %857 = vmatpush2.msra.mxu0 0.0
    %858 = vmatprep.subr.mxu0 0.0
    %859 = vmatpush2.msra.mxu0 0.0
    %860 = vmatprep.subr.mxu0 0.0
    %861 = vmatpush2.msra.mxu0 0.0
    %862 = vmatprep.subr.mxu0 0.0
    %863 = vmatpush2.msra.mxu0 0.0
    %864 = vmatprep.subr.mxu0 0.0
    %865 = vmatpush2.msra.mxu0 0.0
    %866 = vmatprep.subr.mxu0 0.0
    %867 = vmatpush2.msra.mxu0 0.0
    %868 = vmatprep.subr.mxu0 0.0
    %869 = vmatpush2.msra.mxu0 0.0
    %870 = vmatprep.subr.mxu0 0.0
    %871 = vmatpush2.msra.mxu0 0.0
    %872 = vmatprep.mubr.f32.mxu0 0.0
    %v873 = vand.u32 %v177, 4294901760
    %v874 = vsub.f32 %v177, %v873
    %875 = vmatmul.mubr.f32.gmra.mxu0 %v874
    %v876 = vpop.f32.mrf.mxu0
    %v877 = vadd.f32 %v800, %v876
    %v878 = vpop.f32.mrf.mxu0
    %v879 = vadd.f32 %v802, %v878
    %880 = vdwg.mxu0
    %881 = vmatprep.subr.mxu0 0.0
    %882 = vmatpush1.msra.mxu0 0.0
    %883 = vmatprep.subr.mxu0 0.0
    %884 = vmatpush1.msra.mxu0 0.0
    %885 = vmatprep.subr.mxu0 0.0
    %886 = vmatpush1.msra.mxu0 0.0
    %887 = vmatprep.subr.mxu0 0.0
    %888 = vmatpush1.msra.mxu0 0.0
    %889 = vmatprep.subr.mxu0 0.0
    %890 = vmatpush1.msra.mxu0 0.0
    %891 = vmatprep.subr.mxu0 0.0
    %892 = vmatpush1.msra.mxu0 0.0
    %893 = vmatprep.subr.mxu0 0.0
    %894 = vmatpush1.msra.mxu0 0.0
    %895 = vmatprep.subr.mxu0 0.0
    %896 = vmatpush1.msra.mxu0 0.0
    %897 = vmatprep.subr.mxu0 0.0
    %898 = vmatpush1.msra.mxu0 0.0
    %899 = vmatprep.subr.mxu0 0.0
    %900 = vmatpush1.msra.mxu0 0.0
    %901 = vmatprep.subr.mxu0 0.0
    %902 = vmatpush1.msra.mxu0 0.0
    %903 = vmatprep.subr.mxu0 0.0
    %904 = vmatpush1.msra.mxu0 0.0
    %905 = vmatprep.subr.mxu0 0.0
    %906 = vmatpush1.msra.mxu0 0.0
    %907 = vmatprep.subr.mxu0 0.0
    %908 = vmatpush1.msra.mxu0 0.0
    %909 = vmatprep.subr.mxu0 0.0
    %910 = vmatpush1.msra.mxu0 0.0
    %v911 = vand.u32 %v165, 4294901760
    %912 = vmatprep.subr.mxu0 %v911
    %v913 = vand.u32 %v164, 4294901760
    %914 = vmatpush1.msra.mxu0 %v913
    %915 = vmatprep.subr.mxu0 0.0
    %916 = vmatpush2.msra.mxu0 0.0
    %917 = vmatprep.subr.mxu0 0.0
    %918 = vmatpush2.msra.mxu0 0.0
    %919 = vmatprep.subr.mxu0 0.0
    %920 = vmatpush2.msra.mxu0 0.0
    %921 = vmatprep.subr.mxu0 0.0
    %922 = vmatpush2.msra.mxu0 0.0
    %923 = vmatprep.subr.mxu0 0.0
    %924 = vmatpush2.msra.mxu0 0.0
    %925 = vmatprep.subr.mxu0 0.0
    %926 = vmatpush2.msra.mxu0 0.0
    %927 = vmatprep.subr.mxu0 0.0
    %928 = vmatpush2.msra.mxu0 0.0
    %929 = vmatprep.subr.mxu0 0.0
    %930 = vmatpush2.msra.mxu0 0.0
    %931 = vmatprep.subr.mxu0 0.0
    %932 = vmatpush2.msra.mxu0 0.0
    %933 = vmatprep.subr.mxu0 0.0
    %934 = vmatpush2.msra.mxu0 0.0
    %935 = vmatprep.subr.mxu0 0.0
    %936 = vmatpush2.msra.mxu0 0.0
    %937 = vmatprep.subr.mxu0 0.0
    %938 = vmatpush2.msra.mxu0 0.0
    %939 = vmatprep.subr.mxu0 0.0
    %940 = vmatpush2.msra.mxu0 0.0
    %941 = vmatprep.subr.mxu0 0.0
    %942 = vmatpush2.msra.mxu0 0.0
    %943 = vmatprep.subr.mxu0 0.0
    %944 = vmatpush2.msra.mxu0 0.0
    %945 = vmatprep.subr.mxu0 0.0
    %946 = vmatpush2.msra.mxu0 0.0
    %947 = vmatprep.mubr.f32.mxu0 0.0
    %v948 = vand.u32 %v177, 4294901760
    %v949 = vsub.f32 %v177, %v948
    %v950 = vand.u32 %v949, 4294901760
    %951 = vmatmul.mubr.f32.gmra.mxu0 %v950
    %v952 = vpop.f32.mrf.mxu0
    %v953 = vadd.f32 %v877, %v952
    %v954 = vpop.f32.mrf.mxu0
    %v955 = vadd.f32 %v879, %v954
    %956 = vdwg.mxu0
    %957 = vmatprep.subr.mxu0 0.0
    %958 = vmatpush1.msra.mxu0 0.0
    %959 = vmatprep.subr.mxu0 0.0
    %960 = vmatpush1.msra.mxu0 0.0
    %961 = vmatprep.subr.mxu0 0.0
    %962 = vmatpush1.msra.mxu0 0.0
    %963 = vmatprep.subr.mxu0 0.0
    %964 = vmatpush1.msra.mxu0 0.0
    %965 = vmatprep.subr.mxu0 0.0
    %966 = vmatpush1.msra.mxu0 0.0
    %967 = vmatprep.subr.mxu0 0.0
    %968 = vmatpush1.msra.mxu0 0.0
    %969 = vmatprep.subr.mxu0 0.0
    %970 = vmatpush1.msra.mxu0 0.0
    %971 = vmatprep.subr.mxu0 0.0
    %972 = vmatpush1.msra.mxu0 0.0
    %973 = vmatprep.subr.mxu0 0.0
    %974 = vmatpush1.msra.mxu0 0.0
    %975 = vmatprep.subr.mxu0 0.0
    %976 = vmatpush1.msra.mxu0 0.0
    %977 = vmatprep.subr.mxu0 0.0
    %978 = vmatpush1.msra.mxu0 0.0
    %979 = vmatprep.subr.mxu0 0.0
    %980 = vmatpush1.msra.mxu0 0.0
    %981 = vmatprep.subr.mxu0 0.0
    %982 = vmatpush1.msra.mxu0 0.0
    %983 = vmatprep.subr.mxu0 0.0
    %984 = vmatpush1.msra.mxu0 0.0
    %985 = vmatprep.subr.mxu0 0.0
    %986 = vmatpush1.msra.mxu0 0.0
    %v987 = vand.u32 %v165, 4294901760
    %v988 = vsub.f32 %v165, %v987
    %v989 = vand.u32 %v988, 4294901760
    %990 = vmatprep.subr.mxu0 %v989
    %v991 = vand.u32 %v164, 4294901760
    %v992 = vsub.f32 %v164, %v991
    %v993 = vand.u32 %v992, 4294901760
    %994 = vmatpush1.msra.mxu0 %v993
    %995 = vmatprep.subr.mxu0 0.0
    %996 = vmatpush2.msra.mxu0 0.0
    %997 = vmatprep.subr.mxu0 0.0
    %998 = vmatpush2.msra.mxu0 0.0
    %999 = vmatprep.subr.mxu0 0.0
    %1000 = vmatpush2.msra.mxu0 0.0
    %1001 = vmatprep.subr.mxu0 0.0
    %1002 = vmatpush2.msra.mxu0 0.0
    %1003 = vmatprep.subr.mxu0 0.0
    %1004 = vmatpush2.msra.mxu0 0.0
    %1005 = vmatprep.subr.mxu0 0.0
    %1006 = vmatpush2.msra.mxu0 0.0
    %1007 = vmatprep.subr.mxu0 0.0
    %1008 = vmatpush2.msra.mxu0 0.0
    %1009 = vmatprep.subr.mxu0 0.0
    %1010 = vmatpush2.msra.mxu0 0.0
    %1011 = vmatprep.subr.mxu0 0.0
    %1012 = vmatpush2.msra.mxu0 0.0
    %1013 = vmatprep.subr.mxu0 0.0
    %1014 = vmatpush2.msra.mxu0 0.0
    %1015 = vmatprep.subr.mxu0 0.0
    %1016 = vmatpush2.msra.mxu0 0.0
    %1017 = vmatprep.subr.mxu0 0.0
    %1018 = vmatpush2.msra.mxu0 0.0
    %1019 = vmatprep.subr.mxu0 0.0
    %1020 = vmatpush2.msra.mxu0 0.0
    %1021 = vmatprep.subr.mxu0 0.0
    %1022 = vmatpush2.msra.mxu0 0.0
    %1023 = vmatprep.subr.mxu0 0.0
    %1024 = vmatpush2.msra.mxu0 0.0
    %1025 = vmatprep.subr.mxu0 0.0
    %1026 = vmatpush2.msra.mxu0 0.0
    %1027 = vmatprep.mubr.f32.mxu0 0.0
    %v1028 = vand.u32 %v177, 4294901760
    %1029 = vmatmul.mubr.f32.gmra.mxu0 %v1028
    %v1030 = vpop.f32.mrf.mxu0
    %v1031 = vadd.f32 %v953, %v1030
    %v1032 = vpop.f32.mrf.mxu0
    %v1033 = vadd.f32 %v955, %v1032
    %1034 = vdwg.mxu0
    %1035 = vmatprep.subr.mxu0 0.0
    %1036 = vmatpush1.msra.mxu0 0.0
    %1037 = vmatprep.subr.mxu0 0.0
    %1038 = vmatpush1.msra.mxu0 0.0
    %1039 = vmatprep.subr.mxu0 0.0
    %1040 = vmatpush1.msra.mxu0 0.0
    %1041 = vmatprep.subr.mxu0 0.0
    %1042 = vmatpush1.msra.mxu0 0.0
    %1043 = vmatprep.subr.mxu0 0.0
    %1044 = vmatpush1.msra.mxu0 0.0
    %1045 = vmatprep.subr.mxu0 0.0
    %1046 = vmatpush1.msra.mxu0 0.0
    %1047 = vmatprep.subr.mxu0 0.0
    %1048 = vmatpush1.msra.mxu0 0.0
    %1049 = vmatprep.subr.mxu0 0.0
    %1050 = vmatpush1.msra.mxu0 0.0
    %1051 = vmatprep.subr.mxu0 0.0
    %1052 = vmatpush1.msra.mxu0 0.0
    %1053 = vmatprep.subr.mxu0 0.0
    %1054 = vmatpush1.msra.mxu0 0.0
    %1055 = vmatprep.subr.mxu0 0.0
    %1056 = vmatpush1.msra.mxu0 0.0
    %1057 = vmatprep.subr.mxu0 0.0
    %1058 = vmatpush1.msra.mxu0 0.0
    %1059 = vmatprep.subr.mxu0 0.0
    %1060 = vmatpush1.msra.mxu0 0.0
    %1061 = vmatprep.subr.mxu0 0.0
    %1062 = vmatpush1.msra.mxu0 0.0
    %1063 = vmatprep.subr.mxu0 0.0
    %1064 = vmatpush1.msra.mxu0 0.0
    %v1065 = vand.u32 %v165, 4294901760
    %1066 = vmatprep.subr.mxu0 %v1065
    %v1067 = vand.u32 %v164, 4294901760
    %1068 = vmatpush1.msra.mxu0 %v1067
    %1069 = vmatprep.subr.mxu0 0.0
    %1070 = vmatpush2.msra.mxu0 0.0
    %1071 = vmatprep.subr.mxu0 0.0
    %1072 = vmatpush2.msra.mxu0 0.0
    %1073 = vmatprep.subr.mxu0 0.0
    %1074 = vmatpush2.msra.mxu0 0.0
    %1075 = vmatprep.subr.mxu0 0.0
    %1076 = vmatpush2.msra.mxu0 0.0
    %1077 = vmatprep.subr.mxu0 0.0
    %1078 = vmatpush2.msra.mxu0 0.0
    %1079 = vmatprep.subr.mxu0 0.0
    %1080 = vmatpush2.msra.mxu0 0.0
    %1081 = vmatprep.subr.mxu0 0.0
    %1082 = vmatpush2.msra.mxu0 0.0
    %1083 = vmatprep.subr.mxu0 0.0
    %1084 = vmatpush2.msra.mxu0 0.0
    %1085 = vmatprep.subr.mxu0 0.0
    %1086 = vmatpush2.msra.mxu0 0.0
    %1087 = vmatprep.subr.mxu0 0.0
    %1088 = vmatpush2.msra.mxu0 0.0
    %1089 = vmatprep.subr.mxu0 0.0
    %1090 = vmatpush2.msra.mxu0 0.0
    %1091 = vmatprep.subr.mxu0 0.0
    %1092 = vmatpush2.msra.mxu0 0.0
    %1093 = vmatprep.subr.mxu0 0.0
    %1094 = vmatpush2.msra.mxu0 0.0
    %1095 = vmatprep.subr.mxu0 0.0
    %1096 = vmatpush2.msra.mxu0 0.0
    %1097 = vmatprep.subr.mxu0 0.0
    %1098 = vmatpush2.msra.mxu0 0.0
    %1099 = vmatprep.subr.mxu0 0.0
    %1100 = vmatpush2.msra.mxu0 0.0
    %1101 = vmatprep.mubr.f32.mxu0 0.0
    %v1102 = vand.u32 %v177, 4294901760
    %1103 = vmatmul.mubr.f32.gmra.mxu0 %v1102
    %v1104 = vpop.f32.mrf.mxu0
    %v1105 = vadd.f32 %v1031, %v1104
    %v1106 = vpop.f32.mrf.mxu0
    %v1107 = vadd.f32 %v1033, %v1106
    %1108 = vdwg.mxu0
    %1109 = vmatprep.subr.mxu0 0.0
    %1110 = vmatpush1.msra.mxu0 0.0
    %1111 = vmatprep.subr.mxu0 0.0
    %1112 = vmatpush1.msra.mxu0 0.0
    %1113 = vmatprep.subr.mxu0 0.0
    %1114 = vmatpush1.msra.mxu0 0.0
    %1115 = vmatprep.subr.mxu0 0.0
    %1116 = vmatpush1.msra.mxu0 0.0
    %1117 = vmatprep.subr.mxu0 0.0
    %1118 = vmatpush1.msra.mxu0 0.0
    %1119 = vmatprep.subr.mxu0 0.0
    %1120 = vmatpush1.msra.mxu0 0.0
    %1121 = vmatprep.subr.mxu0 0.0
    %1122 = vmatpush1.msra.mxu0 0.0
    %1123 = vmatprep.subr.mxu0 0.0
    %1124 = vmatpush1.msra.mxu0 0.0
    %1125 = vmatprep.subr.mxu0 0.0
    %1126 = vmatpush1.msra.mxu0 0.0
    %1127 = vmatprep.subr.mxu0 0.0
    %1128 = vmatpush1.msra.mxu0 0.0
    %1129 = vmatprep.subr.mxu0 0.0
    %1130 = vmatpush1.msra.mxu0 0.0
    %1131 = vmatprep.subr.mxu0 0.0
    %1132 = vmatpush1.msra.mxu0 0.0
    %1133 = vmatprep.subr.mxu0 0.0
    %1134 = vmatpush1.msra.mxu0 0.0
    %1135 = vmatprep.subr.mxu0 0.0
    %1136 = vmatpush1.msra.mxu0 0.0
    %1137 = vmatprep.subr.mxu0 0.0
    %1138 = vmatpush1.msra.mxu0 0.0
    %v1139 = vand.u32 %v167, 4294901760
    %1140 = vmatprep.subr.mxu0 %v1139
    %v1141 = vand.u32 %v166, 4294901760
    %1142 = vmatpush1.msra.mxu0 %v1141
    %1143 = vmatprep.subr.mxu0 0.0
    %1144 = vmatpush2.msra.mxu0 0.0
    %1145 = vmatprep.subr.mxu0 0.0
    %1146 = vmatpush2.msra.mxu0 0.0
    %1147 = vmatprep.subr.mxu0 0.0
    %1148 = vmatpush2.msra.mxu0 0.0
    %1149 = vmatprep.subr.mxu0 0.0
    %1150 = vmatpush2.msra.mxu0 0.0
    %1151 = vmatprep.subr.mxu0 0.0
    %1152 = vmatpush2.msra.mxu0 0.0
    %1153 = vmatprep.subr.mxu0 0.0
    %1154 = vmatpush2.msra.mxu0 0.0
    %1155 = vmatprep.subr.mxu0 0.0
    %1156 = vmatpush2.msra.mxu0 0.0
    %1157 = vmatprep.subr.mxu0 0.0
    %1158 = vmatpush2.msra.mxu0 0.0
    %1159 = vmatprep.subr.mxu0 0.0
    %1160 = vmatpush2.msra.mxu0 0.0
    %1161 = vmatprep.subr.mxu0 0.0
    %1162 = vmatpush2.msra.mxu0 0.0
    %1163 = vmatprep.subr.mxu0 0.0
    %1164 = vmatpush2.msra.mxu0 0.0
    %1165 = vmatprep.subr.mxu0 0.0
    %1166 = vmatpush2.msra.mxu0 0.0
    %1167 = vmatprep.subr.mxu0 0.0
    %1168 = vmatpush2.msra.mxu0 0.0
    %1169 = vmatprep.subr.mxu0 0.0
    %1170 = vmatpush2.msra.mxu0 0.0
    %1171 = vmatprep.subr.mxu0 0.0
    %1172 = vmatpush2.msra.mxu0 0.0
    %1173 = vmatprep.subr.mxu0 0.0
    %1174 = vmatpush2.msra.mxu0 0.0
    %1175 = vmatprep.mubr.f32.mxu0 0.0
    %v1176 = vand.u32 %v177, 4294901760
    %v1177 = vsub.f32 %v177, %v1176
    %v1178 = vand.u32 %v1177, 4294901760
    %v1179 = vsub.f32 %v1177, %v1178
    %v1180 = vand.u32 %v1179, 4294901760
    %1181 = vmatmul.mubr.f32.gmra.mxu0 %v1180
    %v1182 = vpop.f32.mrf.mxu0
    %v1183 = vadd.f32 %v173, %v1182
    %v1184 = vpop.f32.mrf.mxu0
    %v1185 = vadd.f32 %v173, %v1184
    %1186 = vdwg.mxu0
    %1187 = vmatprep.subr.mxu0 0.0
    %1188 = vmatpush1.msra.mxu0 0.0
    %1189 = vmatprep.subr.mxu0 0.0
    %1190 = vmatpush1.msra.mxu0 0.0
    %1191 = vmatprep.subr.mxu0 0.0
    %1192 = vmatpush1.msra.mxu0 0.0
    %1193 = vmatprep.subr.mxu0 0.0
    %1194 = vmatpush1.msra.mxu0 0.0
    %1195 = vmatprep.subr.mxu0 0.0
    %1196 = vmatpush1.msra.mxu0 0.0
    %1197 = vmatprep.subr.mxu0 0.0
    %1198 = vmatpush1.msra.mxu0 0.0
    %1199 = vmatprep.subr.mxu0 0.0
    %1200 = vmatpush1.msra.mxu0 0.0
    %1201 = vmatprep.subr.mxu0 0.0
    %1202 = vmatpush1.msra.mxu0 0.0
    %1203 = vmatprep.subr.mxu0 0.0
    %1204 = vmatpush1.msra.mxu0 0.0
    %1205 = vmatprep.subr.mxu0 0.0
    %1206 = vmatpush1.msra.mxu0 0.0
    %1207 = vmatprep.subr.mxu0 0.0
    %1208 = vmatpush1.msra.mxu0 0.0
    %1209 = vmatprep.subr.mxu0 0.0
    %1210 = vmatpush1.msra.mxu0 0.0
    %1211 = vmatprep.subr.mxu0 0.0
    %1212 = vmatpush1.msra.mxu0 0.0
    %1213 = vmatprep.subr.mxu0 0.0
    %1214 = vmatpush1.msra.mxu0 0.0
    %1215 = vmatprep.subr.mxu0 0.0
    %1216 = vmatpush1.msra.mxu0 0.0
    %v1217 = vand.u32 %v167, 4294901760
    %v1218 = vsub.f32 %v167, %v1217
    %v1219 = vand.u32 %v1218, 4294901760
    %v1220 = vsub.f32 %v1218, %v1219
    %v1221 = vand.u32 %v1220, 4294901760
    %1222 = vmatprep.subr.mxu0 %v1221
    %v1223 = vand.u32 %v166, 4294901760
    %v1224 = vsub.f32 %v166, %v1223
    %v1225 = vand.u32 %v1224, 4294901760
    %v1226 = vsub.f32 %v1224, %v1225
    %v1227 = vand.u32 %v1226, 4294901760
    %1228 = vmatpush1.msra.mxu0 %v1227
    %1229 = vmatprep.subr.mxu0 0.0
    %1230 = vmatpush2.msra.mxu0 0.0
    %1231 = vmatprep.subr.mxu0 0.0
    %1232 = vmatpush2.msra.mxu0 0.0
    %1233 = vmatprep.subr.mxu0 0.0
    %1234 = vmatpush2.msra.mxu0 0.0
    %1235 = vmatprep.subr.mxu0 0.0
    %1236 = vmatpush2.msra.mxu0 0.0
    %1237 = vmatprep.subr.mxu0 0.0
    %1238 = vmatpush2.msra.mxu0 0.0
    %1239 = vmatprep.subr.mxu0 0.0
    %1240 = vmatpush2.msra.mxu0 0.0
    %1241 = vmatprep.subr.mxu0 0.0
    %1242 = vmatpush2.msra.mxu0 0.0
    %1243 = vmatprep.subr.mxu0 0.0
    %1244 = vmatpush2.msra.mxu0 0.0
    %1245 = vmatprep.subr.mxu0 0.0
    %1246 = vmatpush2.msra.mxu0 0.0
    %1247 = vmatprep.subr.mxu0 0.0
    %1248 = vmatpush2.msra.mxu0 0.0
    %1249 = vmatprep.subr.mxu0 0.0
    %1250 = vmatpush2.msra.mxu0 0.0
    %1251 = vmatprep.subr.mxu0 0.0
    %1252 = vmatpush2.msra.mxu0 0.0
    %1253 = vmatprep.subr.mxu0 0.0
    %1254 = vmatpush2.msra.mxu0 0.0
    %1255 = vmatprep.subr.mxu0 0.0
    %1256 = vmatpush2.msra.mxu0 0.0
    %1257 = vmatprep.subr.mxu0 0.0
    %1258 = vmatpush2.msra.mxu0 0.0
    %1259 = vmatprep.subr.mxu0 0.0
    %1260 = vmatpush2.msra.mxu0 0.0
    %1261 = vmatprep.mubr.f32.mxu0 0.0
    %v1262 = vand.u32 %v177, 4294901760
    %1263 = vmatmul.mubr.f32.gmra.mxu0 %v1262
    %v1264 = vpop.f32.mrf.mxu0
    %v1265 = vadd.f32 %v1183, %v1264
    %v1266 = vpop.f32.mrf.mxu0
    %v1267 = vadd.f32 %v1185, %v1266
    %1268 = vdwg.mxu0
    %1269 = vmatprep.subr.mxu0 0.0
    %1270 = vmatpush1.msra.mxu0 0.0
    %1271 = vmatprep.subr.mxu0 0.0
    %1272 = vmatpush1.msra.mxu0 0.0
    %1273 = vmatprep.subr.mxu0 0.0
    %1274 = vmatpush1.msra.mxu0 0.0
    %1275 = vmatprep.subr.mxu0 0.0
    %1276 = vmatpush1.msra.mxu0 0.0
    %1277 = vmatprep.subr.mxu0 0.0
    %1278 = vmatpush1.msra.mxu0 0.0
    %1279 = vmatprep.subr.mxu0 0.0
    %1280 = vmatpush1.msra.mxu0 0.0
    %1281 = vmatprep.subr.mxu0 0.0
    %1282 = vmatpush1.msra.mxu0 0.0
    %1283 = vmatprep.subr.mxu0 0.0
    %1284 = vmatpush1.msra.mxu0 0.0
    %1285 = vmatprep.subr.mxu0 0.0
    %1286 = vmatpush1.msra.mxu0 0.0
    %1287 = vmatprep.subr.mxu0 0.0
    %1288 = vmatpush1.msra.mxu0 0.0
    %1289 = vmatprep.subr.mxu0 0.0
    %1290 = vmatpush1.msra.mxu0 0.0
    %1291 = vmatprep.subr.mxu0 0.0
    %1292 = vmatpush1.msra.mxu0 0.0
    %1293 = vmatprep.subr.mxu0 0.0
    %1294 = vmatpush1.msra.mxu0 0.0
    %1295 = vmatprep.subr.mxu0 0.0
    %1296 = vmatpush1.msra.mxu0 0.0
    %1297 = vmatprep.subr.mxu0 0.0
    %1298 = vmatpush1.msra.mxu0 0.0
    %v1299 = vand.u32 %v167, 4294901760
    %v1300 = vsub.f32 %v167, %v1299
    %1301 = vmatprep.subr.mxu0 %v1300
    %v1302 = vand.u32 %v166, 4294901760
    %v1303 = vsub.f32 %v166, %v1302
    %1304 = vmatpush1.msra.mxu0 %v1303
    %1305 = vmatprep.subr.mxu0 0.0
    %1306 = vmatpush2.msra.mxu0 0.0
    %1307 = vmatprep.subr.mxu0 0.0
    %1308 = vmatpush2.msra.mxu0 0.0
    %1309 = vmatprep.subr.mxu0 0.0
    %1310 = vmatpush2.msra.mxu0 0.0
    %1311 = vmatprep.subr.mxu0 0.0
    %1312 = vmatpush2.msra.mxu0 0.0
    %1313 = vmatprep.subr.mxu0 0.0
    %1314 = vmatpush2.msra.mxu0 0.0
    %1315 = vmatprep.subr.mxu0 0.0
    %1316 = vmatpush2.msra.mxu0 0.0
    %1317 = vmatprep.subr.mxu0 0.0
    %1318 = vmatpush2.msra.mxu0 0.0
    %1319 = vmatprep.subr.mxu0 0.0
    %1320 = vmatpush2.msra.mxu0 0.0
    %1321 = vmatprep.subr.mxu0 0.0
    %1322 = vmatpush2.msra.mxu0 0.0
    %1323 = vmatprep.subr.mxu0 0.0
    %1324 = vmatpush2.msra.mxu0 0.0
    %1325 = vmatprep.subr.mxu0 0.0
    %1326 = vmatpush2.msra.mxu0 0.0
    %1327 = vmatprep.subr.mxu0 0.0
    %1328 = vmatpush2.msra.mxu0 0.0
    %1329 = vmatprep.subr.mxu0 0.0
    %1330 = vmatpush2.msra.mxu0 0.0
    %1331 = vmatprep.subr.mxu0 0.0
    %1332 = vmatpush2.msra.mxu0 0.0
    %1333 = vmatprep.subr.mxu0 0.0
    %1334 = vmatpush2.msra.mxu0 0.0
    %1335 = vmatprep.subr.mxu0 0.0
    %1336 = vmatpush2.msra.mxu0 0.0
    %1337 = vmatprep.mubr.f32.mxu0 0.0
    %v1338 = vand.u32 %v177, 4294901760
    %v1339 = vsub.f32 %v177, %v1338
    %1340 = vmatmul.mubr.f32.gmra.mxu0 %v1339
    %v1341 = vpop.f32.mrf.mxu0
    %v1342 = vadd.f32 %v1265, %v1341
    %v1343 = vpop.f32.mrf.mxu0
    %v1344 = vadd.f32 %v1267, %v1343
    %1345 = vdwg.mxu0
    %1346 = vmatprep.subr.mxu0 0.0
    %1347 = vmatpush1.msra.mxu0 0.0
    %1348 = vmatprep.subr.mxu0 0.0
    %1349 = vmatpush1.msra.mxu0 0.0
    %1350 = vmatprep.subr.mxu0 0.0
    %1351 = vmatpush1.msra.mxu0 0.0
    %1352 = vmatprep.subr.mxu0 0.0
    %1353 = vmatpush1.msra.mxu0 0.0
    %1354 = vmatprep.subr.mxu0 0.0
    %1355 = vmatpush1.msra.mxu0 0.0
    %1356 = vmatprep.subr.mxu0 0.0
    %1357 = vmatpush1.msra.mxu0 0.0
    %1358 = vmatprep.subr.mxu0 0.0
    %1359 = vmatpush1.msra.mxu0 0.0
    %1360 = vmatprep.subr.mxu0 0.0
    %1361 = vmatpush1.msra.mxu0 0.0
    %1362 = vmatprep.subr.mxu0 0.0
    %1363 = vmatpush1.msra.mxu0 0.0
    %1364 = vmatprep.subr.mxu0 0.0
    %1365 = vmatpush1.msra.mxu0 0.0
    %1366 = vmatprep.subr.mxu0 0.0
    %1367 = vmatpush1.msra.mxu0 0.0
    %1368 = vmatprep.subr.mxu0 0.0
    %1369 = vmatpush1.msra.mxu0 0.0
    %1370 = vmatprep.subr.mxu0 0.0
    %1371 = vmatpush1.msra.mxu0 0.0
    %1372 = vmatprep.subr.mxu0 0.0
    %1373 = vmatpush1.msra.mxu0 0.0
    %1374 = vmatprep.subr.mxu0 0.0
    %1375 = vmatpush1.msra.mxu0 0.0
    %v1376 = vand.u32 %v167, 4294901760
    %1377 = vmatprep.subr.mxu0 %v1376
    %v1378 = vand.u32 %v166, 4294901760
    %1379 = vmatpush1.msra.mxu0 %v1378
    %1380 = vmatprep.subr.mxu0 0.0
    %1381 = vmatpush2.msra.mxu0 0.0
    %1382 = vmatprep.subr.mxu0 0.0
    %1383 = vmatpush2.msra.mxu0 0.0
    %1384 = vmatprep.subr.mxu0 0.0
    %1385 = vmatpush2.msra.mxu0 0.0
    %1386 = vmatprep.subr.mxu0 0.0
    %1387 = vmatpush2.msra.mxu0 0.0
    %1388 = vmatprep.subr.mxu0 0.0
    %1389 = vmatpush2.msra.mxu0 0.0
    %1390 = vmatprep.subr.mxu0 0.0
    %1391 = vmatpush2.msra.mxu0 0.0
    %1392 = vmatprep.subr.mxu0 0.0
    %1393 = vmatpush2.msra.mxu0 0.0
    %1394 = vmatprep.subr.mxu0 0.0
    %1395 = vmatpush2.msra.mxu0 0.0
    %1396 = vmatprep.subr.mxu0 0.0
    %1397 = vmatpush2.msra.mxu0 0.0
    %1398 = vmatprep.subr.mxu0 0.0
    %1399 = vmatpush2.msra.mxu0 0.0
    %1400 = vmatprep.subr.mxu0 0.0
    %1401 = vmatpush2.msra.mxu0 0.0
    %1402 = vmatprep.subr.mxu0 0.0
    %1403 = vmatpush2.msra.mxu0 0.0
    %1404 = vmatprep.subr.mxu0 0.0
    %1405 = vmatpush2.msra.mxu0 0.0
    %1406 = vmatprep.subr.mxu0 0.0
    %1407 = vmatpush2.msra.mxu0 0.0
    %1408 = vmatprep.subr.mxu0 0.0
    %1409 = vmatpush2.msra.mxu0 0.0
    %1410 = vmatprep.subr.mxu0 0.0
    %1411 = vmatpush2.msra.mxu0 0.0
    %1412 = vmatprep.mubr.f32.mxu0 0.0
    %v1413 = vand.u32 %v177, 4294901760
    %v1414 = vsub.f32 %v177, %v1413
    %v1415 = vand.u32 %v1414, 4294901760
    %1416 = vmatmul.mubr.f32.gmra.mxu0 %v1415
    %v1417 = vpop.f32.mrf.mxu0
    %v1418 = vadd.f32 %v1342, %v1417
    %v1419 = vpop.f32.mrf.mxu0
    %v1420 = vadd.f32 %v1344, %v1419
    %1421 = vdwg.mxu0
    %1422 = vmatprep.subr.mxu0 0.0
    %1423 = vmatpush1.msra.mxu0 0.0
    %1424 = vmatprep.subr.mxu0 0.0
    %1425 = vmatpush1.msra.mxu0 0.0
    %1426 = vmatprep.subr.mxu0 0.0
    %1427 = vmatpush1.msra.mxu0 0.0
    %1428 = vmatprep.subr.mxu0 0.0
    %1429 = vmatpush1.msra.mxu0 0.0
    %1430 = vmatprep.subr.mxu0 0.0
    %1431 = vmatpush1.msra.mxu0 0.0
    %1432 = vmatprep.subr.mxu0 0.0
    %1433 = vmatpush1.msra.mxu0 0.0
    %1434 = vmatprep.subr.mxu0 0.0
    %1435 = vmatpush1.msra.mxu0 0.0
    %1436 = vmatprep.subr.mxu0 0.0
    %1437 = vmatpush1.msra.mxu0 0.0
    %1438 = vmatprep.subr.mxu0 0.0
    %1439 = vmatpush1.msra.mxu0 0.0
    %1440 = vmatprep.subr.mxu0 0.0
    %1441 = vmatpush1.msra.mxu0 0.0
    %1442 = vmatprep.subr.mxu0 0.0
    %1443 = vmatpush1.msra.mxu0 0.0
    %1444 = vmatprep.subr.mxu0 0.0
    %1445 = vmatpush1.msra.mxu0 0.0
    %1446 = vmatprep.subr.mxu0 0.0
    %1447 = vmatpush1.msra.mxu0 0.0
    %1448 = vmatprep.subr.mxu0 0.0
    %1449 = vmatpush1.msra.mxu0 0.0
    %1450 = vmatprep.subr.mxu0 0.0
    %1451 = vmatpush1.msra.mxu0 0.0
    %v1452 = vand.u32 %v167, 4294901760
    %v1453 = vsub.f32 %v167, %v1452
    %v1454 = vand.u32 %v1453, 4294901760
    %1455 = vmatprep.subr.mxu0 %v1454
    %v1456 = vand.u32 %v166, 4294901760
    %v1457 = vsub.f32 %v166, %v1456
    %v1458 = vand.u32 %v1457, 4294901760
    %1459 = vmatpush1.msra.mxu0 %v1458
    %1460 = vmatprep.subr.mxu0 0.0
    %1461 = vmatpush2.msra.mxu0 0.0
    %1462 = vmatprep.subr.mxu0 0.0
    %1463 = vmatpush2.msra.mxu0 0.0
    %1464 = vmatprep.subr.mxu0 0.0
    %1465 = vmatpush2.msra.mxu0 0.0
    %1466 = vmatprep.subr.mxu0 0.0
    %1467 = vmatpush2.msra.mxu0 0.0
    %1468 = vmatprep.subr.mxu0 0.0
    %1469 = vmatpush2.msra.mxu0 0.0
    %1470 = vmatprep.subr.mxu0 0.0
    %1471 = vmatpush2.msra.mxu0 0.0
    %1472 = vmatprep.subr.mxu0 0.0
    %1473 = vmatpush2.msra.mxu0 0.0
    %1474 = vmatprep.subr.mxu0 0.0
    %1475 = vmatpush2.msra.mxu0 0.0
    %1476 = vmatprep.subr.mxu0 0.0
    %1477 = vmatpush2.msra.mxu0 0.0
    %1478 = vmatprep.subr.mxu0 0.0
    %1479 = vmatpush2.msra.mxu0 0.0
    %1480 = vmatprep.subr.mxu0 0.0
    %1481 = vmatpush2.msra.mxu0 0.0
    %1482 = vmatprep.subr.mxu0 0.0
    %1483 = vmatpush2.msra.mxu0 0.0
    %1484 = vmatprep.subr.mxu0 0.0
    %1485 = vmatpush2.msra.mxu0 0.0
    %1486 = vmatprep.subr.mxu0 0.0
    %1487 = vmatpush2.msra.mxu0 0.0
    %1488 = vmatprep.subr.mxu0 0.0
    %1489 = vmatpush2.msra.mxu0 0.0
    %1490 = vmatprep.subr.mxu0 0.0
    %1491 = vmatpush2.msra.mxu0 0.0
    %1492 = vmatprep.mubr.f32.mxu0 0.0
    %v1493 = vand.u32 %v177, 4294901760
    %1494 = vmatmul.mubr.f32.gmra.mxu0 %v1493
    %v1495 = vpop.f32.mrf.mxu0
    %v1496 = vadd.f32 %v1418, %v1495
    %v1497 = vpop.f32.mrf.mxu0
    %v1498 = vadd.f32 %v1420, %v1497
    %1499 = vdwg.mxu0
    %1500 = vmatprep.subr.mxu0 0.0
    %1501 = vmatpush1.msra.mxu0 0.0
    %1502 = vmatprep.subr.mxu0 0.0
    %1503 = vmatpush1.msra.mxu0 0.0
    %1504 = vmatprep.subr.mxu0 0.0
    %1505 = vmatpush1.msra.mxu0 0.0
    %1506 = vmatprep.subr.mxu0 0.0
    %1507 = vmatpush1.msra.mxu0 0.0
    %1508 = vmatprep.subr.mxu0 0.0
    %1509 = vmatpush1.msra.mxu0 0.0
    %1510 = vmatprep.subr.mxu0 0.0
    %1511 = vmatpush1.msra.mxu0 0.0
    %1512 = vmatprep.subr.mxu0 0.0
    %1513 = vmatpush1.msra.mxu0 0.0
    %1514 = vmatprep.subr.mxu0 0.0
    %1515 = vmatpush1.msra.mxu0 0.0
    %1516 = vmatprep.subr.mxu0 0.0
    %1517 = vmatpush1.msra.mxu0 0.0
    %1518 = vmatprep.subr.mxu0 0.0
    %1519 = vmatpush1.msra.mxu0 0.0
    %1520 = vmatprep.subr.mxu0 0.0
    %1521 = vmatpush1.msra.mxu0 0.0
    %1522 = vmatprep.subr.mxu0 0.0
    %1523 = vmatpush1.msra.mxu0 0.0
    %1524 = vmatprep.subr.mxu0 0.0
    %1525 = vmatpush1.msra.mxu0 0.0
    %1526 = vmatprep.subr.mxu0 0.0
    %1527 = vmatpush1.msra.mxu0 0.0
    %1528 = vmatprep.subr.mxu0 0.0
    %1529 = vmatpush1.msra.mxu0 0.0
    %v1530 = vand.u32 %v167, 4294901760
    %1531 = vmatprep.subr.mxu0 %v1530
    %v1532 = vand.u32 %v166, 4294901760
    %1533 = vmatpush1.msra.mxu0 %v1532
    %1534 = vmatprep.subr.mxu0 0.0
    %1535 = vmatpush2.msra.mxu0 0.0
    %1536 = vmatprep.subr.mxu0 0.0
    %1537 = vmatpush2.msra.mxu0 0.0
    %1538 = vmatprep.subr.mxu0 0.0
    %1539 = vmatpush2.msra.mxu0 0.0
    %1540 = vmatprep.subr.mxu0 0.0
    %1541 = vmatpush2.msra.mxu0 0.0
    %1542 = vmatprep.subr.mxu0 0.0
    %1543 = vmatpush2.msra.mxu0 0.0
    %1544 = vmatprep.subr.mxu0 0.0
    %1545 = vmatpush2.msra.mxu0 0.0
    %1546 = vmatprep.subr.mxu0 0.0
    %1547 = vmatpush2.msra.mxu0 0.0
    %1548 = vmatprep.subr.mxu0 0.0
    %1549 = vmatpush2.msra.mxu0 0.0
    %1550 = vmatprep.subr.mxu0 0.0
    %1551 = vmatpush2.msra.mxu0 0.0
    %1552 = vmatprep.subr.mxu0 0.0
    %1553 = vmatpush2.msra.mxu0 0.0
    %1554 = vmatprep.subr.mxu0 0.0
    %1555 = vmatpush2.msra.mxu0 0.0
    %1556 = vmatprep.subr.mxu0 0.0
    %1557 = vmatpush2.msra.mxu0 0.0
    %1558 = vmatprep.subr.mxu0 0.0
    %1559 = vmatpush2.msra.mxu0 0.0
    %1560 = vmatprep.subr.mxu0 0.0
    %1561 = vmatpush2.msra.mxu0 0.0
    %1562 = vmatprep.subr.mxu0 0.0
    %1563 = vmatpush2.msra.mxu0 0.0
    %1564 = vmatprep.subr.mxu0 0.0
    %1565 = vmatpush2.msra.mxu0 0.0
    %1566 = vmatprep.mubr.f32.mxu0 0.0
    %v1567 = vand.u32 %v177, 4294901760
    %1568 = vmatmul.mubr.f32.gmra.mxu0 %v1567
    %v1569 = vpop.f32.mrf.mxu0
    %v1570 = vadd.f32 %v1496, %v1569
    %v1571 = vpop.f32.mrf.mxu0
    %v1572 = vadd.f32 %v1498, %v1571
    %1573 = vdwg.mxu0
    %1574 = vmatprep.subr.mxu0 0.0
    %1575 = vmatpush1.msra.mxu0 0.0
    %1576 = vmatprep.subr.mxu0 0.0
    %1577 = vmatpush1.msra.mxu0 0.0
    %1578 = vmatprep.subr.mxu0 0.0
    %1579 = vmatpush1.msra.mxu0 0.0
    %1580 = vmatprep.subr.mxu0 0.0
    %1581 = vmatpush1.msra.mxu0 0.0
    %1582 = vmatprep.subr.mxu0 0.0
    %1583 = vmatpush1.msra.mxu0 0.0
    %1584 = vmatprep.subr.mxu0 0.0
    %1585 = vmatpush1.msra.mxu0 0.0
    %1586 = vmatprep.subr.mxu0 0.0
    %1587 = vmatpush1.msra.mxu0 0.0
    %1588 = vmatprep.subr.mxu0 0.0
    %1589 = vmatpush1.msra.mxu0 0.0
    %1590 = vmatprep.subr.mxu0 0.0
    %1591 = vmatpush1.msra.mxu0 0.0
    %1592 = vmatprep.subr.mxu0 0.0
    %1593 = vmatpush1.msra.mxu0 0.0
    %1594 = vmatprep.subr.mxu0 0.0
    %1595 = vmatpush1.msra.mxu0 0.0
    %1596 = vmatprep.subr.mxu0 0.0
    %1597 = vmatpush1.msra.mxu0 0.0
    %1598 = vmatprep.subr.mxu0 0.0
    %1599 = vmatpush1.msra.mxu0 0.0
    %1600 = vmatprep.subr.mxu0 0.0
    %1601 = vmatpush1.msra.mxu0 0.0
    %1602 = vmatprep.subr.mxu0 0.0
    %1603 = vmatpush1.msra.mxu0 0.0
    %v1604 = vand.u32 %v169, 4294901760
    %1605 = vmatprep.subr.mxu0 %v1604
    %v1606 = vand.u32 %v168, 4294901760
    %1607 = vmatpush1.msra.mxu0 %v1606
    %1608 = vmatprep.subr.mxu0 0.0
    %1609 = vmatpush2.msra.mxu0 0.0
    %1610 = vmatprep.subr.mxu0 0.0
    %1611 = vmatpush2.msra.mxu0 0.0
    %1612 = vmatprep.subr.mxu0 0.0
    %1613 = vmatpush2.msra.mxu0 0.0
    %1614 = vmatprep.subr.mxu0 0.0
    %1615 = vmatpush2.msra.mxu0 0.0
    %1616 = vmatprep.subr.mxu0 0.0
    %1617 = vmatpush2.msra.mxu0 0.0
    %1618 = vmatprep.subr.mxu0 0.0
    %1619 = vmatpush2.msra.mxu0 0.0
    %1620 = vmatprep.subr.mxu0 0.0
    %1621 = vmatpush2.msra.mxu0 0.0
    %1622 = vmatprep.subr.mxu0 0.0
    %1623 = vmatpush2.msra.mxu0 0.0
    %1624 = vmatprep.subr.mxu0 0.0
    %1625 = vmatpush2.msra.mxu0 0.0
    %1626 = vmatprep.subr.mxu0 0.0
    %1627 = vmatpush2.msra.mxu0 0.0
    %1628 = vmatprep.subr.mxu0 0.0
    %1629 = vmatpush2.msra.mxu0 0.0
    %1630 = vmatprep.subr.mxu0 0.0
    %1631 = vmatpush2.msra.mxu0 0.0
    %1632 = vmatprep.subr.mxu0 0.0
    %1633 = vmatpush2.msra.mxu0 0.0
    %1634 = vmatprep.subr.mxu0 0.0
    %1635 = vmatpush2.msra.mxu0 0.0
    %1636 = vmatprep.subr.mxu0 0.0
    %1637 = vmatpush2.msra.mxu0 0.0
    %1638 = vmatprep.subr.mxu0 0.0
    %1639 = vmatpush2.msra.mxu0 0.0
    %1640 = vmatprep.mubr.f32.mxu0 0.0
    %v1641 = vand.u32 %v177, 4294901760
    %v1642 = vsub.f32 %v177, %v1641
    %v1643 = vand.u32 %v1642, 4294901760
    %v1644 = vsub.f32 %v1642, %v1643
    %v1645 = vand.u32 %v1644, 4294901760
    %1646 = vmatmul.mubr.f32.gmra.mxu0 %v1645
    %v1647 = vpop.f32.mrf.mxu0
    %v1648 = vadd.f32 %v173, %v1647
    %v1649 = vpop.f32.mrf.mxu0
    %v1650 = vadd.f32 %v173, %v1649
    %1651 = vdwg.mxu0
    %1652 = vmatprep.subr.mxu0 0.0
    %1653 = vmatpush1.msra.mxu0 0.0
    %1654 = vmatprep.subr.mxu0 0.0
    %1655 = vmatpush1.msra.mxu0 0.0
    %1656 = vmatprep.subr.mxu0 0.0
    %1657 = vmatpush1.msra.mxu0 0.0
    %1658 = vmatprep.subr.mxu0 0.0
    %1659 = vmatpush1.msra.mxu0 0.0
    %1660 = vmatprep.subr.mxu0 0.0
    %1661 = vmatpush1.msra.mxu0 0.0
    %1662 = vmatprep.subr.mxu0 0.0
    %1663 = vmatpush1.msra.mxu0 0.0
    %1664 = vmatprep.subr.mxu0 0.0
    %1665 = vmatpush1.msra.mxu0 0.0
    %1666 = vmatprep.subr.mxu0 0.0
    %1667 = vmatpush1.msra.mxu0 0.0
    %1668 = vmatprep.subr.mxu0 0.0
    %1669 = vmatpush1.msra.mxu0 0.0
    %1670 = vmatprep.subr.mxu0 0.0
    %1671 = vmatpush1.msra.mxu0 0.0
    %1672 = vmatprep.subr.mxu0 0.0
    %1673 = vmatpush1.msra.mxu0 0.0
    %1674 = vmatprep.subr.mxu0 0.0
    %1675 = vmatpush1.msra.mxu0 0.0
    %1676 = vmatprep.subr.mxu0 0.0
    %1677 = vmatpush1.msra.mxu0 0.0
    %1678 = vmatprep.subr.mxu0 0.0
    %1679 = vmatpush1.msra.mxu0 0.0
    %1680 = vmatprep.subr.mxu0 0.0
    %1681 = vmatpush1.msra.mxu0 0.0
    %v1682 = vand.u32 %v169, 4294901760
    %v1683 = vsub.f32 %v169, %v1682
    %v1684 = vand.u32 %v1683, 4294901760
    %v1685 = vsub.f32 %v1683, %v1684
    %v1686 = vand.u32 %v1685, 4294901760
    %1687 = vmatprep.subr.mxu0 %v1686
    %v1688 = vand.u32 %v168, 4294901760
    %v1689 = vsub.f32 %v168, %v1688
    %v1690 = vand.u32 %v1689, 4294901760
    %v1691 = vsub.f32 %v1689, %v1690
    %v1692 = vand.u32 %v1691, 4294901760
    %1693 = vmatpush1.msra.mxu0 %v1692
    %1694 = vmatprep.subr.mxu0 0.0
    %1695 = vmatpush2.msra.mxu0 0.0
    %1696 = vmatprep.subr.mxu0 0.0
    %1697 = vmatpush2.msra.mxu0 0.0
    %1698 = vmatprep.subr.mxu0 0.0
    %1699 = vmatpush2.msra.mxu0 0.0
    %1700 = vmatprep.subr.mxu0 0.0
    %1701 = vmatpush2.msra.mxu0 0.0
    %1702 = vmatprep.subr.mxu0 0.0
    %1703 = vmatpush2.msra.mxu0 0.0
    %1704 = vmatprep.subr.mxu0 0.0
    %1705 = vmatpush2.msra.mxu0 0.0
    %1706 = vmatprep.subr.mxu0 0.0
    %1707 = vmatpush2.msra.mxu0 0.0
    %1708 = vmatprep.subr.mxu0 0.0
    %1709 = vmatpush2.msra.mxu0 0.0
    %1710 = vmatprep.subr.mxu0 0.0
    %1711 = vmatpush2.msra.mxu0 0.0
    %1712 = vmatprep.subr.mxu0 0.0
    %1713 = vmatpush2.msra.mxu0 0.0
    %1714 = vmatprep.subr.mxu0 0.0
    %1715 = vmatpush2.msra.mxu0 0.0
    %1716 = vmatprep.subr.mxu0 0.0
    %1717 = vmatpush2.msra.mxu0 0.0
    %1718 = vmatprep.subr.mxu0 0.0
    %1719 = vmatpush2.msra.mxu0 0.0
    %1720 = vmatprep.subr.mxu0 0.0
    %1721 = vmatpush2.msra.mxu0 0.0
    %1722 = vmatprep.subr.mxu0 0.0
    %1723 = vmatpush2.msra.mxu0 0.0
    %1724 = vmatprep.subr.mxu0 0.0
    %1725 = vmatpush2.msra.mxu0 0.0
    %1726 = vmatprep.mubr.f32.mxu0 0.0
    %v1727 = vand.u32 %v177, 4294901760
    %1728 = vmatmul.mubr.f32.gmra.mxu0 %v1727
    %v1729 = vpop.f32.mrf.mxu0
    %v1730 = vadd.f32 %v1648, %v1729
    %v1731 = vpop.f32.mrf.mxu0
    %v1732 = vadd.f32 %v1650, %v1731
    %1733 = vdwg.mxu0
    %1734 = vmatprep.subr.mxu0 0.0
    %1735 = vmatpush1.msra.mxu0 0.0
    %1736 = vmatprep.subr.mxu0 0.0
    %1737 = vmatpush1.msra.mxu0 0.0
    %1738 = vmatprep.subr.mxu0 0.0
    %1739 = vmatpush1.msra.mxu0 0.0
    %1740 = vmatprep.subr.mxu0 0.0
    %1741 = vmatpush1.msra.mxu0 0.0
    %1742 = vmatprep.subr.mxu0 0.0
    %1743 = vmatpush1.msra.mxu0 0.0
    %1744 = vmatprep.subr.mxu0 0.0
    %1745 = vmatpush1.msra.mxu0 0.0
    %1746 = vmatprep.subr.mxu0 0.0
    %1747 = vmatpush1.msra.mxu0 0.0
    %1748 = vmatprep.subr.mxu0 0.0
    %1749 = vmatpush1.msra.mxu0 0.0
    %1750 = vmatprep.subr.mxu0 0.0
    %1751 = vmatpush1.msra.mxu0 0.0
    %1752 = vmatprep.subr.mxu0 0.0
    %1753 = vmatpush1.msra.mxu0 0.0
    %1754 = vmatprep.subr.mxu0 0.0
    %1755 = vmatpush1.msra.mxu0 0.0
    %1756 = vmatprep.subr.mxu0 0.0
    %1757 = vmatpush1.msra.mxu0 0.0
    %1758 = vmatprep.subr.mxu0 0.0
    %1759 = vmatpush1.msra.mxu0 0.0
    %1760 = vmatprep.subr.mxu0 0.0
    %1761 = vmatpush1.msra.mxu0 0.0
    %1762 = vmatprep.subr.mxu0 0.0
    %1763 = vmatpush1.msra.mxu0 0.0
    %v1764 = vand.u32 %v169, 4294901760
    %v1765 = vsub.f32 %v169, %v1764
    %1766 = vmatprep.subr.mxu0 %v1765
    %v1767 = vand.u32 %v168, 4294901760
    %v1768 = vsub.f32 %v168, %v1767
    %1769 = vmatpush1.msra.mxu0 %v1768
    %1770 = vmatprep.subr.mxu0 0.0
    %1771 = vmatpush2.msra.mxu0 0.0
    %1772 = vmatprep.subr.mxu0 0.0
    %1773 = vmatpush2.msra.mxu0 0.0
    %1774 = vmatprep.subr.mxu0 0.0
    %1775 = vmatpush2.msra.mxu0 0.0
    %1776 = vmatprep.subr.mxu0 0.0
    %1777 = vmatpush2.msra.mxu0 0.0
    %1778 = vmatprep.subr.mxu0 0.0
    %1779 = vmatpush2.msra.mxu0 0.0
    %1780 = vmatprep.subr.mxu0 0.0
    %1781 = vmatpush2.msra.mxu0 0.0
    %1782 = vmatprep.subr.mxu0 0.0
    %1783 = vmatpush2.msra.mxu0 0.0
    %1784 = vmatprep.subr.mxu0 0.0
    %1785 = vmatpush2.msra.mxu0 0.0
    %1786 = vmatprep.subr.mxu0 0.0
    %1787 = vmatpush2.msra.mxu0 0.0
    %1788 = vmatprep.subr.mxu0 0.0
    %1789 = vmatpush2.msra.mxu0 0.0
    %1790 = vmatprep.subr.mxu0 0.0
    %1791 = vmatpush2.msra.mxu0 0.0
    %1792 = vmatprep.subr.mxu0 0.0
    %1793 = vmatpush2.msra.mxu0 0.0
    %1794 = vmatprep.subr.mxu0 0.0
    %1795 = vmatpush2.msra.mxu0 0.0
    %1796 = vmatprep.subr.mxu0 0.0
    %1797 = vmatpush2.msra.mxu0 0.0
    %1798 = vmatprep.subr.mxu0 0.0
    %1799 = vmatpush2.msra.mxu0 0.0
    %1800 = vmatprep.subr.mxu0 0.0
    %1801 = vmatpush2.msra.mxu0 0.0
    %1802 = vmatprep.mubr.f32.mxu0 0.0
    %v1803 = vand.u32 %v177, 4294901760
    %v1804 = vsub.f32 %v177, %v1803
    %1805 = vmatmul.mubr.f32.gmra.mxu0 %v1804
    %v1806 = vpop.f32.mrf.mxu0
    %v1807 = vadd.f32 %v1730, %v1806
    %v1808 = vpop.f32.mrf.mxu0
    %v1809 = vadd.f32 %v1732, %v1808
    %1810 = vdwg.mxu0
    %1811 = vmatprep.subr.mxu0 0.0
    %1812 = vmatpush1.msra.mxu0 0.0
    %1813 = vmatprep.subr.mxu0 0.0
    %1814 = vmatpush1.msra.mxu0 0.0
    %1815 = vmatprep.subr.mxu0 0.0
    %1816 = vmatpush1.msra.mxu0 0.0
    %1817 = vmatprep.subr.mxu0 0.0
    %1818 = vmatpush1.msra.mxu0 0.0
    %1819 = vmatprep.subr.mxu0 0.0
    %1820 = vmatpush1.msra.mxu0 0.0
    %1821 = vmatprep.subr.mxu0 0.0
    %1822 = vmatpush1.msra.mxu0 0.0
    %1823 = vmatprep.subr.mxu0 0.0
    %1824 = vmatpush1.msra.mxu0 0.0
    %1825 = vmatprep.subr.mxu0 0.0
    %1826 = vmatpush1.msra.mxu0 0.0
    %1827 = vmatprep.subr.mxu0 0.0
    %1828 = vmatpush1.msra.mxu0 0.0
    %1829 = vmatprep.subr.mxu0 0.0
    %1830 = vmatpush1.msra.mxu0 0.0
    %1831 = vmatprep.subr.mxu0 0.0
    %1832 = vmatpush1.msra.mxu0 0.0
    %1833 = vmatprep.subr.mxu0 0.0
    %1834 = vmatpush1.msra.mxu0 0.0
    %1835 = vmatprep.subr.mxu0 0.0
    %1836 = vmatpush1.msra.mxu0 0.0
    %1837 = vmatprep.subr.mxu0 0.0
    %1838 = vmatpush1.msra.mxu0 0.0
    %1839 = vmatprep.subr.mxu0 0.0
    %1840 = vmatpush1.msra.mxu0 0.0
    %v1841 = vand.u32 %v169, 4294901760
    %1842 = vmatprep.subr.mxu0 %v1841
    %v1843 = vand.u32 %v168, 4294901760
    %1844 = vmatpush1.msra.mxu0 %v1843
    %1845 = vmatprep.subr.mxu0 0.0
    %1846 = vmatpush2.msra.mxu0 0.0
    %1847 = vmatprep.subr.mxu0 0.0
    %1848 = vmatpush2.msra.mxu0 0.0
    %1849 = vmatprep.subr.mxu0 0.0
    %1850 = vmatpush2.msra.mxu0 0.0
    %1851 = vmatprep.subr.mxu0 0.0
    %1852 = vmatpush2.msra.mxu0 0.0
    %1853 = vmatprep.subr.mxu0 0.0
    %1854 = vmatpush2.msra.mxu0 0.0
    %1855 = vmatprep.subr.mxu0 0.0
    %1856 = vmatpush2.msra.mxu0 0.0
    %1857 = vmatprep.subr.mxu0 0.0
    %1858 = vmatpush2.msra.mxu0 0.0
    %1859 = vmatprep.subr.mxu0 0.0
    %1860 = vmatpush2.msra.mxu0 0.0
    %1861 = vmatprep.subr.mxu0 0.0
    %1862 = vmatpush2.msra.mxu0 0.0
    %1863 = vmatprep.subr.mxu0 0.0
    %1864 = vmatpush2.msra.mxu0 0.0
    %1865 = vmatprep.subr.mxu0 0.0
    %1866 = vmatpush2.msra.mxu0 0.0
    %1867 = vmatprep.subr.mxu0 0.0
    %1868 = vmatpush2.msra.mxu0 0.0
    %1869 = vmatprep.subr.mxu0 0.0
    %1870 = vmatpush2.msra.mxu0 0.0
    %1871 = vmatprep.subr.mxu0 0.0
    %1872 = vmatpush2.msra.mxu0 0.0
    %1873 = vmatprep.subr.mxu0 0.0
    %1874 = vmatpush2.msra.mxu0 0.0
    %1875 = vmatprep.subr.mxu0 0.0
    %1876 = vmatpush2.msra.mxu0 0.0
    %1877 = vmatprep.mubr.f32.mxu0 0.0
    %v1878 = vand.u32 %v177, 4294901760
    %v1879 = vsub.f32 %v177, %v1878
    %v1880 = vand.u32 %v1879, 4294901760
    %1881 = vmatmul.mubr.f32.gmra.mxu0 %v1880
    %v1882 = vpop.f32.mrf.mxu0
    %v1883 = vadd.f32 %v1807, %v1882
    %v1884 = vpop.f32.mrf.mxu0
    %v1885 = vadd.f32 %v1809, %v1884
    %1886 = vdwg.mxu0
    %1887 = vmatprep.subr.mxu0 0.0
    %1888 = vmatpush1.msra.mxu0 0.0
    %1889 = vmatprep.subr.mxu0 0.0
    %1890 = vmatpush1.msra.mxu0 0.0
    %1891 = vmatprep.subr.mxu0 0.0
    %1892 = vmatpush1.msra.mxu0 0.0
    %1893 = vmatprep.subr.mxu0 0.0
    %1894 = vmatpush1.msra.mxu0 0.0
    %1895 = vmatprep.subr.mxu0 0.0
    %1896 = vmatpush1.msra.mxu0 0.0
    %1897 = vmatprep.subr.mxu0 0.0
    %1898 = vmatpush1.msra.mxu0 0.0
    %1899 = vmatprep.subr.mxu0 0.0
    %1900 = vmatpush1.msra.mxu0 0.0
    %1901 = vmatprep.subr.mxu0 0.0
    %1902 = vmatpush1.msra.mxu0 0.0
    %1903 = vmatprep.subr.mxu0 0.0
    %1904 = vmatpush1.msra.mxu0 0.0
    %1905 = vmatprep.subr.mxu0 0.0
    %1906 = vmatpush1.msra.mxu0 0.0
    %1907 = vmatprep.subr.mxu0 0.0
    %1908 = vmatpush1.msra.mxu0 0.0
    %1909 = vmatprep.subr.mxu0 0.0
    %1910 = vmatpush1.msra.mxu0 0.0
    %1911 = vmatprep.subr.mxu0 0.0
    %1912 = vmatpush1.msra.mxu0 0.0
    %1913 = vmatprep.subr.mxu0 0.0
    %1914 = vmatpush1.msra.mxu0 0.0
    %1915 = vmatprep.subr.mxu0 0.0
    %1916 = vmatpush1.msra.mxu0 0.0
    %v1917 = vand.u32 %v169, 4294901760
    %v1918 = vsub.f32 %v169, %v1917
    %v1919 = vand.u32 %v1918, 4294901760
    %1920 = vmatprep.subr.mxu0 %v1919
    %v1921 = vand.u32 %v168, 4294901760
    %v1922 = vsub.f32 %v168, %v1921
    %v1923 = vand.u32 %v1922, 4294901760
    %1924 = vmatpush1.msra.mxu0 %v1923
    %1925 = vmatprep.subr.mxu0 0.0
    %1926 = vmatpush2.msra.mxu0 0.0
    %1927 = vmatprep.subr.mxu0 0.0
    %1928 = vmatpush2.msra.mxu0 0.0
    %1929 = vmatprep.subr.mxu0 0.0
    %1930 = vmatpush2.msra.mxu0 0.0
    %1931 = vmatprep.subr.mxu0 0.0
    %1932 = vmatpush2.msra.mxu0 0.0
    %1933 = vmatprep.subr.mxu0 0.0
    %1934 = vmatpush2.msra.mxu0 0.0
    %1935 = vmatprep.subr.mxu0 0.0
    %1936 = vmatpush2.msra.mxu0 0.0
    %1937 = vmatprep.subr.mxu0 0.0
    %1938 = vmatpush2.msra.mxu0 0.0
    %1939 = vmatprep.subr.mxu0 0.0
    %1940 = vmatpush2.msra.mxu0 0.0
    %1941 = vmatprep.subr.mxu0 0.0
    %1942 = vmatpush2.msra.mxu0 0.0
    %1943 = vmatprep.subr.mxu0 0.0
    %1944 = vmatpush2.msra.mxu0 0.0
    %1945 = vmatprep.subr.mxu0 0.0
    %1946 = vmatpush2.msra.mxu0 0.0
    %1947 = vmatprep.subr.mxu0 0.0
    %1948 = vmatpush2.msra.mxu0 0.0
    %1949 = vmatprep.subr.mxu0 0.0
    %1950 = vmatpush2.msra.mxu0 0.0
    %1951 = vmatprep.subr.mxu0 0.0
    %1952 = vmatpush2.msra.mxu0 0.0
    %1953 = vmatprep.subr.mxu0 0.0
    %1954 = vmatpush2.msra.mxu0 0.0
    %1955 = vmatprep.subr.mxu0 0.0
    %1956 = vmatpush2.msra.mxu0 0.0
    %1957 = vmatprep.mubr.f32.mxu0 0.0
    %v1958 = vand.u32 %v177, 4294901760
    %1959 = vmatmul.mubr.f32.gmra.mxu0 %v1958
    %v1960 = vpop.f32.mrf.mxu0
    %v1961 = vadd.f32 %v1883, %v1960
    %v1962 = vpop.f32.mrf.mxu0
    %v1963 = vadd.f32 %v1885, %v1962
    %1964 = vdwg.mxu0
    %1965 = vmatprep.subr.mxu0 0.0
    %1966 = vmatpush1.msra.mxu0 0.0
    %1967 = vmatprep.subr.mxu0 0.0
    %1968 = vmatpush1.msra.mxu0 0.0
    %1969 = vmatprep.subr.mxu0 0.0
    %1970 = vmatpush1.msra.mxu0 0.0
    %1971 = vmatprep.subr.mxu0 0.0
    %1972 = vmatpush1.msra.mxu0 0.0
    %1973 = vmatprep.subr.mxu0 0.0
    %1974 = vmatpush1.msra.mxu0 0.0
    %1975 = vmatprep.subr.mxu0 0.0
    %1976 = vmatpush1.msra.mxu0 0.0
    %1977 = vmatprep.subr.mxu0 0.0
    %1978 = vmatpush1.msra.mxu0 0.0
    %1979 = vmatprep.subr.mxu0 0.0
    %1980 = vmatpush1.msra.mxu0 0.0
    %1981 = vmatprep.subr.mxu0 0.0
    %1982 = vmatpush1.msra.mxu0 0.0
    %1983 = vmatprep.subr.mxu0 0.0
    %1984 = vmatpush1.msra.mxu0 0.0
    %1985 = vmatprep.subr.mxu0 0.0
    %1986 = vmatpush1.msra.mxu0 0.0
    %1987 = vmatprep.subr.mxu0 0.0
    %1988 = vmatpush1.msra.mxu0 0.0
    %1989 = vmatprep.subr.mxu0 0.0
    %1990 = vmatpush1.msra.mxu0 0.0
    %1991 = vmatprep.subr.mxu0 0.0
    %1992 = vmatpush1.msra.mxu0 0.0
    %1993 = vmatprep.subr.mxu0 0.0
    %1994 = vmatpush1.msra.mxu0 0.0
    %v1995 = vand.u32 %v169, 4294901760
    %1996 = vmatprep.subr.mxu0 %v1995
    %v1997 = vand.u32 %v168, 4294901760
    %1998 = vmatpush1.msra.mxu0 %v1997
    %1999 = vmatprep.subr.mxu0 0.0
    %2000 = vmatpush2.msra.mxu0 0.0
    %2001 = vmatprep.subr.mxu0 0.0
    %2002 = vmatpush2.msra.mxu0 0.0
    %2003 = vmatprep.subr.mxu0 0.0
    %2004 = vmatpush2.msra.mxu0 0.0
    %2005 = vmatprep.subr.mxu0 0.0
    %2006 = vmatpush2.msra.mxu0 0.0
    %2007 = vmatprep.subr.mxu0 0.0
    %2008 = vmatpush2.msra.mxu0 0.0
    %2009 = vmatprep.subr.mxu0 0.0
    %2010 = vmatpush2.msra.mxu0 0.0
    %2011 = vmatprep.subr.mxu0 0.0
    %2012 = vmatpush2.msra.mxu0 0.0
    %2013 = vmatprep.subr.mxu0 0.0
    %2014 = vmatpush2.msra.mxu0 0.0
    %2015 = vmatprep.subr.mxu0 0.0
    %2016 = vmatpush2.msra.mxu0 0.0
    %2017 = vmatprep.subr.mxu0 0.0
    %2018 = vmatpush2.msra.mxu0 0.0
    %2019 = vmatprep.subr.mxu0 0.0
    %2020 = vmatpush2.msra.mxu0 0.0
    %2021 = vmatprep.subr.mxu0 0.0
    %2022 = vmatpush2.msra.mxu0 0.0
    %2023 = vmatprep.subr.mxu0 0.0
    %2024 = vmatpush2.msra.mxu0 0.0
    %2025 = vmatprep.subr.mxu0 0.0
    %2026 = vmatpush2.msra.mxu0 0.0
    %2027 = vmatprep.subr.mxu0 0.0
    %2028 = vmatpush2.msra.mxu0 0.0
    %2029 = vmatprep.subr.mxu0 0.0
    %2030 = vmatpush2.msra.mxu0 0.0
    %2031 = vmatprep.mubr.f32.mxu0 0.0
    %v2032 = vand.u32 %v177, 4294901760
    %2033 = vmatmul.mubr.f32.gmra.mxu0 %v2032
    %v2034 = vpop.f32.mrf.mxu0
    %v2035 = vadd.f32 %v1961, %v2034
    %v2036 = vpop.f32.mrf.mxu0
    %v2037 = vadd.f32 %v1963, %v2036
    %2038 = vdwg.mxu0
    %v2039 = vmax.f32 %v640, 0.0
    %v2040 = vmax.f32 %v642, 0.0
    %v2041 = vmax.f32 %v1105, 0.0
    %v2042 = vmax.f32 %v1107, 0.0
    %v2043 = vmax.f32 %v1570, 0.0
    %v2044 = vmax.f32 %v1572, 0.0
    %v2045 = vmax.f32 %v2035, 0.0
    %v2046 = vmax.f32 %v2037, 0.0
    %2048 = vset.pattern.permute.xlu0 0
    %2049 = vperm.xlu0 %2048, %v83
    %v2050 = vpop.permute.xlu0 %2049
    %v2053 = vsel %vm175, %v82, 0
    %2055 = vmatprep.subr.mxu0 0.0
    %2056 = vmatpush1.msra.mxu0 0.0
    %2057 = vmatprep.subr.mxu0 0.0
    %2058 = vmatpush1.msra.mxu0 0.0
    %2059 = vmatprep.subr.mxu0 0.0
    %2060 = vmatpush1.msra.mxu0 0.0
    %2061 = vmatprep.subr.mxu0 0.0
    %2062 = vmatpush1.msra.mxu0 0.0
    %2063 = vmatprep.subr.mxu0 0.0
    %2064 = vmatpush1.msra.mxu0 0.0
    %2065 = vmatprep.subr.mxu0 0.0
    %2066 = vmatpush1.msra.mxu0 0.0
    %2067 = vmatprep.subr.mxu0 0.0
    %2068 = vmatpush1.msra.mxu0 0.0
    %2069 = vmatprep.subr.mxu0 0.0
    %2070 = vmatpush1.msra.mxu0 0.0
    %2071 = vmatprep.subr.mxu0 0.0
    %2072 = vmatpush1.msra.mxu0 0.0
    %2073 = vmatprep.subr.mxu0 0.0
    %2074 = vmatpush1.msra.mxu0 0.0
    %2075 = vmatprep.subr.mxu0 0.0
    %2076 = vmatpush1.msra.mxu0 0.0
    %2077 = vmatprep.subr.mxu0 0.0
    %2078 = vmatpush1.msra.mxu0 0.0
    %2079 = vmatprep.subr.mxu0 0.0
    %2080 = vmatpush1.msra.mxu0 0.0
    %2081 = vmatprep.subr.mxu0 0.0
    %2082 = vmatpush1.msra.mxu0 0.0
    %2083 = vmatprep.subr.mxu0 0.0
    %2084 = vmatpush1.msra.mxu0 0.0
    %v2085 = vand.u32 %v2040, 4294901760
    %2086 = vmatprep.subr.mxu0 %v2085
    %v2087 = vand.u32 %v2039, 4294901760
    %2088 = vmatpush1.msra.mxu0 %v2087
    %2089 = vmatprep.subr.mxu0 0.0
    %2090 = vmatpush2.msra.mxu0 0.0
    %2091 = vmatprep.subr.mxu0 0.0
    %2092 = vmatpush2.msra.mxu0 0.0
    %2093 = vmatprep.subr.mxu0 0.0
    %2094 = vmatpush2.msra.mxu0 0.0
    %2095 = vmatprep.subr.mxu0 0.0
    %2096 = vmatpush2.msra.mxu0 0.0
    %2097 = vmatprep.subr.mxu0 0.0
    %2098 = vmatpush2.msra.mxu0 0.0
    %2099 = vmatprep.subr.mxu0 0.0
    %2100 = vmatpush2.msra.mxu0 0.0
    %2101 = vmatprep.subr.mxu0 0.0
    %2102 = vmatpush2.msra.mxu0 0.0
    %2103 = vmatprep.subr.mxu0 0.0
    %2104 = vmatpush2.msra.mxu0 0.0
    %2105 = vmatprep.subr.mxu0 0.0
    %2106 = vmatpush2.msra.mxu0 0.0
    %2107 = vmatprep.subr.mxu0 0.0
    %2108 = vmatpush2.msra.mxu0 0.0
    %2109 = vmatprep.subr.mxu0 0.0
    %2110 = vmatpush2.msra.mxu0 0.0
    %2111 = vmatprep.subr.mxu0 0.0
    %2112 = vmatpush2.msra.mxu0 0.0
    %2113 = vmatprep.subr.mxu0 0.0
    %2114 = vmatpush2.msra.mxu0 0.0
    %2115 = vmatprep.subr.mxu0 0.0
    %2116 = vmatpush2.msra.mxu0 0.0
    %2117 = vmatprep.subr.mxu0 0.0
    %2118 = vmatpush2.msra.mxu0 0.0
    %2119 = vmatprep.subr.mxu0 0.0
    %2120 = vmatpush2.msra.mxu0 0.0
    %2121 = vmatprep.mubr.f32.mxu0 0.0
    %v2122 = vand.u32 %v2053, 4294901760
    %v2123 = vsub.f32 %v2053, %v2122
    %v2124 = vand.u32 %v2123, 4294901760
    %v2125 = vsub.f32 %v2123, %v2124
    %v2126 = vand.u32 %v2125, 4294901760
    %2127 = vmatmul.mubr.f32.gmra.mxu0 %v2126
    %v2128 = vpop.f32.mrf.mxu0
    %v2129 = vadd.f32 %v2050, %v2128
    %v2130 = vpop.f32.mrf.mxu0
    %v2131 = vadd.f32 %v2050, %v2130
    %2132 = vdwg.mxu0
    %2133 = vmatprep.subr.mxu0 0.0
    %2134 = vmatpush1.msra.mxu0 0.0
    %2135 = vmatprep.subr.mxu0 0.0
    %2136 = vmatpush1.msra.mxu0 0.0
    %2137 = vmatprep.subr.mxu0 0.0
    %2138 = vmatpush1.msra.mxu0 0.0
    %2139 = vmatprep.subr.mxu0 0.0
    %2140 = vmatpush1.msra.mxu0 0.0
    %2141 = vmatprep.subr.mxu0 0.0
    %2142 = vmatpush1.msra.mxu0 0.0
    %2143 = vmatprep.subr.mxu0 0.0
    %2144 = vmatpush1.msra.mxu0 0.0
    %2145 = vmatprep.subr.mxu0 0.0
    %2146 = vmatpush1.msra.mxu0 0.0
    %2147 = vmatprep.subr.mxu0 0.0
    %2148 = vmatpush1.msra.mxu0 0.0
    %2149 = vmatprep.subr.mxu0 0.0
    %2150 = vmatpush1.msra.mxu0 0.0
    %2151 = vmatprep.subr.mxu0 0.0
    %2152 = vmatpush1.msra.mxu0 0.0
    %2153 = vmatprep.subr.mxu0 0.0
    %2154 = vmatpush1.msra.mxu0 0.0
    %2155 = vmatprep.subr.mxu0 0.0
    %2156 = vmatpush1.msra.mxu0 0.0
    %2157 = vmatprep.subr.mxu0 0.0
    %2158 = vmatpush1.msra.mxu0 0.0
    %2159 = vmatprep.subr.mxu0 0.0
    %2160 = vmatpush1.msra.mxu0 0.0
    %2161 = vmatprep.subr.mxu0 0.0
    %2162 = vmatpush1.msra.mxu0 0.0
    %v2163 = vand.u32 %v2040, 4294901760
    %v2164 = vsub.f32 %v2040, %v2163
    %v2165 = vand.u32 %v2164, 4294901760
    %v2166 = vsub.f32 %v2164, %v2165
    %v2167 = vand.u32 %v2166, 4294901760
    %2168 = vmatprep.subr.mxu0 %v2167
    %v2169 = vand.u32 %v2039, 4294901760
    %v2170 = vsub.f32 %v2039, %v2169
    %v2171 = vand.u32 %v2170, 4294901760
    %v2172 = vsub.f32 %v2170, %v2171
    %v2173 = vand.u32 %v2172, 4294901760
    %2174 = vmatpush1.msra.mxu0 %v2173
    %2175 = vmatprep.subr.mxu0 0.0
    %2176 = vmatpush2.msra.mxu0 0.0
    %2177 = vmatprep.subr.mxu0 0.0
    %2178 = vmatpush2.msra.mxu0 0.0
    %2179 = vmatprep.subr.mxu0 0.0
    %2180 = vmatpush2.msra.mxu0 0.0
    %2181 = vmatprep.subr.mxu0 0.0
    %2182 = vmatpush2.msra.mxu0 0.0
    %2183 = vmatprep.subr.mxu0 0.0
    %2184 = vmatpush2.msra.mxu0 0.0
    %2185 = vmatprep.subr.mxu0 0.0
    %2186 = vmatpush2.msra.mxu0 0.0
    %2187 = vmatprep.subr.mxu0 0.0
    %2188 = vmatpush2.msra.mxu0 0.0
    %2189 = vmatprep.subr.mxu0 0.0
    %2190 = vmatpush2.msra.mxu0 0.0
    %2191 = vmatprep.subr.mxu0 0.0
    %2192 = vmatpush2.msra.mxu0 0.0
    %2193 = vmatprep.subr.mxu0 0.0
    %2194 = vmatpush2.msra.mxu0 0.0
    %2195 = vmatprep.subr.mxu0 0.0
    %2196 = vmatpush2.msra.mxu0 0.0
    %2197 = vmatprep.subr.mxu0 0.0
    %2198 = vmatpush2.msra.mxu0 0.0
    %2199 = vmatprep.subr.mxu0 0.0
    %2200 = vmatpush2.msra.mxu0 0.0
    %2201 = vmatprep.subr.mxu0 0.0
    %2202 = vmatpush2.msra.mxu0 0.0
    %2203 = vmatprep.subr.mxu0 0.0
    %2204 = vmatpush2.msra.mxu0 0.0
    %2205 = vmatprep.subr.mxu0 0.0
    %2206 = vmatpush2.msra.mxu0 0.0
    %2207 = vmatprep.mubr.f32.mxu0 0.0
    %v2208 = vand.u32 %v2053, 4294901760
    %2209 = vmatmul.mubr.f32.gmra.mxu0 %v2208
    %v2210 = vpop.f32.mrf.mxu0
    %v2211 = vadd.f32 %v2129, %v2210
    %v2212 = vpop.f32.mrf.mxu0
    %v2213 = vadd.f32 %v2131, %v2212
    %2214 = vdwg.mxu0
    %2215 = vmatprep.subr.mxu0 0.0
    %2216 = vmatpush1.msra.mxu0 0.0
    %2217 = vmatprep.subr.mxu0 0.0
    %2218 = vmatpush1.msra.mxu0 0.0
    %2219 = vmatprep.subr.mxu0 0.0
    %2220 = vmatpush1.msra.mxu0 0.0
    %2221 = vmatprep.subr.mxu0 0.0
    %2222 = vmatpush1.msra.mxu0 0.0
    %2223 = vmatprep.subr.mxu0 0.0
    %2224 = vmatpush1.msra.mxu0 0.0
    %2225 = vmatprep.subr.mxu0 0.0
    %2226 = vmatpush1.msra.mxu0 0.0
    %2227 = vmatprep.subr.mxu0 0.0
    %2228 = vmatpush1.msra.mxu0 0.0
    %2229 = vmatprep.subr.mxu0 0.0
    %2230 = vmatpush1.msra.mxu0 0.0
    %2231 = vmatprep.subr.mxu0 0.0
    %2232 = vmatpush1.msra.mxu0 0.0
    %2233 = vmatprep.subr.mxu0 0.0
    %2234 = vmatpush1.msra.mxu0 0.0
    %2235 = vmatprep.subr.mxu0 0.0
    %2236 = vmatpush1.msra.mxu0 0.0
    %2237 = vmatprep.subr.mxu0 0.0
    %2238 = vmatpush1.msra.mxu0 0.0
    %2239 = vmatprep.subr.mxu0 0.0
    %2240 = vmatpush1.msra.mxu0 0.0
    %2241 = vmatprep.subr.mxu0 0.0
    %2242 = vmatpush1.msra.mxu0 0.0
    %2243 = vmatprep.subr.mxu0 0.0
    %2244 = vmatpush1.msra.mxu0 0.0
    %v2245 = vand.u32 %v2040, 4294901760
    %v2246 = vsub.f32 %v2040, %v2245
    %2247 = vmatprep.subr.mxu0 %v2246
    %v2248 = vand.u32 %v2039, 4294901760
    %v2249 = vsub.f32 %v2039, %v2248
    %2250 = vmatpush1.msra.mxu0 %v2249
    %2251 = vmatprep.subr.mxu0 0.0
    %2252 = vmatpush2.msra.mxu0 0.0
    %2253 = vmatprep.subr.mxu0 0.0
    %2254 = vmatpush2.msra.mxu0 0.0
    %2255 = vmatprep.subr.mxu0 0.0
    %2256 = vmatpush2.msra.mxu0 0.0
    %2257 = vmatprep.subr.mxu0 0.0
    %2258 = vmatpush2.msra.mxu0 0.0
    %2259 = vmatprep.subr.mxu0 0.0
    %2260 = vmatpush2.msra.mxu0 0.0
    %2261 = vmatprep.subr.mxu0 0.0
    %2262 = vmatpush2.msra.mxu0 0.0
    %2263 = vmatprep.subr.mxu0 0.0
    %2264 = vmatpush2.msra.mxu0 0.0
    %2265 = vmatprep.subr.mxu0 0.0
    %2266 = vmatpush2.msra.mxu0 0.0
    %2267 = vmatprep.subr.mxu0 0.0
    %2268 = vmatpush2.msra.mxu0 0.0
    %2269 = vmatprep.subr.mxu0 0.0
    %2270 = vmatpush2.msra.mxu0 0.0
    %2271 = vmatprep.subr.mxu0 0.0
    %2272 = vmatpush2.msra.mxu0 0.0
    %2273 = vmatprep.subr.mxu0 0.0
    %2274 = vmatpush2.msra.mxu0 0.0
    %2275 = vmatprep.subr.mxu0 0.0
    %2276 = vmatpush2.msra.mxu0 0.0
    %2277 = vmatprep.subr.mxu0 0.0
    %2278 = vmatpush2.msra.mxu0 0.0
    %2279 = vmatprep.subr.mxu0 0.0
    %2280 = vmatpush2.msra.mxu0 0.0
    %2281 = vmatprep.subr.mxu0 0.0
    %2282 = vmatpush2.msra.mxu0 0.0
    %2283 = vmatprep.mubr.f32.mxu0 0.0
    %v2284 = vand.u32 %v2053, 4294901760
    %v2285 = vsub.f32 %v2053, %v2284
    %2286 = vmatmul.mubr.f32.gmra.mxu0 %v2285
    %v2287 = vpop.f32.mrf.mxu0
    %v2288 = vadd.f32 %v2211, %v2287
    %v2289 = vpop.f32.mrf.mxu0
    %v2290 = vadd.f32 %v2213, %v2289
    %2291 = vdwg.mxu0
    %2292 = vmatprep.subr.mxu0 0.0
    %2293 = vmatpush1.msra.mxu0 0.0
    %2294 = vmatprep.subr.mxu0 0.0
    %2295 = vmatpush1.msra.mxu0 0.0
    %2296 = vmatprep.subr.mxu0 0.0
    %2297 = vmatpush1.msra.mxu0 0.0
    %2298 = vmatprep.subr.mxu0 0.0
    %2299 = vmatpush1.msra.mxu0 0.0
    %2300 = vmatprep.subr.mxu0 0.0
    %2301 = vmatpush1.msra.mxu0 0.0
    %2302 = vmatprep.subr.mxu0 0.0
    %2303 = vmatpush1.msra.mxu0 0.0
    %2304 = vmatprep.subr.mxu0 0.0
    %2305 = vmatpush1.msra.mxu0 0.0
    %2306 = vmatprep.subr.mxu0 0.0
    %2307 = vmatpush1.msra.mxu0 0.0
    %2308 = vmatprep.subr.mxu0 0.0
    %2309 = vmatpush1.msra.mxu0 0.0
    %2310 = vmatprep.subr.mxu0 0.0
    %2311 = vmatpush1.msra.mxu0 0.0
    %2312 = vmatprep.subr.mxu0 0.0
    %2313 = vmatpush1.msra.mxu0 0.0
    %2314 = vmatprep.subr.mxu0 0.0
    %2315 = vmatpush1.msra.mxu0 0.0
    %2316 = vmatprep.subr.mxu0 0.0
    %2317 = vmatpush1.msra.mxu0 0.0
    %2318 = vmatprep.subr.mxu0 0.0
    %2319 = vmatpush1.msra.mxu0 0.0
    %2320 = vmatprep.subr.mxu0 0.0
    %2321 = vmatpush1.msra.mxu0 0.0
    %v2322 = vand.u32 %v2040, 4294901760
    %2323 = vmatprep.subr.mxu0 %v2322
    %v2324 = vand.u32 %v2039, 4294901760
    %2325 = vmatpush1.msra.mxu0 %v2324
    %2326 = vmatprep.subr.mxu0 0.0
    %2327 = vmatpush2.msra.mxu0 0.0
    %2328 = vmatprep.subr.mxu0 0.0
    %2329 = vmatpush2.msra.mxu0 0.0
    %2330 = vmatprep.subr.mxu0 0.0
    %2331 = vmatpush2.msra.mxu0 0.0
    %2332 = vmatprep.subr.mxu0 0.0
    %2333 = vmatpush2.msra.mxu0 0.0
    %2334 = vmatprep.subr.mxu0 0.0
    %2335 = vmatpush2.msra.mxu0 0.0
    %2336 = vmatprep.subr.mxu0 0.0
    %2337 = vmatpush2.msra.mxu0 0.0
    %2338 = vmatprep.subr.mxu0 0.0
    %2339 = vmatpush2.msra.mxu0 0.0
    %2340 = vmatprep.subr.mxu0 0.0
    %2341 = vmatpush2.msra.mxu0 0.0
    %2342 = vmatprep.subr.mxu0 0.0
    %2343 = vmatpush2.msra.mxu0 0.0
    %2344 = vmatprep.subr.mxu0 0.0
    %2345 = vmatpush2.msra.mxu0 0.0
    %2346 = vmatprep.subr.mxu0 0.0
    %2347 = vmatpush2.msra.mxu0 0.0
    %2348 = vmatprep.subr.mxu0 0.0
    %2349 = vmatpush2.msra.mxu0 0.0
    %2350 = vmatprep.subr.mxu0 0.0
    %2351 = vmatpush2.msra.mxu0 0.0
    %2352 = vmatprep.subr.mxu0 0.0
    %2353 = vmatpush2.msra.mxu0 0.0
    %2354 = vmatprep.subr.mxu0 0.0
    %2355 = vmatpush2.msra.mxu0 0.0
    %2356 = vmatprep.subr.mxu0 0.0
    %2357 = vmatpush2.msra.mxu0 0.0
    %2358 = vmatprep.mubr.f32.mxu0 0.0
    %v2359 = vand.u32 %v2053, 4294901760
    %v2360 = vsub.f32 %v2053, %v2359
    %v2361 = vand.u32 %v2360, 4294901760
    %2362 = vmatmul.mubr.f32.gmra.mxu0 %v2361
    %v2363 = vpop.f32.mrf.mxu0
    %v2364 = vadd.f32 %v2288, %v2363
    %v2365 = vpop.f32.mrf.mxu0
    %v2366 = vadd.f32 %v2290, %v2365
    %2367 = vdwg.mxu0
    %2368 = vmatprep.subr.mxu0 0.0
    %2369 = vmatpush1.msra.mxu0 0.0
    %2370 = vmatprep.subr.mxu0 0.0
    %2371 = vmatpush1.msra.mxu0 0.0
    %2372 = vmatprep.subr.mxu0 0.0
    %2373 = vmatpush1.msra.mxu0 0.0
    %2374 = vmatprep.subr.mxu0 0.0
    %2375 = vmatpush1.msra.mxu0 0.0
    %2376 = vmatprep.subr.mxu0 0.0
    %2377 = vmatpush1.msra.mxu0 0.0
    %2378 = vmatprep.subr.mxu0 0.0
    %2379 = vmatpush1.msra.mxu0 0.0
    %2380 = vmatprep.subr.mxu0 0.0
    %2381 = vmatpush1.msra.mxu0 0.0
    %2382 = vmatprep.subr.mxu0 0.0
    %2383 = vmatpush1.msra.mxu0 0.0
    %2384 = vmatprep.subr.mxu0 0.0
    %2385 = vmatpush1.msra.mxu0 0.0
    %2386 = vmatprep.subr.mxu0 0.0
    %2387 = vmatpush1.msra.mxu0 0.0
    %2388 = vmatprep.subr.mxu0 0.0
    %2389 = vmatpush1.msra.mxu0 0.0
    %2390 = vmatprep.subr.mxu0 0.0
    %2391 = vmatpush1.msra.mxu0 0.0
    %2392 = vmatprep.subr.mxu0 0.0
    %2393 = vmatpush1.msra.mxu0 0.0
    %2394 = vmatprep.subr.mxu0 0.0
    %2395 = vmatpush1.msra.mxu0 0.0
    %2396 = vmatprep.subr.mxu0 0.0
    %2397 = vmatpush1.msra.mxu0 0.0
    %v2398 = vand.u32 %v2040, 4294901760
    %v2399 = vsub.f32 %v2040, %v2398
    %v2400 = vand.u32 %v2399, 4294901760
    %2401 = vmatprep.subr.mxu0 %v2400
    %v2402 = vand.u32 %v2039, 4294901760
    %v2403 = vsub.f32 %v2039, %v2402
    %v2404 = vand.u32 %v2403, 4294901760
    %2405 = vmatpush1.msra.mxu0 %v2404
    %2406 = vmatprep.subr.mxu0 0.0
    %2407 = vmatpush2.msra.mxu0 0.0
    %2408 = vmatprep.subr.mxu0 0.0
    %2409 = vmatpush2.msra.mxu0 0.0
    %2410 = vmatprep.subr.mxu0 0.0
    %2411 = vmatpush2.msra.mxu0 0.0
    %2412 = vmatprep.subr.mxu0 0.0
    %2413 = vmatpush2.msra.mxu0 0.0
    %2414 = vmatprep.subr.mxu0 0.0
    %2415 = vmatpush2.msra.mxu0 0.0
    %2416 = vmatprep.subr.mxu0 0.0
    %2417 = vmatpush2.msra.mxu0 0.0
    %2418 = vmatprep.subr.mxu0 0.0
    %2419 = vmatpush2.msra.mxu0 0.0
    %2420 = vmatprep.subr.mxu0 0.0
    %2421 = vmatpush2.msra.mxu0 0.0
    %2422 = vmatprep.subr.mxu0 0.0
    %2423 = vmatpush2.msra.mxu0 0.0
    %2424 = vmatprep.subr.mxu0 0.0
    %2425 = vmatpush2.msra.mxu0 0.0
    %2426 = vmatprep.subr.mxu0 0.0
    %2427 = vmatpush2.msra.mxu0 0.0
    %2428 = vmatprep.subr.mxu0 0.0
    %2429 = vmatpush2.msra.mxu0 0.0
    %2430 = vmatprep.subr.mxu0 0.0
    %2431 = vmatpush2.msra.mxu0 0.0
    %2432 = vmatprep.subr.mxu0 0.0
    %2433 = vmatpush2.msra.mxu0 0.0
    %2434 = vmatprep.subr.mxu0 0.0
    %2435 = vmatpush2.msra.mxu0 0.0
    %2436 = vmatprep.subr.mxu0 0.0
    %2437 = vmatpush2.msra.mxu0 0.0
    %2438 = vmatprep.mubr.f32.mxu0 0.0
    %v2439 = vand.u32 %v2053, 4294901760
    %2440 = vmatmul.mubr.f32.gmra.mxu0 %v2439
    %v2441 = vpop.f32.mrf.mxu0
    %v2442 = vadd.f32 %v2364, %v2441
    %v2443 = vpop.f32.mrf.mxu0
    %v2444 = vadd.f32 %v2366, %v2443
    %2445 = vdwg.mxu0
    %2446 = vmatprep.subr.mxu0 0.0
    %2447 = vmatpush1.msra.mxu0 0.0
    %2448 = vmatprep.subr.mxu0 0.0
    %2449 = vmatpush1.msra.mxu0 0.0
    %2450 = vmatprep.subr.mxu0 0.0
    %2451 = vmatpush1.msra.mxu0 0.0
    %2452 = vmatprep.subr.mxu0 0.0
    %2453 = vmatpush1.msra.mxu0 0.0
    %2454 = vmatprep.subr.mxu0 0.0
    %2455 = vmatpush1.msra.mxu0 0.0
    %2456 = vmatprep.subr.mxu0 0.0
    %2457 = vmatpush1.msra.mxu0 0.0
    %2458 = vmatprep.subr.mxu0 0.0
    %2459 = vmatpush1.msra.mxu0 0.0
    %2460 = vmatprep.subr.mxu0 0.0
    %2461 = vmatpush1.msra.mxu0 0.0
    %2462 = vmatprep.subr.mxu0 0.0
    %2463 = vmatpush1.msra.mxu0 0.0
    %2464 = vmatprep.subr.mxu0 0.0
    %2465 = vmatpush1.msra.mxu0 0.0
    %2466 = vmatprep.subr.mxu0 0.0
    %2467 = vmatpush1.msra.mxu0 0.0
    %2468 = vmatprep.subr.mxu0 0.0
    %2469 = vmatpush1.msra.mxu0 0.0
    %2470 = vmatprep.subr.mxu0 0.0
    %2471 = vmatpush1.msra.mxu0 0.0
    %2472 = vmatprep.subr.mxu0 0.0
    %2473 = vmatpush1.msra.mxu0 0.0
    %2474 = vmatprep.subr.mxu0 0.0
    %2475 = vmatpush1.msra.mxu0 0.0
    %v2476 = vand.u32 %v2040, 4294901760
    %2477 = vmatprep.subr.mxu0 %v2476
    %v2478 = vand.u32 %v2039, 4294901760
    %2479 = vmatpush1.msra.mxu0 %v2478
    %2480 = vmatprep.subr.mxu0 0.0
    %2481 = vmatpush2.msra.mxu0 0.0
    %2482 = vmatprep.subr.mxu0 0.0
    %2483 = vmatpush2.msra.mxu0 0.0
    %2484 = vmatprep.subr.mxu0 0.0
    %2485 = vmatpush2.msra.mxu0 0.0
    %2486 = vmatprep.subr.mxu0 0.0
    %2487 = vmatpush2.msra.mxu0 0.0
    %2488 = vmatprep.subr.mxu0 0.0
    %2489 = vmatpush2.msra.mxu0 0.0
    %2490 = vmatprep.subr.mxu0 0.0
    %2491 = vmatpush2.msra.mxu0 0.0
    %2492 = vmatprep.subr.mxu0 0.0
    %2493 = vmatpush2.msra.mxu0 0.0
    %2494 = vmatprep.subr.mxu0 0.0
    %2495 = vmatpush2.msra.mxu0 0.0
    %2496 = vmatprep.subr.mxu0 0.0
    %2497 = vmatpush2.msra.mxu0 0.0
    %2498 = vmatprep.subr.mxu0 0.0
    %2499 = vmatpush2.msra.mxu0 0.0
    %2500 = vmatprep.subr.mxu0 0.0
    %2501 = vmatpush2.msra.mxu0 0.0
    %2502 = vmatprep.subr.mxu0 0.0
    %2503 = vmatpush2.msra.mxu0 0.0
    %2504 = vmatprep.subr.mxu0 0.0
    %2505 = vmatpush2.msra.mxu0 0.0
    %2506 = vmatprep.subr.mxu0 0.0
    %2507 = vmatpush2.msra.mxu0 0.0
    %2508 = vmatprep.subr.mxu0 0.0
    %2509 = vmatpush2.msra.mxu0 0.0
    %2510 = vmatprep.subr.mxu0 0.0
    %2511 = vmatpush2.msra.mxu0 0.0
    %2512 = vmatprep.mubr.f32.mxu0 0.0
    %v2513 = vand.u32 %v2053, 4294901760
    %2514 = vmatmul.mubr.f32.gmra.mxu0 %v2513
    %v2515 = vpop.f32.mrf.mxu0
    %v2516 = vadd.f32 %v2442, %v2515
    %v2517 = vpop.f32.mrf.mxu0
    %v2518 = vadd.f32 %v2444, %v2517
    %2519 = vdwg.mxu0
    %2520 = vmatprep.subr.mxu0 0.0
    %2521 = vmatpush1.msra.mxu0 0.0
    %2522 = vmatprep.subr.mxu0 0.0
    %2523 = vmatpush1.msra.mxu0 0.0
    %2524 = vmatprep.subr.mxu0 0.0
    %2525 = vmatpush1.msra.mxu0 0.0
    %2526 = vmatprep.subr.mxu0 0.0
    %2527 = vmatpush1.msra.mxu0 0.0
    %2528 = vmatprep.subr.mxu0 0.0
    %2529 = vmatpush1.msra.mxu0 0.0
    %2530 = vmatprep.subr.mxu0 0.0
    %2531 = vmatpush1.msra.mxu0 0.0
    %2532 = vmatprep.subr.mxu0 0.0
    %2533 = vmatpush1.msra.mxu0 0.0
    %2534 = vmatprep.subr.mxu0 0.0
    %2535 = vmatpush1.msra.mxu0 0.0
    %2536 = vmatprep.subr.mxu0 0.0
    %2537 = vmatpush1.msra.mxu0 0.0
    %2538 = vmatprep.subr.mxu0 0.0
    %2539 = vmatpush1.msra.mxu0 0.0
    %2540 = vmatprep.subr.mxu0 0.0
    %2541 = vmatpush1.msra.mxu0 0.0
    %2542 = vmatprep.subr.mxu0 0.0
    %2543 = vmatpush1.msra.mxu0 0.0
    %2544 = vmatprep.subr.mxu0 0.0
    %2545 = vmatpush1.msra.mxu0 0.0
    %2546 = vmatprep.subr.mxu0 0.0
    %2547 = vmatpush1.msra.mxu0 0.0
    %2548 = vmatprep.subr.mxu0 0.0
    %2549 = vmatpush1.msra.mxu0 0.0
    %v2550 = vand.u32 %v2042, 4294901760
    %2551 = vmatprep.subr.mxu0 %v2550
    %v2552 = vand.u32 %v2041, 4294901760
    %2553 = vmatpush1.msra.mxu0 %v2552
    %2554 = vmatprep.subr.mxu0 0.0
    %2555 = vmatpush2.msra.mxu0 0.0
    %2556 = vmatprep.subr.mxu0 0.0
    %2557 = vmatpush2.msra.mxu0 0.0
    %2558 = vmatprep.subr.mxu0 0.0
    %2559 = vmatpush2.msra.mxu0 0.0
    %2560 = vmatprep.subr.mxu0 0.0
    %2561 = vmatpush2.msra.mxu0 0.0
    %2562 = vmatprep.subr.mxu0 0.0
    %2563 = vmatpush2.msra.mxu0 0.0
    %2564 = vmatprep.subr.mxu0 0.0
    %2565 = vmatpush2.msra.mxu0 0.0
    %2566 = vmatprep.subr.mxu0 0.0
    %2567 = vmatpush2.msra.mxu0 0.0
    %2568 = vmatprep.subr.mxu0 0.0
    %2569 = vmatpush2.msra.mxu0 0.0
    %2570 = vmatprep.subr.mxu0 0.0
    %2571 = vmatpush2.msra.mxu0 0.0
    %2572 = vmatprep.subr.mxu0 0.0
    %2573 = vmatpush2.msra.mxu0 0.0
    %2574 = vmatprep.subr.mxu0 0.0
    %2575 = vmatpush2.msra.mxu0 0.0
    %2576 = vmatprep.subr.mxu0 0.0
    %2577 = vmatpush2.msra.mxu0 0.0
    %2578 = vmatprep.subr.mxu0 0.0
    %2579 = vmatpush2.msra.mxu0 0.0
    %2580 = vmatprep.subr.mxu0 0.0
    %2581 = vmatpush2.msra.mxu0 0.0
    %2582 = vmatprep.subr.mxu0 0.0
    %2583 = vmatpush2.msra.mxu0 0.0
    %2584 = vmatprep.subr.mxu0 0.0
    %2585 = vmatpush2.msra.mxu0 0.0
    %2586 = vmatprep.mubr.f32.mxu0 0.0
    %v2587 = vand.u32 %v2053, 4294901760
    %v2588 = vsub.f32 %v2053, %v2587
    %v2589 = vand.u32 %v2588, 4294901760
    %v2590 = vsub.f32 %v2588, %v2589
    %v2591 = vand.u32 %v2590, 4294901760
    %2592 = vmatmul.mubr.f32.gmra.mxu0 %v2591
    %v2593 = vpop.f32.mrf.mxu0
    %v2594 = vadd.f32 %v2050, %v2593
    %v2595 = vpop.f32.mrf.mxu0
    %v2596 = vadd.f32 %v2050, %v2595
    %2597 = vdwg.mxu0
    %2598 = vmatprep.subr.mxu0 0.0
    %2599 = vmatpush1.msra.mxu0 0.0
    %2600 = vmatprep.subr.mxu0 0.0
    %2601 = vmatpush1.msra.mxu0 0.0
    %2602 = vmatprep.subr.mxu0 0.0
    %2603 = vmatpush1.msra.mxu0 0.0
    %2604 = vmatprep.subr.mxu0 0.0
    %2605 = vmatpush1.msra.mxu0 0.0
    %2606 = vmatprep.subr.mxu0 0.0
    %2607 = vmatpush1.msra.mxu0 0.0
    %2608 = vmatprep.subr.mxu0 0.0
    %2609 = vmatpush1.msra.mxu0 0.0
    %2610 = vmatprep.subr.mxu0 0.0
    %2611 = vmatpush1.msra.mxu0 0.0
    %2612 = vmatprep.subr.mxu0 0.0
    %2613 = vmatpush1.msra.mxu0 0.0
    %2614 = vmatprep.subr.mxu0 0.0
    %2615 = vmatpush1.msra.mxu0 0.0
    %2616 = vmatprep.subr.mxu0 0.0
    %2617 = vmatpush1.msra.mxu0 0.0
    %2618 = vmatprep.subr.mxu0 0.0
    %2619 = vmatpush1.msra.mxu0 0.0
    %2620 = vmatprep.subr.mxu0 0.0
    %2621 = vmatpush1.msra.mxu0 0.0
    %2622 = vmatprep.subr.mxu0 0.0
    %2623 = vmatpush1.msra.mxu0 0.0
    %2624 = vmatprep.subr.mxu0 0.0
    %2625 = vmatpush1.msra.mxu0 0.0
    %2626 = vmatprep.subr.mxu0 0.0
    %2627 = vmatpush1.msra.mxu0 0.0
    %v2628 = vand.u32 %v2042, 4294901760
    %v2629 = vsub.f32 %v2042, %v2628
    %v2630 = vand.u32 %v2629, 4294901760
    %v2631 = vsub.f32 %v2629, %v2630
    %v2632 = vand.u32 %v2631, 4294901760
    %2633 = vmatprep.subr.mxu0 %v2632
    %v2634 = vand.u32 %v2041, 4294901760
    %v2635 = vsub.f32 %v2041, %v2634
    %v2636 = vand.u32 %v2635, 4294901760
    %v2637 = vsub.f32 %v2635, %v2636
    %v2638 = vand.u32 %v2637, 4294901760
    %2639 = vmatpush1.msra.mxu0 %v2638
    %2640 = vmatprep.subr.mxu0 0.0
    %2641 = vmatpush2.msra.mxu0 0.0
    %2642 = vmatprep.subr.mxu0 0.0
    %2643 = vmatpush2.msra.mxu0 0.0
    %2644 = vmatprep.subr.mxu0 0.0
    %2645 = vmatpush2.msra.mxu0 0.0
    %2646 = vmatprep.subr.mxu0 0.0
    %2647 = vmatpush2.msra.mxu0 0.0
    %2648 = vmatprep.subr.mxu0 0.0
    %2649 = vmatpush2.msra.mxu0 0.0
    %2650 = vmatprep.subr.mxu0 0.0
    %2651 = vmatpush2.msra.mxu0 0.0
    %2652 = vmatprep.subr.mxu0 0.0
    %2653 = vmatpush2.msra.mxu0 0.0
    %2654 = vmatprep.subr.mxu0 0.0
    %2655 = vmatpush2.msra.mxu0 0.0
    %2656 = vmatprep.subr.mxu0 0.0
    %2657 = vmatpush2.msra.mxu0 0.0
    %2658 = vmatprep.subr.mxu0 0.0
    %2659 = vmatpush2.msra.mxu0 0.0
    %2660 = vmatprep.subr.mxu0 0.0
    %2661 = vmatpush2.msra.mxu0 0.0
    %2662 = vmatprep.subr.mxu0 0.0
    %2663 = vmatpush2.msra.mxu0 0.0
    %2664 = vmatprep.subr.mxu0 0.0
    %2665 = vmatpush2.msra.mxu0 0.0
    %2666 = vmatprep.subr.mxu0 0.0
    %2667 = vmatpush2.msra.mxu0 0.0
    %2668 = vmatprep.subr.mxu0 0.0
    %2669 = vmatpush2.msra.mxu0 0.0
    %2670 = vmatprep.subr.mxu0 0.0
    %2671 = vmatpush2.msra.mxu0 0.0
    %2672 = vmatprep.mubr.f32.mxu0 0.0
    %v2673 = vand.u32 %v2053, 4294901760
    %2674 = vmatmul.mubr.f32.gmra.mxu0 %v2673
    %v2675 = vpop.f32.mrf.mxu0
    %v2676 = vadd.f32 %v2594, %v2675
    %v2677 = vpop.f32.mrf.mxu0
    %v2678 = vadd.f32 %v2596, %v2677
    %2679 = vdwg.mxu0
    %2680 = vmatprep.subr.mxu0 0.0
    %2681 = vmatpush1.msra.mxu0 0.0
    %2682 = vmatprep.subr.mxu0 0.0
    %2683 = vmatpush1.msra.mxu0 0.0
    %2684 = vmatprep.subr.mxu0 0.0
    %2685 = vmatpush1.msra.mxu0 0.0
    %2686 = vmatprep.subr.mxu0 0.0
    %2687 = vmatpush1.msra.mxu0 0.0
    %2688 = vmatprep.subr.mxu0 0.0
    %2689 = vmatpush1.msra.mxu0 0.0
    %2690 = vmatprep.subr.mxu0 0.0
    %2691 = vmatpush1.msra.mxu0 0.0
    %2692 = vmatprep.subr.mxu0 0.0
    %2693 = vmatpush1.msra.mxu0 0.0
    %2694 = vmatprep.subr.mxu0 0.0
    %2695 = vmatpush1.msra.mxu0 0.0
    %2696 = vmatprep.subr.mxu0 0.0
    %2697 = vmatpush1.msra.mxu0 0.0
    %2698 = vmatprep.subr.mxu0 0.0
    %2699 = vmatpush1.msra.mxu0 0.0
    %2700 = vmatprep.subr.mxu0 0.0
    %2701 = vmatpush1.msra.mxu0 0.0
    %2702 = vmatprep.subr.mxu0 0.0
    %2703 = vmatpush1.msra.mxu0 0.0
    %2704 = vmatprep.subr.mxu0 0.0
    %2705 = vmatpush1.msra.mxu0 0.0
    %2706 = vmatprep.subr.mxu0 0.0
    %2707 = vmatpush1.msra.mxu0 0.0
    %2708 = vmatprep.subr.mxu0 0.0
    %2709 = vmatpush1.msra.mxu0 0.0
    %v2710 = vand.u32 %v2042, 4294901760
    %v2711 = vsub.f32 %v2042, %v2710
    %2712 = vmatprep.subr.mxu0 %v2711
    %v2713 = vand.u32 %v2041, 4294901760
    %v2714 = vsub.f32 %v2041, %v2713
    %2715 = vmatpush1.msra.mxu0 %v2714
    %2716 = vmatprep.subr.mxu0 0.0
    %2717 = vmatpush2.msra.mxu0 0.0
    %2718 = vmatprep.subr.mxu0 0.0
    %2719 = vmatpush2.msra.mxu0 0.0
    %2720 = vmatprep.subr.mxu0 0.0
    %2721 = vmatpush2.msra.mxu0 0.0
    %2722 = vmatprep.subr.mxu0 0.0
    %2723 = vmatpush2.msra.mxu0 0.0
    %2724 = vmatprep.subr.mxu0 0.0
    %2725 = vmatpush2.msra.mxu0 0.0
    %2726 = vmatprep.subr.mxu0 0.0
    %2727 = vmatpush2.msra.mxu0 0.0
    %2728 = vmatprep.subr.mxu0 0.0
    %2729 = vmatpush2.msra.mxu0 0.0
    %2730 = vmatprep.subr.mxu0 0.0
    %2731 = vmatpush2.msra.mxu0 0.0
    %2732 = vmatprep.subr.mxu0 0.0
    %2733 = vmatpush2.msra.mxu0 0.0
    %2734 = vmatprep.subr.mxu0 0.0
    %2735 = vmatpush2.msra.mxu0 0.0
    %2736 = vmatprep.subr.mxu0 0.0
    %2737 = vmatpush2.msra.mxu0 0.0
    %2738 = vmatprep.subr.mxu0 0.0
    %2739 = vmatpush2.msra.mxu0 0.0
    %2740 = vmatprep.subr.mxu0 0.0
    %2741 = vmatpush2.msra.mxu0 0.0
    %2742 = vmatprep.subr.mxu0 0.0
    %2743 = vmatpush2.msra.mxu0 0.0
    %2744 = vmatprep.subr.mxu0 0.0
    %2745 = vmatpush2.msra.mxu0 0.0
    %2746 = vmatprep.subr.mxu0 0.0
    %2747 = vmatpush2.msra.mxu0 0.0
    %2748 = vmatprep.mubr.f32.mxu0 0.0
    %v2749 = vand.u32 %v2053, 4294901760
    %v2750 = vsub.f32 %v2053, %v2749
    %2751 = vmatmul.mubr.f32.gmra.mxu0 %v2750
    %v2752 = vpop.f32.mrf.mxu0
    %v2753 = vadd.f32 %v2676, %v2752
    %v2754 = vpop.f32.mrf.mxu0
    %v2755 = vadd.f32 %v2678, %v2754
    %2756 = vdwg.mxu0
    %2757 = vmatprep.subr.mxu0 0.0
    %2758 = vmatpush1.msra.mxu0 0.0
    %2759 = vmatprep.subr.mxu0 0.0
    %2760 = vmatpush1.msra.mxu0 0.0
    %2761 = vmatprep.subr.mxu0 0.0
    %2762 = vmatpush1.msra.mxu0 0.0
    %2763 = vmatprep.subr.mxu0 0.0
    %2764 = vmatpush1.msra.mxu0 0.0
    %2765 = vmatprep.subr.mxu0 0.0
    %2766 = vmatpush1.msra.mxu0 0.0
    %2767 = vmatprep.subr.mxu0 0.0
    %2768 = vmatpush1.msra.mxu0 0.0
    %2769 = vmatprep.subr.mxu0 0.0
    %2770 = vmatpush1.msra.mxu0 0.0
    %2771 = vmatprep.subr.mxu0 0.0
    %2772 = vmatpush1.msra.mxu0 0.0
    %2773 = vmatprep.subr.mxu0 0.0
    %2774 = vmatpush1.msra.mxu0 0.0
    %2775 = vmatprep.subr.mxu0 0.0
    %2776 = vmatpush1.msra.mxu0 0.0
    %2777 = vmatprep.subr.mxu0 0.0
    %2778 = vmatpush1.msra.mxu0 0.0
    %2779 = vmatprep.subr.mxu0 0.0
    %2780 = vmatpush1.msra.mxu0 0.0
    %2781 = vmatprep.subr.mxu0 0.0
    %2782 = vmatpush1.msra.mxu0 0.0
    %2783 = vmatprep.subr.mxu0 0.0
    %2784 = vmatpush1.msra.mxu0 0.0
    %2785 = vmatprep.subr.mxu0 0.0
    %2786 = vmatpush1.msra.mxu0 0.0
    %v2787 = vand.u32 %v2042, 4294901760
    %2788 = vmatprep.subr.mxu0 %v2787
    %v2789 = vand.u32 %v2041, 4294901760
    %2790 = vmatpush1.msra.mxu0 %v2789
    %2791 = vmatprep.subr.mxu0 0.0
    %2792 = vmatpush2.msra.mxu0 0.0
    %2793 = vmatprep.subr.mxu0 0.0
    %2794 = vmatpush2.msra.mxu0 0.0
    %2795 = vmatprep.subr.mxu0 0.0
    %2796 = vmatpush2.msra.mxu0 0.0
    %2797 = vmatprep.subr.mxu0 0.0
    %2798 = vmatpush2.msra.mxu0 0.0
    %2799 = vmatprep.subr.mxu0 0.0
    %2800 = vmatpush2.msra.mxu0 0.0
    %2801 = vmatprep.subr.mxu0 0.0
    %2802 = vmatpush2.msra.mxu0 0.0
    %2803 = vmatprep.subr.mxu0 0.0
    %2804 = vmatpush2.msra.mxu0 0.0
    %2805 = vmatprep.subr.mxu0 0.0
    %2806 = vmatpush2.msra.mxu0 0.0
    %2807 = vmatprep.subr.mxu0 0.0
    %2808 = vmatpush2.msra.mxu0 0.0
    %2809 = vmatprep.subr.mxu0 0.0
    %2810 = vmatpush2.msra.mxu0 0.0
    %2811 = vmatprep.subr.mxu0 0.0
    %2812 = vmatpush2.msra.mxu0 0.0
    %2813 = vmatprep.subr.mxu0 0.0
    %2814 = vmatpush2.msra.mxu0 0.0
    %2815 = vmatprep.subr.mxu0 0.0
    %2816 = vmatpush2.msra.mxu0 0.0
    %2817 = vmatprep.subr.mxu0 0.0
    %2818 = vmatpush2.msra.mxu0 0.0
    %2819 = vmatprep.subr.mxu0 0.0
    %2820 = vmatpush2.msra.mxu0 0.0
    %2821 = vmatprep.subr.mxu0 0.0
    %2822 = vmatpush2.msra.mxu0 0.0
    %2823 = vmatprep.mubr.f32.mxu0 0.0
    %v2824 = vand.u32 %v2053, 4294901760
    %v2825 = vsub.f32 %v2053, %v2824
    %v2826 = vand.u32 %v2825, 4294901760
    %2827 = vmatmul.mubr.f32.gmra.mxu0 %v2826
    %v2828 = vpop.f32.mrf.mxu0
    %v2829 = vadd.f32 %v2753, %v2828
    %v2830 = vpop.f32.mrf.mxu0
    %v2831 = vadd.f32 %v2755, %v2830
    %2832 = vdwg.mxu0
    %2833 = vmatprep.subr.mxu0 0.0
    %2834 = vmatpush1.msra.mxu0 0.0
    %2835 = vmatprep.subr.mxu0 0.0
    %2836 = vmatpush1.msra.mxu0 0.0
    %2837 = vmatprep.subr.mxu0 0.0
    %2838 = vmatpush1.msra.mxu0 0.0
    %2839 = vmatprep.subr.mxu0 0.0
    %2840 = vmatpush1.msra.mxu0 0.0
    %2841 = vmatprep.subr.mxu0 0.0
    %2842 = vmatpush1.msra.mxu0 0.0
    %2843 = vmatprep.subr.mxu0 0.0
    %2844 = vmatpush1.msra.mxu0 0.0
    %2845 = vmatprep.subr.mxu0 0.0
    %2846 = vmatpush1.msra.mxu0 0.0
    %2847 = vmatprep.subr.mxu0 0.0
    %2848 = vmatpush1.msra.mxu0 0.0
    %2849 = vmatprep.subr.mxu0 0.0
    %2850 = vmatpush1.msra.mxu0 0.0
    %2851 = vmatprep.subr.mxu0 0.0
    %2852 = vmatpush1.msra.mxu0 0.0
    %2853 = vmatprep.subr.mxu0 0.0
    %2854 = vmatpush1.msra.mxu0 0.0
    %2855 = vmatprep.subr.mxu0 0.0
    %2856 = vmatpush1.msra.mxu0 0.0
    %2857 = vmatprep.subr.mxu0 0.0
    %2858 = vmatpush1.msra.mxu0 0.0
    %2859 = vmatprep.subr.mxu0 0.0
    %2860 = vmatpush1.msra.mxu0 0.0
    %2861 = vmatprep.subr.mxu0 0.0
    %2862 = vmatpush1.msra.mxu0 0.0
    %v2863 = vand.u32 %v2042, 4294901760
    %v2864 = vsub.f32 %v2042, %v2863
    %v2865 = vand.u32 %v2864, 4294901760
    %2866 = vmatprep.subr.mxu0 %v2865
    %v2867 = vand.u32 %v2041, 4294901760
    %v2868 = vsub.f32 %v2041, %v2867
    %v2869 = vand.u32 %v2868, 4294901760
    %2870 = vmatpush1.msra.mxu0 %v2869
    %2871 = vmatprep.subr.mxu0 0.0
    %2872 = vmatpush2.msra.mxu0 0.0
    %2873 = vmatprep.subr.mxu0 0.0
    %2874 = vmatpush2.msra.mxu0 0.0
    %2875 = vmatprep.subr.mxu0 0.0
    %2876 = vmatpush2.msra.mxu0 0.0
    %2877 = vmatprep.subr.mxu0 0.0
    %2878 = vmatpush2.msra.mxu0 0.0
    %2879 = vmatprep.subr.mxu0 0.0
    %2880 = vmatpush2.msra.mxu0 0.0
    %2881 = vmatprep.subr.mxu0 0.0
    %2882 = vmatpush2.msra.mxu0 0.0
    %2883 = vmatprep.subr.mxu0 0.0
    %2884 = vmatpush2.msra.mxu0 0.0
    %2885 = vmatprep.subr.mxu0 0.0
    %2886 = vmatpush2.msra.mxu0 0.0
    %2887 = vmatprep.subr.mxu0 0.0
    %2888 = vmatpush2.msra.mxu0 0.0
    %2889 = vmatprep.subr.mxu0 0.0
    %2890 = vmatpush2.msra.mxu0 0.0
    %2891 = vmatprep.subr.mxu0 0.0
    %2892 = vmatpush2.msra.mxu0 0.0
    %2893 = vmatprep.subr.mxu0 0.0
    %2894 = vmatpush2.msra.mxu0 0.0
    %2895 = vmatprep.subr.mxu0 0.0
    %2896 = vmatpush2.msra.mxu0 0.0
    %2897 = vmatprep.subr.mxu0 0.0
    %2898 = vmatpush2.msra.mxu0 0.0
    %2899 = vmatprep.subr.mxu0 0.0
    %2900 = vmatpush2.msra.mxu0 0.0
    %2901 = vmatprep.subr.mxu0 0.0
    %2902 = vmatpush2.msra.mxu0 0.0
    %2903 = vmatprep.mubr.f32.mxu0 0.0
    %v2904 = vand.u32 %v2053, 4294901760
    %2905 = vmatmul.mubr.f32.gmra.mxu0 %v2904
    %v2906 = vpop.f32.mrf.mxu0
    %v2907 = vadd.f32 %v2829, %v2906
    %v2908 = vpop.f32.mrf.mxu0
    %v2909 = vadd.f32 %v2831, %v2908
    %2910 = vdwg.mxu0
    %2911 = vmatprep.subr.mxu0 0.0
    %2912 = vmatpush1.msra.mxu0 0.0
    %2913 = vmatprep.subr.mxu0 0.0
    %2914 = vmatpush1.msra.mxu0 0.0
    %2915 = vmatprep.subr.mxu0 0.0
    %2916 = vmatpush1.msra.mxu0 0.0
    %2917 = vmatprep.subr.mxu0 0.0
    %2918 = vmatpush1.msra.mxu0 0.0
    %2919 = vmatprep.subr.mxu0 0.0
    %2920 = vmatpush1.msra.mxu0 0.0
    %2921 = vmatprep.subr.mxu0 0.0
    %2922 = vmatpush1.msra.mxu0 0.0
    %2923 = vmatprep.subr.mxu0 0.0
    %2924 = vmatpush1.msra.mxu0 0.0
    %2925 = vmatprep.subr.mxu0 0.0
    %2926 = vmatpush1.msra.mxu0 0.0
    %2927 = vmatprep.subr.mxu0 0.0
    %2928 = vmatpush1.msra.mxu0 0.0
    %2929 = vmatprep.subr.mxu0 0.0
    %2930 = vmatpush1.msra.mxu0 0.0
    %2931 = vmatprep.subr.mxu0 0.0
    %2932 = vmatpush1.msra.mxu0 0.0
    %2933 = vmatprep.subr.mxu0 0.0
    %2934 = vmatpush1.msra.mxu0 0.0
    %2935 = vmatprep.subr.mxu0 0.0
    %2936 = vmatpush1.msra.mxu0 0.0
    %2937 = vmatprep.subr.mxu0 0.0
    %2938 = vmatpush1.msra.mxu0 0.0
    %2939 = vmatprep.subr.mxu0 0.0
    %2940 = vmatpush1.msra.mxu0 0.0
    %v2941 = vand.u32 %v2042, 4294901760
    %2942 = vmatprep.subr.mxu0 %v2941
    %v2943 = vand.u32 %v2041, 4294901760
    %2944 = vmatpush1.msra.mxu0 %v2943
    %2945 = vmatprep.subr.mxu0 0.0
    %2946 = vmatpush2.msra.mxu0 0.0
    %2947 = vmatprep.subr.mxu0 0.0
    %2948 = vmatpush2.msra.mxu0 0.0
    %2949 = vmatprep.subr.mxu0 0.0
    %2950 = vmatpush2.msra.mxu0 0.0
    %2951 = vmatprep.subr.mxu0 0.0
    %2952 = vmatpush2.msra.mxu0 0.0
    %2953 = vmatprep.subr.mxu0 0.0
    %2954 = vmatpush2.msra.mxu0 0.0
    %2955 = vmatprep.subr.mxu0 0.0
    %2956 = vmatpush2.msra.mxu0 0.0
    %2957 = vmatprep.subr.mxu0 0.0
    %2958 = vmatpush2.msra.mxu0 0.0
    %2959 = vmatprep.subr.mxu0 0.0
    %2960 = vmatpush2.msra.mxu0 0.0
    %2961 = vmatprep.subr.mxu0 0.0
    %2962 = vmatpush2.msra.mxu0 0.0
    %2963 = vmatprep.subr.mxu0 0.0
    %2964 = vmatpush2.msra.mxu0 0.0
    %2965 = vmatprep.subr.mxu0 0.0
    %2966 = vmatpush2.msra.mxu0 0.0
    %2967 = vmatprep.subr.mxu0 0.0
    %2968 = vmatpush2.msra.mxu0 0.0
    %2969 = vmatprep.subr.mxu0 0.0
    %2970 = vmatpush2.msra.mxu0 0.0
    %2971 = vmatprep.subr.mxu0 0.0
    %2972 = vmatpush2.msra.mxu0 0.0
    %2973 = vmatprep.subr.mxu0 0.0
    %2974 = vmatpush2.msra.mxu0 0.0
    %2975 = vmatprep.subr.mxu0 0.0
    %2976 = vmatpush2.msra.mxu0 0.0
    %2977 = vmatprep.mubr.f32.mxu0 0.0
    %v2978 = vand.u32 %v2053, 4294901760
    %2979 = vmatmul.mubr.f32.gmra.mxu0 %v2978
    %v2980 = vpop.f32.mrf.mxu0
    %v2981 = vadd.f32 %v2907, %v2980
    %v2982 = vpop.f32.mrf.mxu0
    %v2983 = vadd.f32 %v2909, %v2982
    %2984 = vdwg.mxu0
    %2985 = vmatprep.subr.mxu0 0.0
    %2986 = vmatpush1.msra.mxu0 0.0
    %2987 = vmatprep.subr.mxu0 0.0
    %2988 = vmatpush1.msra.mxu0 0.0
    %2989 = vmatprep.subr.mxu0 0.0
    %2990 = vmatpush1.msra.mxu0 0.0
    %2991 = vmatprep.subr.mxu0 0.0
    %2992 = vmatpush1.msra.mxu0 0.0
    %2993 = vmatprep.subr.mxu0 0.0
    %2994 = vmatpush1.msra.mxu0 0.0
    %2995 = vmatprep.subr.mxu0 0.0
    %2996 = vmatpush1.msra.mxu0 0.0
    %2997 = vmatprep.subr.mxu0 0.0
    %2998 = vmatpush1.msra.mxu0 0.0
    %2999 = vmatprep.subr.mxu0 0.0
    %3000 = vmatpush1.msra.mxu0 0.0
    %3001 = vmatprep.subr.mxu0 0.0
    %3002 = vmatpush1.msra.mxu0 0.0
    %3003 = vmatprep.subr.mxu0 0.0
    %3004 = vmatpush1.msra.mxu0 0.0
    %3005 = vmatprep.subr.mxu0 0.0
    %3006 = vmatpush1.msra.mxu0 0.0
    %3007 = vmatprep.subr.mxu0 0.0
    %3008 = vmatpush1.msra.mxu0 0.0
    %3009 = vmatprep.subr.mxu0 0.0
    %3010 = vmatpush1.msra.mxu0 0.0
    %3011 = vmatprep.subr.mxu0 0.0
    %3012 = vmatpush1.msra.mxu0 0.0
    %3013 = vmatprep.subr.mxu0 0.0
    %3014 = vmatpush1.msra.mxu0 0.0
    %v3015 = vand.u32 %v2044, 4294901760
    %3016 = vmatprep.subr.mxu0 %v3015
    %v3017 = vand.u32 %v2043, 4294901760
    %3018 = vmatpush1.msra.mxu0 %v3017
    %3019 = vmatprep.subr.mxu0 0.0
    %3020 = vmatpush2.msra.mxu0 0.0
    %3021 = vmatprep.subr.mxu0 0.0
    %3022 = vmatpush2.msra.mxu0 0.0
    %3023 = vmatprep.subr.mxu0 0.0
    %3024 = vmatpush2.msra.mxu0 0.0
    %3025 = vmatprep.subr.mxu0 0.0
    %3026 = vmatpush2.msra.mxu0 0.0
    %3027 = vmatprep.subr.mxu0 0.0
    %3028 = vmatpush2.msra.mxu0 0.0
    %3029 = vmatprep.subr.mxu0 0.0
    %3030 = vmatpush2.msra.mxu0 0.0
    %3031 = vmatprep.subr.mxu0 0.0
    %3032 = vmatpush2.msra.mxu0 0.0
    %3033 = vmatprep.subr.mxu0 0.0
    %3034 = vmatpush2.msra.mxu0 0.0
    %3035 = vmatprep.subr.mxu0 0.0
    %3036 = vmatpush2.msra.mxu0 0.0
    %3037 = vmatprep.subr.mxu0 0.0
    %3038 = vmatpush2.msra.mxu0 0.0
    %3039 = vmatprep.subr.mxu0 0.0
    %3040 = vmatpush2.msra.mxu0 0.0
    %3041 = vmatprep.subr.mxu0 0.0
    %3042 = vmatpush2.msra.mxu0 0.0
    %3043 = vmatprep.subr.mxu0 0.0
    %3044 = vmatpush2.msra.mxu0 0.0
    %3045 = vmatprep.subr.mxu0 0.0
    %3046 = vmatpush2.msra.mxu0 0.0
    %3047 = vmatprep.subr.mxu0 0.0
    %3048 = vmatpush2.msra.mxu0 0.0
    %3049 = vmatprep.subr.mxu0 0.0
    %3050 = vmatpush2.msra.mxu0 0.0
    %3051 = vmatprep.mubr.f32.mxu0 0.0
    %v3052 = vand.u32 %v2053, 4294901760
    %v3053 = vsub.f32 %v2053, %v3052
    %v3054 = vand.u32 %v3053, 4294901760
    %v3055 = vsub.f32 %v3053, %v3054
    %v3056 = vand.u32 %v3055, 4294901760
    %3057 = vmatmul.mubr.f32.gmra.mxu0 %v3056
    %v3058 = vpop.f32.mrf.mxu0
    %v3059 = vadd.f32 %v2050, %v3058
    %v3060 = vpop.f32.mrf.mxu0
    %v3061 = vadd.f32 %v2050, %v3060
    %3062 = vdwg.mxu0
    %3063 = vmatprep.subr.mxu0 0.0
    %3064 = vmatpush1.msra.mxu0 0.0
    %3065 = vmatprep.subr.mxu0 0.0
    %3066 = vmatpush1.msra.mxu0 0.0
    %3067 = vmatprep.subr.mxu0 0.0
    %3068 = vmatpush1.msra.mxu0 0.0
    %3069 = vmatprep.subr.mxu0 0.0
    %3070 = vmatpush1.msra.mxu0 0.0
    %3071 = vmatprep.subr.mxu0 0.0
    %3072 = vmatpush1.msra.mxu0 0.0
    %3073 = vmatprep.subr.mxu0 0.0
    %3074 = vmatpush1.msra.mxu0 0.0
    %3075 = vmatprep.subr.mxu0 0.0
    %3076 = vmatpush1.msra.mxu0 0.0
    %3077 = vmatprep.subr.mxu0 0.0
    %3078 = vmatpush1.msra.mxu0 0.0
    %3079 = vmatprep.subr.mxu0 0.0
    %3080 = vmatpush1.msra.mxu0 0.0
    %3081 = vmatprep.subr.mxu0 0.0
    %3082 = vmatpush1.msra.mxu0 0.0
    %3083 = vmatprep.subr.mxu0 0.0
    %3084 = vmatpush1.msra.mxu0 0.0
    %3085 = vmatprep.subr.mxu0 0.0
    %3086 = vmatpush1.msra.mxu0 0.0
    %3087 = vmatprep.subr.mxu0 0.0
    %3088 = vmatpush1.msra.mxu0 0.0
    %3089 = vmatprep.subr.mxu0 0.0
    %3090 = vmatpush1.msra.mxu0 0.0
    %3091 = vmatprep.subr.mxu0 0.0
    %3092 = vmatpush1.msra.mxu0 0.0
    %v3093 = vand.u32 %v2044, 4294901760
    %v3094 = vsub.f32 %v2044, %v3093
    %v3095 = vand.u32 %v3094, 4294901760
    %v3096 = vsub.f32 %v3094, %v3095
    %v3097 = vand.u32 %v3096, 4294901760
    %3098 = vmatprep.subr.mxu0 %v3097
    %v3099 = vand.u32 %v2043, 4294901760
    %v3100 = vsub.f32 %v2043, %v3099
    %v3101 = vand.u32 %v3100, 4294901760
    %v3102 = vsub.f32 %v3100, %v3101
    %v3103 = vand.u32 %v3102, 4294901760
    %3104 = vmatpush1.msra.mxu0 %v3103
    %3105 = vmatprep.subr.mxu0 0.0
    %3106 = vmatpush2.msra.mxu0 0.0
    %3107 = vmatprep.subr.mxu0 0.0
    %3108 = vmatpush2.msra.mxu0 0.0
    %3109 = vmatprep.subr.mxu0 0.0
    %3110 = vmatpush2.msra.mxu0 0.0
    %3111 = vmatprep.subr.mxu0 0.0
    %3112 = vmatpush2.msra.mxu0 0.0
    %3113 = vmatprep.subr.mxu0 0.0
    %3114 = vmatpush2.msra.mxu0 0.0
    %3115 = vmatprep.subr.mxu0 0.0
    %3116 = vmatpush2.msra.mxu0 0.0
    %3117 = vmatprep.subr.mxu0 0.0
    %3118 = vmatpush2.msra.mxu0 0.0
    %3119 = vmatprep.subr.mxu0 0.0
    %3120 = vmatpush2.msra.mxu0 0.0
    %3121 = vmatprep.subr.mxu0 0.0
    %3122 = vmatpush2.msra.mxu0 0.0
    %3123 = vmatprep.subr.mxu0 0.0
    %3124 = vmatpush2.msra.mxu0 0.0
    %3125 = vmatprep.subr.mxu0 0.0
    %3126 = vmatpush2.msra.mxu0 0.0
    %3127 = vmatprep.subr.mxu0 0.0
    %3128 = vmatpush2.msra.mxu0 0.0
    %3129 = vmatprep.subr.mxu0 0.0
    %3130 = vmatpush2.msra.mxu0 0.0
    %3131 = vmatprep.subr.mxu0 0.0
    %3132 = vmatpush2.msra.mxu0 0.0
    %3133 = vmatprep.subr.mxu0 0.0
    %3134 = vmatpush2.msra.mxu0 0.0
    %3135 = vmatprep.subr.mxu0 0.0
    %3136 = vmatpush2.msra.mxu0 0.0
    %3137 = vmatprep.mubr.f32.mxu0 0.0
    %v3138 = vand.u32 %v2053, 4294901760
    %3139 = vmatmul.mubr.f32.gmra.mxu0 %v3138
    %v3140 = vpop.f32.mrf.mxu0
    %v3141 = vadd.f32 %v3059, %v3140
    %v3142 = vpop.f32.mrf.mxu0
    %v3143 = vadd.f32 %v3061, %v3142
    %3144 = vdwg.mxu0
    %3145 = vmatprep.subr.mxu0 0.0
    %3146 = vmatpush1.msra.mxu0 0.0
    %3147 = vmatprep.subr.mxu0 0.0
    %3148 = vmatpush1.msra.mxu0 0.0
    %3149 = vmatprep.subr.mxu0 0.0
    %3150 = vmatpush1.msra.mxu0 0.0
    %3151 = vmatprep.subr.mxu0 0.0
    %3152 = vmatpush1.msra.mxu0 0.0
    %3153 = vmatprep.subr.mxu0 0.0
    %3154 = vmatpush1.msra.mxu0 0.0
    %3155 = vmatprep.subr.mxu0 0.0
    %3156 = vmatpush1.msra.mxu0 0.0
    %3157 = vmatprep.subr.mxu0 0.0
    %3158 = vmatpush1.msra.mxu0 0.0
    %3159 = vmatprep.subr.mxu0 0.0
    %3160 = vmatpush1.msra.mxu0 0.0
    %3161 = vmatprep.subr.mxu0 0.0
    %3162 = vmatpush1.msra.mxu0 0.0
    %3163 = vmatprep.subr.mxu0 0.0
    %3164 = vmatpush1.msra.mxu0 0.0
    %3165 = vmatprep.subr.mxu0 0.0
    %3166 = vmatpush1.msra.mxu0 0.0
    %3167 = vmatprep.subr.mxu0 0.0
    %3168 = vmatpush1.msra.mxu0 0.0
    %3169 = vmatprep.subr.mxu0 0.0
    %3170 = vmatpush1.msra.mxu0 0.0
    %3171 = vmatprep.subr.mxu0 0.0
    %3172 = vmatpush1.msra.mxu0 0.0
    %3173 = vmatprep.subr.mxu0 0.0
    %3174 = vmatpush1.msra.mxu0 0.0
    %v3175 = vand.u32 %v2044, 4294901760
    %v3176 = vsub.f32 %v2044, %v3175
    %3177 = vmatprep.subr.mxu0 %v3176
    %v3178 = vand.u32 %v2043, 4294901760
    %v3179 = vsub.f32 %v2043, %v3178
    %3180 = vmatpush1.msra.mxu0 %v3179
    %3181 = vmatprep.subr.mxu0 0.0
    %3182 = vmatpush2.msra.mxu0 0.0
    %3183 = vmatprep.subr.mxu0 0.0
    %3184 = vmatpush2.msra.mxu0 0.0
    %3185 = vmatprep.subr.mxu0 0.0
    %3186 = vmatpush2.msra.mxu0 0.0
    %3187 = vmatprep.subr.mxu0 0.0
    %3188 = vmatpush2.msra.mxu0 0.0
    %3189 = vmatprep.subr.mxu0 0.0
    %3190 = vmatpush2.msra.mxu0 0.0
    %3191 = vmatprep.subr.mxu0 0.0
    %3192 = vmatpush2.msra.mxu0 0.0
    %3193 = vmatprep.subr.mxu0 0.0
    %3194 = vmatpush2.msra.mxu0 0.0
    %3195 = vmatprep.subr.mxu0 0.0
    %3196 = vmatpush2.msra.mxu0 0.0
    %3197 = vmatprep.subr.mxu0 0.0
    %3198 = vmatpush2.msra.mxu0 0.0
    %3199 = vmatprep.subr.mxu0 0.0
    %3200 = vmatpush2.msra.mxu0 0.0
    %3201 = vmatprep.subr.mxu0 0.0
    %3202 = vmatpush2.msra.mxu0 0.0
    %3203 = vmatprep.subr.mxu0 0.0
    %3204 = vmatpush2.msra.mxu0 0.0
    %3205 = vmatprep.subr.mxu0 0.0
    %3206 = vmatpush2.msra.mxu0 0.0
    %3207 = vmatprep.subr.mxu0 0.0
    %3208 = vmatpush2.msra.mxu0 0.0
    %3209 = vmatprep.subr.mxu0 0.0
    %3210 = vmatpush2.msra.mxu0 0.0
    %3211 = vmatprep.subr.mxu0 0.0
    %3212 = vmatpush2.msra.mxu0 0.0
    %3213 = vmatprep.mubr.f32.mxu0 0.0
    %v3214 = vand.u32 %v2053, 4294901760
    %v3215 = vsub.f32 %v2053, %v3214
    %3216 = vmatmul.mubr.f32.gmra.mxu0 %v3215
    %v3217 = vpop.f32.mrf.mxu0
    %v3218 = vadd.f32 %v3141, %v3217
    %v3219 = vpop.f32.mrf.mxu0
    %v3220 = vadd.f32 %v3143, %v3219
    %3221 = vdwg.mxu0
    %3222 = vmatprep.subr.mxu0 0.0
    %3223 = vmatpush1.msra.mxu0 0.0
    %3224 = vmatprep.subr.mxu0 0.0
    %3225 = vmatpush1.msra.mxu0 0.0
    %3226 = vmatprep.subr.mxu0 0.0
    %3227 = vmatpush1.msra.mxu0 0.0
    %3228 = vmatprep.subr.mxu0 0.0
    %3229 = vmatpush1.msra.mxu0 0.0
    %3230 = vmatprep.subr.mxu0 0.0
    %3231 = vmatpush1.msra.mxu0 0.0
    %3232 = vmatprep.subr.mxu0 0.0
    %3233 = vmatpush1.msra.mxu0 0.0
    %3234 = vmatprep.subr.mxu0 0.0
    %3235 = vmatpush1.msra.mxu0 0.0
    %3236 = vmatprep.subr.mxu0 0.0
    %3237 = vmatpush1.msra.mxu0 0.0
    %3238 = vmatprep.subr.mxu0 0.0
    %3239 = vmatpush1.msra.mxu0 0.0
    %3240 = vmatprep.subr.mxu0 0.0
    %3241 = vmatpush1.msra.mxu0 0.0
    %3242 = vmatprep.subr.mxu0 0.0
    %3243 = vmatpush1.msra.mxu0 0.0
    %3244 = vmatprep.subr.mxu0 0.0
    %3245 = vmatpush1.msra.mxu0 0.0
    %3246 = vmatprep.subr.mxu0 0.0
    %3247 = vmatpush1.msra.mxu0 0.0
    %3248 = vmatprep.subr.mxu0 0.0
    %3249 = vmatpush1.msra.mxu0 0.0
    %3250 = vmatprep.subr.mxu0 0.0
    %3251 = vmatpush1.msra.mxu0 0.0
    %v3252 = vand.u32 %v2044, 4294901760
    %3253 = vmatprep.subr.mxu0 %v3252
    %v3254 = vand.u32 %v2043, 4294901760
    %3255 = vmatpush1.msra.mxu0 %v3254
    %3256 = vmatprep.subr.mxu0 0.0
    %3257 = vmatpush2.msra.mxu0 0.0
    %3258 = vmatprep.subr.mxu0 0.0
    %3259 = vmatpush2.msra.mxu0 0.0
    %3260 = vmatprep.subr.mxu0 0.0
    %3261 = vmatpush2.msra.mxu0 0.0
    %3262 = vmatprep.subr.mxu0 0.0
    %3263 = vmatpush2.msra.mxu0 0.0
    %3264 = vmatprep.subr.mxu0 0.0
    %3265 = vmatpush2.msra.mxu0 0.0
    %3266 = vmatprep.subr.mxu0 0.0
    %3267 = vmatpush2.msra.mxu0 0.0
    %3268 = vmatprep.subr.mxu0 0.0
    %3269 = vmatpush2.msra.mxu0 0.0
    %3270 = vmatprep.subr.mxu0 0.0
    %3271 = vmatpush2.msra.mxu0 0.0
    %3272 = vmatprep.subr.mxu0 0.0
    %3273 = vmatpush2.msra.mxu0 0.0
    %3274 = vmatprep.subr.mxu0 0.0
    %3275 = vmatpush2.msra.mxu0 0.0
    %3276 = vmatprep.subr.mxu0 0.0
    %3277 = vmatpush2.msra.mxu0 0.0
    %3278 = vmatprep.subr.mxu0 0.0
    %3279 = vmatpush2.msra.mxu0 0.0
    %3280 = vmatprep.subr.mxu0 0.0
    %3281 = vmatpush2.msra.mxu0 0.0
    %3282 = vmatprep.subr.mxu0 0.0
    %3283 = vmatpush2.msra.mxu0 0.0
    %3284 = vmatprep.subr.mxu0 0.0
    %3285 = vmatpush2.msra.mxu0 0.0
    %3286 = vmatprep.subr.mxu0 0.0
    %3287 = vmatpush2.msra.mxu0 0.0
    %3288 = vmatprep.mubr.f32.mxu0 0.0
    %v3289 = vand.u32 %v2053, 4294901760
    %v3290 = vsub.f32 %v2053, %v3289
    %v3291 = vand.u32 %v3290, 4294901760
    %3292 = vmatmul.mubr.f32.gmra.mxu0 %v3291
    %v3293 = vpop.f32.mrf.mxu0
    %v3294 = vadd.f32 %v3218, %v3293
    %v3295 = vpop.f32.mrf.mxu0
    %v3296 = vadd.f32 %v3220, %v3295
    %3297 = vdwg.mxu0
    %3298 = vmatprep.subr.mxu0 0.0
    %3299 = vmatpush1.msra.mxu0 0.0
    %3300 = vmatprep.subr.mxu0 0.0
    %3301 = vmatpush1.msra.mxu0 0.0
    %3302 = vmatprep.subr.mxu0 0.0
    %3303 = vmatpush1.msra.mxu0 0.0
    %3304 = vmatprep.subr.mxu0 0.0
    %3305 = vmatpush1.msra.mxu0 0.0
    %3306 = vmatprep.subr.mxu0 0.0
    %3307 = vmatpush1.msra.mxu0 0.0
    %3308 = vmatprep.subr.mxu0 0.0
    %3309 = vmatpush1.msra.mxu0 0.0
    %3310 = vmatprep.subr.mxu0 0.0
    %3311 = vmatpush1.msra.mxu0 0.0
    %3312 = vmatprep.subr.mxu0 0.0
    %3313 = vmatpush1.msra.mxu0 0.0
    %3314 = vmatprep.subr.mxu0 0.0
    %3315 = vmatpush1.msra.mxu0 0.0
    %3316 = vmatprep.subr.mxu0 0.0
    %3317 = vmatpush1.msra.mxu0 0.0
    %3318 = vmatprep.subr.mxu0 0.0
    %3319 = vmatpush1.msra.mxu0 0.0
    %3320 = vmatprep.subr.mxu0 0.0
    %3321 = vmatpush1.msra.mxu0 0.0
    %3322 = vmatprep.subr.mxu0 0.0
    %3323 = vmatpush1.msra.mxu0 0.0
    %3324 = vmatprep.subr.mxu0 0.0
    %3325 = vmatpush1.msra.mxu0 0.0
    %3326 = vmatprep.subr.mxu0 0.0
    %3327 = vmatpush1.msra.mxu0 0.0
    %v3328 = vand.u32 %v2044, 4294901760
    %v3329 = vsub.f32 %v2044, %v3328
    %v3330 = vand.u32 %v3329, 4294901760
    %3331 = vmatprep.subr.mxu0 %v3330
    %v3332 = vand.u32 %v2043, 4294901760
    %v3333 = vsub.f32 %v2043, %v3332
    %v3334 = vand.u32 %v3333, 4294901760
    %3335 = vmatpush1.msra.mxu0 %v3334
    %3336 = vmatprep.subr.mxu0 0.0
    %3337 = vmatpush2.msra.mxu0 0.0
    %3338 = vmatprep.subr.mxu0 0.0
    %3339 = vmatpush2.msra.mxu0 0.0
    %3340 = vmatprep.subr.mxu0 0.0
    %3341 = vmatpush2.msra.mxu0 0.0
    %3342 = vmatprep.subr.mxu0 0.0
    %3343 = vmatpush2.msra.mxu0 0.0
    %3344 = vmatprep.subr.mxu0 0.0
    %3345 = vmatpush2.msra.mxu0 0.0
    %3346 = vmatprep.subr.mxu0 0.0
    %3347 = vmatpush2.msra.mxu0 0.0
    %3348 = vmatprep.subr.mxu0 0.0
    %3349 = vmatpush2.msra.mxu0 0.0
    %3350 = vmatprep.subr.mxu0 0.0
    %3351 = vmatpush2.msra.mxu0 0.0
    %3352 = vmatprep.subr.mxu0 0.0
    %3353 = vmatpush2.msra.mxu0 0.0
    %3354 = vmatprep.subr.mxu0 0.0
    %3355 = vmatpush2.msra.mxu0 0.0
    %3356 = vmatprep.subr.mxu0 0.0
    %3357 = vmatpush2.msra.mxu0 0.0
    %3358 = vmatprep.subr.mxu0 0.0
    %3359 = vmatpush2.msra.mxu0 0.0
    %3360 = vmatprep.subr.mxu0 0.0
    %3361 = vmatpush2.msra.mxu0 0.0
    %3362 = vmatprep.subr.mxu0 0.0
    %3363 = vmatpush2.msra.mxu0 0.0
    %3364 = vmatprep.subr.mxu0 0.0
    %3365 = vmatpush2.msra.mxu0 0.0
    %3366 = vmatprep.subr.mxu0 0.0
    %3367 = vmatpush2.msra.mxu0 0.0
    %3368 = vmatprep.mubr.f32.mxu0 0.0
    %v3369 = vand.u32 %v2053, 4294901760
    %3370 = vmatmul.mubr.f32.gmra.mxu0 %v3369
    %v3371 = vpop.f32.mrf.mxu0
    %v3372 = vadd.f32 %v3294, %v3371
    %v3373 = vpop.f32.mrf.mxu0
    %v3374 = vadd.f32 %v3296, %v3373
    %3375 = vdwg.mxu0
    %3376 = vmatprep.subr.mxu0 0.0
    %3377 = vmatpush1.msra.mxu0 0.0
    %3378 = vmatprep.subr.mxu0 0.0
    %3379 = vmatpush1.msra.mxu0 0.0
    %3380 = vmatprep.subr.mxu0 0.0
    %3381 = vmatpush1.msra.mxu0 0.0
    %3382 = vmatprep.subr.mxu0 0.0
    %3383 = vmatpush1.msra.mxu0 0.0
    %3384 = vmatprep.subr.mxu0 0.0
    %3385 = vmatpush1.msra.mxu0 0.0
    %3386 = vmatprep.subr.mxu0 0.0
    %3387 = vmatpush1.msra.mxu0 0.0
    %3388 = vmatprep.subr.mxu0 0.0
    %3389 = vmatpush1.msra.mxu0 0.0
    %3390 = vmatprep.subr.mxu0 0.0
    %3391 = vmatpush1.msra.mxu0 0.0
    %3392 = vmatprep.subr.mxu0 0.0
    %3393 = vmatpush1.msra.mxu0 0.0
    %3394 = vmatprep.subr.mxu0 0.0
    %3395 = vmatpush1.msra.mxu0 0.0
    %3396 = vmatprep.subr.mxu0 0.0
    %3397 = vmatpush1.msra.mxu0 0.0
    %3398 = vmatprep.subr.mxu0 0.0
    %3399 = vmatpush1.msra.mxu0 0.0
    %3400 = vmatprep.subr.mxu0 0.0
    %3401 = vmatpush1.msra.mxu0 0.0
    %3402 = vmatprep.subr.mxu0 0.0
    %3403 = vmatpush1.msra.mxu0 0.0
    %3404 = vmatprep.subr.mxu0 0.0
    %3405 = vmatpush1.msra.mxu0 0.0
    %v3406 = vand.u32 %v2044, 4294901760
    %3407 = vmatprep.subr.mxu0 %v3406
    %v3408 = vand.u32 %v2043, 4294901760
    %3409 = vmatpush1.msra.mxu0 %v3408
    %3410 = vmatprep.subr.mxu0 0.0
    %3411 = vmatpush2.msra.mxu0 0.0
    %3412 = vmatprep.subr.mxu0 0.0
    %3413 = vmatpush2.msra.mxu0 0.0
    %3414 = vmatprep.subr.mxu0 0.0
    %3415 = vmatpush2.msra.mxu0 0.0
    %3416 = vmatprep.subr.mxu0 0.0
    %3417 = vmatpush2.msra.mxu0 0.0
    %3418 = vmatprep.subr.mxu0 0.0
    %3419 = vmatpush2.msra.mxu0 0.0
    %3420 = vmatprep.subr.mxu0 0.0
    %3421 = vmatpush2.msra.mxu0 0.0
    %3422 = vmatprep.subr.mxu0 0.0
    %3423 = vmatpush2.msra.mxu0 0.0
    %3424 = vmatprep.subr.mxu0 0.0
    %3425 = vmatpush2.msra.mxu0 0.0
    %3426 = vmatprep.subr.mxu0 0.0
    %3427 = vmatpush2.msra.mxu0 0.0
    %3428 = vmatprep.subr.mxu0 0.0
    %3429 = vmatpush2.msra.mxu0 0.0
    %3430 = vmatprep.subr.mxu0 0.0
    %3431 = vmatpush2.msra.mxu0 0.0
    %3432 = vmatprep.subr.mxu0 0.0
    %3433 = vmatpush2.msra.mxu0 0.0
    %3434 = vmatprep.subr.mxu0 0.0
    %3435 = vmatpush2.msra.mxu0 0.0
    %3436 = vmatprep.subr.mxu0 0.0
    %3437 = vmatpush2.msra.mxu0 0.0
    %3438 = vmatprep.subr.mxu0 0.0
    %3439 = vmatpush2.msra.mxu0 0.0
    %3440 = vmatprep.subr.mxu0 0.0
    %3441 = vmatpush2.msra.mxu0 0.0
    %3442 = vmatprep.mubr.f32.mxu0 0.0
    %v3443 = vand.u32 %v2053, 4294901760
    %3444 = vmatmul.mubr.f32.gmra.mxu0 %v3443
    %v3445 = vpop.f32.mrf.mxu0
    %v3446 = vadd.f32 %v3372, %v3445
    %v3447 = vpop.f32.mrf.mxu0
    %v3448 = vadd.f32 %v3374, %v3447
    %3449 = vdwg.mxu0
    %3450 = vmatprep.subr.mxu0 0.0
    %3451 = vmatpush1.msra.mxu0 0.0
    %3452 = vmatprep.subr.mxu0 0.0
    %3453 = vmatpush1.msra.mxu0 0.0
    %3454 = vmatprep.subr.mxu0 0.0
    %3455 = vmatpush1.msra.mxu0 0.0
    %3456 = vmatprep.subr.mxu0 0.0
    %3457 = vmatpush1.msra.mxu0 0.0
    %3458 = vmatprep.subr.mxu0 0.0
    %3459 = vmatpush1.msra.mxu0 0.0
    %3460 = vmatprep.subr.mxu0 0.0
    %3461 = vmatpush1.msra.mxu0 0.0
    %3462 = vmatprep.subr.mxu0 0.0
    %3463 = vmatpush1.msra.mxu0 0.0
    %3464 = vmatprep.subr.mxu0 0.0
    %3465 = vmatpush1.msra.mxu0 0.0
    %3466 = vmatprep.subr.mxu0 0.0
    %3467 = vmatpush1.msra.mxu0 0.0
    %3468 = vmatprep.subr.mxu0 0.0
    %3469 = vmatpush1.msra.mxu0 0.0
    %3470 = vmatprep.subr.mxu0 0.0
    %3471 = vmatpush1.msra.mxu0 0.0
    %3472 = vmatprep.subr.mxu0 0.0
    %3473 = vmatpush1.msra.mxu0 0.0
    %3474 = vmatprep.subr.mxu0 0.0
    %3475 = vmatpush1.msra.mxu0 0.0
    %3476 = vmatprep.subr.mxu0 0.0
    %3477 = vmatpush1.msra.mxu0 0.0
    %3478 = vmatprep.subr.mxu0 0.0
    %3479 = vmatpush1.msra.mxu0 0.0
    %v3480 = vand.u32 %v2046, 4294901760
    %3481 = vmatprep.subr.mxu0 %v3480
    %v3482 = vand.u32 %v2045, 4294901760
    %3483 = vmatpush1.msra.mxu0 %v3482
    %3484 = vmatprep.subr.mxu0 0.0
    %3485 = vmatpush2.msra.mxu0 0.0
    %3486 = vmatprep.subr.mxu0 0.0
    %3487 = vmatpush2.msra.mxu0 0.0
    %3488 = vmatprep.subr.mxu0 0.0
    %3489 = vmatpush2.msra.mxu0 0.0
    %3490 = vmatprep.subr.mxu0 0.0
    %3491 = vmatpush2.msra.mxu0 0.0
    %3492 = vmatprep.subr.mxu0 0.0
    %3493 = vmatpush2.msra.mxu0 0.0
    %3494 = vmatprep.subr.mxu0 0.0
    %3495 = vmatpush2.msra.mxu0 0.0
    %3496 = vmatprep.subr.mxu0 0.0
    %3497 = vmatpush2.msra.mxu0 0.0
    %3498 = vmatprep.subr.mxu0 0.0
    %3499 = vmatpush2.msra.mxu0 0.0
    %3500 = vmatprep.subr.mxu0 0.0
    %3501 = vmatpush2.msra.mxu0 0.0
    %3502 = vmatprep.subr.mxu0 0.0
    %3503 = vmatpush2.msra.mxu0 0.0
    %3504 = vmatprep.subr.mxu0 0.0
    %3505 = vmatpush2.msra.mxu0 0.0
    %3506 = vmatprep.subr.mxu0 0.0
    %3507 = vmatpush2.msra.mxu0 0.0
    %3508 = vmatprep.subr.mxu0 0.0
    %3509 = vmatpush2.msra.mxu0 0.0
    %3510 = vmatprep.subr.mxu0 0.0
    %3511 = vmatpush2.msra.mxu0 0.0
    %3512 = vmatprep.subr.mxu0 0.0
    %3513 = vmatpush2.msra.mxu0 0.0
    %3514 = vmatprep.subr.mxu0 0.0
    %3515 = vmatpush2.msra.mxu0 0.0
    %3516 = vmatprep.mubr.f32.mxu0 0.0
    %v3517 = vand.u32 %v2053, 4294901760
    %v3518 = vsub.f32 %v2053, %v3517
    %v3519 = vand.u32 %v3518, 4294901760
    %v3520 = vsub.f32 %v3518, %v3519
    %v3521 = vand.u32 %v3520, 4294901760
    %3522 = vmatmul.mubr.f32.gmra.mxu0 %v3521
    %v3523 = vpop.f32.mrf.mxu0
    %v3524 = vadd.f32 %v2050, %v3523
    %v3525 = vpop.f32.mrf.mxu0
    %v3526 = vadd.f32 %v2050, %v3525
    %3527 = vdwg.mxu0
    %3528 = vmatprep.subr.mxu0 0.0
    %3529 = vmatpush1.msra.mxu0 0.0
    %3530 = vmatprep.subr.mxu0 0.0
    %3531 = vmatpush1.msra.mxu0 0.0
    %3532 = vmatprep.subr.mxu0 0.0
    %3533 = vmatpush1.msra.mxu0 0.0
    %3534 = vmatprep.subr.mxu0 0.0
    %3535 = vmatpush1.msra.mxu0 0.0
    %3536 = vmatprep.subr.mxu0 0.0
    %3537 = vmatpush1.msra.mxu0 0.0
    %3538 = vmatprep.subr.mxu0 0.0
    %3539 = vmatpush1.msra.mxu0 0.0
    %3540 = vmatprep.subr.mxu0 0.0
    %3541 = vmatpush1.msra.mxu0 0.0
    %3542 = vmatprep.subr.mxu0 0.0
    %3543 = vmatpush1.msra.mxu0 0.0
    %3544 = vmatprep.subr.mxu0 0.0
    %3545 = vmatpush1.msra.mxu0 0.0
    %3546 = vmatprep.subr.mxu0 0.0
    %3547 = vmatpush1.msra.mxu0 0.0
    %3548 = vmatprep.subr.mxu0 0.0
    %3549 = vmatpush1.msra.mxu0 0.0
    %3550 = vmatprep.subr.mxu0 0.0
    %3551 = vmatpush1.msra.mxu0 0.0
    %3552 = vmatprep.subr.mxu0 0.0
    %3553 = vmatpush1.msra.mxu0 0.0
    %3554 = vmatprep.subr.mxu0 0.0
    %3555 = vmatpush1.msra.mxu0 0.0
    %3556 = vmatprep.subr.mxu0 0.0
    %3557 = vmatpush1.msra.mxu0 0.0
    %v3558 = vand.u32 %v2046, 4294901760
    %v3559 = vsub.f32 %v2046, %v3558
    %v3560 = vand.u32 %v3559, 4294901760
    %v3561 = vsub.f32 %v3559, %v3560
    %v3562 = vand.u32 %v3561, 4294901760
    %3563 = vmatprep.subr.mxu0 %v3562
    %v3564 = vand.u32 %v2045, 4294901760
    %v3565 = vsub.f32 %v2045, %v3564
    %v3566 = vand.u32 %v3565, 4294901760
    %v3567 = vsub.f32 %v3565, %v3566
    %v3568 = vand.u32 %v3567, 4294901760
    %3569 = vmatpush1.msra.mxu0 %v3568
    %3570 = vmatprep.subr.mxu0 0.0
    %3571 = vmatpush2.msra.mxu0 0.0
    %3572 = vmatprep.subr.mxu0 0.0
    %3573 = vmatpush2.msra.mxu0 0.0
    %3574 = vmatprep.subr.mxu0 0.0
    %3575 = vmatpush2.msra.mxu0 0.0
    %3576 = vmatprep.subr.mxu0 0.0
    %3577 = vmatpush2.msra.mxu0 0.0
    %3578 = vmatprep.subr.mxu0 0.0
    %3579 = vmatpush2.msra.mxu0 0.0
    %3580 = vmatprep.subr.mxu0 0.0
    %3581 = vmatpush2.msra.mxu0 0.0
    %3582 = vmatprep.subr.mxu0 0.0
    %3583 = vmatpush2.msra.mxu0 0.0
    %3584 = vmatprep.subr.mxu0 0.0
    %3585 = vmatpush2.msra.mxu0 0.0
    %3586 = vmatprep.subr.mxu0 0.0
    %3587 = vmatpush2.msra.mxu0 0.0
    %3588 = vmatprep.subr.mxu0 0.0
    %3589 = vmatpush2.msra.mxu0 0.0
    %3590 = vmatprep.subr.mxu0 0.0
    %3591 = vmatpush2.msra.mxu0 0.0
    %3592 = vmatprep.subr.mxu0 0.0
    %3593 = vmatpush2.msra.mxu0 0.0
    %3594 = vmatprep.subr.mxu0 0.0
    %3595 = vmatpush2.msra.mxu0 0.0
    %3596 = vmatprep.subr.mxu0 0.0
    %3597 = vmatpush2.msra.mxu0 0.0
    %3598 = vmatprep.subr.mxu0 0.0
    %3599 = vmatpush2.msra.mxu0 0.0
    %3600 = vmatprep.subr.mxu0 0.0
    %3601 = vmatpush2.msra.mxu0 0.0
    %3602 = vmatprep.mubr.f32.mxu0 0.0
    %v3603 = vand.u32 %v2053, 4294901760
    %3604 = vmatmul.mubr.f32.gmra.mxu0 %v3603
    %v3605 = vpop.f32.mrf.mxu0
    %v3606 = vadd.f32 %v3524, %v3605
    %v3607 = vpop.f32.mrf.mxu0
    %v3608 = vadd.f32 %v3526, %v3607
    %3609 = vdwg.mxu0
    %3610 = vmatprep.subr.mxu0 0.0
    %3611 = vmatpush1.msra.mxu0 0.0
    %3612 = vmatprep.subr.mxu0 0.0
    %3613 = vmatpush1.msra.mxu0 0.0
    %3614 = vmatprep.subr.mxu0 0.0
    %3615 = vmatpush1.msra.mxu0 0.0
    %3616 = vmatprep.subr.mxu0 0.0
    %3617 = vmatpush1.msra.mxu0 0.0
    %3618 = vmatprep.subr.mxu0 0.0
    %3619 = vmatpush1.msra.mxu0 0.0
    %3620 = vmatprep.subr.mxu0 0.0
    %3621 = vmatpush1.msra.mxu0 0.0
    %3622 = vmatprep.subr.mxu0 0.0
    %3623 = vmatpush1.msra.mxu0 0.0
    %3624 = vmatprep.subr.mxu0 0.0
    %3625 = vmatpush1.msra.mxu0 0.0
    %3626 = vmatprep.subr.mxu0 0.0
    %3627 = vmatpush1.msra.mxu0 0.0
    %3628 = vmatprep.subr.mxu0 0.0
    %3629 = vmatpush1.msra.mxu0 0.0
    %3630 = vmatprep.subr.mxu0 0.0
    %3631 = vmatpush1.msra.mxu0 0.0
    %3632 = vmatprep.subr.mxu0 0.0
    %3633 = vmatpush1.msra.mxu0 0.0
    %3634 = vmatprep.subr.mxu0 0.0
    %3635 = vmatpush1.msra.mxu0 0.0
    %3636 = vmatprep.subr.mxu0 0.0
    %3637 = vmatpush1.msra.mxu0 0.0
    %3638 = vmatprep.subr.mxu0 0.0
    %3639 = vmatpush1.msra.mxu0 0.0
    %v3640 = vand.u32 %v2046, 4294901760
    %v3641 = vsub.f32 %v2046, %v3640
    %3642 = vmatprep.subr.mxu0 %v3641
    %v3643 = vand.u32 %v2045, 4294901760
    %v3644 = vsub.f32 %v2045, %v3643
    %3645 = vmatpush1.msra.mxu0 %v3644
    %3646 = vmatprep.subr.mxu0 0.0
    %3647 = vmatpush2.msra.mxu0 0.0
    %3648 = vmatprep.subr.mxu0 0.0
    %3649 = vmatpush2.msra.mxu0 0.0
    %3650 = vmatprep.subr.mxu0 0.0
    %3651 = vmatpush2.msra.mxu0 0.0
    %3652 = vmatprep.subr.mxu0 0.0
    %3653 = vmatpush2.msra.mxu0 0.0
    %3654 = vmatprep.subr.mxu0 0.0
    %3655 = vmatpush2.msra.mxu0 0.0
    %3656 = vmatprep.subr.mxu0 0.0
    %3657 = vmatpush2.msra.mxu0 0.0
    %3658 = vmatprep.subr.mxu0 0.0
    %3659 = vmatpush2.msra.mxu0 0.0
    %3660 = vmatprep.subr.mxu0 0.0
    %3661 = vmatpush2.msra.mxu0 0.0
    %3662 = vmatprep.subr.mxu0 0.0
    %3663 = vmatpush2.msra.mxu0 0.0
    %3664 = vmatprep.subr.mxu0 0.0
    %3665 = vmatpush2.msra.mxu0 0.0
    %3666 = vmatprep.subr.mxu0 0.0
    %3667 = vmatpush2.msra.mxu0 0.0
    %3668 = vmatprep.subr.mxu0 0.0
    %3669 = vmatpush2.msra.mxu0 0.0
    %3670 = vmatprep.subr.mxu0 0.0
    %3671 = vmatpush2.msra.mxu0 0.0
    %3672 = vmatprep.subr.mxu0 0.0
    %3673 = vmatpush2.msra.mxu0 0.0
    %3674 = vmatprep.subr.mxu0 0.0
    %3675 = vmatpush2.msra.mxu0 0.0
    %3676 = vmatprep.subr.mxu0 0.0
    %3677 = vmatpush2.msra.mxu0 0.0
    %3678 = vmatprep.mubr.f32.mxu0 0.0
    %v3679 = vand.u32 %v2053, 4294901760
    %v3680 = vsub.f32 %v2053, %v3679
    %3681 = vmatmul.mubr.f32.gmra.mxu0 %v3680
    %v3682 = vpop.f32.mrf.mxu0
    %v3683 = vadd.f32 %v3606, %v3682
    %v3684 = vpop.f32.mrf.mxu0
    %v3685 = vadd.f32 %v3608, %v3684
    %3686 = vdwg.mxu0
    %3687 = vmatprep.subr.mxu0 0.0
    %3688 = vmatpush1.msra.mxu0 0.0
    %3689 = vmatprep.subr.mxu0 0.0
    %3690 = vmatpush1.msra.mxu0 0.0
    %3691 = vmatprep.subr.mxu0 0.0
    %3692 = vmatpush1.msra.mxu0 0.0
    %3693 = vmatprep.subr.mxu0 0.0
    %3694 = vmatpush1.msra.mxu0 0.0
    %3695 = vmatprep.subr.mxu0 0.0
    %3696 = vmatpush1.msra.mxu0 0.0
    %3697 = vmatprep.subr.mxu0 0.0
    %3698 = vmatpush1.msra.mxu0 0.0
    %3699 = vmatprep.subr.mxu0 0.0
    %3700 = vmatpush1.msra.mxu0 0.0
    %3701 = vmatprep.subr.mxu0 0.0
    %3702 = vmatpush1.msra.mxu0 0.0
    %3703 = vmatprep.subr.mxu0 0.0
    %3704 = vmatpush1.msra.mxu0 0.0
    %3705 = vmatprep.subr.mxu0 0.0
    %3706 = vmatpush1.msra.mxu0 0.0
    %3707 = vmatprep.subr.mxu0 0.0
    %3708 = vmatpush1.msra.mxu0 0.0
    %3709 = vmatprep.subr.mxu0 0.0
    %3710 = vmatpush1.msra.mxu0 0.0
    %3711 = vmatprep.subr.mxu0 0.0
    %3712 = vmatpush1.msra.mxu0 0.0
    %3713 = vmatprep.subr.mxu0 0.0
    %3714 = vmatpush1.msra.mxu0 0.0
    %3715 = vmatprep.subr.mxu0 0.0
    %3716 = vmatpush1.msra.mxu0 0.0
    %v3717 = vand.u32 %v2046, 4294901760
    %3718 = vmatprep.subr.mxu0 %v3717
    %v3719 = vand.u32 %v2045, 4294901760
    %3720 = vmatpush1.msra.mxu0 %v3719
    %3721 = vmatprep.subr.mxu0 0.0
    %3722 = vmatpush2.msra.mxu0 0.0
    %3723 = vmatprep.subr.mxu0 0.0
    %3724 = vmatpush2.msra.mxu0 0.0
    %3725 = vmatprep.subr.mxu0 0.0
    %3726 = vmatpush2.msra.mxu0 0.0
    %3727 = vmatprep.subr.mxu0 0.0
    %3728 = vmatpush2.msra.mxu0 0.0
    %3729 = vmatprep.subr.mxu0 0.0
    %3730 = vmatpush2.msra.mxu0 0.0
    %3731 = vmatprep.subr.mxu0 0.0
    %3732 = vmatpush2.msra.mxu0 0.0
    %3733 = vmatprep.subr.mxu0 0.0
    %3734 = vmatpush2.msra.mxu0 0.0
    %3735 = vmatprep.subr.mxu0 0.0
    %3736 = vmatpush2.msra.mxu0 0.0
    %3737 = vmatprep.subr.mxu0 0.0
    %3738 = vmatpush2.msra.mxu0 0.0
    %3739 = vmatprep.subr.mxu0 0.0
    %3740 = vmatpush2.msra.mxu0 0.0
    %3741 = vmatprep.subr.mxu0 0.0
    %3742 = vmatpush2.msra.mxu0 0.0
    %3743 = vmatprep.subr.mxu0 0.0
    %3744 = vmatpush2.msra.mxu0 0.0
    %3745 = vmatprep.subr.mxu0 0.0
    %3746 = vmatpush2.msra.mxu0 0.0
    %3747 = vmatprep.subr.mxu0 0.0
    %3748 = vmatpush2.msra.mxu0 0.0
    %3749 = vmatprep.subr.mxu0 0.0
    %3750 = vmatpush2.msra.mxu0 0.0
    %3751 = vmatprep.subr.mxu0 0.0
    %3752 = vmatpush2.msra.mxu0 0.0
    %3753 = vmatprep.mubr.f32.mxu0 0.0
    %v3754 = vand.u32 %v2053, 4294901760
    %v3755 = vsub.f32 %v2053, %v3754
    %v3756 = vand.u32 %v3755, 4294901760
    %3757 = vmatmul.mubr.f32.gmra.mxu0 %v3756
    %v3758 = vpop.f32.mrf.mxu0
    %v3759 = vadd.f32 %v3683, %v3758
    %v3760 = vpop.f32.mrf.mxu0
    %v3761 = vadd.f32 %v3685, %v3760
    %3762 = vdwg.mxu0
    %3763 = vmatprep.subr.mxu0 0.0
    %3764 = vmatpush1.msra.mxu0 0.0
    %3765 = vmatprep.subr.mxu0 0.0
    %3766 = vmatpush1.msra.mxu0 0.0
    %3767 = vmatprep.subr.mxu0 0.0
    %3768 = vmatpush1.msra.mxu0 0.0
    %3769 = vmatprep.subr.mxu0 0.0
    %3770 = vmatpush1.msra.mxu0 0.0
    %3771 = vmatprep.subr.mxu0 0.0
    %3772 = vmatpush1.msra.mxu0 0.0
    %3773 = vmatprep.subr.mxu0 0.0
    %3774 = vmatpush1.msra.mxu0 0.0
    %3775 = vmatprep.subr.mxu0 0.0
    %3776 = vmatpush1.msra.mxu0 0.0
    %3777 = vmatprep.subr.mxu0 0.0
    %3778 = vmatpush1.msra.mxu0 0.0
    %3779 = vmatprep.subr.mxu0 0.0
    %3780 = vmatpush1.msra.mxu0 0.0
    %3781 = vmatprep.subr.mxu0 0.0
    %3782 = vmatpush1.msra.mxu0 0.0
    %3783 = vmatprep.subr.mxu0 0.0
    %3784 = vmatpush1.msra.mxu0 0.0
    %3785 = vmatprep.subr.mxu0 0.0
    %3786 = vmatpush1.msra.mxu0 0.0
    %3787 = vmatprep.subr.mxu0 0.0
    %3788 = vmatpush1.msra.mxu0 0.0
    %3789 = vmatprep.subr.mxu0 0.0
    %3790 = vmatpush1.msra.mxu0 0.0
    %3791 = vmatprep.subr.mxu0 0.0
    %3792 = vmatpush1.msra.mxu0 0.0
    %v3793 = vand.u32 %v2046, 4294901760
    %v3794 = vsub.f32 %v2046, %v3793
    %v3795 = vand.u32 %v3794, 4294901760
    %3796 = vmatprep.subr.mxu0 %v3795
    %v3797 = vand.u32 %v2045, 4294901760
    %v3798 = vsub.f32 %v2045, %v3797
    %v3799 = vand.u32 %v3798, 4294901760
    %3800 = vmatpush1.msra.mxu0 %v3799
    %3801 = vmatprep.subr.mxu0 0.0
    %3802 = vmatpush2.msra.mxu0 0.0
    %3803 = vmatprep.subr.mxu0 0.0
    %3804 = vmatpush2.msra.mxu0 0.0
    %3805 = vmatprep.subr.mxu0 0.0
    %3806 = vmatpush2.msra.mxu0 0.0
    %3807 = vmatprep.subr.mxu0 0.0
    %3808 = vmatpush2.msra.mxu0 0.0
    %3809 = vmatprep.subr.mxu0 0.0
    %3810 = vmatpush2.msra.mxu0 0.0
    %3811 = vmatprep.subr.mxu0 0.0
    %3812 = vmatpush2.msra.mxu0 0.0
    %3813 = vmatprep.subr.mxu0 0.0
    %3814 = vmatpush2.msra.mxu0 0.0
    %3815 = vmatprep.subr.mxu0 0.0
    %3816 = vmatpush2.msra.mxu0 0.0
    %3817 = vmatprep.subr.mxu0 0.0
    %3818 = vmatpush2.msra.mxu0 0.0
    %3819 = vmatprep.subr.mxu0 0.0
    %3820 = vmatpush2.msra.mxu0 0.0
    %3821 = vmatprep.subr.mxu0 0.0
    %3822 = vmatpush2.msra.mxu0 0.0
    %3823 = vmatprep.subr.mxu0 0.0
    %3824 = vmatpush2.msra.mxu0 0.0
    %3825 = vmatprep.subr.mxu0 0.0
    %3826 = vmatpush2.msra.mxu0 0.0
    %3827 = vmatprep.subr.mxu0 0.0
    %3828 = vmatpush2.msra.mxu0 0.0
    %3829 = vmatprep.subr.mxu0 0.0
    %3830 = vmatpush2.msra.mxu0 0.0
    %3831 = vmatprep.subr.mxu0 0.0
    %3832 = vmatpush2.msra.mxu0 0.0
    %3833 = vmatprep.mubr.f32.mxu0 0.0
    %v3834 = vand.u32 %v2053, 4294901760
    %3835 = vmatmul.mubr.f32.gmra.mxu0 %v3834
    %v3836 = vpop.f32.mrf.mxu0
    %v3837 = vadd.f32 %v3759, %v3836
    %v3838 = vpop.f32.mrf.mxu0
    %v3839 = vadd.f32 %v3761, %v3838
    %3840 = vdwg.mxu0
    %3841 = vmatprep.subr.mxu0 0.0
    %3842 = vmatpush1.msra.mxu0 0.0
    %3843 = vmatprep.subr.mxu0 0.0
    %3844 = vmatpush1.msra.mxu0 0.0
    %3845 = vmatprep.subr.mxu0 0.0
    %3846 = vmatpush1.msra.mxu0 0.0
    %3847 = vmatprep.subr.mxu0 0.0
    %3848 = vmatpush1.msra.mxu0 0.0
    %3849 = vmatprep.subr.mxu0 0.0
    %3850 = vmatpush1.msra.mxu0 0.0
    %3851 = vmatprep.subr.mxu0 0.0
    %3852 = vmatpush1.msra.mxu0 0.0
    %3853 = vmatprep.subr.mxu0 0.0
    %3854 = vmatpush1.msra.mxu0 0.0
    %3855 = vmatprep.subr.mxu0 0.0
    %3856 = vmatpush1.msra.mxu0 0.0
    %3857 = vmatprep.subr.mxu0 0.0
    %3858 = vmatpush1.msra.mxu0 0.0
    %3859 = vmatprep.subr.mxu0 0.0
    %3860 = vmatpush1.msra.mxu0 0.0
    %3861 = vmatprep.subr.mxu0 0.0
    %3862 = vmatpush1.msra.mxu0 0.0
    %3863 = vmatprep.subr.mxu0 0.0
    %3864 = vmatpush1.msra.mxu0 0.0
    %3865 = vmatprep.subr.mxu0 0.0
    %3866 = vmatpush1.msra.mxu0 0.0
    %3867 = vmatprep.subr.mxu0 0.0
    %3868 = vmatpush1.msra.mxu0 0.0
    %3869 = vmatprep.subr.mxu0 0.0
    %3870 = vmatpush1.msra.mxu0 0.0
    %v3871 = vand.u32 %v2046, 4294901760
    %3872 = vmatprep.subr.mxu0 %v3871
    %v3873 = vand.u32 %v2045, 4294901760
    %3874 = vmatpush1.msra.mxu0 %v3873
    %3875 = vmatprep.subr.mxu0 0.0
    %3876 = vmatpush2.msra.mxu0 0.0
    %3877 = vmatprep.subr.mxu0 0.0
    %3878 = vmatpush2.msra.mxu0 0.0
    %3879 = vmatprep.subr.mxu0 0.0
    %3880 = vmatpush2.msra.mxu0 0.0
    %3881 = vmatprep.subr.mxu0 0.0
    %3882 = vmatpush2.msra.mxu0 0.0
    %3883 = vmatprep.subr.mxu0 0.0
    %3884 = vmatpush2.msra.mxu0 0.0
    %3885 = vmatprep.subr.mxu0 0.0
    %3886 = vmatpush2.msra.mxu0 0.0
    %3887 = vmatprep.subr.mxu0 0.0
    %3888 = vmatpush2.msra.mxu0 0.0
    %3889 = vmatprep.subr.mxu0 0.0
    %3890 = vmatpush2.msra.mxu0 0.0
    %3891 = vmatprep.subr.mxu0 0.0
    %3892 = vmatpush2.msra.mxu0 0.0
    %3893 = vmatprep.subr.mxu0 0.0
    %3894 = vmatpush2.msra.mxu0 0.0
    %3895 = vmatprep.subr.mxu0 0.0
    %3896 = vmatpush2.msra.mxu0 0.0
    %3897 = vmatprep.subr.mxu0 0.0
    %3898 = vmatpush2.msra.mxu0 0.0
    %3899 = vmatprep.subr.mxu0 0.0
    %3900 = vmatpush2.msra.mxu0 0.0
    %3901 = vmatprep.subr.mxu0 0.0
    %3902 = vmatpush2.msra.mxu0 0.0
    %3903 = vmatprep.subr.mxu0 0.0
    %3904 = vmatpush2.msra.mxu0 0.0
    %3905 = vmatprep.subr.mxu0 0.0
    %3906 = vmatpush2.msra.mxu0 0.0
    %3907 = vmatprep.mubr.f32.mxu0 0.0
    %v3908 = vand.u32 %v2053, 4294901760
    %3909 = vmatmul.mubr.f32.gmra.mxu0 %v3908
    %v3910 = vpop.f32.mrf.mxu0
    %v3911 = vadd.f32 %v3837, %v3910
    %v3912 = vpop.f32.mrf.mxu0
    %v3913 = vadd.f32 %v3839, %v3912
    %3914 = vdwg.mxu0
    %3915 = vst [vmem:[#allocation8] sm:$0xff] %v2516
    %3916 = vst [vmem:[#allocation8 + $0x8] sm:$0xff] %v2518
    %3917 = vst [vmem:[#allocation8 + $0x10] sm:$0xff] %v2981
    %3918 = vst [vmem:[#allocation8 + $0x18] sm:$0xff] %v2983
    %3919 = vst [vmem:[#allocation8 + $0x20] sm:$0xff] %v3446
    %3920 = vst [vmem:[#allocation8 + $0x28] sm:$0xff] %v3448
    %3921 = vst [vmem:[#allocation8 + $0x30] sm:$0xff] %v3911
    %3922 = vst [vmem:[#allocation8 + $0x38] sm:$0xff] %v3913
    %s3923 = scalar_lea.vmem [#allocation2], 64
    %v3924 = vld [vmem:[%s3923] sm:$0xff]
    %v3925 = vld [vmem:[%s3923 + $0x8] sm:$0xff]
    %v3926 = vld [vmem:[%s3923 + $0x10] sm:$0xff]
    %v3927 = vld [vmem:[%s3923 + $0x18] sm:$0xff]
    %v3928 = vld [vmem:[%s3923 + $0x20] sm:$0xff]
    %v3929 = vld [vmem:[%s3923 + $0x28] sm:$0xff]
    %v3930 = vld [vmem:[%s3923 + $0x30] sm:$0xff]
    %v3931 = vld [vmem:[%s3923 + $0x38] sm:$0xff]
    %v3932 = vadd.f32 %v3924, %v3925
    %v3933 = vadd.f32 %v3932, %v3926
    %v3934 = vadd.f32 %v3933, %v3927
    %v3935 = vadd.f32 %v3934, %v3928
    %v3936 = vadd.f32 %v3935, %v3929
    %v3937 = vadd.f32 %v3936, %v3930
    %v3938 = vadd.f32 %v3937, %v3931
    %3939 = vadd.xlane.f32.xlu0 %v3938
    %v3940 = vpop.xlane.xlu0 %3939
    %v3941 = vrot.slane %v3940, 4
    %v3942 = vadd.f32 %v3940, %v3941
    %v3943 = vrot.slane %v3942, 2
    %v3944 = vadd.f32 %v3942, %v3943
    %v3945 = vrot.slane %v3944, 1
    %v3946 = vadd.f32 %v3944, %v3945
    %s3947 = vtos %v3946
    %v3948 = vstv %s3947
    %v3949 = vmul.f32 %v3948, 0.00012207031
    %v3950 = vsub.f32 %v3924, %v3949
    %v3951 = vsub.f32 %v3925, %v3949
    %v3952 = vsub.f32 %v3926, %v3949
    %v3953 = vsub.f32 %v3927, %v3949
    %v3954 = vsub.f32 %v3928, %v3949
    %v3955 = vsub.f32 %v3929, %v3949
    %v3956 = vsub.f32 %v3930, %v3949
    %v3957 = vsub.f32 %v3931, %v3949
    %v3958 = vmul.f32 %v3950, %v3950
    %v3959 = vmul.f32 %v3951, %v3951
    %v3960 = vmul.f32 %v3952, %v3952
    %v3961 = vmul.f32 %v3953, %v3953
    %v3962 = vmul.f32 %v3954, %v3954
    %v3963 = vmul.f32 %v3955, %v3955
    %v3964 = vmul.f32 %v3956, %v3956
    %v3965 = vmul.f32 %v3957, %v3957
    %v3966 = vadd.f32 %v3958, %v3959
    %v3967 = vadd.f32 %v3966, %v3960
    %v3968 = vadd.f32 %v3967, %v3961
    %v3969 = vadd.f32 %v3968, %v3962
    %v3970 = vadd.f32 %v3969, %v3963
    %v3971 = vadd.f32 %v3970, %v3964
    %v3972 = vadd.f32 %v3971, %v3965
    %3973 = vadd.xlane.f32.xlu0 %v3972
    %v3974 = vpop.xlane.xlu0 %3973
    %v3975 = vrot.slane %v3974, 4
    %v3976 = vadd.f32 %v3974, %v3975
    %v3977 = vrot.slane %v3976, 2
    %v3978 = vadd.f32 %v3976, %v3977
    %v3979 = vrot.slane %v3978, 1
    %v3980 = vadd.f32 %v3978, %v3979
    %s3981 = vtos %v3980
    %v3982 = vstv %s3981
    %v3983 = vmul.f32 %v3982, 0.00012207031
    %v3984 = vadd.f32 %v3983, 1e-05
    %v3985 = vrsqrt.pop %v3984
    %v3986 = vmul.f32 %v3950, %v3985
    %v3987 = vmul.f32 %v3951, %v3985
    %v3988 = vmul.f32 %v3952, %v3985
    %v3989 = vmul.f32 %v3953, %v3985
    %v3990 = vmul.f32 %v3954, %v3985
    %v3991 = vmul.f32 %v3955, %v3985
    %v3992 = vmul.f32 %v3956, %v3985
    %v3993 = vmul.f32 %v3957, %v3985
    %v3994 = vmul.f32 %v3986, %v64
    %v3995 = vmul.f32 %v3987, %v65
    %v3996 = vmul.f32 %v3988, %v66
    %v3997 = vmul.f32 %v3989, %v67
    %v3998 = vmul.f32 %v3990, %v68
    %v3999 = vmul.f32 %v3991, %v69
    %v4000 = vmul.f32 %v3992, %v70
    %v4001 = vmul.f32 %v3993, %v71
    %v4002 = vadd.f32 %v3994, %v72
    %v4003 = vadd.f32 %v3995, %v73
    %v4004 = vadd.f32 %v3996, %v74
    %v4005 = vadd.f32 %v3997, %v75
    %v4006 = vadd.f32 %v3998, %v76
    %v4007 = vadd.f32 %v3999, %v77
    %v4008 = vadd.f32 %v4000, %v78
    %v4009 = vadd.f32 %v4001, %v79
    %4010 = vmatprep.subr.mxu0 0.0
    %4011 = vmatpush1.msra.mxu0 0.0
    %4012 = vmatprep.subr.mxu0 0.0
    %4013 = vmatpush1.msra.mxu0 0.0
    %4014 = vmatprep.subr.mxu0 0.0
    %4015 = vmatpush1.msra.mxu0 0.0
    %4016 = vmatprep.subr.mxu0 0.0
    %4017 = vmatpush1.msra.mxu0 0.0
    %4018 = vmatprep.subr.mxu0 0.0
    %4019 = vmatpush1.msra.mxu0 0.0
    %4020 = vmatprep.subr.mxu0 0.0
    %4021 = vmatpush1.msra.mxu0 0.0
    %4022 = vmatprep.subr.mxu0 0.0
    %4023 = vmatpush1.msra.mxu0 0.0
    %4024 = vmatprep.subr.mxu0 0.0
    %4025 = vmatpush1.msra.mxu0 0.0
    %4026 = vmatprep.subr.mxu0 0.0
    %4027 = vmatpush1.msra.mxu0 0.0
    %4028 = vmatprep.subr.mxu0 0.0
    %4029 = vmatpush1.msra.mxu0 0.0
    %4030 = vmatprep.subr.mxu0 0.0
    %4031 = vmatpush1.msra.mxu0 0.0
    %4032 = vmatprep.subr.mxu0 0.0
    %4033 = vmatpush1.msra.mxu0 0.0
    %4034 = vmatprep.subr.mxu0 0.0
    %4035 = vmatpush1.msra.mxu0 0.0
    %4036 = vmatprep.subr.mxu0 0.0
    %4037 = vmatpush1.msra.mxu0 0.0
    %4038 = vmatprep.subr.mxu0 0.0
    %4039 = vmatpush1.msra.mxu0 0.0
    %v4040 = vand.u32 %v4003, 4294901760
    %4041 = vmatprep.subr.mxu0 %v4040
    %v4042 = vand.u32 %v4002, 4294901760
    %4043 = vmatpush1.msra.mxu0 %v4042
    %4044 = vmatprep.subr.mxu0 0.0
    %4045 = vmatpush2.msra.mxu0 0.0
    %4046 = vmatprep.subr.mxu0 0.0
    %4047 = vmatpush2.msra.mxu0 0.0
    %4048 = vmatprep.subr.mxu0 0.0
    %4049 = vmatpush2.msra.mxu0 0.0
    %4050 = vmatprep.subr.mxu0 0.0
    %4051 = vmatpush2.msra.mxu0 0.0
    %4052 = vmatprep.subr.mxu0 0.0
    %4053 = vmatpush2.msra.mxu0 0.0
    %4054 = vmatprep.subr.mxu0 0.0
    %4055 = vmatpush2.msra.mxu0 0.0
    %4056 = vmatprep.subr.mxu0 0.0
    %4057 = vmatpush2.msra.mxu0 0.0
    %4058 = vmatprep.subr.mxu0 0.0
    %4059 = vmatpush2.msra.mxu0 0.0
    %4060 = vmatprep.subr.mxu0 0.0
    %4061 = vmatpush2.msra.mxu0 0.0
    %4062 = vmatprep.subr.mxu0 0.0
    %4063 = vmatpush2.msra.mxu0 0.0
    %4064 = vmatprep.subr.mxu0 0.0
    %4065 = vmatpush2.msra.mxu0 0.0
    %4066 = vmatprep.subr.mxu0 0.0
    %4067 = vmatpush2.msra.mxu0 0.0
    %4068 = vmatprep.subr.mxu0 0.0
    %4069 = vmatpush2.msra.mxu0 0.0
    %4070 = vmatprep.subr.mxu0 0.0
    %4071 = vmatpush2.msra.mxu0 0.0
    %4072 = vmatprep.subr.mxu0 0.0
    %4073 = vmatpush2.msra.mxu0 0.0
    %4074 = vmatprep.subr.mxu0 0.0
    %4075 = vmatpush2.msra.mxu0 0.0
    %4076 = vmatprep.mubr.f32.mxu0 0.0
    %v4077 = vand.u32 %v177, 4294901760
    %v4078 = vsub.f32 %v177, %v4077
    %v4079 = vand.u32 %v4078, 4294901760
    %v4080 = vsub.f32 %v4078, %v4079
    %v4081 = vand.u32 %v4080, 4294901760
    %4082 = vmatmul.mubr.f32.gmra.mxu0 %v4081
    %v4083 = vpop.f32.mrf.mxu0
    %v4084 = vadd.f32 %v173, %v4083
    %v4085 = vpop.f32.mrf.mxu0
    %v4086 = vadd.f32 %v173, %v4085
    %4087 = vdwg.mxu0
    %4088 = vmatprep.subr.mxu0 0.0
    %4089 = vmatpush1.msra.mxu0 0.0
    %4090 = vmatprep.subr.mxu0 0.0
    %4091 = vmatpush1.msra.mxu0 0.0
    %4092 = vmatprep.subr.mxu0 0.0
    %4093 = vmatpush1.msra.mxu0 0.0
    %4094 = vmatprep.subr.mxu0 0.0
    %4095 = vmatpush1.msra.mxu0 0.0
    %4096 = vmatprep.subr.mxu0 0.0
    %4097 = vmatpush1.msra.mxu0 0.0
    %4098 = vmatprep.subr.mxu0 0.0
    %4099 = vmatpush1.msra.mxu0 0.0
    %4100 = vmatprep.subr.mxu0 0.0
    %4101 = vmatpush1.msra.mxu0 0.0
    %4102 = vmatprep.subr.mxu0 0.0
    %4103 = vmatpush1.msra.mxu0 0.0
    %4104 = vmatprep.subr.mxu0 0.0
    %4105 = vmatpush1.msra.mxu0 0.0
    %4106 = vmatprep.subr.mxu0 0.0
    %4107 = vmatpush1.msra.mxu0 0.0
    %4108 = vmatprep.subr.mxu0 0.0
    %4109 = vmatpush1.msra.mxu0 0.0
    %4110 = vmatprep.subr.mxu0 0.0
    %4111 = vmatpush1.msra.mxu0 0.0
    %4112 = vmatprep.subr.mxu0 0.0
    %4113 = vmatpush1.msra.mxu0 0.0
    %4114 = vmatprep.subr.mxu0 0.0
    %4115 = vmatpush1.msra.mxu0 0.0
    %4116 = vmatprep.subr.mxu0 0.0
    %4117 = vmatpush1.msra.mxu0 0.0
    %v4118 = vand.u32 %v4003, 4294901760
    %v4119 = vsub.f32 %v4003, %v4118
    %v4120 = vand.u32 %v4119, 4294901760
    %v4121 = vsub.f32 %v4119, %v4120
    %v4122 = vand.u32 %v4121, 4294901760
    %4123 = vmatprep.subr.mxu0 %v4122
    %v4124 = vand.u32 %v4002, 4294901760
    %v4125 = vsub.f32 %v4002, %v4124
    %v4126 = vand.u32 %v4125, 4294901760
    %v4127 = vsub.f32 %v4125, %v4126
    %v4128 = vand.u32 %v4127, 4294901760
    %4129 = vmatpush1.msra.mxu0 %v4128
    %4130 = vmatprep.subr.mxu0 0.0
    %4131 = vmatpush2.msra.mxu0 0.0
    %4132 = vmatprep.subr.mxu0 0.0
    %4133 = vmatpush2.msra.mxu0 0.0
    %4134 = vmatprep.subr.mxu0 0.0
    %4135 = vmatpush2.msra.mxu0 0.0
    %4136 = vmatprep.subr.mxu0 0.0
    %4137 = vmatpush2.msra.mxu0 0.0
    %4138 = vmatprep.subr.mxu0 0.0
    %4139 = vmatpush2.msra.mxu0 0.0
    %4140 = vmatprep.subr.mxu0 0.0
    %4141 = vmatpush2.msra.mxu0 0.0
    %4142 = vmatprep.subr.mxu0 0.0
    %4143 = vmatpush2.msra.mxu0 0.0
    %4144 = vmatprep.subr.mxu0 0.0
    %4145 = vmatpush2.msra.mxu0 0.0
    %4146 = vmatprep.subr.mxu0 0.0
    %4147 = vmatpush2.msra.mxu0 0.0
    %4148 = vmatprep.subr.mxu0 0.0
    %4149 = vmatpush2.msra.mxu0 0.0
    %4150 = vmatprep.subr.mxu0 0.0
    %4151 = vmatpush2.msra.mxu0 0.0
    %4152 = vmatprep.subr.mxu0 0.0
    %4153 = vmatpush2.msra.mxu0 0.0
    %4154 = vmatprep.subr.mxu0 0.0
    %4155 = vmatpush2.msra.mxu0 0.0
    %4156 = vmatprep.subr.mxu0 0.0
    %4157 = vmatpush2.msra.mxu0 0.0
    %4158 = vmatprep.subr.mxu0 0.0
    %4159 = vmatpush2.msra.mxu0 0.0
    %4160 = vmatprep.subr.mxu0 0.0
    %4161 = vmatpush2.msra.mxu0 0.0
    %4162 = vmatprep.mubr.f32.mxu0 0.0
    %v4163 = vand.u32 %v177, 4294901760
    %4164 = vmatmul.mubr.f32.gmra.mxu0 %v4163
    %v4165 = vpop.f32.mrf.mxu0
    %v4166 = vadd.f32 %v4084, %v4165
    %v4167 = vpop.f32.mrf.mxu0
    %v4168 = vadd.f32 %v4086, %v4167
    %4169 = vdwg.mxu0
    %4170 = vmatprep.subr.mxu0 0.0
    %4171 = vmatpush1.msra.mxu0 0.0
    %4172 = vmatprep.subr.mxu0 0.0
    %4173 = vmatpush1.msra.mxu0 0.0
    %4174 = vmatprep.subr.mxu0 0.0
    %4175 = vmatpush1.msra.mxu0 0.0
    %4176 = vmatprep.subr.mxu0 0.0
    %4177 = vmatpush1.msra.mxu0 0.0
    %4178 = vmatprep.subr.mxu0 0.0
    %4179 = vmatpush1.msra.mxu0 0.0
    %4180 = vmatprep.subr.mxu0 0.0
    %4181 = vmatpush1.msra.mxu0 0.0
    %4182 = vmatprep.subr.mxu0 0.0
    %4183 = vmatpush1.msra.mxu0 0.0
    %4184 = vmatprep.subr.mxu0 0.0
    %4185 = vmatpush1.msra.mxu0 0.0
    %4186 = vmatprep.subr.mxu0 0.0
    %4187 = vmatpush1.msra.mxu0 0.0
    %4188 = vmatprep.subr.mxu0 0.0
    %4189 = vmatpush1.msra.mxu0 0.0
    %4190 = vmatprep.subr.mxu0 0.0
    %4191 = vmatpush1.msra.mxu0 0.0
    %4192 = vmatprep.subr.mxu0 0.0
    %4193 = vmatpush1.msra.mxu0 0.0
    %4194 = vmatprep.subr.mxu0 0.0
    %4195 = vmatpush1.msra.mxu0 0.0
    %4196 = vmatprep.subr.mxu0 0.0
    %4197 = vmatpush1.msra.mxu0 0.0
    %4198 = vmatprep.subr.mxu0 0.0
    %4199 = vmatpush1.msra.mxu0 0.0
    %v4200 = vand.u32 %v4003, 4294901760
    %v4201 = vsub.f32 %v4003, %v4200
    %4202 = vmatprep.subr.mxu0 %v4201
    %v4203 = vand.u32 %v4002, 4294901760
    %v4204 = vsub.f32 %v4002, %v4203
    %4205 = vmatpush1.msra.mxu0 %v4204
    %4206 = vmatprep.subr.mxu0 0.0
    %4207 = vmatpush2.msra.mxu0 0.0
    %4208 = vmatprep.subr.mxu0 0.0
    %4209 = vmatpush2.msra.mxu0 0.0
    %4210 = vmatprep.subr.mxu0 0.0
    %4211 = vmatpush2.msra.mxu0 0.0
    %4212 = vmatprep.subr.mxu0 0.0
    %4213 = vmatpush2.msra.mxu0 0.0
    %4214 = vmatprep.subr.mxu0 0.0
    %4215 = vmatpush2.msra.mxu0 0.0
    %4216 = vmatprep.subr.mxu0 0.0
    %4217 = vmatpush2.msra.mxu0 0.0
    %4218 = vmatprep.subr.mxu0 0.0
    %4219 = vmatpush2.msra.mxu0 0.0
    %4220 = vmatprep.subr.mxu0 0.0
    %4221 = vmatpush2.msra.mxu0 0.0
    %4222 = vmatprep.subr.mxu0 0.0
    %4223 = vmatpush2.msra.mxu0 0.0
    %4224 = vmatprep.subr.mxu0 0.0
    %4225 = vmatpush2.msra.mxu0 0.0
    %4226 = vmatprep.subr.mxu0 0.0
    %4227 = vmatpush2.msra.mxu0 0.0
    %4228 = vmatprep.subr.mxu0 0.0
    %4229 = vmatpush2.msra.mxu0 0.0
    %4230 = vmatprep.subr.mxu0 0.0
    %4231 = vmatpush2.msra.mxu0 0.0
    %4232 = vmatprep.subr.mxu0 0.0
    %4233 = vmatpush2.msra.mxu0 0.0
    %4234 = vmatprep.subr.mxu0 0.0
    %4235 = vmatpush2.msra.mxu0 0.0
    %4236 = vmatprep.subr.mxu0 0.0
    %4237 = vmatpush2.msra.mxu0 0.0
    %4238 = vmatprep.mubr.f32.mxu0 0.0
    %v4239 = vand.u32 %v177, 4294901760
    %v4240 = vsub.f32 %v177, %v4239
    %4241 = vmatmul.mubr.f32.gmra.mxu0 %v4240
    %v4242 = vpop.f32.mrf.mxu0
    %v4243 = vadd.f32 %v4166, %v4242
    %v4244 = vpop.f32.mrf.mxu0
    %v4245 = vadd.f32 %v4168, %v4244
    %4246 = vdwg.mxu0
    %4247 = vmatprep.subr.mxu0 0.0
    %4248 = vmatpush1.msra.mxu0 0.0
    %4249 = vmatprep.subr.mxu0 0.0
    %4250 = vmatpush1.msra.mxu0 0.0
    %4251 = vmatprep.subr.mxu0 0.0
    %4252 = vmatpush1.msra.mxu0 0.0
    %4253 = vmatprep.subr.mxu0 0.0
    %4254 = vmatpush1.msra.mxu0 0.0
    %4255 = vmatprep.subr.mxu0 0.0
    %4256 = vmatpush1.msra.mxu0 0.0
    %4257 = vmatprep.subr.mxu0 0.0
    %4258 = vmatpush1.msra.mxu0 0.0
    %4259 = vmatprep.subr.mxu0 0.0
    %4260 = vmatpush1.msra.mxu0 0.0
    %4261 = vmatprep.subr.mxu0 0.0
    %4262 = vmatpush1.msra.mxu0 0.0
    %4263 = vmatprep.subr.mxu0 0.0
    %4264 = vmatpush1.msra.mxu0 0.0
    %4265 = vmatprep.subr.mxu0 0.0
    %4266 = vmatpush1.msra.mxu0 0.0
    %4267 = vmatprep.subr.mxu0 0.0
    %4268 = vmatpush1.msra.mxu0 0.0
    %4269 = vmatprep.subr.mxu0 0.0
    %4270 = vmatpush1.msra.mxu0 0.0
    %4271 = vmatprep.subr.mxu0 0.0
    %4272 = vmatpush1.msra.mxu0 0.0
    %4273 = vmatprep.subr.mxu0 0.0
    %4274 = vmatpush1.msra.mxu0 0.0
    %4275 = vmatprep.subr.mxu0 0.0
    %4276 = vmatpush1.msra.mxu0 0.0
    %v4277 = vand.u32 %v4003, 4294901760
    %4278 = vmatprep.subr.mxu0 %v4277
    %v4279 = vand.u32 %v4002, 4294901760
    %4280 = vmatpush1.msra.mxu0 %v4279
    %4281 = vmatprep.subr.mxu0 0.0
    %4282 = vmatpush2.msra.mxu0 0.0
    %4283 = vmatprep.subr.mxu0 0.0
    %4284 = vmatpush2.msra.mxu0 0.0
    %4285 = vmatprep.subr.mxu0 0.0
    %4286 = vmatpush2.msra.mxu0 0.0
    %4287 = vmatprep.subr.mxu0 0.0
    %4288 = vmatpush2.msra.mxu0 0.0
    %4289 = vmatprep.subr.mxu0 0.0
    %4290 = vmatpush2.msra.mxu0 0.0
    %4291 = vmatprep.subr.mxu0 0.0
    %4292 = vmatpush2.msra.mxu0 0.0
    %4293 = vmatprep.subr.mxu0 0.0
    %4294 = vmatpush2.msra.mxu0 0.0
    %4295 = vmatprep.subr.mxu0 0.0
    %4296 = vmatpush2.msra.mxu0 0.0
    %4297 = vmatprep.subr.mxu0 0.0
    %4298 = vmatpush2.msra.mxu0 0.0
    %4299 = vmatprep.subr.mxu0 0.0
    %4300 = vmatpush2.msra.mxu0 0.0
    %4301 = vmatprep.subr.mxu0 0.0
    %4302 = vmatpush2.msra.mxu0 0.0
    %4303 = vmatprep.subr.mxu0 0.0
    %4304 = vmatpush2.msra.mxu0 0.0
    %4305 = vmatprep.subr.mxu0 0.0
    %4306 = vmatpush2.msra.mxu0 0.0
    %4307 = vmatprep.subr.mxu0 0.0
    %4308 = vmatpush2.msra.mxu0 0.0
    %4309 = vmatprep.subr.mxu0 0.0
    %4310 = vmatpush2.msra.mxu0 0.0
    %4311 = vmatprep.subr.mxu0 0.0
    %4312 = vmatpush2.msra.mxu0 0.0
    %4313 = vmatprep.mubr.f32.mxu0 0.0
    %v4314 = vand.u32 %v177, 4294901760
    %v4315 = vsub.f32 %v177, %v4314
    %v4316 = vand.u32 %v4315, 4294901760
    %4317 = vmatmul.mubr.f32.gmra.mxu0 %v4316
    %v4318 = vpop.f32.mrf.mxu0
    %v4319 = vadd.f32 %v4243, %v4318
    %v4320 = vpop.f32.mrf.mxu0
    %v4321 = vadd.f32 %v4245, %v4320
    %4322 = vdwg.mxu0
    %4323 = vmatprep.subr.mxu0 0.0
    %4324 = vmatpush1.msra.mxu0 0.0
    %4325 = vmatprep.subr.mxu0 0.0
    %4326 = vmatpush1.msra.mxu0 0.0
    %4327 = vmatprep.subr.mxu0 0.0
    %4328 = vmatpush1.msra.mxu0 0.0
    %4329 = vmatprep.subr.mxu0 0.0
    %4330 = vmatpush1.msra.mxu0 0.0
    %4331 = vmatprep.subr.mxu0 0.0
    %4332 = vmatpush1.msra.mxu0 0.0
    %4333 = vmatprep.subr.mxu0 0.0
    %4334 = vmatpush1.msra.mxu0 0.0
    %4335 = vmatprep.subr.mxu0 0.0
    %4336 = vmatpush1.msra.mxu0 0.0
    %4337 = vmatprep.subr.mxu0 0.0
    %4338 = vmatpush1.msra.mxu0 0.0
    %4339 = vmatprep.subr.mxu0 0.0
    %4340 = vmatpush1.msra.mxu0 0.0
    %4341 = vmatprep.subr.mxu0 0.0
    %4342 = vmatpush1.msra.mxu0 0.0
    %4343 = vmatprep.subr.mxu0 0.0
    %4344 = vmatpush1.msra.mxu0 0.0
    %4345 = vmatprep.subr.mxu0 0.0
    %4346 = vmatpush1.msra.mxu0 0.0
    %4347 = vmatprep.subr.mxu0 0.0
    %4348 = vmatpush1.msra.mxu0 0.0
    %4349 = vmatprep.subr.mxu0 0.0
    %4350 = vmatpush1.msra.mxu0 0.0
    %4351 = vmatprep.subr.mxu0 0.0
    %4352 = vmatpush1.msra.mxu0 0.0
    %v4353 = vand.u32 %v4003, 4294901760
    %v4354 = vsub.f32 %v4003, %v4353
    %v4355 = vand.u32 %v4354, 4294901760
    %4356 = vmatprep.subr.mxu0 %v4355
    %v4357 = vand.u32 %v4002, 4294901760
    %v4358 = vsub.f32 %v4002, %v4357
    %v4359 = vand.u32 %v4358, 4294901760
    %4360 = vmatpush1.msra.mxu0 %v4359
    %4361 = vmatprep.subr.mxu0 0.0
    %4362 = vmatpush2.msra.mxu0 0.0
    %4363 = vmatprep.subr.mxu0 0.0
    %4364 = vmatpush2.msra.mxu0 0.0
    %4365 = vmatprep.subr.mxu0 0.0
    %4366 = vmatpush2.msra.mxu0 0.0
    %4367 = vmatprep.subr.mxu0 0.0
    %4368 = vmatpush2.msra.mxu0 0.0
    %4369 = vmatprep.subr.mxu0 0.0
    %4370 = vmatpush2.msra.mxu0 0.0
    %4371 = vmatprep.subr.mxu0 0.0
    %4372 = vmatpush2.msra.mxu0 0.0
    %4373 = vmatprep.subr.mxu0 0.0
    %4374 = vmatpush2.msra.mxu0 0.0
    %4375 = vmatprep.subr.mxu0 0.0
    %4376 = vmatpush2.msra.mxu0 0.0
    %4377 = vmatprep.subr.mxu0 0.0
    %4378 = vmatpush2.msra.mxu0 0.0
    %4379 = vmatprep.subr.mxu0 0.0
    %4380 = vmatpush2.msra.mxu0 0.0
    %4381 = vmatprep.subr.mxu0 0.0
    %4382 = vmatpush2.msra.mxu0 0.0
    %4383 = vmatprep.subr.mxu0 0.0
    %4384 = vmatpush2.msra.mxu0 0.0
    %4385 = vmatprep.subr.mxu0 0.0
    %4386 = vmatpush2.msra.mxu0 0.0
    %4387 = vmatprep.subr.mxu0 0.0
    %4388 = vmatpush2.msra.mxu0 0.0
    %4389 = vmatprep.subr.mxu0 0.0
    %4390 = vmatpush2.msra.mxu0 0.0
    %4391 = vmatprep.subr.mxu0 0.0
    %4392 = vmatpush2.msra.mxu0 0.0
    %4393 = vmatprep.mubr.f32.mxu0 0.0
    %v4394 = vand.u32 %v177, 4294901760
    %4395 = vmatmul.mubr.f32.gmra.mxu0 %v4394
    %v4396 = vpop.f32.mrf.mxu0
    %v4397 = vadd.f32 %v4319, %v4396
    %v4398 = vpop.f32.mrf.mxu0
    %v4399 = vadd.f32 %v4321, %v4398
    %4400 = vdwg.mxu0
    %4401 = vmatprep.subr.mxu0 0.0
    %4402 = vmatpush1.msra.mxu0 0.0
    %4403 = vmatprep.subr.mxu0 0.0
    %4404 = vmatpush1.msra.mxu0 0.0
    %4405 = vmatprep.subr.mxu0 0.0
    %4406 = vmatpush1.msra.mxu0 0.0
    %4407 = vmatprep.subr.mxu0 0.0
    %4408 = vmatpush1.msra.mxu0 0.0
    %4409 = vmatprep.subr.mxu0 0.0
    %4410 = vmatpush1.msra.mxu0 0.0
    %4411 = vmatprep.subr.mxu0 0.0
    %4412 = vmatpush1.msra.mxu0 0.0
    %4413 = vmatprep.subr.mxu0 0.0
    %4414 = vmatpush1.msra.mxu0 0.0
    %4415 = vmatprep.subr.mxu0 0.0
    %4416 = vmatpush1.msra.mxu0 0.0
    %4417 = vmatprep.subr.mxu0 0.0
    %4418 = vmatpush1.msra.mxu0 0.0
    %4419 = vmatprep.subr.mxu0 0.0
    %4420 = vmatpush1.msra.mxu0 0.0
    %4421 = vmatprep.subr.mxu0 0.0
    %4422 = vmatpush1.msra.mxu0 0.0
    %4423 = vmatprep.subr.mxu0 0.0
    %4424 = vmatpush1.msra.mxu0 0.0
    %4425 = vmatprep.subr.mxu0 0.0
    %4426 = vmatpush1.msra.mxu0 0.0
    %4427 = vmatprep.subr.mxu0 0.0
    %4428 = vmatpush1.msra.mxu0 0.0
    %4429 = vmatprep.subr.mxu0 0.0
    %4430 = vmatpush1.msra.mxu0 0.0
    %v4431 = vand.u32 %v4003, 4294901760
    %4432 = vmatprep.subr.mxu0 %v4431
    %v4433 = vand.u32 %v4002, 4294901760
    %4434 = vmatpush1.msra.mxu0 %v4433
    %4435 = vmatprep.subr.mxu0 0.0
    %4436 = vmatpush2.msra.mxu0 0.0
    %4437 = vmatprep.subr.mxu0 0.0
    %4438 = vmatpush2.msra.mxu0 0.0
    %4439 = vmatprep.subr.mxu0 0.0
    %4440 = vmatpush2.msra.mxu0 0.0
    %4441 = vmatprep.subr.mxu0 0.0
    %4442 = vmatpush2.msra.mxu0 0.0
    %4443 = vmatprep.subr.mxu0 0.0
    %4444 = vmatpush2.msra.mxu0 0.0
    %4445 = vmatprep.subr.mxu0 0.0
    %4446 = vmatpush2.msra.mxu0 0.0
    %4447 = vmatprep.subr.mxu0 0.0
    %4448 = vmatpush2.msra.mxu0 0.0
    %4449 = vmatprep.subr.mxu0 0.0
    %4450 = vmatpush2.msra.mxu0 0.0
    %4451 = vmatprep.subr.mxu0 0.0
    %4452 = vmatpush2.msra.mxu0 0.0
    %4453 = vmatprep.subr.mxu0 0.0
    %4454 = vmatpush2.msra.mxu0 0.0
    %4455 = vmatprep.subr.mxu0 0.0
    %4456 = vmatpush2.msra.mxu0 0.0
    %4457 = vmatprep.subr.mxu0 0.0
    %4458 = vmatpush2.msra.mxu0 0.0
    %4459 = vmatprep.subr.mxu0 0.0
    %4460 = vmatpush2.msra.mxu0 0.0
    %4461 = vmatprep.subr.mxu0 0.0
    %4462 = vmatpush2.msra.mxu0 0.0
    %4463 = vmatprep.subr.mxu0 0.0
    %4464 = vmatpush2.msra.mxu0 0.0
    %4465 = vmatprep.subr.mxu0 0.0
    %4466 = vmatpush2.msra.mxu0 0.0
    %4467 = vmatprep.mubr.f32.mxu0 0.0
    %v4468 = vand.u32 %v177, 4294901760
    %4469 = vmatmul.mubr.f32.gmra.mxu0 %v4468
    %v4470 = vpop.f32.mrf.mxu0
    %v4471 = vadd.f32 %v4397, %v4470
    %v4472 = vpop.f32.mrf.mxu0
    %v4473 = vadd.f32 %v4399, %v4472
    %4474 = vdwg.mxu0
    %4475 = vmatprep.subr.mxu0 0.0
    %4476 = vmatpush1.msra.mxu0 0.0
    %4477 = vmatprep.subr.mxu0 0.0
    %4478 = vmatpush1.msra.mxu0 0.0
    %4479 = vmatprep.subr.mxu0 0.0
    %4480 = vmatpush1.msra.mxu0 0.0
    %4481 = vmatprep.subr.mxu0 0.0
    %4482 = vmatpush1.msra.mxu0 0.0
    %4483 = vmatprep.subr.mxu0 0.0
    %4484 = vmatpush1.msra.mxu0 0.0
    %4485 = vmatprep.subr.mxu0 0.0
    %4486 = vmatpush1.msra.mxu0 0.0
    %4487 = vmatprep.subr.mxu0 0.0
    %4488 = vmatpush1.msra.mxu0 0.0
    %4489 = vmatprep.subr.mxu0 0.0
    %4490 = vmatpush1.msra.mxu0 0.0
    %4491 = vmatprep.subr.mxu0 0.0
    %4492 = vmatpush1.msra.mxu0 0.0
    %4493 = vmatprep.subr.mxu0 0.0
    %4494 = vmatpush1.msra.mxu0 0.0
    %4495 = vmatprep.subr.mxu0 0.0
    %4496 = vmatpush1.msra.mxu0 0.0
    %4497 = vmatprep.subr.mxu0 0.0
    %4498 = vmatpush1.msra.mxu0 0.0
    %4499 = vmatprep.subr.mxu0 0.0
    %4500 = vmatpush1.msra.mxu0 0.0
    %4501 = vmatprep.subr.mxu0 0.0
    %4502 = vmatpush1.msra.mxu0 0.0
    %4503 = vmatprep.subr.mxu0 0.0
    %4504 = vmatpush1.msra.mxu0 0.0
    %v4505 = vand.u32 %v4005, 4294901760
    %4506 = vmatprep.subr.mxu0 %v4505
    %v4507 = vand.u32 %v4004, 4294901760
    %4508 = vmatpush1.msra.mxu0 %v4507
    %4509 = vmatprep.subr.mxu0 0.0
    %4510 = vmatpush2.msra.mxu0 0.0
    %4511 = vmatprep.subr.mxu0 0.0
    %4512 = vmatpush2.msra.mxu0 0.0
    %4513 = vmatprep.subr.mxu0 0.0
    %4514 = vmatpush2.msra.mxu0 0.0
    %4515 = vmatprep.subr.mxu0 0.0
    %4516 = vmatpush2.msra.mxu0 0.0
    %4517 = vmatprep.subr.mxu0 0.0
    %4518 = vmatpush2.msra.mxu0 0.0
    %4519 = vmatprep.subr.mxu0 0.0
    %4520 = vmatpush2.msra.mxu0 0.0
    %4521 = vmatprep.subr.mxu0 0.0
    %4522 = vmatpush2.msra.mxu0 0.0
    %4523 = vmatprep.subr.mxu0 0.0
    %4524 = vmatpush2.msra.mxu0 0.0
    %4525 = vmatprep.subr.mxu0 0.0
    %4526 = vmatpush2.msra.mxu0 0.0
    %4527 = vmatprep.subr.mxu0 0.0
    %4528 = vmatpush2.msra.mxu0 0.0
    %4529 = vmatprep.subr.mxu0 0.0
    %4530 = vmatpush2.msra.mxu0 0.0
    %4531 = vmatprep.subr.mxu0 0.0
    %4532 = vmatpush2.msra.mxu0 0.0
    %4533 = vmatprep.subr.mxu0 0.0
    %4534 = vmatpush2.msra.mxu0 0.0
    %4535 = vmatprep.subr.mxu0 0.0
    %4536 = vmatpush2.msra.mxu0 0.0
    %4537 = vmatprep.subr.mxu0 0.0
    %4538 = vmatpush2.msra.mxu0 0.0
    %4539 = vmatprep.subr.mxu0 0.0
    %4540 = vmatpush2.msra.mxu0 0.0
    %4541 = vmatprep.mubr.f32.mxu0 0.0
    %v4542 = vand.u32 %v177, 4294901760
    %v4543 = vsub.f32 %v177, %v4542
    %v4544 = vand.u32 %v4543, 4294901760
    %v4545 = vsub.f32 %v4543, %v4544
    %v4546 = vand.u32 %v4545, 4294901760
    %4547 = vmatmul.mubr.f32.gmra.mxu0 %v4546
    %v4548 = vpop.f32.mrf.mxu0
    %v4549 = vadd.f32 %v173, %v4548
    %v4550 = vpop.f32.mrf.mxu0
    %v4551 = vadd.f32 %v173, %v4550
    %4552 = vdwg.mxu0
    %4553 = vmatprep.subr.mxu0 0.0
    %4554 = vmatpush1.msra.mxu0 0.0
    %4555 = vmatprep.subr.mxu0 0.0
    %4556 = vmatpush1.msra.mxu0 0.0
    %4557 = vmatprep.subr.mxu0 0.0
    %4558 = vmatpush1.msra.mxu0 0.0
    %4559 = vmatprep.subr.mxu0 0.0
    %4560 = vmatpush1.msra.mxu0 0.0
    %4561 = vmatprep.subr.mxu0 0.0
    %4562 = vmatpush1.msra.mxu0 0.0
    %4563 = vmatprep.subr.mxu0 0.0
    %4564 = vmatpush1.msra.mxu0 0.0
    %4565 = vmatprep.subr.mxu0 0.0
    %4566 = vmatpush1.msra.mxu0 0.0
    %4567 = vmatprep.subr.mxu0 0.0
    %4568 = vmatpush1.msra.mxu0 0.0
    %4569 = vmatprep.subr.mxu0 0.0
    %4570 = vmatpush1.msra.mxu0 0.0
    %4571 = vmatprep.subr.mxu0 0.0
    %4572 = vmatpush1.msra.mxu0 0.0
    %4573 = vmatprep.subr.mxu0 0.0
    %4574 = vmatpush1.msra.mxu0 0.0
    %4575 = vmatprep.subr.mxu0 0.0
    %4576 = vmatpush1.msra.mxu0 0.0
    %4577 = vmatprep.subr.mxu0 0.0
    %4578 = vmatpush1.msra.mxu0 0.0
    %4579 = vmatprep.subr.mxu0 0.0
    %4580 = vmatpush1.msra.mxu0 0.0
    %4581 = vmatprep.subr.mxu0 0.0
    %4582 = vmatpush1.msra.mxu0 0.0
    %v4583 = vand.u32 %v4005, 4294901760
    %v4584 = vsub.f32 %v4005, %v4583
    %v4585 = vand.u32 %v4584, 4294901760
    %v4586 = vsub.f32 %v4584, %v4585
    %v4587 = vand.u32 %v4586, 4294901760
    %4588 = vmatprep.subr.mxu0 %v4587
    %v4589 = vand.u32 %v4004, 4294901760
    %v4590 = vsub.f32 %v4004, %v4589
    %v4591 = vand.u32 %v4590, 4294901760
    %v4592 = vsub.f32 %v4590, %v4591
    %v4593 = vand.u32 %v4592, 4294901760
    %4594 = vmatpush1.msra.mxu0 %v4593
    %4595 = vmatprep.subr.mxu0 0.0
    %4596 = vmatpush2.msra.mxu0 0.0
    %4597 = vmatprep.subr.mxu0 0.0
    %4598 = vmatpush2.msra.mxu0 0.0
    %4599 = vmatprep.subr.mxu0 0.0
    %4600 = vmatpush2.msra.mxu0 0.0
    %4601 = vmatprep.subr.mxu0 0.0
    %4602 = vmatpush2.msra.mxu0 0.0
    %4603 = vmatprep.subr.mxu0 0.0
    %4604 = vmatpush2.msra.mxu0 0.0
    %4605 = vmatprep.subr.mxu0 0.0
    %4606 = vmatpush2.msra.mxu0 0.0
    %4607 = vmatprep.subr.mxu0 0.0
    %4608 = vmatpush2.msra.mxu0 0.0
    %4609 = vmatprep.subr.mxu0 0.0
    %4610 = vmatpush2.msra.mxu0 0.0
    %4611 = vmatprep.subr.mxu0 0.0
    %4612 = vmatpush2.msra.mxu0 0.0
    %4613 = vmatprep.subr.mxu0 0.0
    %4614 = vmatpush2.msra.mxu0 0.0
    %4615 = vmatprep.subr.mxu0 0.0
    %4616 = vmatpush2.msra.mxu0 0.0
    %4617 = vmatprep.subr.mxu0 0.0
    %4618 = vmatpush2.msra.mxu0 0.0
    %4619 = vmatprep.subr.mxu0 0.0
    %4620 = vmatpush2.msra.mxu0 0.0
    %4621 = vmatprep.subr.mxu0 0.0
    %4622 = vmatpush2.msra.mxu0 0.0
    %4623 = vmatprep.subr.mxu0 0.0
    %4624 = vmatpush2.msra.mxu0 0.0
    %4625 = vmatprep.subr.mxu0 0.0
    %4626 = vmatpush2.msra.mxu0 0.0
    %4627 = vmatprep.mubr.f32.mxu0 0.0
    %v4628 = vand.u32 %v177, 4294901760
    %4629 = vmatmul.mubr.f32.gmra.mxu0 %v4628
    %v4630 = vpop.f32.mrf.mxu0
    %v4631 = vadd.f32 %v4549, %v4630
    %v4632 = vpop.f32.mrf.mxu0
    %v4633 = vadd.f32 %v4551, %v4632
    %4634 = vdwg.mxu0
    %4635 = vmatprep.subr.mxu0 0.0
    %4636 = vmatpush1.msra.mxu0 0.0
    %4637 = vmatprep.subr.mxu0 0.0
    %4638 = vmatpush1.msra.mxu0 0.0
    %4639 = vmatprep.subr.mxu0 0.0
    %4640 = vmatpush1.msra.mxu0 0.0
    %4641 = vmatprep.subr.mxu0 0.0
    %4642 = vmatpush1.msra.mxu0 0.0
    %4643 = vmatprep.subr.mxu0 0.0
    %4644 = vmatpush1.msra.mxu0 0.0
    %4645 = vmatprep.subr.mxu0 0.0
    %4646 = vmatpush1.msra.mxu0 0.0
    %4647 = vmatprep.subr.mxu0 0.0
    %4648 = vmatpush1.msra.mxu0 0.0
    %4649 = vmatprep.subr.mxu0 0.0
    %4650 = vmatpush1.msra.mxu0 0.0
    %4651 = vmatprep.subr.mxu0 0.0
    %4652 = vmatpush1.msra.mxu0 0.0
    %4653 = vmatprep.subr.mxu0 0.0
    %4654 = vmatpush1.msra.mxu0 0.0
    %4655 = vmatprep.subr.mxu0 0.0
    %4656 = vmatpush1.msra.mxu0 0.0
    %4657 = vmatprep.subr.mxu0 0.0
    %4658 = vmatpush1.msra.mxu0 0.0
    %4659 = vmatprep.subr.mxu0 0.0
    %4660 = vmatpush1.msra.mxu0 0.0
    %4661 = vmatprep.subr.mxu0 0.0
    %4662 = vmatpush1.msra.mxu0 0.0
    %4663 = vmatprep.subr.mxu0 0.0
    %4664 = vmatpush1.msra.mxu0 0.0
    %v4665 = vand.u32 %v4005, 4294901760
    %v4666 = vsub.f32 %v4005, %v4665
    %4667 = vmatprep.subr.mxu0 %v4666
    %v4668 = vand.u32 %v4004, 4294901760
    %v4669 = vsub.f32 %v4004, %v4668
    %4670 = vmatpush1.msra.mxu0 %v4669
    %4671 = vmatprep.subr.mxu0 0.0
    %4672 = vmatpush2.msra.mxu0 0.0
    %4673 = vmatprep.subr.mxu0 0.0
    %4674 = vmatpush2.msra.mxu0 0.0
    %4675 = vmatprep.subr.mxu0 0.0
    %4676 = vmatpush2.msra.mxu0 0.0
    %4677 = vmatprep.subr.mxu0 0.0
    %4678 = vmatpush2.msra.mxu0 0.0
    %4679 = vmatprep.subr.mxu0 0.0
    %4680 = vmatpush2.msra.mxu0 0.0
    %4681 = vmatprep.subr.mxu0 0.0
    %4682 = vmatpush2.msra.mxu0 0.0
    %4683 = vmatprep.subr.mxu0 0.0
    %4684 = vmatpush2.msra.mxu0 0.0
    %4685 = vmatprep.subr.mxu0 0.0
    %4686 = vmatpush2.msra.mxu0 0.0
    %4687 = vmatprep.subr.mxu0 0.0
    %4688 = vmatpush2.msra.mxu0 0.0
    %4689 = vmatprep.subr.mxu0 0.0
    %4690 = vmatpush2.msra.mxu0 0.0
    %4691 = vmatprep.subr.mxu0 0.0
    %4692 = vmatpush2.msra.mxu0 0.0
    %4693 = vmatprep.subr.mxu0 0.0
    %4694 = vmatpush2.msra.mxu0 0.0
    %4695 = vmatprep.subr.mxu0 0.0
    %4696 = vmatpush2.msra.mxu0 0.0
    %4697 = vmatprep.subr.mxu0 0.0
    %4698 = vmatpush2.msra.mxu0 0.0
    %4699 = vmatprep.subr.mxu0 0.0
    %4700 = vmatpush2.msra.mxu0 0.0
    %4701 = vmatprep.subr.mxu0 0.0
    %4702 = vmatpush2.msra.mxu0 0.0
    %4703 = vmatprep.mubr.f32.mxu0 0.0
    %v4704 = vand.u32 %v177, 4294901760
    %v4705 = vsub.f32 %v177, %v4704
    %4706 = vmatmul.mubr.f32.gmra.mxu0 %v4705
    %v4707 = vpop.f32.mrf.mxu0
    %v4708 = vadd.f32 %v4631, %v4707
    %v4709 = vpop.f32.mrf.mxu0
    %v4710 = vadd.f32 %v4633, %v4709
    %4711 = vdwg.mxu0
    %4712 = vmatprep.subr.mxu0 0.0
    %4713 = vmatpush1.msra.mxu0 0.0
    %4714 = vmatprep.subr.mxu0 0.0
    %4715 = vmatpush1.msra.mxu0 0.0
    %4716 = vmatprep.subr.mxu0 0.0
    %4717 = vmatpush1.msra.mxu0 0.0
    %4718 = vmatprep.subr.mxu0 0.0
    %4719 = vmatpush1.msra.mxu0 0.0
    %4720 = vmatprep.subr.mxu0 0.0
    %4721 = vmatpush1.msra.mxu0 0.0
    %4722 = vmatprep.subr.mxu0 0.0
    %4723 = vmatpush1.msra.mxu0 0.0
    %4724 = vmatprep.subr.mxu0 0.0
    %4725 = vmatpush1.msra.mxu0 0.0
    %4726 = vmatprep.subr.mxu0 0.0
    %4727 = vmatpush1.msra.mxu0 0.0
    %4728 = vmatprep.subr.mxu0 0.0
    %4729 = vmatpush1.msra.mxu0 0.0
    %4730 = vmatprep.subr.mxu0 0.0
    %4731 = vmatpush1.msra.mxu0 0.0
    %4732 = vmatprep.subr.mxu0 0.0
    %4733 = vmatpush1.msra.mxu0 0.0
    %4734 = vmatprep.subr.mxu0 0.0
    %4735 = vmatpush1.msra.mxu0 0.0
    %4736 = vmatprep.subr.mxu0 0.0
    %4737 = vmatpush1.msra.mxu0 0.0
    %4738 = vmatprep.subr.mxu0 0.0
    %4739 = vmatpush1.msra.mxu0 0.0
    %4740 = vmatprep.subr.mxu0 0.0
    %4741 = vmatpush1.msra.mxu0 0.0
    %v4742 = vand.u32 %v4005, 4294901760
    %4743 = vmatprep.subr.mxu0 %v4742
    %v4744 = vand.u32 %v4004, 4294901760
    %4745 = vmatpush1.msra.mxu0 %v4744
    %4746 = vmatprep.subr.mxu0 0.0
    %4747 = vmatpush2.msra.mxu0 0.0
    %4748 = vmatprep.subr.mxu0 0.0
    %4749 = vmatpush2.msra.mxu0 0.0
    %4750 = vmatprep.subr.mxu0 0.0
    %4751 = vmatpush2.msra.mxu0 0.0
    %4752 = vmatprep.subr.mxu0 0.0
    %4753 = vmatpush2.msra.mxu0 0.0
    %4754 = vmatprep.subr.mxu0 0.0
    %4755 = vmatpush2.msra.mxu0 0.0
    %4756 = vmatprep.subr.mxu0 0.0
    %4757 = vmatpush2.msra.mxu0 0.0
    %4758 = vmatprep.subr.mxu0 0.0
    %4759 = vmatpush2.msra.mxu0 0.0
    %4760 = vmatprep.subr.mxu0 0.0
    %4761 = vmatpush2.msra.mxu0 0.0
    %4762 = vmatprep.subr.mxu0 0.0
    %4763 = vmatpush2.msra.mxu0 0.0
    %4764 = vmatprep.subr.mxu0 0.0
    %4765 = vmatpush2.msra.mxu0 0.0
    %4766 = vmatprep.subr.mxu0 0.0
    %4767 = vmatpush2.msra.mxu0 0.0
    %4768 = vmatprep.subr.mxu0 0.0
    %4769 = vmatpush2.msra.mxu0 0.0
    %4770 = vmatprep.subr.mxu0 0.0
    %4771 = vmatpush2.msra.mxu0 0.0
    %4772 = vmatprep.subr.mxu0 0.0
    %4773 = vmatpush2.msra.mxu0 0.0
    %4774 = vmatprep.subr.mxu0 0.0
    %4775 = vmatpush2.msra.mxu0 0.0
    %4776 = vmatprep.subr.mxu0 0.0
    %4777 = vmatpush2.msra.mxu0 0.0
    %4778 = vmatprep.mubr.f32.mxu0 0.0
    %v4779 = vand.u32 %v177, 4294901760
    %v4780 = vsub.f32 %v177, %v4779
    %v4781 = vand.u32 %v4780, 4294901760
    %4782 = vmatmul.mubr.f32.gmra.mxu0 %v4781
    %v4783 = vpop.f32.mrf.mxu0
    %v4784 = vadd.f32 %v4708, %v4783
    %v4785 = vpop.f32.mrf.mxu0
    %v4786 = vadd.f32 %v4710, %v4785
    %4787 = vdwg.mxu0
    %4788 = vmatprep.subr.mxu0 0.0
    %4789 = vmatpush1.msra.mxu0 0.0
    %4790 = vmatprep.subr.mxu0 0.0
    %4791 = vmatpush1.msra.mxu0 0.0
    %4792 = vmatprep.subr.mxu0 0.0
    %4793 = vmatpush1.msra.mxu0 0.0
    %4794 = vmatprep.subr.mxu0 0.0
    %4795 = vmatpush1.msra.mxu0 0.0
    %4796 = vmatprep.subr.mxu0 0.0
    %4797 = vmatpush1.msra.mxu0 0.0
    %4798 = vmatprep.subr.mxu0 0.0
    %4799 = vmatpush1.msra.mxu0 0.0
    %4800 = vmatprep.subr.mxu0 0.0
    %4801 = vmatpush1.msra.mxu0 0.0
    %4802 = vmatprep.subr.mxu0 0.0
    %4803 = vmatpush1.msra.mxu0 0.0
    %4804 = vmatprep.subr.mxu0 0.0
    %4805 = vmatpush1.msra.mxu0 0.0
    %4806 = vmatprep.subr.mxu0 0.0
    %4807 = vmatpush1.msra.mxu0 0.0
    %4808 = vmatprep.subr.mxu0 0.0
    %4809 = vmatpush1.msra.mxu0 0.0
    %4810 = vmatprep.subr.mxu0 0.0
    %4811 = vmatpush1.msra.mxu0 0.0
    %4812 = vmatprep.subr.mxu0 0.0
    %4813 = vmatpush1.msra.mxu0 0.0
    %4814 = vmatprep.subr.mxu0 0.0
    %4815 = vmatpush1.msra.mxu0 0.0
    %4816 = vmatprep.subr.mxu0 0.0
    %4817 = vmatpush1.msra.mxu0 0.0
    %v4818 = vand.u32 %v4005, 4294901760
    %v4819 = vsub.f32 %v4005, %v4818
    %v4820 = vand.u32 %v4819, 4294901760
    %4821 = vmatprep.subr.mxu0 %v4820
    %v4822 = vand.u32 %v4004, 4294901760
    %v4823 = vsub.f32 %v4004, %v4822
    %v4824 = vand.u32 %v4823, 4294901760
    %4825 = vmatpush1.msra.mxu0 %v4824
    %4826 = vmatprep.subr.mxu0 0.0
    %4827 = vmatpush2.msra.mxu0 0.0
    %4828 = vmatprep.subr.mxu0 0.0
    %4829 = vmatpush2.msra.mxu0 0.0
    %4830 = vmatprep.subr.mxu0 0.0
    %4831 = vmatpush2.msra.mxu0 0.0
    %4832 = vmatprep.subr.mxu0 0.0
    %4833 = vmatpush2.msra.mxu0 0.0
    %4834 = vmatprep.subr.mxu0 0.0
    %4835 = vmatpush2.msra.mxu0 0.0
    %4836 = vmatprep.subr.mxu0 0.0
    %4837 = vmatpush2.msra.mxu0 0.0
    %4838 = vmatprep.subr.mxu0 0.0
    %4839 = vmatpush2.msra.mxu0 0.0
    %4840 = vmatprep.subr.mxu0 0.0
    %4841 = vmatpush2.msra.mxu0 0.0
    %4842 = vmatprep.subr.mxu0 0.0
    %4843 = vmatpush2.msra.mxu0 0.0
    %4844 = vmatprep.subr.mxu0 0.0
    %4845 = vmatpush2.msra.mxu0 0.0
    %4846 = vmatprep.subr.mxu0 0.0
    %4847 = vmatpush2.msra.mxu0 0.0
    %4848 = vmatprep.subr.mxu0 0.0
    %4849 = vmatpush2.msra.mxu0 0.0
    %4850 = vmatprep.subr.mxu0 0.0
    %4851 = vmatpush2.msra.mxu0 0.0
    %4852 = vmatprep.subr.mxu0 0.0
    %4853 = vmatpush2.msra.mxu0 0.0
    %4854 = vmatprep.subr.mxu0 0.0
    %4855 = vmatpush2.msra.mxu0 0.0
    %4856 = vmatprep.subr.mxu0 0.0
    %4857 = vmatpush2.msra.mxu0 0.0
    %4858 = vmatprep.mubr.f32.mxu0 0.0
    %v4859 = vand.u32 %v177, 4294901760
    %4860 = vmatmul.mubr.f32.gmra.mxu0 %v4859
    %v4861 = vpop.f32.mrf.mxu0
    %v4862 = vadd.f32 %v4784, %v4861
    %v4863 = vpop.f32.mrf.mxu0
    %v4864 = vadd.f32 %v4786, %v4863
    %4865 = vdwg.mxu0
    %4866 = vmatprep.subr.mxu0 0.0
    %4867 = vmatpush1.msra.mxu0 0.0
    %4868 = vmatprep.subr.mxu0 0.0
    %4869 = vmatpush1.msra.mxu0 0.0
    %4870 = vmatprep.subr.mxu0 0.0
    %4871 = vmatpush1.msra.mxu0 0.0
    %4872 = vmatprep.subr.mxu0 0.0
    %4873 = vmatpush1.msra.mxu0 0.0
    %4874 = vmatprep.subr.mxu0 0.0
    %4875 = vmatpush1.msra.mxu0 0.0
    %4876 = vmatprep.subr.mxu0 0.0
    %4877 = vmatpush1.msra.mxu0 0.0
    %4878 = vmatprep.subr.mxu0 0.0
    %4879 = vmatpush1.msra.mxu0 0.0
    %4880 = vmatprep.subr.mxu0 0.0
    %4881 = vmatpush1.msra.mxu0 0.0
    %4882 = vmatprep.subr.mxu0 0.0
    %4883 = vmatpush1.msra.mxu0 0.0
    %4884 = vmatprep.subr.mxu0 0.0
    %4885 = vmatpush1.msra.mxu0 0.0
    %4886 = vmatprep.subr.mxu0 0.0
    %4887 = vmatpush1.msra.mxu0 0.0
    %4888 = vmatprep.subr.mxu0 0.0
    %4889 = vmatpush1.msra.mxu0 0.0
    %4890 = vmatprep.subr.mxu0 0.0
    %4891 = vmatpush1.msra.mxu0 0.0
    %4892 = vmatprep.subr.mxu0 0.0
    %4893 = vmatpush1.msra.mxu0 0.0
    %4894 = vmatprep.subr.mxu0 0.0
    %4895 = vmatpush1.msra.mxu0 0.0
    %v4896 = vand.u32 %v4005, 4294901760
    %4897 = vmatprep.subr.mxu0 %v4896
    %v4898 = vand.u32 %v4004, 4294901760
    %4899 = vmatpush1.msra.mxu0 %v4898
    %4900 = vmatprep.subr.mxu0 0.0
    %4901 = vmatpush2.msra.mxu0 0.0
    %4902 = vmatprep.subr.mxu0 0.0
    %4903 = vmatpush2.msra.mxu0 0.0
    %4904 = vmatprep.subr.mxu0 0.0
    %4905 = vmatpush2.msra.mxu0 0.0
    %4906 = vmatprep.subr.mxu0 0.0
    %4907 = vmatpush2.msra.mxu0 0.0
    %4908 = vmatprep.subr.mxu0 0.0
    %4909 = vmatpush2.msra.mxu0 0.0
    %4910 = vmatprep.subr.mxu0 0.0
    %4911 = vmatpush2.msra.mxu0 0.0
    %4912 = vmatprep.subr.mxu0 0.0
    %4913 = vmatpush2.msra.mxu0 0.0
    %4914 = vmatprep.subr.mxu0 0.0
    %4915 = vmatpush2.msra.mxu0 0.0
    %4916 = vmatprep.subr.mxu0 0.0
    %4917 = vmatpush2.msra.mxu0 0.0
    %4918 = vmatprep.subr.mxu0 0.0
    %4919 = vmatpush2.msra.mxu0 0.0
    %4920 = vmatprep.subr.mxu0 0.0
    %4921 = vmatpush2.msra.mxu0 0.0
    %4922 = vmatprep.subr.mxu0 0.0
    %4923 = vmatpush2.msra.mxu0 0.0
    %4924 = vmatprep.subr.mxu0 0.0
    %4925 = vmatpush2.msra.mxu0 0.0
    %4926 = vmatprep.subr.mxu0 0.0
    %4927 = vmatpush2.msra.mxu0 0.0
    %4928 = vmatprep.subr.mxu0 0.0
    %4929 = vmatpush2.msra.mxu0 0.0
    %4930 = vmatprep.subr.mxu0 0.0
    %4931 = vmatpush2.msra.mxu0 0.0
    %4932 = vmatprep.mubr.f32.mxu0 0.0
    %v4933 = vand.u32 %v177, 4294901760
    %4934 = vmatmul.mubr.f32.gmra.mxu0 %v4933
    %v4935 = vpop.f32.mrf.mxu0
    %v4936 = vadd.f32 %v4862, %v4935
    %v4937 = vpop.f32.mrf.mxu0
    %v4938 = vadd.f32 %v4864, %v4937
    %4939 = vdwg.mxu0
    %4940 = vmatprep.subr.mxu0 0.0
    %4941 = vmatpush1.msra.mxu0 0.0
    %4942 = vmatprep.subr.mxu0 0.0
    %4943 = vmatpush1.msra.mxu0 0.0
    %4944 = vmatprep.subr.mxu0 0.0
    %4945 = vmatpush1.msra.mxu0 0.0
    %4946 = vmatprep.subr.mxu0 0.0
    %4947 = vmatpush1.msra.mxu0 0.0
    %4948 = vmatprep.subr.mxu0 0.0
    %4949 = vmatpush1.msra.mxu0 0.0
    %4950 = vmatprep.subr.mxu0 0.0
    %4951 = vmatpush1.msra.mxu0 0.0
    %4952 = vmatprep.subr.mxu0 0.0
    %4953 = vmatpush1.msra.mxu0 0.0
    %4954 = vmatprep.subr.mxu0 0.0
    %4955 = vmatpush1.msra.mxu0 0.0
    %4956 = vmatprep.subr.mxu0 0.0
    %4957 = vmatpush1.msra.mxu0 0.0
    %4958 = vmatprep.subr.mxu0 0.0
    %4959 = vmatpush1.msra.mxu0 0.0
    %4960 = vmatprep.subr.mxu0 0.0
    %4961 = vmatpush1.msra.mxu0 0.0
    %4962 = vmatprep.subr.mxu0 0.0
    %4963 = vmatpush1.msra.mxu0 0.0
    %4964 = vmatprep.subr.mxu0 0.0
    %4965 = vmatpush1.msra.mxu0 0.0
    %4966 = vmatprep.subr.mxu0 0.0
    %4967 = vmatpush1.msra.mxu0 0.0
    %4968 = vmatprep.subr.mxu0 0.0
    %4969 = vmatpush1.msra.mxu0 0.0
    %v4970 = vand.u32 %v4007, 4294901760
    %4971 = vmatprep.subr.mxu0 %v4970
    %v4972 = vand.u32 %v4006, 4294901760
    %4973 = vmatpush1.msra.mxu0 %v4972
    %4974 = vmatprep.subr.mxu0 0.0
    %4975 = vmatpush2.msra.mxu0 0.0
    %4976 = vmatprep.subr.mxu0 0.0
    %4977 = vmatpush2.msra.mxu0 0.0
    %4978 = vmatprep.subr.mxu0 0.0
    %4979 = vmatpush2.msra.mxu0 0.0
    %4980 = vmatprep.subr.mxu0 0.0
    %4981 = vmatpush2.msra.mxu0 0.0
    %4982 = vmatprep.subr.mxu0 0.0
    %4983 = vmatpush2.msra.mxu0 0.0
    %4984 = vmatprep.subr.mxu0 0.0
    %4985 = vmatpush2.msra.mxu0 0.0
    %4986 = vmatprep.subr.mxu0 0.0
    %4987 = vmatpush2.msra.mxu0 0.0
    %4988 = vmatprep.subr.mxu0 0.0
    %4989 = vmatpush2.msra.mxu0 0.0
    %4990 = vmatprep.subr.mxu0 0.0
    %4991 = vmatpush2.msra.mxu0 0.0
    %4992 = vmatprep.subr.mxu0 0.0
    %4993 = vmatpush2.msra.mxu0 0.0
    %4994 = vmatprep.subr.mxu0 0.0
    %4995 = vmatpush2.msra.mxu0 0.0
    %4996 = vmatprep.subr.mxu0 0.0
    %4997 = vmatpush2.msra.mxu0 0.0
    %4998 = vmatprep.subr.mxu0 0.0
    %4999 = vmatpush2.msra.mxu0 0.0
    %5000 = vmatprep.subr.mxu0 0.0
    %5001 = vmatpush2.msra.mxu0 0.0
    %5002 = vmatprep.subr.mxu0 0.0
    %5003 = vmatpush2.msra.mxu0 0.0
    %5004 = vmatprep.subr.mxu0 0.0
    %5005 = vmatpush2.msra.mxu0 0.0
    %5006 = vmatprep.mubr.f32.mxu0 0.0
    %v5007 = vand.u32 %v177, 4294901760
    %v5008 = vsub.f32 %v177, %v5007
    %v5009 = vand.u32 %v5008, 4294901760
    %v5010 = vsub.f32 %v5008, %v5009
    %v5011 = vand.u32 %v5010, 4294901760
    %5012 = vmatmul.mubr.f32.gmra.mxu0 %v5011
    %v5013 = vpop.f32.mrf.mxu0
    %v5014 = vadd.f32 %v173, %v5013
    %v5015 = vpop.f32.mrf.mxu0
    %v5016 = vadd.f32 %v173, %v5015
    %5017 = vdwg.mxu0
    %5018 = vmatprep.subr.mxu0 0.0
    %5019 = vmatpush1.msra.mxu0 0.0
    %5020 = vmatprep.subr.mxu0 0.0
    %5021 = vmatpush1.msra.mxu0 0.0
    %5022 = vmatprep.subr.mxu0 0.0
    %5023 = vmatpush1.msra.mxu0 0.0
    %5024 = vmatprep.subr.mxu0 0.0
    %5025 = vmatpush1.msra.mxu0 0.0
    %5026 = vmatprep.subr.mxu0 0.0
    %5027 = vmatpush1.msra.mxu0 0.0
    %5028 = vmatprep.subr.mxu0 0.0
    %5029 = vmatpush1.msra.mxu0 0.0
    %5030 = vmatprep.subr.mxu0 0.0
    %5031 = vmatpush1.msra.mxu0 0.0
    %5032 = vmatprep.subr.mxu0 0.0
    %5033 = vmatpush1.msra.mxu0 0.0
    %5034 = vmatprep.subr.mxu0 0.0
    %5035 = vmatpush1.msra.mxu0 0.0
    %5036 = vmatprep.subr.mxu0 0.0
    %5037 = vmatpush1.msra.mxu0 0.0
    %5038 = vmatprep.subr.mxu0 0.0
    %5039 = vmatpush1.msra.mxu0 0.0
    %5040 = vmatprep.subr.mxu0 0.0
    %5041 = vmatpush1.msra.mxu0 0.0
    %5042 = vmatprep.subr.mxu0 0.0
    %5043 = vmatpush1.msra.mxu0 0.0
    %5044 = vmatprep.subr.mxu0 0.0
    %5045 = vmatpush1.msra.mxu0 0.0
    %5046 = vmatprep.subr.mxu0 0.0
    %5047 = vmatpush1.msra.mxu0 0.0
    %v5048 = vand.u32 %v4007, 4294901760
    %v5049 = vsub.f32 %v4007, %v5048
    %v5050 = vand.u32 %v5049, 4294901760
    %v5051 = vsub.f32 %v5049, %v5050
    %v5052 = vand.u32 %v5051, 4294901760
    %5053 = vmatprep.subr.mxu0 %v5052
    %v5054 = vand.u32 %v4006, 4294901760
    %v5055 = vsub.f32 %v4006, %v5054
    %v5056 = vand.u32 %v5055, 4294901760
    %v5057 = vsub.f32 %v5055, %v5056
    %v5058 = vand.u32 %v5057, 4294901760
    %5059 = vmatpush1.msra.mxu0 %v5058
    %5060 = vmatprep.subr.mxu0 0.0
    %5061 = vmatpush2.msra.mxu0 0.0
    %5062 = vmatprep.subr.mxu0 0.0
    %5063 = vmatpush2.msra.mxu0 0.0
    %5064 = vmatprep.subr.mxu0 0.0
    %5065 = vmatpush2.msra.mxu0 0.0
    %5066 = vmatprep.subr.mxu0 0.0
    %5067 = vmatpush2.msra.mxu0 0.0
    %5068 = vmatprep.subr.mxu0 0.0
    %5069 = vmatpush2.msra.mxu0 0.0
    %5070 = vmatprep.subr.mxu0 0.0
    %5071 = vmatpush2.msra.mxu0 0.0
    %5072 = vmatprep.subr.mxu0 0.0
    %5073 = vmatpush2.msra.mxu0 0.0
    %5074 = vmatprep.subr.mxu0 0.0
    %5075 = vmatpush2.msra.mxu0 0.0
    %5076 = vmatprep.subr.mxu0 0.0
    %5077 = vmatpush2.msra.mxu0 0.0
    %5078 = vmatprep.subr.mxu0 0.0
    %5079 = vmatpush2.msra.mxu0 0.0
    %5080 = vmatprep.subr.mxu0 0.0
    %5081 = vmatpush2.msra.mxu0 0.0
    %5082 = vmatprep.subr.mxu0 0.0
    %5083 = vmatpush2.msra.mxu0 0.0
    %5084 = vmatprep.subr.mxu0 0.0
    %5085 = vmatpush2.msra.mxu0 0.0
    %5086 = vmatprep.subr.mxu0 0.0
    %5087 = vmatpush2.msra.mxu0 0.0
    %5088 = vmatprep.subr.mxu0 0.0
    %5089 = vmatpush2.msra.mxu0 0.0
    %5090 = vmatprep.subr.mxu0 0.0
    %5091 = vmatpush2.msra.mxu0 0.0
    %5092 = vmatprep.mubr.f32.mxu0 0.0
    %v5093 = vand.u32 %v177, 4294901760
    %5094 = vmatmul.mubr.f32.gmra.mxu0 %v5093
    %v5095 = vpop.f32.mrf.mxu0
    %v5096 = vadd.f32 %v5014, %v5095
    %v5097 = vpop.f32.mrf.mxu0
    %v5098 = vadd.f32 %v5016, %v5097
    %5099 = vdwg.mxu0
    %5100 = vmatprep.subr.mxu0 0.0
    %5101 = vmatpush1.msra.mxu0 0.0
    %5102 = vmatprep.subr.mxu0 0.0
    %5103 = vmatpush1.msra.mxu0 0.0
    %5104 = vmatprep.subr.mxu0 0.0
    %5105 = vmatpush1.msra.mxu0 0.0
    %5106 = vmatprep.subr.mxu0 0.0
    %5107 = vmatpush1.msra.mxu0 0.0
    %5108 = vmatprep.subr.mxu0 0.0
    %5109 = vmatpush1.msra.mxu0 0.0
    %5110 = vmatprep.subr.mxu0 0.0
    %5111 = vmatpush1.msra.mxu0 0.0
    %5112 = vmatprep.subr.mxu0 0.0
    %5113 = vmatpush1.msra.mxu0 0.0
    %5114 = vmatprep.subr.mxu0 0.0
    %5115 = vmatpush1.msra.mxu0 0.0
    %5116 = vmatprep.subr.mxu0 0.0
    %5117 = vmatpush1.msra.mxu0 0.0
    %5118 = vmatprep.subr.mxu0 0.0
    %5119 = vmatpush1.msra.mxu0 0.0
    %5120 = vmatprep.subr.mxu0 0.0
    %5121 = vmatpush1.msra.mxu0 0.0
    %5122 = vmatprep.subr.mxu0 0.0
    %5123 = vmatpush1.msra.mxu0 0.0
    %5124 = vmatprep.subr.mxu0 0.0
    %5125 = vmatpush1.msra.mxu0 0.0
    %5126 = vmatprep.subr.mxu0 0.0
    %5127 = vmatpush1.msra.mxu0 0.0
    %5128 = vmatprep.subr.mxu0 0.0
    %5129 = vmatpush1.msra.mxu0 0.0
    %v5130 = vand.u32 %v4007, 4294901760
    %v5131 = vsub.f32 %v4007, %v5130
    %5132 = vmatprep.subr.mxu0 %v5131
    %v5133 = vand.u32 %v4006, 4294901760
    %v5134 = vsub.f32 %v4006, %v5133
    %5135 = vmatpush1.msra.mxu0 %v5134
    %5136 = vmatprep.subr.mxu0 0.0
    %5137 = vmatpush2.msra.mxu0 0.0
    %5138 = vmatprep.subr.mxu0 0.0
    %5139 = vmatpush2.msra.mxu0 0.0
    %5140 = vmatprep.subr.mxu0 0.0
    %5141 = vmatpush2.msra.mxu0 0.0
    %5142 = vmatprep.subr.mxu0 0.0
    %5143 = vmatpush2.msra.mxu0 0.0
    %5144 = vmatprep.subr.mxu0 0.0
    %5145 = vmatpush2.msra.mxu0 0.0
    %5146 = vmatprep.subr.mxu0 0.0
    %5147 = vmatpush2.msra.mxu0 0.0
    %5148 = vmatprep.subr.mxu0 0.0
    %5149 = vmatpush2.msra.mxu0 0.0
    %5150 = vmatprep.subr.mxu0 0.0
    %5151 = vmatpush2.msra.mxu0 0.0
    %5152 = vmatprep.subr.mxu0 0.0
    %5153 = vmatpush2.msra.mxu0 0.0
    %5154 = vmatprep.subr.mxu0 0.0
    %5155 = vmatpush2.msra.mxu0 0.0
    %5156 = vmatprep.subr.mxu0 0.0
    %5157 = vmatpush2.msra.mxu0 0.0
    %5158 = vmatprep.subr.mxu0 0.0
    %5159 = vmatpush2.msra.mxu0 0.0
    %5160 = vmatprep.subr.mxu0 0.0
    %5161 = vmatpush2.msra.mxu0 0.0
    %5162 = vmatprep.subr.mxu0 0.0
    %5163 = vmatpush2.msra.mxu0 0.0
    %5164 = vmatprep.subr.mxu0 0.0
    %5165 = vmatpush2.msra.mxu0 0.0
    %5166 = vmatprep.subr.mxu0 0.0
    %5167 = vmatpush2.msra.mxu0 0.0
    %5168 = vmatprep.mubr.f32.mxu0 0.0
    %v5169 = vand.u32 %v177, 4294901760
    %v5170 = vsub.f32 %v177, %v5169
    %5171 = vmatmul.mubr.f32.gmra.mxu0 %v5170
    %v5172 = vpop.f32.mrf.mxu0
    %v5173 = vadd.f32 %v5096, %v5172
    %v5174 = vpop.f32.mrf.mxu0
    %v5175 = vadd.f32 %v5098, %v5174
    %5176 = vdwg.mxu0
    %5177 = vmatprep.subr.mxu0 0.0
    %5178 = vmatpush1.msra.mxu0 0.0
    %5179 = vmatprep.subr.mxu0 0.0
    %5180 = vmatpush1.msra.mxu0 0.0
    %5181 = vmatprep.subr.mxu0 0.0
    %5182 = vmatpush1.msra.mxu0 0.0
    %5183 = vmatprep.subr.mxu0 0.0
    %5184 = vmatpush1.msra.mxu0 0.0
    %5185 = vmatprep.subr.mxu0 0.0
    %5186 = vmatpush1.msra.mxu0 0.0
    %5187 = vmatprep.subr.mxu0 0.0
    %5188 = vmatpush1.msra.mxu0 0.0
    %5189 = vmatprep.subr.mxu0 0.0
    %5190 = vmatpush1.msra.mxu0 0.0
    %5191 = vmatprep.subr.mxu0 0.0
    %5192 = vmatpush1.msra.mxu0 0.0
    %5193 = vmatprep.subr.mxu0 0.0
    %5194 = vmatpush1.msra.mxu0 0.0
    %5195 = vmatprep.subr.mxu0 0.0
    %5196 = vmatpush1.msra.mxu0 0.0
    %5197 = vmatprep.subr.mxu0 0.0
    %5198 = vmatpush1.msra.mxu0 0.0
    %5199 = vmatprep.subr.mxu0 0.0
    %5200 = vmatpush1.msra.mxu0 0.0
    %5201 = vmatprep.subr.mxu0 0.0
    %5202 = vmatpush1.msra.mxu0 0.0
    %5203 = vmatprep.subr.mxu0 0.0
    %5204 = vmatpush1.msra.mxu0 0.0
    %5205 = vmatprep.subr.mxu0 0.0
    %5206 = vmatpush1.msra.mxu0 0.0
    %v5207 = vand.u32 %v4007, 4294901760
    %5208 = vmatprep.subr.mxu0 %v5207
    %v5209 = vand.u32 %v4006, 4294901760
    %5210 = vmatpush1.msra.mxu0 %v5209
    %5211 = vmatprep.subr.mxu0 0.0
    %5212 = vmatpush2.msra.mxu0 0.0
    %5213 = vmatprep.subr.mxu0 0.0
    %5214 = vmatpush2.msra.mxu0 0.0
    %5215 = vmatprep.subr.mxu0 0.0
    %5216 = vmatpush2.msra.mxu0 0.0
    %5217 = vmatprep.subr.mxu0 0.0
    %5218 = vmatpush2.msra.mxu0 0.0
    %5219 = vmatprep.subr.mxu0 0.0
    %5220 = vmatpush2.msra.mxu0 0.0
    %5221 = vmatprep.subr.mxu0 0.0
    %5222 = vmatpush2.msra.mxu0 0.0
    %5223 = vmatprep.subr.mxu0 0.0
    %5224 = vmatpush2.msra.mxu0 0.0
    %5225 = vmatprep.subr.mxu0 0.0
    %5226 = vmatpush2.msra.mxu0 0.0
    %5227 = vmatprep.subr.mxu0 0.0
    %5228 = vmatpush2.msra.mxu0 0.0
    %5229 = vmatprep.subr.mxu0 0.0
    %5230 = vmatpush2.msra.mxu0 0.0
    %5231 = vmatprep.subr.mxu0 0.0
    %5232 = vmatpush2.msra.mxu0 0.0
    %5233 = vmatprep.subr.mxu0 0.0
    %5234 = vmatpush2.msra.mxu0 0.0
    %5235 = vmatprep.subr.mxu0 0.0
    %5236 = vmatpush2.msra.mxu0 0.0
    %5237 = vmatprep.subr.mxu0 0.0
    %5238 = vmatpush2.msra.mxu0 0.0
    %5239 = vmatprep.subr.mxu0 0.0
    %5240 = vmatpush2.msra.mxu0 0.0
    %5241 = vmatprep.subr.mxu0 0.0
    %5242 = vmatpush2.msra.mxu0 0.0
    %5243 = vmatprep.mubr.f32.mxu0 0.0
    %v5244 = vand.u32 %v177, 4294901760
    %v5245 = vsub.f32 %v177, %v5244
    %v5246 = vand.u32 %v5245, 4294901760
    %5247 = vmatmul.mubr.f32.gmra.mxu0 %v5246
    %v5248 = vpop.f32.mrf.mxu0
    %v5249 = vadd.f32 %v5173, %v5248
    %v5250 = vpop.f32.mrf.mxu0
    %v5251 = vadd.f32 %v5175, %v5250
    %5252 = vdwg.mxu0
    %5253 = vmatprep.subr.mxu0 0.0
    %5254 = vmatpush1.msra.mxu0 0.0
    %5255 = vmatprep.subr.mxu0 0.0
    %5256 = vmatpush1.msra.mxu0 0.0
    %5257 = vmatprep.subr.mxu0 0.0
    %5258 = vmatpush1.msra.mxu0 0.0
    %5259 = vmatprep.subr.mxu0 0.0
    %5260 = vmatpush1.msra.mxu0 0.0
    %5261 = vmatprep.subr.mxu0 0.0
    %5262 = vmatpush1.msra.mxu0 0.0
    %5263 = vmatprep.subr.mxu0 0.0
    %5264 = vmatpush1.msra.mxu0 0.0
    %5265 = vmatprep.subr.mxu0 0.0
    %5266 = vmatpush1.msra.mxu0 0.0
    %5267 = vmatprep.subr.mxu0 0.0
    %5268 = vmatpush1.msra.mxu0 0.0
    %5269 = vmatprep.subr.mxu0 0.0
    %5270 = vmatpush1.msra.mxu0 0.0
    %5271 = vmatprep.subr.mxu0 0.0
    %5272 = vmatpush1.msra.mxu0 0.0
    %5273 = vmatprep.subr.mxu0 0.0
    %5274 = vmatpush1.msra.mxu0 0.0
    %5275 = vmatprep.subr.mxu0 0.0
    %5276 = vmatpush1.msra.mxu0 0.0
    %5277 = vmatprep.subr.mxu0 0.0
    %5278 = vmatpush1.msra.mxu0 0.0
    %5279 = vmatprep.subr.mxu0 0.0
    %5280 = vmatpush1.msra.mxu0 0.0
    %5281 = vmatprep.subr.mxu0 0.0
    %5282 = vmatpush1.msra.mxu0 0.0
    %v5283 = vand.u32 %v4007, 4294901760
    %v5284 = vsub.f32 %v4007, %v5283
    %v5285 = vand.u32 %v5284, 4294901760
    %5286 = vmatprep.subr.mxu0 %v5285
    %v5287 = vand.u32 %v4006, 4294901760
    %v5288 = vsub.f32 %v4006, %v5287
    %v5289 = vand.u32 %v5288, 4294901760
    %5290 = vmatpush1.msra.mxu0 %v5289
    %5291 = vmatprep.subr.mxu0 0.0
    %5292 = vmatpush2.msra.mxu0 0.0
    %5293 = vmatprep.subr.mxu0 0.0
    %5294 = vmatpush2.msra.mxu0 0.0
    %5295 = vmatprep.subr.mxu0 0.0
    %5296 = vmatpush2.msra.mxu0 0.0
    %5297 = vmatprep.subr.mxu0 0.0
    %5298 = vmatpush2.msra.mxu0 0.0
    %5299 = vmatprep.subr.mxu0 0.0
    %5300 = vmatpush2.msra.mxu0 0.0
    %5301 = vmatprep.subr.mxu0 0.0
    %5302 = vmatpush2.msra.mxu0 0.0
    %5303 = vmatprep.subr.mxu0 0.0
    %5304 = vmatpush2.msra.mxu0 0.0
    %5305 = vmatprep.subr.mxu0 0.0
    %5306 = vmatpush2.msra.mxu0 0.0
    %5307 = vmatprep.subr.mxu0 0.0
    %5308 = vmatpush2.msra.mxu0 0.0
    %5309 = vmatprep.subr.mxu0 0.0
    %5310 = vmatpush2.msra.mxu0 0.0
    %5311 = vmatprep.subr.mxu0 0.0
    %5312 = vmatpush2.msra.mxu0 0.0
    %5313 = vmatprep.subr.mxu0 0.0
    %5314 = vmatpush2.msra.mxu0 0.0
    %5315 = vmatprep.subr.mxu0 0.0
    %5316 = vmatpush2.msra.mxu0 0.0
    %5317 = vmatprep.subr.mxu0 0.0
    %5318 = vmatpush2.msra.mxu0 0.0
    %5319 = vmatprep.subr.mxu0 0.0
    %5320 = vmatpush2.msra.mxu0 0.0
    %5321 = vmatprep.subr.mxu0 0.0
    %5322 = vmatpush2.msra.mxu0 0.0
    %5323 = vmatprep.mubr.f32.mxu0 0.0
    %v5324 = vand.u32 %v177, 4294901760
    %5325 = vmatmul.mubr.f32.gmra.mxu0 %v5324
    %v5326 = vpop.f32.mrf.mxu0
    %v5327 = vadd.f32 %v5249, %v5326
    %v5328 = vpop.f32.mrf.mxu0
    %v5329 = vadd.f32 %v5251, %v5328
    %5330 = vdwg.mxu0
    %5331 = vmatprep.subr.mxu0 0.0
    %5332 = vmatpush1.msra.mxu0 0.0
    %5333 = vmatprep.subr.mxu0 0.0
    %5334 = vmatpush1.msra.mxu0 0.0
    %5335 = vmatprep.subr.mxu0 0.0
    %5336 = vmatpush1.msra.mxu0 0.0
    %5337 = vmatprep.subr.mxu0 0.0
    %5338 = vmatpush1.msra.mxu0 0.0
    %5339 = vmatprep.subr.mxu0 0.0
    %5340 = vmatpush1.msra.mxu0 0.0
    %5341 = vmatprep.subr.mxu0 0.0
    %5342 = vmatpush1.msra.mxu0 0.0
    %5343 = vmatprep.subr.mxu0 0.0
    %5344 = vmatpush1.msra.mxu0 0.0
    %5345 = vmatprep.subr.mxu0 0.0
    %5346 = vmatpush1.msra.mxu0 0.0
    %5347 = vmatprep.subr.mxu0 0.0
    %5348 = vmatpush1.msra.mxu0 0.0
    %5349 = vmatprep.subr.mxu0 0.0
    %5350 = vmatpush1.msra.mxu0 0.0
    %5351 = vmatprep.subr.mxu0 0.0
    %5352 = vmatpush1.msra.mxu0 0.0
    %5353 = vmatprep.subr.mxu0 0.0
    %5354 = vmatpush1.msra.mxu0 0.0
    %5355 = vmatprep.subr.mxu0 0.0
    %5356 = vmatpush1.msra.mxu0 0.0
    %5357 = vmatprep.subr.mxu0 0.0
    %5358 = vmatpush1.msra.mxu0 0.0
    %5359 = vmatprep.subr.mxu0 0.0
    %5360 = vmatpush1.msra.mxu0 0.0
    %v5361 = vand.u32 %v4007, 4294901760
    %5362 = vmatprep.subr.mxu0 %v5361
    %v5363 = vand.u32 %v4006, 4294901760
    %5364 = vmatpush1.msra.mxu0 %v5363
    %5365 = vmatprep.subr.mxu0 0.0
    %5366 = vmatpush2.msra.mxu0 0.0
    %5367 = vmatprep.subr.mxu0 0.0
    %5368 = vmatpush2.msra.mxu0 0.0
    %5369 = vmatprep.subr.mxu0 0.0
    %5370 = vmatpush2.msra.mxu0 0.0
    %5371 = vmatprep.subr.mxu0 0.0
    %5372 = vmatpush2.msra.mxu0 0.0
    %5373 = vmatprep.subr.mxu0 0.0
    %5374 = vmatpush2.msra.mxu0 0.0
    %5375 = vmatprep.subr.mxu0 0.0
    %5376 = vmatpush2.msra.mxu0 0.0
    %5377 = vmatprep.subr.mxu0 0.0
    %5378 = vmatpush2.msra.mxu0 0.0
    %5379 = vmatprep.subr.mxu0 0.0
    %5380 = vmatpush2.msra.mxu0 0.0
    %5381 = vmatprep.subr.mxu0 0.0
    %5382 = vmatpush2.msra.mxu0 0.0
    %5383 = vmatprep.subr.mxu0 0.0
    %5384 = vmatpush2.msra.mxu0 0.0
    %5385 = vmatprep.subr.mxu0 0.0
    %5386 = vmatpush2.msra.mxu0 0.0
    %5387 = vmatprep.subr.mxu0 0.0
    %5388 = vmatpush2.msra.mxu0 0.0
    %5389 = vmatprep.subr.mxu0 0.0
    %5390 = vmatpush2.msra.mxu0 0.0
    %5391 = vmatprep.subr.mxu0 0.0
    %5392 = vmatpush2.msra.mxu0 0.0
    %5393 = vmatprep.subr.mxu0 0.0
    %5394 = vmatpush2.msra.mxu0 0.0
    %5395 = vmatprep.subr.mxu0 0.0
    %5396 = vmatpush2.msra.mxu0 0.0
    %5397 = vmatprep.mubr.f32.mxu0 0.0
    %v5398 = vand.u32 %v177, 4294901760
    %5399 = vmatmul.mubr.f32.gmra.mxu0 %v5398
    %v5400 = vpop.f32.mrf.mxu0
    %v5401 = vadd.f32 %v5327, %v5400
    %v5402 = vpop.f32.mrf.mxu0
    %v5403 = vadd.f32 %v5329, %v5402
    %5404 = vdwg.mxu0
    %5405 = vmatprep.subr.mxu0 0.0
    %5406 = vmatpush1.msra.mxu0 0.0
    %5407 = vmatprep.subr.mxu0 0.0
    %5408 = vmatpush1.msra.mxu0 0.0
    %5409 = vmatprep.subr.mxu0 0.0
    %5410 = vmatpush1.msra.mxu0 0.0
    %5411 = vmatprep.subr.mxu0 0.0
    %5412 = vmatpush1.msra.mxu0 0.0
    %5413 = vmatprep.subr.mxu0 0.0
    %5414 = vmatpush1.msra.mxu0 0.0
    %5415 = vmatprep.subr.mxu0 0.0
    %5416 = vmatpush1.msra.mxu0 0.0
    %5417 = vmatprep.subr.mxu0 0.0
    %5418 = vmatpush1.msra.mxu0 0.0
    %5419 = vmatprep.subr.mxu0 0.0
    %5420 = vmatpush1.msra.mxu0 0.0
    %5421 = vmatprep.subr.mxu0 0.0
    %5422 = vmatpush1.msra.mxu0 0.0
    %5423 = vmatprep.subr.mxu0 0.0
    %5424 = vmatpush1.msra.mxu0 0.0
    %5425 = vmatprep.subr.mxu0 0.0
    %5426 = vmatpush1.msra.mxu0 0.0
    %5427 = vmatprep.subr.mxu0 0.0
    %5428 = vmatpush1.msra.mxu0 0.0
    %5429 = vmatprep.subr.mxu0 0.0
    %5430 = vmatpush1.msra.mxu0 0.0
    %5431 = vmatprep.subr.mxu0 0.0
    %5432 = vmatpush1.msra.mxu0 0.0
    %5433 = vmatprep.subr.mxu0 0.0
    %5434 = vmatpush1.msra.mxu0 0.0
    %v5435 = vand.u32 %v4009, 4294901760
    %5436 = vmatprep.subr.mxu0 %v5435
    %v5437 = vand.u32 %v4008, 4294901760
    %5438 = vmatpush1.msra.mxu0 %v5437
    %5439 = vmatprep.subr.mxu0 0.0
    %5440 = vmatpush2.msra.mxu0 0.0
    %5441 = vmatprep.subr.mxu0 0.0
    %5442 = vmatpush2.msra.mxu0 0.0
    %5443 = vmatprep.subr.mxu0 0.0
    %5444 = vmatpush2.msra.mxu0 0.0
    %5445 = vmatprep.subr.mxu0 0.0
    %5446 = vmatpush2.msra.mxu0 0.0
    %5447 = vmatprep.subr.mxu0 0.0
    %5448 = vmatpush2.msra.mxu0 0.0
    %5449 = vmatprep.subr.mxu0 0.0
    %5450 = vmatpush2.msra.mxu0 0.0
    %5451 = vmatprep.subr.mxu0 0.0
    %5452 = vmatpush2.msra.mxu0 0.0
    %5453 = vmatprep.subr.mxu0 0.0
    %5454 = vmatpush2.msra.mxu0 0.0
    %5455 = vmatprep.subr.mxu0 0.0
    %5456 = vmatpush2.msra.mxu0 0.0
    %5457 = vmatprep.subr.mxu0 0.0
    %5458 = vmatpush2.msra.mxu0 0.0
    %5459 = vmatprep.subr.mxu0 0.0
    %5460 = vmatpush2.msra.mxu0 0.0
    %5461 = vmatprep.subr.mxu0 0.0
    %5462 = vmatpush2.msra.mxu0 0.0
    %5463 = vmatprep.subr.mxu0 0.0
    %5464 = vmatpush2.msra.mxu0 0.0
    %5465 = vmatprep.subr.mxu0 0.0
    %5466 = vmatpush2.msra.mxu0 0.0
    %5467 = vmatprep.subr.mxu0 0.0
    %5468 = vmatpush2.msra.mxu0 0.0
    %5469 = vmatprep.subr.mxu0 0.0
    %5470 = vmatpush2.msra.mxu0 0.0
    %5471 = vmatprep.mubr.f32.mxu0 0.0
    %v5472 = vand.u32 %v177, 4294901760
    %v5473 = vsub.f32 %v177, %v5472
    %v5474 = vand.u32 %v5473, 4294901760
    %v5475 = vsub.f32 %v5473, %v5474
    %v5476 = vand.u32 %v5475, 4294901760
    %5477 = vmatmul.mubr.f32.gmra.mxu0 %v5476
    %v5478 = vpop.f32.mrf.mxu0
    %v5479 = vadd.f32 %v173, %v5478
    %v5480 = vpop.f32.mrf.mxu0
    %v5481 = vadd.f32 %v173, %v5480
    %5482 = vdwg.mxu0
    %5483 = vmatprep.subr.mxu0 0.0
    %5484 = vmatpush1.msra.mxu0 0.0
    %5485 = vmatprep.subr.mxu0 0.0
    %5486 = vmatpush1.msra.mxu0 0.0
    %5487 = vmatprep.subr.mxu0 0.0
    %5488 = vmatpush1.msra.mxu0 0.0
    %5489 = vmatprep.subr.mxu0 0.0
    %5490 = vmatpush1.msra.mxu0 0.0
    %5491 = vmatprep.subr.mxu0 0.0
    %5492 = vmatpush1.msra.mxu0 0.0
    %5493 = vmatprep.subr.mxu0 0.0
    %5494 = vmatpush1.msra.mxu0 0.0
    %5495 = vmatprep.subr.mxu0 0.0
    %5496 = vmatpush1.msra.mxu0 0.0
    %5497 = vmatprep.subr.mxu0 0.0
    %5498 = vmatpush1.msra.mxu0 0.0
    %5499 = vmatprep.subr.mxu0 0.0
    %5500 = vmatpush1.msra.mxu0 0.0
    %5501 = vmatprep.subr.mxu0 0.0
    %5502 = vmatpush1.msra.mxu0 0.0
    %5503 = vmatprep.subr.mxu0 0.0
    %5504 = vmatpush1.msra.mxu0 0.0
    %5505 = vmatprep.subr.mxu0 0.0
    %5506 = vmatpush1.msra.mxu0 0.0
    %5507 = vmatprep.subr.mxu0 0.0
    %5508 = vmatpush1.msra.mxu0 0.0
    %5509 = vmatprep.subr.mxu0 0.0
    %5510 = vmatpush1.msra.mxu0 0.0
    %5511 = vmatprep.subr.mxu0 0.0
    %5512 = vmatpush1.msra.mxu0 0.0
    %v5513 = vand.u32 %v4009, 4294901760
    %v5514 = vsub.f32 %v4009, %v5513
    %v5515 = vand.u32 %v5514, 4294901760
    %v5516 = vsub.f32 %v5514, %v5515
    %v5517 = vand.u32 %v5516, 4294901760
    %5518 = vmatprep.subr.mxu0 %v5517
    %v5519 = vand.u32 %v4008, 4294901760
    %v5520 = vsub.f32 %v4008, %v5519
    %v5521 = vand.u32 %v5520, 4294901760
    %v5522 = vsub.f32 %v5520, %v5521
    %v5523 = vand.u32 %v5522, 4294901760
    %5524 = vmatpush1.msra.mxu0 %v5523
    %5525 = vmatprep.subr.mxu0 0.0
    %5526 = vmatpush2.msra.mxu0 0.0
    %5527 = vmatprep.subr.mxu0 0.0
    %5528 = vmatpush2.msra.mxu0 0.0
    %5529 = vmatprep.subr.mxu0 0.0
    %5530 = vmatpush2.msra.mxu0 0.0
    %5531 = vmatprep.subr.mxu0 0.0
    %5532 = vmatpush2.msra.mxu0 0.0
    %5533 = vmatprep.subr.mxu0 0.0
    %5534 = vmatpush2.msra.mxu0 0.0
    %5535 = vmatprep.subr.mxu0 0.0
    %5536 = vmatpush2.msra.mxu0 0.0
    %5537 = vmatprep.subr.mxu0 0.0
    %5538 = vmatpush2.msra.mxu0 0.0
    %5539 = vmatprep.subr.mxu0 0.0
    %5540 = vmatpush2.msra.mxu0 0.0
    %5541 = vmatprep.subr.mxu0 0.0
    %5542 = vmatpush2.msra.mxu0 0.0
    %5543 = vmatprep.subr.mxu0 0.0
    %5544 = vmatpush2.msra.mxu0 0.0
    %5545 = vmatprep.subr.mxu0 0.0
    %5546 = vmatpush2.msra.mxu0 0.0
    %5547 = vmatprep.subr.mxu0 0.0
    %5548 = vmatpush2.msra.mxu0 0.0
    %5549 = vmatprep.subr.mxu0 0.0
    %5550 = vmatpush2.msra.mxu0 0.0
    %5551 = vmatprep.subr.mxu0 0.0
    %5552 = vmatpush2.msra.mxu0 0.0
    %5553 = vmatprep.subr.mxu0 0.0
    %5554 = vmatpush2.msra.mxu0 0.0
    %5555 = vmatprep.subr.mxu0 0.0
    %5556 = vmatpush2.msra.mxu0 0.0
    %5557 = vmatprep.mubr.f32.mxu0 0.0
    %v5558 = vand.u32 %v177, 4294901760
    %5559 = vmatmul.mubr.f32.gmra.mxu0 %v5558
    %v5560 = vpop.f32.mrf.mxu0
    %v5561 = vadd.f32 %v5479, %v5560
    %v5562 = vpop.f32.mrf.mxu0
    %v5563 = vadd.f32 %v5481, %v5562
    %5564 = vdwg.mxu0
    %5565 = vmatprep.subr.mxu0 0.0
    %5566 = vmatpush1.msra.mxu0 0.0
    %5567 = vmatprep.subr.mxu0 0.0
    %5568 = vmatpush1.msra.mxu0 0.0
    %5569 = vmatprep.subr.mxu0 0.0
    %5570 = vmatpush1.msra.mxu0 0.0
    %5571 = vmatprep.subr.mxu0 0.0
    %5572 = vmatpush1.msra.mxu0 0.0
    %5573 = vmatprep.subr.mxu0 0.0
    %5574 = vmatpush1.msra.mxu0 0.0
    %5575 = vmatprep.subr.mxu0 0.0
    %5576 = vmatpush1.msra.mxu0 0.0
    %5577 = vmatprep.subr.mxu0 0.0
    %5578 = vmatpush1.msra.mxu0 0.0
    %5579 = vmatprep.subr.mxu0 0.0
    %5580 = vmatpush1.msra.mxu0 0.0
    %5581 = vmatprep.subr.mxu0 0.0
    %5582 = vmatpush1.msra.mxu0 0.0
    %5583 = vmatprep.subr.mxu0 0.0
    %5584 = vmatpush1.msra.mxu0 0.0
    %5585 = vmatprep.subr.mxu0 0.0
    %5586 = vmatpush1.msra.mxu0 0.0
    %5587 = vmatprep.subr.mxu0 0.0
    %5588 = vmatpush1.msra.mxu0 0.0
    %5589 = vmatprep.subr.mxu0 0.0
    %5590 = vmatpush1.msra.mxu0 0.0
    %5591 = vmatprep.subr.mxu0 0.0
    %5592 = vmatpush1.msra.mxu0 0.0
    %5593 = vmatprep.subr.mxu0 0.0
    %5594 = vmatpush1.msra.mxu0 0.0
    %v5595 = vand.u32 %v4009, 4294901760
    %v5596 = vsub.f32 %v4009, %v5595
    %5597 = vmatprep.subr.mxu0 %v5596
    %v5598 = vand.u32 %v4008, 4294901760
    %v5599 = vsub.f32 %v4008, %v5598
    %5600 = vmatpush1.msra.mxu0 %v5599
    %5601 = vmatprep.subr.mxu0 0.0
    %5602 = vmatpush2.msra.mxu0 0.0
    %5603 = vmatprep.subr.mxu0 0.0
    %5604 = vmatpush2.msra.mxu0 0.0
    %5605 = vmatprep.subr.mxu0 0.0
    %5606 = vmatpush2.msra.mxu0 0.0
    %5607 = vmatprep.subr.mxu0 0.0
    %5608 = vmatpush2.msra.mxu0 0.0
    %5609 = vmatprep.subr.mxu0 0.0
    %5610 = vmatpush2.msra.mxu0 0.0
    %5611 = vmatprep.subr.mxu0 0.0
    %5612 = vmatpush2.msra.mxu0 0.0
    %5613 = vmatprep.subr.mxu0 0.0
    %5614 = vmatpush2.msra.mxu0 0.0
    %5615 = vmatprep.subr.mxu0 0.0
    %5616 = vmatpush2.msra.mxu0 0.0
    %5617 = vmatprep.subr.mxu0 0.0
    %5618 = vmatpush2.msra.mxu0 0.0
    %5619 = vmatprep.subr.mxu0 0.0
    %5620 = vmatpush2.msra.mxu0 0.0
    %5621 = vmatprep.subr.mxu0 0.0
    %5622 = vmatpush2.msra.mxu0 0.0
    %5623 = vmatprep.subr.mxu0 0.0
    %5624 = vmatpush2.msra.mxu0 0.0
    %5625 = vmatprep.subr.mxu0 0.0
    %5626 = vmatpush2.msra.mxu0 0.0
    %5627 = vmatprep.subr.mxu0 0.0
    %5628 = vmatpush2.msra.mxu0 0.0
    %5629 = vmatprep.subr.mxu0 0.0
    %5630 = vmatpush2.msra.mxu0 0.0
    %5631 = vmatprep.subr.mxu0 0.0
    %5632 = vmatpush2.msra.mxu0 0.0
    %5633 = vmatprep.mubr.f32.mxu0 0.0
    %v5634 = vand.u32 %v177, 4294901760
    %v5635 = vsub.f32 %v177, %v5634
    %5636 = vmatmul.mubr.f32.gmra.mxu0 %v5635
    %v5637 = vpop.f32.mrf.mxu0
    %v5638 = vadd.f32 %v5561, %v5637
    %v5639 = vpop.f32.mrf.mxu0
    %v5640 = vadd.f32 %v5563, %v5639
    %5641 = vdwg.mxu0
    %5642 = vmatprep.subr.mxu0 0.0
    %5643 = vmatpush1.msra.mxu0 0.0
    %5644 = vmatprep.subr.mxu0 0.0
    %5645 = vmatpush1.msra.mxu0 0.0
    %5646 = vmatprep.subr.mxu0 0.0
    %5647 = vmatpush1.msra.mxu0 0.0
    %5648 = vmatprep.subr.mxu0 0.0
    %5649 = vmatpush1.msra.mxu0 0.0
    %5650 = vmatprep.subr.mxu0 0.0
    %5651 = vmatpush1.msra.mxu0 0.0
    %5652 = vmatprep.subr.mxu0 0.0
    %5653 = vmatpush1.msra.mxu0 0.0
    %5654 = vmatprep.subr.mxu0 0.0
    %5655 = vmatpush1.msra.mxu0 0.0
    %5656 = vmatprep.subr.mxu0 0.0
    %5657 = vmatpush1.msra.mxu0 0.0
    %5658 = vmatprep.subr.mxu0 0.0
    %5659 = vmatpush1.msra.mxu0 0.0
    %5660 = vmatprep.subr.mxu0 0.0
    %5661 = vmatpush1.msra.mxu0 0.0
    %5662 = vmatprep.subr.mxu0 0.0
    %5663 = vmatpush1.msra.mxu0 0.0
    %5664 = vmatprep.subr.mxu0 0.0
    %5665 = vmatpush1.msra.mxu0 0.0
    %5666 = vmatprep.subr.mxu0 0.0
    %5667 = vmatpush1.msra.mxu0 0.0
    %5668 = vmatprep.subr.mxu0 0.0
    %5669 = vmatpush1.msra.mxu0 0.0
    %5670 = vmatprep.subr.mxu0 0.0
    %5671 = vmatpush1.msra.mxu0 0.0
    %v5672 = vand.u32 %v4009, 4294901760
    %5673 = vmatprep.subr.mxu0 %v5672
    %v5674 = vand.u32 %v4008, 4294901760
    %5675 = vmatpush1.msra.mxu0 %v5674
    %5676 = vmatprep.subr.mxu0 0.0
    %5677 = vmatpush2.msra.mxu0 0.0
    %5678 = vmatprep.subr.mxu0 0.0
    %5679 = vmatpush2.msra.mxu0 0.0
    %5680 = vmatprep.subr.mxu0 0.0
    %5681 = vmatpush2.msra.mxu0 0.0
    %5682 = vmatprep.subr.mxu0 0.0
    %5683 = vmatpush2.msra.mxu0 0.0
    %5684 = vmatprep.subr.mxu0 0.0
    %5685 = vmatpush2.msra.mxu0 0.0
    %5686 = vmatprep.subr.mxu0 0.0
    %5687 = vmatpush2.msra.mxu0 0.0
    %5688 = vmatprep.subr.mxu0 0.0
    %5689 = vmatpush2.msra.mxu0 0.0
    %5690 = vmatprep.subr.mxu0 0.0
    %5691 = vmatpush2.msra.mxu0 0.0
    %5692 = vmatprep.subr.mxu0 0.0
    %5693 = vmatpush2.msra.mxu0 0.0
    %5694 = vmatprep.subr.mxu0 0.0
    %5695 = vmatpush2.msra.mxu0 0.0
    %5696 = vmatprep.subr.mxu0 0.0
    %5697 = vmatpush2.msra.mxu0 0.0
    %5698 = vmatprep.subr.mxu0 0.0
    %5699 = vmatpush2.msra.mxu0 0.0
    %5700 = vmatprep.subr.mxu0 0.0
    %5701 = vmatpush2.msra.mxu0 0.0
    %5702 = vmatprep.subr.mxu0 0.0
    %5703 = vmatpush2.msra.mxu0 0.0
    %5704 = vmatprep.subr.mxu0 0.0
    %5705 = vmatpush2.msra.mxu0 0.0
    %5706 = vmatprep.subr.mxu0 0.0
    %5707 = vmatpush2.msra.mxu0 0.0
    %5708 = vmatprep.mubr.f32.mxu0 0.0
    %v5709 = vand.u32 %v177, 4294901760
    %v5710 = vsub.f32 %v177, %v5709
    %v5711 = vand.u32 %v5710, 4294901760
    %5712 = vmatmul.mubr.f32.gmra.mxu0 %v5711
    %v5713 = vpop.f32.mrf.mxu0
    %v5714 = vadd.f32 %v5638, %v5713
    %v5715 = vpop.f32.mrf.mxu0
    %v5716 = vadd.f32 %v5640, %v5715
    %5717 = vdwg.mxu0
    %5718 = vmatprep.subr.mxu0 0.0
    %5719 = vmatpush1.msra.mxu0 0.0
    %5720 = vmatprep.subr.mxu0 0.0
    %5721 = vmatpush1.msra.mxu0 0.0
    %5722 = vmatprep.subr.mxu0 0.0
    %5723 = vmatpush1.msra.mxu0 0.0
    %5724 = vmatprep.subr.mxu0 0.0
    %5725 = vmatpush1.msra.mxu0 0.0
    %5726 = vmatprep.subr.mxu0 0.0
    %5727 = vmatpush1.msra.mxu0 0.0
    %5728 = vmatprep.subr.mxu0 0.0
    %5729 = vmatpush1.msra.mxu0 0.0
    %5730 = vmatprep.subr.mxu0 0.0
    %5731 = vmatpush1.msra.mxu0 0.0
    %5732 = vmatprep.subr.mxu0 0.0
    %5733 = vmatpush1.msra.mxu0 0.0
    %5734 = vmatprep.subr.mxu0 0.0
    %5735 = vmatpush1.msra.mxu0 0.0
    %5736 = vmatprep.subr.mxu0 0.0
    %5737 = vmatpush1.msra.mxu0 0.0
    %5738 = vmatprep.subr.mxu0 0.0
    %5739 = vmatpush1.msra.mxu0 0.0
    %5740 = vmatprep.subr.mxu0 0.0
    %5741 = vmatpush1.msra.mxu0 0.0
    %5742 = vmatprep.subr.mxu0 0.0
    %5743 = vmatpush1.msra.mxu0 0.0
    %5744 = vmatprep.subr.mxu0 0.0
    %5745 = vmatpush1.msra.mxu0 0.0
    %5746 = vmatprep.subr.mxu0 0.0
    %5747 = vmatpush1.msra.mxu0 0.0
    %v5748 = vand.u32 %v4009, 4294901760
    %v5749 = vsub.f32 %v4009, %v5748
    %v5750 = vand.u32 %v5749, 4294901760
    %5751 = vmatprep.subr.mxu0 %v5750
    %v5752 = vand.u32 %v4008, 4294901760
    %v5753 = vsub.f32 %v4008, %v5752
    %v5754 = vand.u32 %v5753, 4294901760
    %5755 = vmatpush1.msra.mxu0 %v5754
    %5756 = vmatprep.subr.mxu0 0.0
    %5757 = vmatpush2.msra.mxu0 0.0
    %5758 = vmatprep.subr.mxu0 0.0
    %5759 = vmatpush2.msra.mxu0 0.0
    %5760 = vmatprep.subr.mxu0 0.0
    %5761 = vmatpush2.msra.mxu0 0.0
    %5762 = vmatprep.subr.mxu0 0.0
    %5763 = vmatpush2.msra.mxu0 0.0
    %5764 = vmatprep.subr.mxu0 0.0
    %5765 = vmatpush2.msra.mxu0 0.0
    %5766 = vmatprep.subr.mxu0 0.0
    %5767 = vmatpush2.msra.mxu0 0.0
    %5768 = vmatprep.subr.mxu0 0.0
    %5769 = vmatpush2.msra.mxu0 0.0
    %5770 = vmatprep.subr.mxu0 0.0
    %5771 = vmatpush2.msra.mxu0 0.0
    %5772 = vmatprep.subr.mxu0 0.0
    %5773 = vmatpush2.msra.mxu0 0.0
    %5774 = vmatprep.subr.mxu0 0.0
    %5775 = vmatpush2.msra.mxu0 0.0
    %5776 = vmatprep.subr.mxu0 0.0
    %5777 = vmatpush2.msra.mxu0 0.0
    %5778 = vmatprep.subr.mxu0 0.0
    %5779 = vmatpush2.msra.mxu0 0.0
    %5780 = vmatprep.subr.mxu0 0.0
    %5781 = vmatpush2.msra.mxu0 0.0
    %5782 = vmatprep.subr.mxu0 0.0
    %5783 = vmatpush2.msra.mxu0 0.0
    %5784 = vmatprep.subr.mxu0 0.0
    %5785 = vmatpush2.msra.mxu0 0.0
    %5786 = vmatprep.subr.mxu0 0.0
    %5787 = vmatpush2.msra.mxu0 0.0
    %5788 = vmatprep.mubr.f32.mxu0 0.0
    %v5789 = vand.u32 %v177, 4294901760
    %5790 = vmatmul.mubr.f32.gmra.mxu0 %v5789
    %v5791 = vpop.f32.mrf.mxu0
    %v5792 = vadd.f32 %v5714, %v5791
    %v5793 = vpop.f32.mrf.mxu0
    %v5794 = vadd.f32 %v5716, %v5793
    %5795 = vdwg.mxu0
    %5796 = vmatprep.subr.mxu0 0.0
    %5797 = vmatpush1.msra.mxu0 0.0
    %5798 = vmatprep.subr.mxu0 0.0
    %5799 = vmatpush1.msra.mxu0 0.0
    %5800 = vmatprep.subr.mxu0 0.0
    %5801 = vmatpush1.msra.mxu0 0.0
    %5802 = vmatprep.subr.mxu0 0.0
    %5803 = vmatpush1.msra.mxu0 0.0
    %5804 = vmatprep.subr.mxu0 0.0
    %5805 = vmatpush1.msra.mxu0 0.0
    %5806 = vmatprep.subr.mxu0 0.0
    %5807 = vmatpush1.msra.mxu0 0.0
    %5808 = vmatprep.subr.mxu0 0.0
    %5809 = vmatpush1.msra.mxu0 0.0
    %5810 = vmatprep.subr.mxu0 0.0
    %5811 = vmatpush1.msra.mxu0 0.0
    %5812 = vmatprep.subr.mxu0 0.0
    %5813 = vmatpush1.msra.mxu0 0.0
    %5814 = vmatprep.subr.mxu0 0.0
    %5815 = vmatpush1.msra.mxu0 0.0
    %5816 = vmatprep.subr.mxu0 0.0
    %5817 = vmatpush1.msra.mxu0 0.0
    %5818 = vmatprep.subr.mxu0 0.0
    %5819 = vmatpush1.msra.mxu0 0.0
    %5820 = vmatprep.subr.mxu0 0.0
    %5821 = vmatpush1.msra.mxu0 0.0
    %5822 = vmatprep.subr.mxu0 0.0
    %5823 = vmatpush1.msra.mxu0 0.0
    %5824 = vmatprep.subr.mxu0 0.0
    %5825 = vmatpush1.msra.mxu0 0.0
    %v5826 = vand.u32 %v4009, 4294901760
    %5827 = vmatprep.subr.mxu0 %v5826
    %v5828 = vand.u32 %v4008, 4294901760
    %5829 = vmatpush1.msra.mxu0 %v5828
    %5830 = vmatprep.subr.mxu0 0.0
    %5831 = vmatpush2.msra.mxu0 0.0
    %5832 = vmatprep.subr.mxu0 0.0
    %5833 = vmatpush2.msra.mxu0 0.0
    %5834 = vmatprep.subr.mxu0 0.0
    %5835 = vmatpush2.msra.mxu0 0.0
    %5836 = vmatprep.subr.mxu0 0.0
    %5837 = vmatpush2.msra.mxu0 0.0
    %5838 = vmatprep.subr.mxu0 0.0
    %5839 = vmatpush2.msra.mxu0 0.0
    %5840 = vmatprep.subr.mxu0 0.0
    %5841 = vmatpush2.msra.mxu0 0.0
    %5842 = vmatprep.subr.mxu0 0.0
    %5843 = vmatpush2.msra.mxu0 0.0
    %5844 = vmatprep.subr.mxu0 0.0
    %5845 = vmatpush2.msra.mxu0 0.0
    %5846 = vmatprep.subr.mxu0 0.0
    %5847 = vmatpush2.msra.mxu0 0.0
    %5848 = vmatprep.subr.mxu0 0.0
    %5849 = vmatpush2.msra.mxu0 0.0
    %5850 = vmatprep.subr.mxu0 0.0
    %5851 = vmatpush2.msra.mxu0 0.0
    %5852 = vmatprep.subr.mxu0 0.0
    %5853 = vmatpush2.msra.mxu0 0.0
    %5854 = vmatprep.subr.mxu0 0.0
    %5855 = vmatpush2.msra.mxu0 0.0
    %5856 = vmatprep.subr.mxu0 0.0
    %5857 = vmatpush2.msra.mxu0 0.0
    %5858 = vmatprep.subr.mxu0 0.0
    %5859 = vmatpush2.msra.mxu0 0.0
    %5860 = vmatprep.subr.mxu0 0.0
    %5861 = vmatpush2.msra.mxu0 0.0
    %5862 = vmatprep.mubr.f32.mxu0 0.0
    %v5863 = vand.u32 %v177, 4294901760
    %5864 = vmatmul.mubr.f32.gmra.mxu0 %v5863
    %v5865 = vpop.f32.mrf.mxu0
    %v5866 = vadd.f32 %v5792, %v5865
    %v5867 = vpop.f32.mrf.mxu0
    %v5868 = vadd.f32 %v5794, %v5867
    %5869 = vdwg.mxu0
    %v5870 = vmax.f32 %v4471, 0.0
    %v5871 = vmax.f32 %v4473, 0.0
    %v5872 = vmax.f32 %v4936, 0.0
    %v5873 = vmax.f32 %v4938, 0.0
    %v5874 = vmax.f32 %v5401, 0.0
    %v5875 = vmax.f32 %v5403, 0.0
    %v5876 = vmax.f32 %v5866, 0.0
    %v5877 = vmax.f32 %v5868, 0.0
    %5878 = vmatprep.subr.mxu0 0.0
    %5879 = vmatpush1.msra.mxu0 0.0
    %5880 = vmatprep.subr.mxu0 0.0
    %5881 = vmatpush1.msra.mxu0 0.0
    %5882 = vmatprep.subr.mxu0 0.0
    %5883 = vmatpush1.msra.mxu0 0.0
    %5884 = vmatprep.subr.mxu0 0.0
    %5885 = vmatpush1.msra.mxu0 0.0
    %5886 = vmatprep.subr.mxu0 0.0
    %5887 = vmatpush1.msra.mxu0 0.0
    %5888 = vmatprep.subr.mxu0 0.0
    %5889 = vmatpush1.msra.mxu0 0.0
    %5890 = vmatprep.subr.mxu0 0.0
    %5891 = vmatpush1.msra.mxu0 0.0
    %5892 = vmatprep.subr.mxu0 0.0
    %5893 = vmatpush1.msra.mxu0 0.0
    %5894 = vmatprep.subr.mxu0 0.0
    %5895 = vmatpush1.msra.mxu0 0.0
    %5896 = vmatprep.subr.mxu0 0.0
    %5897 = vmatpush1.msra.mxu0 0.0
    %5898 = vmatprep.subr.mxu0 0.0
    %5899 = vmatpush1.msra.mxu0 0.0
    %5900 = vmatprep.subr.mxu0 0.0
    %5901 = vmatpush1.msra.mxu0 0.0
    %5902 = vmatprep.subr.mxu0 0.0
    %5903 = vmatpush1.msra.mxu0 0.0
    %5904 = vmatprep.subr.mxu0 0.0
    %5905 = vmatpush1.msra.mxu0 0.0
    %5906 = vmatprep.subr.mxu0 0.0
    %5907 = vmatpush1.msra.mxu0 0.0
    %v5908 = vand.u32 %v5871, 4294901760
    %5909 = vmatprep.subr.mxu0 %v5908
    %v5910 = vand.u32 %v5870, 4294901760
    %5911 = vmatpush1.msra.mxu0 %v5910
    %5912 = vmatprep.subr.mxu0 0.0
    %5913 = vmatpush2.msra.mxu0 0.0
    %5914 = vmatprep.subr.mxu0 0.0
    %5915 = vmatpush2.msra.mxu0 0.0
    %5916 = vmatprep.subr.mxu0 0.0
    %5917 = vmatpush2.msra.mxu0 0.0
    %5918 = vmatprep.subr.mxu0 0.0
    %5919 = vmatpush2.msra.mxu0 0.0
    %5920 = vmatprep.subr.mxu0 0.0
    %5921 = vmatpush2.msra.mxu0 0.0
    %5922 = vmatprep.subr.mxu0 0.0
    %5923 = vmatpush2.msra.mxu0 0.0
    %5924 = vmatprep.subr.mxu0 0.0
    %5925 = vmatpush2.msra.mxu0 0.0
    %5926 = vmatprep.subr.mxu0 0.0
    %5927 = vmatpush2.msra.mxu0 0.0
    %5928 = vmatprep.subr.mxu0 0.0
    %5929 = vmatpush2.msra.mxu0 0.0
    %5930 = vmatprep.subr.mxu0 0.0
    %5931 = vmatpush2.msra.mxu0 0.0
    %5932 = vmatprep.subr.mxu0 0.0
    %5933 = vmatpush2.msra.mxu0 0.0
    %5934 = vmatprep.subr.mxu0 0.0
    %5935 = vmatpush2.msra.mxu0 0.0
    %5936 = vmatprep.subr.mxu0 0.0
    %5937 = vmatpush2.msra.mxu0 0.0
    %5938 = vmatprep.subr.mxu0 0.0
    %5939 = vmatpush2.msra.mxu0 0.0
    %5940 = vmatprep.subr.mxu0 0.0
    %5941 = vmatpush2.msra.mxu0 0.0
    %5942 = vmatprep.subr.mxu0 0.0
    %5943 = vmatpush2.msra.mxu0 0.0
    %5944 = vmatprep.mubr.f32.mxu0 0.0
    %v5945 = vand.u32 %v2053, 4294901760
    %v5946 = vsub.f32 %v2053, %v5945
    %v5947 = vand.u32 %v5946, 4294901760
    %v5948 = vsub.f32 %v5946, %v5947
    %v5949 = vand.u32 %v5948, 4294901760
    %5950 = vmatmul.mubr.f32.gmra.mxu0 %v5949
    %v5951 = vpop.f32.mrf.mxu0
    %v5952 = vadd.f32 %v2050, %v5951
    %v5953 = vpop.f32.mrf.mxu0
    %v5954 = vadd.f32 %v2050, %v5953
    %5955 = vdwg.mxu0
    %5956 = vmatprep.subr.mxu0 0.0
    %5957 = vmatpush1.msra.mxu0 0.0
    %5958 = vmatprep.subr.mxu0 0.0
    %5959 = vmatpush1.msra.mxu0 0.0
    %5960 = vmatprep.subr.mxu0 0.0
    %5961 = vmatpush1.msra.mxu0 0.0
    %5962 = vmatprep.subr.mxu0 0.0
    %5963 = vmatpush1.msra.mxu0 0.0
    %5964 = vmatprep.subr.mxu0 0.0
    %5965 = vmatpush1.msra.mxu0 0.0
    %5966 = vmatprep.subr.mxu0 0.0
    %5967 = vmatpush1.msra.mxu0 0.0
    %5968 = vmatprep.subr.mxu0 0.0
    %5969 = vmatpush1.msra.mxu0 0.0
    %5970 = vmatprep.subr.mxu0 0.0
    %5971 = vmatpush1.msra.mxu0 0.0
    %5972 = vmatprep.subr.mxu0 0.0
    %5973 = vmatpush1.msra.mxu0 0.0
    %5974 = vmatprep.subr.mxu0 0.0
    %5975 = vmatpush1.msra.mxu0 0.0
    %5976 = vmatprep.subr.mxu0 0.0
    %5977 = vmatpush1.msra.mxu0 0.0
    %5978 = vmatprep.subr.mxu0 0.0
    %5979 = vmatpush1.msra.mxu0 0.0
    %5980 = vmatprep.subr.mxu0 0.0
    %5981 = vmatpush1.msra.mxu0 0.0
    %5982 = vmatprep.subr.mxu0 0.0
    %5983 = vmatpush1.msra.mxu0 0.0
    %5984 = vmatprep.subr.mxu0 0.0
    %5985 = vmatpush1.msra.mxu0 0.0
    %v5986 = vand.u32 %v5871, 4294901760
    %v5987 = vsub.f32 %v5871, %v5986
    %v5988 = vand.u32 %v5987, 4294901760
    %v5989 = vsub.f32 %v5987, %v5988
    %v5990 = vand.u32 %v5989, 4294901760
    %5991 = vmatprep.subr.mxu0 %v5990
    %v5992 = vand.u32 %v5870, 4294901760
    %v5993 = vsub.f32 %v5870, %v5992
    %v5994 = vand.u32 %v5993, 4294901760
    %v5995 = vsub.f32 %v5993, %v5994
    %v5996 = vand.u32 %v5995, 4294901760
    %5997 = vmatpush1.msra.mxu0 %v5996
    %5998 = vmatprep.subr.mxu0 0.0
    %5999 = vmatpush2.msra.mxu0 0.0
    %6000 = vmatprep.subr.mxu0 0.0
    %6001 = vmatpush2.msra.mxu0 0.0
    %6002 = vmatprep.subr.mxu0 0.0
    %6003 = vmatpush2.msra.mxu0 0.0
    %6004 = vmatprep.subr.mxu0 0.0
    %6005 = vmatpush2.msra.mxu0 0.0
    %6006 = vmatprep.subr.mxu0 0.0
    %6007 = vmatpush2.msra.mxu0 0.0
    %6008 = vmatprep.subr.mxu0 0.0
    %6009 = vmatpush2.msra.mxu0 0.0
    %6010 = vmatprep.subr.mxu0 0.0
    %6011 = vmatpush2.msra.mxu0 0.0
    %6012 = vmatprep.subr.mxu0 0.0
    %6013 = vmatpush2.msra.mxu0 0.0
    %6014 = vmatprep.subr.mxu0 0.0
    %6015 = vmatpush2.msra.mxu0 0.0
    %6016 = vmatprep.subr.mxu0 0.0
    %6017 = vmatpush2.msra.mxu0 0.0
    %6018 = vmatprep.subr.mxu0 0.0
    %6019 = vmatpush2.msra.mxu0 0.0
    %6020 = vmatprep.subr.mxu0 0.0
    %6021 = vmatpush2.msra.mxu0 0.0
    %6022 = vmatprep.subr.mxu0 0.0
    %6023 = vmatpush2.msra.mxu0 0.0
    %6024 = vmatprep.subr.mxu0 0.0
    %6025 = vmatpush2.msra.mxu0 0.0
    %6026 = vmatprep.subr.mxu0 0.0
    %6027 = vmatpush2.msra.mxu0 0.0
    %6028 = vmatprep.subr.mxu0 0.0
    %6029 = vmatpush2.msra.mxu0 0.0
    %6030 = vmatprep.mubr.f32.mxu0 0.0
    %v6031 = vand.u32 %v2053, 4294901760
    %6032 = vmatmul.mubr.f32.gmra.mxu0 %v6031
    %v6033 = vpop.f32.mrf.mxu0
    %v6034 = vadd.f32 %v5952, %v6033
    %v6035 = vpop.f32.mrf.mxu0
    %v6036 = vadd.f32 %v5954, %v6035
    %6037 = vdwg.mxu0
    %6038 = vmatprep.subr.mxu0 0.0
    %6039 = vmatpush1.msra.mxu0 0.0
    %6040 = vmatprep.subr.mxu0 0.0
    %6041 = vmatpush1.msra.mxu0 0.0
    %6042 = vmatprep.subr.mxu0 0.0
    %6043 = vmatpush1.msra.mxu0 0.0
    %6044 = vmatprep.subr.mxu0 0.0
    %6045 = vmatpush1.msra.mxu0 0.0
    %6046 = vmatprep.subr.mxu0 0.0
    %6047 = vmatpush1.msra.mxu0 0.0
    %6048 = vmatprep.subr.mxu0 0.0
    %6049 = vmatpush1.msra.mxu0 0.0
    %6050 = vmatprep.subr.mxu0 0.0
    %6051 = vmatpush1.msra.mxu0 0.0
    %6052 = vmatprep.subr.mxu0 0.0
    %6053 = vmatpush1.msra.mxu0 0.0
    %6054 = vmatprep.subr.mxu0 0.0
    %6055 = vmatpush1.msra.mxu0 0.0
    %6056 = vmatprep.subr.mxu0 0.0
    %6057 = vmatpush1.msra.mxu0 0.0
    %6058 = vmatprep.subr.mxu0 0.0
    %6059 = vmatpush1.msra.mxu0 0.0
    %6060 = vmatprep.subr.mxu0 0.0
    %6061 = vmatpush1.msra.mxu0 0.0
    %6062 = vmatprep.subr.mxu0 0.0
    %6063 = vmatpush1.msra.mxu0 0.0
    %6064 = vmatprep.subr.mxu0 0.0
    %6065 = vmatpush1.msra.mxu0 0.0
    %6066 = vmatprep.subr.mxu0 0.0
    %6067 = vmatpush1.msra.mxu0 0.0
    %v6068 = vand.u32 %v5871, 4294901760
    %v6069 = vsub.f32 %v5871, %v6068
    %6070 = vmatprep.subr.mxu0 %v6069
    %v6071 = vand.u32 %v5870, 4294901760
    %v6072 = vsub.f32 %v5870, %v6071
    %6073 = vmatpush1.msra.mxu0 %v6072
    %6074 = vmatprep.subr.mxu0 0.0
    %6075 = vmatpush2.msra.mxu0 0.0
    %6076 = vmatprep.subr.mxu0 0.0
    %6077 = vmatpush2.msra.mxu0 0.0
    %6078 = vmatprep.subr.mxu0 0.0
    %6079 = vmatpush2.msra.mxu0 0.0
    %6080 = vmatprep.subr.mxu0 0.0
    %6081 = vmatpush2.msra.mxu0 0.0
    %6082 = vmatprep.subr.mxu0 0.0
    %6083 = vmatpush2.msra.mxu0 0.0
    %6084 = vmatprep.subr.mxu0 0.0
    %6085 = vmatpush2.msra.mxu0 0.0
    %6086 = vmatprep.subr.mxu0 0.0
    %6087 = vmatpush2.msra.mxu0 0.0
    %6088 = vmatprep.subr.mxu0 0.0
    %6089 = vmatpush2.msra.mxu0 0.0
    %6090 = vmatprep.subr.mxu0 0.0
    %6091 = vmatpush2.msra.mxu0 0.0
    %6092 = vmatprep.subr.mxu0 0.0
    %6093 = vmatpush2.msra.mxu0 0.0
    %6094 = vmatprep.subr.mxu0 0.0
    %6095 = vmatpush2.msra.mxu0 0.0
    %6096 = vmatprep.subr.mxu0 0.0
    %6097 = vmatpush2.msra.mxu0 0.0
    %6098 = vmatprep.subr.mxu0 0.0
    %6099 = vmatpush2.msra.mxu0 0.0
    %6100 = vmatprep.subr.mxu0 0.0
    %6101 = vmatpush2.msra.mxu0 0.0
    %6102 = vmatprep.subr.mxu0 0.0
    %6103 = vmatpush2.msra.mxu0 0.0
    %6104 = vmatprep.subr.mxu0 0.0
    %6105 = vmatpush2.msra.mxu0 0.0
    %6106 = vmatprep.mubr.f32.mxu0 0.0
    %v6107 = vand.u32 %v2053, 4294901760
    %v6108 = vsub.f32 %v2053, %v6107
    %6109 = vmatmul.mubr.f32.gmra.mxu0 %v6108
    %v6110 = vpop.f32.mrf.mxu0
    %v6111 = vadd.f32 %v6034, %v6110
    %v6112 = vpop.f32.mrf.mxu0
    %v6113 = vadd.f32 %v6036, %v6112
    %6114 = vdwg.mxu0
    %6115 = vmatprep.subr.mxu0 0.0
    %6116 = vmatpush1.msra.mxu0 0.0
    %6117 = vmatprep.subr.mxu0 0.0
    %6118 = vmatpush1.msra.mxu0 0.0
    %6119 = vmatprep.subr.mxu0 0.0
    %6120 = vmatpush1.msra.mxu0 0.0
    %6121 = vmatprep.subr.mxu0 0.0
    %6122 = vmatpush1.msra.mxu0 0.0
    %6123 = vmatprep.subr.mxu0 0.0
    %6124 = vmatpush1.msra.mxu0 0.0
    %6125 = vmatprep.subr.mxu0 0.0
    %6126 = vmatpush1.msra.mxu0 0.0
    %6127 = vmatprep.subr.mxu0 0.0
    %6128 = vmatpush1.msra.mxu0 0.0
    %6129 = vmatprep.subr.mxu0 0.0
    %6130 = vmatpush1.msra.mxu0 0.0
    %6131 = vmatprep.subr.mxu0 0.0
    %6132 = vmatpush1.msra.mxu0 0.0
    %6133 = vmatprep.subr.mxu0 0.0
    %6134 = vmatpush1.msra.mxu0 0.0
    %6135 = vmatprep.subr.mxu0 0.0
    %6136 = vmatpush1.msra.mxu0 0.0
    %6137 = vmatprep.subr.mxu0 0.0
    %6138 = vmatpush1.msra.mxu0 0.0
    %6139 = vmatprep.subr.mxu0 0.0
    %6140 = vmatpush1.msra.mxu0 0.0
    %6141 = vmatprep.subr.mxu0 0.0
    %6142 = vmatpush1.msra.mxu0 0.0
    %6143 = vmatprep.subr.mxu0 0.0
    %6144 = vmatpush1.msra.mxu0 0.0
    %v6145 = vand.u32 %v5871, 4294901760
    %6146 = vmatprep.subr.mxu0 %v6145
    %v6147 = vand.u32 %v5870, 4294901760
    %6148 = vmatpush1.msra.mxu0 %v6147
    %6149 = vmatprep.subr.mxu0 0.0
    %6150 = vmatpush2.msra.mxu0 0.0
    %6151 = vmatprep.subr.mxu0 0.0
    %6152 = vmatpush2.msra.mxu0 0.0
    %6153 = vmatprep.subr.mxu0 0.0
    %6154 = vmatpush2.msra.mxu0 0.0
    %6155 = vmatprep.subr.mxu0 0.0
    %6156 = vmatpush2.msra.mxu0 0.0
    %6157 = vmatprep.subr.mxu0 0.0
    %6158 = vmatpush2.msra.mxu0 0.0
    %6159 = vmatprep.subr.mxu0 0.0
    %6160 = vmatpush2.msra.mxu0 0.0
    %6161 = vmatprep.subr.mxu0 0.0
    %6162 = vmatpush2.msra.mxu0 0.0
    %6163 = vmatprep.subr.mxu0 0.0
    %6164 = vmatpush2.msra.mxu0 0.0
    %6165 = vmatprep.subr.mxu0 0.0
    %6166 = vmatpush2.msra.mxu0 0.0
    %6167 = vmatprep.subr.mxu0 0.0
    %6168 = vmatpush2.msra.mxu0 0.0
    %6169 = vmatprep.subr.mxu0 0.0
    %6170 = vmatpush2.msra.mxu0 0.0
    %6171 = vmatprep.subr.mxu0 0.0
    %6172 = vmatpush2.msra.mxu0 0.0
    %6173 = vmatprep.subr.mxu0 0.0
    %6174 = vmatpush2.msra.mxu0 0.0
    %6175 = vmatprep.subr.mxu0 0.0
    %6176 = vmatpush2.msra.mxu0 0.0
    %6177 = vmatprep.subr.mxu0 0.0
    %6178 = vmatpush2.msra.mxu0 0.0
    %6179 = vmatprep.subr.mxu0 0.0
    %6180 = vmatpush2.msra.mxu0 0.0
    %6181 = vmatprep.mubr.f32.mxu0 0.0
    %v6182 = vand.u32 %v2053, 4294901760
    %v6183 = vsub.f32 %v2053, %v6182
    %v6184 = vand.u32 %v6183, 4294901760
    %6185 = vmatmul.mubr.f32.gmra.mxu0 %v6184
    %v6186 = vpop.f32.mrf.mxu0
    %v6187 = vadd.f32 %v6111, %v6186
    %v6188 = vpop.f32.mrf.mxu0
    %v6189 = vadd.f32 %v6113, %v6188
    %6190 = vdwg.mxu0
    %6191 = vmatprep.subr.mxu0 0.0
    %6192 = vmatpush1.msra.mxu0 0.0
    %6193 = vmatprep.subr.mxu0 0.0
    %6194 = vmatpush1.msra.mxu0 0.0
    %6195 = vmatprep.subr.mxu0 0.0
    %6196 = vmatpush1.msra.mxu0 0.0
    %6197 = vmatprep.subr.mxu0 0.0
    %6198 = vmatpush1.msra.mxu0 0.0
    %6199 = vmatprep.subr.mxu0 0.0
    %6200 = vmatpush1.msra.mxu0 0.0
    %6201 = vmatprep.subr.mxu0 0.0
    %6202 = vmatpush1.msra.mxu0 0.0
    %6203 = vmatprep.subr.mxu0 0.0
    %6204 = vmatpush1.msra.mxu0 0.0
    %6205 = vmatprep.subr.mxu0 0.0
    %6206 = vmatpush1.msra.mxu0 0.0
    %6207 = vmatprep.subr.mxu0 0.0
    %6208 = vmatpush1.msra.mxu0 0.0
    %6209 = vmatprep.subr.mxu0 0.0
    %6210 = vmatpush1.msra.mxu0 0.0
    %6211 = vmatprep.subr.mxu0 0.0
    %6212 = vmatpush1.msra.mxu0 0.0
    %6213 = vmatprep.subr.mxu0 0.0
    %6214 = vmatpush1.msra.mxu0 0.0
    %6215 = vmatprep.subr.mxu0 0.0
    %6216 = vmatpush1.msra.mxu0 0.0
    %6217 = vmatprep.subr.mxu0 0.0
    %6218 = vmatpush1.msra.mxu0 0.0
    %6219 = vmatprep.subr.mxu0 0.0
    %6220 = vmatpush1.msra.mxu0 0.0
    %v6221 = vand.u32 %v5871, 4294901760
    %v6222 = vsub.f32 %v5871, %v6221
    %v6223 = vand.u32 %v6222, 4294901760
    %6224 = vmatprep.subr.mxu0 %v6223
    %v6225 = vand.u32 %v5870, 4294901760
    %v6226 = vsub.f32 %v5870, %v6225
    %v6227 = vand.u32 %v6226, 4294901760
    %6228 = vmatpush1.msra.mxu0 %v6227
    %6229 = vmatprep.subr.mxu0 0.0
    %6230 = vmatpush2.msra.mxu0 0.0
    %6231 = vmatprep.subr.mxu0 0.0
    %6232 = vmatpush2.msra.mxu0 0.0
    %6233 = vmatprep.subr.mxu0 0.0
    %6234 = vmatpush2.msra.mxu0 0.0
    %6235 = vmatprep.subr.mxu0 0.0
    %6236 = vmatpush2.msra.mxu0 0.0
    %6237 = vmatprep.subr.mxu0 0.0
    %6238 = vmatpush2.msra.mxu0 0.0
    %6239 = vmatprep.subr.mxu0 0.0
    %6240 = vmatpush2.msra.mxu0 0.0
    %6241 = vmatprep.subr.mxu0 0.0
    %6242 = vmatpush2.msra.mxu0 0.0
    %6243 = vmatprep.subr.mxu0 0.0
    %6244 = vmatpush2.msra.mxu0 0.0
    %6245 = vmatprep.subr.mxu0 0.0
    %6246 = vmatpush2.msra.mxu0 0.0
    %6247 = vmatprep.subr.mxu0 0.0
    %6248 = vmatpush2.msra.mxu0 0.0
    %6249 = vmatprep.subr.mxu0 0.0
    %6250 = vmatpush2.msra.mxu0 0.0
    %6251 = vmatprep.subr.mxu0 0.0
    %6252 = vmatpush2.msra.mxu0 0.0
    %6253 = vmatprep.subr.mxu0 0.0
    %6254 = vmatpush2.msra.mxu0 0.0
    %6255 = vmatprep.subr.mxu0 0.0
    %6256 = vmatpush2.msra.mxu0 0.0
    %6257 = vmatprep.subr.mxu0 0.0
    %6258 = vmatpush2.msra.mxu0 0.0
    %6259 = vmatprep.subr.mxu0 0.0
    %6260 = vmatpush2.msra.mxu0 0.0
    %6261 = vmatprep.mubr.f32.mxu0 0.0
    %v6262 = vand.u32 %v2053, 4294901760
    %6263 = vmatmul.mubr.f32.gmra.mxu0 %v6262
    %v6264 = vpop.f32.mrf.mxu0
    %v6265 = vadd.f32 %v6187, %v6264
    %v6266 = vpop.f32.mrf.mxu0
    %v6267 = vadd.f32 %v6189, %v6266
    %6268 = vdwg.mxu0
    %6269 = vmatprep.subr.mxu0 0.0
    %6270 = vmatpush1.msra.mxu0 0.0
    %6271 = vmatprep.subr.mxu0 0.0
    %6272 = vmatpush1.msra.mxu0 0.0
    %6273 = vmatprep.subr.mxu0 0.0
    %6274 = vmatpush1.msra.mxu0 0.0
    %6275 = vmatprep.subr.mxu0 0.0
    %6276 = vmatpush1.msra.mxu0 0.0
    %6277 = vmatprep.subr.mxu0 0.0
    %6278 = vmatpush1.msra.mxu0 0.0
    %6279 = vmatprep.subr.mxu0 0.0
    %6280 = vmatpush1.msra.mxu0 0.0
    %6281 = vmatprep.subr.mxu0 0.0
    %6282 = vmatpush1.msra.mxu0 0.0
    %6283 = vmatprep.subr.mxu0 0.0
    %6284 = vmatpush1.msra.mxu0 0.0
    %6285 = vmatprep.subr.mxu0 0.0
    %6286 = vmatpush1.msra.mxu0 0.0
    %6287 = vmatprep.subr.mxu0 0.0
    %6288 = vmatpush1.msra.mxu0 0.0
    %6289 = vmatprep.subr.mxu0 0.0
    %6290 = vmatpush1.msra.mxu0 0.0
    %6291 = vmatprep.subr.mxu0 0.0
    %6292 = vmatpush1.msra.mxu0 0.0
    %6293 = vmatprep.subr.mxu0 0.0
    %6294 = vmatpush1.msra.mxu0 0.0
    %6295 = vmatprep.subr.mxu0 0.0
    %6296 = vmatpush1.msra.mxu0 0.0
    %6297 = vmatprep.subr.mxu0 0.0
    %6298 = vmatpush1.msra.mxu0 0.0
    %v6299 = vand.u32 %v5871, 4294901760
    %6300 = vmatprep.subr.mxu0 %v6299
    %v6301 = vand.u32 %v5870, 4294901760
    %6302 = vmatpush1.msra.mxu0 %v6301
    %6303 = vmatprep.subr.mxu0 0.0
    %6304 = vmatpush2.msra.mxu0 0.0
    %6305 = vmatprep.subr.mxu0 0.0
    %6306 = vmatpush2.msra.mxu0 0.0
    %6307 = vmatprep.subr.mxu0 0.0
    %6308 = vmatpush2.msra.mxu0 0.0
    %6309 = vmatprep.subr.mxu0 0.0
    %6310 = vmatpush2.msra.mxu0 0.0
    %6311 = vmatprep.subr.mxu0 0.0
    %6312 = vmatpush2.msra.mxu0 0.0
    %6313 = vmatprep.subr.mxu0 0.0
    %6314 = vmatpush2.msra.mxu0 0.0
    %6315 = vmatprep.subr.mxu0 0.0
    %6316 = vmatpush2.msra.mxu0 0.0
    %6317 = vmatprep.subr.mxu0 0.0
    %6318 = vmatpush2.msra.mxu0 0.0
    %6319 = vmatprep.subr.mxu0 0.0
    %6320 = vmatpush2.msra.mxu0 0.0
    %6321 = vmatprep.subr.mxu0 0.0
    %6322 = vmatpush2.msra.mxu0 0.0
    %6323 = vmatprep.subr.mxu0 0.0
    %6324 = vmatpush2.msra.mxu0 0.0
    %6325 = vmatprep.subr.mxu0 0.0
    %6326 = vmatpush2.msra.mxu0 0.0
    %6327 = vmatprep.subr.mxu0 0.0
    %6328 = vmatpush2.msra.mxu0 0.0
    %6329 = vmatprep.subr.mxu0 0.0
    %6330 = vmatpush2.msra.mxu0 0.0
    %6331 = vmatprep.subr.mxu0 0.0
    %6332 = vmatpush2.msra.mxu0 0.0
    %6333 = vmatprep.subr.mxu0 0.0
    %6334 = vmatpush2.msra.mxu0 0.0
    %6335 = vmatprep.mubr.f32.mxu0 0.0
    %v6336 = vand.u32 %v2053, 4294901760
    %6337 = vmatmul.mubr.f32.gmra.mxu0 %v6336
    %v6338 = vpop.f32.mrf.mxu0
    %v6339 = vadd.f32 %v6265, %v6338
    %v6340 = vpop.f32.mrf.mxu0
    %v6341 = vadd.f32 %v6267, %v6340
    %6342 = vdwg.mxu0
    %6343 = vmatprep.subr.mxu0 0.0
    %6344 = vmatpush1.msra.mxu0 0.0
    %6345 = vmatprep.subr.mxu0 0.0
    %6346 = vmatpush1.msra.mxu0 0.0
    %6347 = vmatprep.subr.mxu0 0.0
    %6348 = vmatpush1.msra.mxu0 0.0
    %6349 = vmatprep.subr.mxu0 0.0
    %6350 = vmatpush1.msra.mxu0 0.0
    %6351 = vmatprep.subr.mxu0 0.0
    %6352 = vmatpush1.msra.mxu0 0.0
    %6353 = vmatprep.subr.mxu0 0.0
    %6354 = vmatpush1.msra.mxu0 0.0
    %6355 = vmatprep.subr.mxu0 0.0
    %6356 = vmatpush1.msra.mxu0 0.0
    %6357 = vmatprep.subr.mxu0 0.0
    %6358 = vmatpush1.msra.mxu0 0.0
    %6359 = vmatprep.subr.mxu0 0.0
    %6360 = vmatpush1.msra.mxu0 0.0
    %6361 = vmatprep.subr.mxu0 0.0
    %6362 = vmatpush1.msra.mxu0 0.0
    %6363 = vmatprep.subr.mxu0 0.0
    %6364 = vmatpush1.msra.mxu0 0.0
    %6365 = vmatprep.subr.mxu0 0.0
    %6366 = vmatpush1.msra.mxu0 0.0
    %6367 = vmatprep.subr.mxu0 0.0
    %6368 = vmatpush1.msra.mxu0 0.0
    %6369 = vmatprep.subr.mxu0 0.0
    %6370 = vmatpush1.msra.mxu0 0.0
    %6371 = vmatprep.subr.mxu0 0.0
    %6372 = vmatpush1.msra.mxu0 0.0
    %v6373 = vand.u32 %v5873, 4294901760
    %6374 = vmatprep.subr.mxu0 %v6373
    %v6375 = vand.u32 %v5872, 4294901760
    %6376 = vmatpush1.msra.mxu0 %v6375
    %6377 = vmatprep.subr.mxu0 0.0
    %6378 = vmatpush2.msra.mxu0 0.0
    %6379 = vmatprep.subr.mxu0 0.0
    %6380 = vmatpush2.msra.mxu0 0.0
    %6381 = vmatprep.subr.mxu0 0.0
    %6382 = vmatpush2.msra.mxu0 0.0
    %6383 = vmatprep.subr.mxu0 0.0
    %6384 = vmatpush2.msra.mxu0 0.0
    %6385 = vmatprep.subr.mxu0 0.0
    %6386 = vmatpush2.msra.mxu0 0.0
    %6387 = vmatprep.subr.mxu0 0.0
    %6388 = vmatpush2.msra.mxu0 0.0
    %6389 = vmatprep.subr.mxu0 0.0
    %6390 = vmatpush2.msra.mxu0 0.0
    %6391 = vmatprep.subr.mxu0 0.0
    %6392 = vmatpush2.msra.mxu0 0.0
    %6393 = vmatprep.subr.mxu0 0.0
    %6394 = vmatpush2.msra.mxu0 0.0
    %6395 = vmatprep.subr.mxu0 0.0
    %6396 = vmatpush2.msra.mxu0 0.0
    %6397 = vmatprep.subr.mxu0 0.0
    %6398 = vmatpush2.msra.mxu0 0.0
    %6399 = vmatprep.subr.mxu0 0.0
    %6400 = vmatpush2.msra.mxu0 0.0
    %6401 = vmatprep.subr.mxu0 0.0
    %6402 = vmatpush2.msra.mxu0 0.0
    %6403 = vmatprep.subr.mxu0 0.0
    %6404 = vmatpush2.msra.mxu0 0.0
    %6405 = vmatprep.subr.mxu0 0.0
    %6406 = vmatpush2.msra.mxu0 0.0
    %6407 = vmatprep.subr.mxu0 0.0
    %6408 = vmatpush2.msra.mxu0 0.0
    %6409 = vmatprep.mubr.f32.mxu0 0.0
    %v6410 = vand.u32 %v2053, 4294901760
    %v6411 = vsub.f32 %v2053, %v6410
    %v6412 = vand.u32 %v6411, 4294901760
    %v6413 = vsub.f32 %v6411, %v6412
    %v6414 = vand.u32 %v6413, 4294901760
    %6415 = vmatmul.mubr.f32.gmra.mxu0 %v6414
    %v6416 = vpop.f32.mrf.mxu0
    %v6417 = vadd.f32 %v2050, %v6416
    %v6418 = vpop.f32.mrf.mxu0
    %v6419 = vadd.f32 %v2050, %v6418
    %6420 = vdwg.mxu0
    %6421 = vmatprep.subr.mxu0 0.0
    %6422 = vmatpush1.msra.mxu0 0.0
    %6423 = vmatprep.subr.mxu0 0.0
    %6424 = vmatpush1.msra.mxu0 0.0
    %6425 = vmatprep.subr.mxu0 0.0
    %6426 = vmatpush1.msra.mxu0 0.0
    %6427 = vmatprep.subr.mxu0 0.0
    %6428 = vmatpush1.msra.mxu0 0.0
    %6429 = vmatprep.subr.mxu0 0.0
    %6430 = vmatpush1.msra.mxu0 0.0
    %6431 = vmatprep.subr.mxu0 0.0
    %6432 = vmatpush1.msra.mxu0 0.0
    %6433 = vmatprep.subr.mxu0 0.0
    %6434 = vmatpush1.msra.mxu0 0.0
    %6435 = vmatprep.subr.mxu0 0.0
    %6436 = vmatpush1.msra.mxu0 0.0
    %6437 = vmatprep.subr.mxu0 0.0
    %6438 = vmatpush1.msra.mxu0 0.0
    %6439 = vmatprep.subr.mxu0 0.0
    %6440 = vmatpush1.msra.mxu0 0.0
    %6441 = vmatprep.subr.mxu0 0.0
    %6442 = vmatpush1.msra.mxu0 0.0
    %6443 = vmatprep.subr.mxu0 0.0
    %6444 = vmatpush1.msra.mxu0 0.0
    %6445 = vmatprep.subr.mxu0 0.0
    %6446 = vmatpush1.msra.mxu0 0.0
    %6447 = vmatprep.subr.mxu0 0.0
    %6448 = vmatpush1.msra.mxu0 0.0
    %6449 = vmatprep.subr.mxu0 0.0
    %6450 = vmatpush1.msra.mxu0 0.0
    %v6451 = vand.u32 %v5873, 4294901760
    %v6452 = vsub.f32 %v5873, %v6451
    %v6453 = vand.u32 %v6452, 4294901760
    %v6454 = vsub.f32 %v6452, %v6453
    %v6455 = vand.u32 %v6454, 4294901760
    %6456 = vmatprep.subr.mxu0 %v6455
    %v6457 = vand.u32 %v5872, 4294901760
    %v6458 = vsub.f32 %v5872, %v6457
    %v6459 = vand.u32 %v6458, 4294901760
    %v6460 = vsub.f32 %v6458, %v6459
    %v6461 = vand.u32 %v6460, 4294901760
    %6462 = vmatpush1.msra.mxu0 %v6461
    %6463 = vmatprep.subr.mxu0 0.0
    %6464 = vmatpush2.msra.mxu0 0.0
    %6465 = vmatprep.subr.mxu0 0.0
    %6466 = vmatpush2.msra.mxu0 0.0
    %6467 = vmatprep.subr.mxu0 0.0
    %6468 = vmatpush2.msra.mxu0 0.0
    %6469 = vmatprep.subr.mxu0 0.0
    %6470 = vmatpush2.msra.mxu0 0.0
    %6471 = vmatprep.subr.mxu0 0.0
    %6472 = vmatpush2.msra.mxu0 0.0
    %6473 = vmatprep.subr.mxu0 0.0
    %6474 = vmatpush2.msra.mxu0 0.0
    %6475 = vmatprep.subr.mxu0 0.0
    %6476 = vmatpush2.msra.mxu0 0.0
    %6477 = vmatprep.subr.mxu0 0.0
    %6478 = vmatpush2.msra.mxu0 0.0
    %6479 = vmatprep.subr.mxu0 0.0
    %6480 = vmatpush2.msra.mxu0 0.0
    %6481 = vmatprep.subr.mxu0 0.0
    %6482 = vmatpush2.msra.mxu0 0.0
    %6483 = vmatprep.subr.mxu0 0.0
    %6484 = vmatpush2.msra.mxu0 0.0
    %6485 = vmatprep.subr.mxu0 0.0
    %6486 = vmatpush2.msra.mxu0 0.0
    %6487 = vmatprep.subr.mxu0 0.0
    %6488 = vmatpush2.msra.mxu0 0.0
    %6489 = vmatprep.subr.mxu0 0.0
    %6490 = vmatpush2.msra.mxu0 0.0
    %6491 = vmatprep.subr.mxu0 0.0
    %6492 = vmatpush2.msra.mxu0 0.0
    %6493 = vmatprep.subr.mxu0 0.0
    %6494 = vmatpush2.msra.mxu0 0.0
    %6495 = vmatprep.mubr.f32.mxu0 0.0
    %v6496 = vand.u32 %v2053, 4294901760
    %6497 = vmatmul.mubr.f32.gmra.mxu0 %v6496
    %v6498 = vpop.f32.mrf.mxu0
    %v6499 = vadd.f32 %v6417, %v6498
    %v6500 = vpop.f32.mrf.mxu0
    %v6501 = vadd.f32 %v6419, %v6500
    %6502 = vdwg.mxu0
    %6503 = vmatprep.subr.mxu0 0.0
    %6504 = vmatpush1.msra.mxu0 0.0
    %6505 = vmatprep.subr.mxu0 0.0
    %6506 = vmatpush1.msra.mxu0 0.0
    %6507 = vmatprep.subr.mxu0 0.0
    %6508 = vmatpush1.msra.mxu0 0.0
    %6509 = vmatprep.subr.mxu0 0.0
    %6510 = vmatpush1.msra.mxu0 0.0
    %6511 = vmatprep.subr.mxu0 0.0
    %6512 = vmatpush1.msra.mxu0 0.0
    %6513 = vmatprep.subr.mxu0 0.0
    %6514 = vmatpush1.msra.mxu0 0.0
    %6515 = vmatprep.subr.mxu0 0.0
    %6516 = vmatpush1.msra.mxu0 0.0
    %6517 = vmatprep.subr.mxu0 0.0
    %6518 = vmatpush1.msra.mxu0 0.0
    %6519 = vmatprep.subr.mxu0 0.0
    %6520 = vmatpush1.msra.mxu0 0.0
    %6521 = vmatprep.subr.mxu0 0.0
    %6522 = vmatpush1.msra.mxu0 0.0
    %6523 = vmatprep.subr.mxu0 0.0
    %6524 = vmatpush1.msra.mxu0 0.0
    %6525 = vmatprep.subr.mxu0 0.0
    %6526 = vmatpush1.msra.mxu0 0.0
    %6527 = vmatprep.subr.mxu0 0.0
    %6528 = vmatpush1.msra.mxu0 0.0
    %6529 = vmatprep.subr.mxu0 0.0
    %6530 = vmatpush1.msra.mxu0 0.0
    %6531 = vmatprep.subr.mxu0 0.0
    %6532 = vmatpush1.msra.mxu0 0.0
    %v6533 = vand.u32 %v5873, 4294901760
    %v6534 = vsub.f32 %v5873, %v6533
    %6535 = vmatprep.subr.mxu0 %v6534
    %v6536 = vand.u32 %v5872, 4294901760
    %v6537 = vsub.f32 %v5872, %v6536
    %6538 = vmatpush1.msra.mxu0 %v6537
    %6539 = vmatprep.subr.mxu0 0.0
    %6540 = vmatpush2.msra.mxu0 0.0
    %6541 = vmatprep.subr.mxu0 0.0
    %6542 = vmatpush2.msra.mxu0 0.0
    %6543 = vmatprep.subr.mxu0 0.0
    %6544 = vmatpush2.msra.mxu0 0.0
    %6545 = vmatprep.subr.mxu0 0.0
    %6546 = vmatpush2.msra.mxu0 0.0
    %6547 = vmatprep.subr.mxu0 0.0
    %6548 = vmatpush2.msra.mxu0 0.0
    %6549 = vmatprep.subr.mxu0 0.0
    %6550 = vmatpush2.msra.mxu0 0.0
    %6551 = vmatprep.subr.mxu0 0.0
    %6552 = vmatpush2.msra.mxu0 0.0
    %6553 = vmatprep.subr.mxu0 0.0
    %6554 = vmatpush2.msra.mxu0 0.0
    %6555 = vmatprep.subr.mxu0 0.0
    %6556 = vmatpush2.msra.mxu0 0.0
    %6557 = vmatprep.subr.mxu0 0.0
    %6558 = vmatpush2.msra.mxu0 0.0
    %6559 = vmatprep.subr.mxu0 0.0
    %6560 = vmatpush2.msra.mxu0 0.0
    %6561 = vmatprep.subr.mxu0 0.0
    %6562 = vmatpush2.msra.mxu0 0.0
    %6563 = vmatprep.subr.mxu0 0.0
    %6564 = vmatpush2.msra.mxu0 0.0
    %6565 = vmatprep.subr.mxu0 0.0
    %6566 = vmatpush2.msra.mxu0 0.0
    %6567 = vmatprep.subr.mxu0 0.0
    %6568 = vmatpush2.msra.mxu0 0.0
    %6569 = vmatprep.subr.mxu0 0.0
    %6570 = vmatpush2.msra.mxu0 0.0
    %6571 = vmatprep.mubr.f32.mxu0 0.0
    %v6572 = vand.u32 %v2053, 4294901760
    %v6573 = vsub.f32 %v2053, %v6572
    %6574 = vmatmul.mubr.f32.gmra.mxu0 %v6573
    %v6575 = vpop.f32.mrf.mxu0
    %v6576 = vadd.f32 %v6499, %v6575
    %v6577 = vpop.f32.mrf.mxu0
    %v6578 = vadd.f32 %v6501, %v6577
    %6579 = vdwg.mxu0
    %6580 = vmatprep.subr.mxu0 0.0
    %6581 = vmatpush1.msra.mxu0 0.0
    %6582 = vmatprep.subr.mxu0 0.0
    %6583 = vmatpush1.msra.mxu0 0.0
    %6584 = vmatprep.subr.mxu0 0.0
    %6585 = vmatpush1.msra.mxu0 0.0
    %6586 = vmatprep.subr.mxu0 0.0
    %6587 = vmatpush1.msra.mxu0 0.0
    %6588 = vmatprep.subr.mxu0 0.0
    %6589 = vmatpush1.msra.mxu0 0.0
    %6590 = vmatprep.subr.mxu0 0.0
    %6591 = vmatpush1.msra.mxu0 0.0
    %6592 = vmatprep.subr.mxu0 0.0
    %6593 = vmatpush1.msra.mxu0 0.0
    %6594 = vmatprep.subr.mxu0 0.0
    %6595 = vmatpush1.msra.mxu0 0.0
    %6596 = vmatprep.subr.mxu0 0.0
    %6597 = vmatpush1.msra.mxu0 0.0
    %6598 = vmatprep.subr.mxu0 0.0
    %6599 = vmatpush1.msra.mxu0 0.0
    %6600 = vmatprep.subr.mxu0 0.0
    %6601 = vmatpush1.msra.mxu0 0.0
    %6602 = vmatprep.subr.mxu0 0.0
    %6603 = vmatpush1.msra.mxu0 0.0
    %6604 = vmatprep.subr.mxu0 0.0
    %6605 = vmatpush1.msra.mxu0 0.0
    %6606 = vmatprep.subr.mxu0 0.0
    %6607 = vmatpush1.msra.mxu0 0.0
    %6608 = vmatprep.subr.mxu0 0.0
    %6609 = vmatpush1.msra.mxu0 0.0
    %v6610 = vand.u32 %v5873, 4294901760
    %6611 = vmatprep.subr.mxu0 %v6610
    %v6612 = vand.u32 %v5872, 4294901760
    %6613 = vmatpush1.msra.mxu0 %v6612
    %6614 = vmatprep.subr.mxu0 0.0
    %6615 = vmatpush2.msra.mxu0 0.0
    %6616 = vmatprep.subr.mxu0 0.0
    %6617 = vmatpush2.msra.mxu0 0.0
    %6618 = vmatprep.subr.mxu0 0.0
    %6619 = vmatpush2.msra.mxu0 0.0
    %6620 = vmatprep.subr.mxu0 0.0
    %6621 = vmatpush2.msra.mxu0 0.0
    %6622 = vmatprep.subr.mxu0 0.0
    %6623 = vmatpush2.msra.mxu0 0.0
    %6624 = vmatprep.subr.mxu0 0.0
    %6625 = vmatpush2.msra.mxu0 0.0
    %6626 = vmatprep.subr.mxu0 0.0
    %6627 = vmatpush2.msra.mxu0 0.0
    %6628 = vmatprep.subr.mxu0 0.0
    %6629 = vmatpush2.msra.mxu0 0.0
    %6630 = vmatprep.subr.mxu0 0.0
    %6631 = vmatpush2.msra.mxu0 0.0
    %6632 = vmatprep.subr.mxu0 0.0
    %6633 = vmatpush2.msra.mxu0 0.0
    %6634 = vmatprep.subr.mxu0 0.0
    %6635 = vmatpush2.msra.mxu0 0.0
    %6636 = vmatprep.subr.mxu0 0.0
    %6637 = vmatpush2.msra.mxu0 0.0
    %6638 = vmatprep.subr.mxu0 0.0
    %6639 = vmatpush2.msra.mxu0 0.0
    %6640 = vmatprep.subr.mxu0 0.0
    %6641 = vmatpush2.msra.mxu0 0.0
    %6642 = vmatprep.subr.mxu0 0.0
    %6643 = vmatpush2.msra.mxu0 0.0
    %6644 = vmatprep.subr.mxu0 0.0
    %6645 = vmatpush2.msra.mxu0 0.0
    %6646 = vmatprep.mubr.f32.mxu0 0.0
    %v6647 = vand.u32 %v2053, 4294901760
    %v6648 = vsub.f32 %v2053, %v6647
    %v6649 = vand.u32 %v6648, 4294901760
    %6650 = vmatmul.mubr.f32.gmra.mxu0 %v6649
    %v6651 = vpop.f32.mrf.mxu0
    %v6652 = vadd.f32 %v6576, %v6651
    %v6653 = vpop.f32.mrf.mxu0
    %v6654 = vadd.f32 %v6578, %v6653
    %6655 = vdwg.mxu0
    %6656 = vmatprep.subr.mxu0 0.0
    %6657 = vmatpush1.msra.mxu0 0.0
    %6658 = vmatprep.subr.mxu0 0.0
    %6659 = vmatpush1.msra.mxu0 0.0
    %6660 = vmatprep.subr.mxu0 0.0
    %6661 = vmatpush1.msra.mxu0 0.0
    %6662 = vmatprep.subr.mxu0 0.0
    %6663 = vmatpush1.msra.mxu0 0.0
    %6664 = vmatprep.subr.mxu0 0.0
    %6665 = vmatpush1.msra.mxu0 0.0
    %6666 = vmatprep.subr.mxu0 0.0
    %6667 = vmatpush1.msra.mxu0 0.0
    %6668 = vmatprep.subr.mxu0 0.0
    %6669 = vmatpush1.msra.mxu0 0.0
    %6670 = vmatprep.subr.mxu0 0.0
    %6671 = vmatpush1.msra.mxu0 0.0
    %6672 = vmatprep.subr.mxu0 0.0
    %6673 = vmatpush1.msra.mxu0 0.0
    %6674 = vmatprep.subr.mxu0 0.0
    %6675 = vmatpush1.msra.mxu0 0.0
    %6676 = vmatprep.subr.mxu0 0.0
    %6677 = vmatpush1.msra.mxu0 0.0
    %6678 = vmatprep.subr.mxu0 0.0
    %6679 = vmatpush1.msra.mxu0 0.0
    %6680 = vmatprep.subr.mxu0 0.0
    %6681 = vmatpush1.msra.mxu0 0.0
    %6682 = vmatprep.subr.mxu0 0.0
    %6683 = vmatpush1.msra.mxu0 0.0
    %6684 = vmatprep.subr.mxu0 0.0
    %6685 = vmatpush1.msra.mxu0 0.0
    %v6686 = vand.u32 %v5873, 4294901760
    %v6687 = vsub.f32 %v5873, %v6686
    %v6688 = vand.u32 %v6687, 4294901760
    %6689 = vmatprep.subr.mxu0 %v6688
    %v6690 = vand.u32 %v5872, 4294901760
    %v6691 = vsub.f32 %v5872, %v6690
    %v6692 = vand.u32 %v6691, 4294901760
    %6693 = vmatpush1.msra.mxu0 %v6692
    %6694 = vmatprep.subr.mxu0 0.0
    %6695 = vmatpush2.msra.mxu0 0.0
    %6696 = vmatprep.subr.mxu0 0.0
    %6697 = vmatpush2.msra.mxu0 0.0
    %6698 = vmatprep.subr.mxu0 0.0
    %6699 = vmatpush2.msra.mxu0 0.0
    %6700 = vmatprep.subr.mxu0 0.0
    %6701 = vmatpush2.msra.mxu0 0.0
    %6702 = vmatprep.subr.mxu0 0.0
    %6703 = vmatpush2.msra.mxu0 0.0
    %6704 = vmatprep.subr.mxu0 0.0
    %6705 = vmatpush2.msra.mxu0 0.0
    %6706 = vmatprep.subr.mxu0 0.0
    %6707 = vmatpush2.msra.mxu0 0.0
    %6708 = vmatprep.subr.mxu0 0.0
    %6709 = vmatpush2.msra.mxu0 0.0
    %6710 = vmatprep.subr.mxu0 0.0
    %6711 = vmatpush2.msra.mxu0 0.0
    %6712 = vmatprep.subr.mxu0 0.0
    %6713 = vmatpush2.msra.mxu0 0.0
    %6714 = vmatprep.subr.mxu0 0.0
    %6715 = vmatpush2.msra.mxu0 0.0
    %6716 = vmatprep.subr.mxu0 0.0
    %6717 = vmatpush2.msra.mxu0 0.0
    %6718 = vmatprep.subr.mxu0 0.0
    %6719 = vmatpush2.msra.mxu0 0.0
    %6720 = vmatprep.subr.mxu0 0.0
    %6721 = vmatpush2.msra.mxu0 0.0
    %6722 = vmatprep.subr.mxu0 0.0
    %6723 = vmatpush2.msra.mxu0 0.0
    %6724 = vmatprep.subr.mxu0 0.0
    %6725 = vmatpush2.msra.mxu0 0.0
    %6726 = vmatprep.mubr.f32.mxu0 0.0
    %v6727 = vand.u32 %v2053, 4294901760
    %6728 = vmatmul.mubr.f32.gmra.mxu0 %v6727
    %v6729 = vpop.f32.mrf.mxu0
    %v6730 = vadd.f32 %v6652, %v6729
    %v6731 = vpop.f32.mrf.mxu0
    %v6732 = vadd.f32 %v6654, %v6731
    %6733 = vdwg.mxu0
    %6734 = vmatprep.subr.mxu0 0.0
    %6735 = vmatpush1.msra.mxu0 0.0
    %6736 = vmatprep.subr.mxu0 0.0
    %6737 = vmatpush1.msra.mxu0 0.0
    %6738 = vmatprep.subr.mxu0 0.0
    %6739 = vmatpush1.msra.mxu0 0.0
    %6740 = vmatprep.subr.mxu0 0.0
    %6741 = vmatpush1.msra.mxu0 0.0
    %6742 = vmatprep.subr.mxu0 0.0
    %6743 = vmatpush1.msra.mxu0 0.0
    %6744 = vmatprep.subr.mxu0 0.0
    %6745 = vmatpush1.msra.mxu0 0.0
    %6746 = vmatprep.subr.mxu0 0.0
    %6747 = vmatpush1.msra.mxu0 0.0
    %6748 = vmatprep.subr.mxu0 0.0
    %6749 = vmatpush1.msra.mxu0 0.0
    %6750 = vmatprep.subr.mxu0 0.0
    %6751 = vmatpush1.msra.mxu0 0.0
    %6752 = vmatprep.subr.mxu0 0.0
    %6753 = vmatpush1.msra.mxu0 0.0
    %6754 = vmatprep.subr.mxu0 0.0
    %6755 = vmatpush1.msra.mxu0 0.0
    %6756 = vmatprep.subr.mxu0 0.0
    %6757 = vmatpush1.msra.mxu0 0.0
    %6758 = vmatprep.subr.mxu0 0.0
    %6759 = vmatpush1.msra.mxu0 0.0
    %6760 = vmatprep.subr.mxu0 0.0
    %6761 = vmatpush1.msra.mxu0 0.0
    %6762 = vmatprep.subr.mxu0 0.0
    %6763 = vmatpush1.msra.mxu0 0.0
    %v6764 = vand.u32 %v5873, 4294901760
    %6765 = vmatprep.subr.mxu0 %v6764
    %v6766 = vand.u32 %v5872, 4294901760
    %6767 = vmatpush1.msra.mxu0 %v6766
    %6768 = vmatprep.subr.mxu0 0.0
    %6769 = vmatpush2.msra.mxu0 0.0
    %6770 = vmatprep.subr.mxu0 0.0
    %6771 = vmatpush2.msra.mxu0 0.0
    %6772 = vmatprep.subr.mxu0 0.0
    %6773 = vmatpush2.msra.mxu0 0.0
    %6774 = vmatprep.subr.mxu0 0.0
    %6775 = vmatpush2.msra.mxu0 0.0
    %6776 = vmatprep.subr.mxu0 0.0
    %6777 = vmatpush2.msra.mxu0 0.0
    %6778 = vmatprep.subr.mxu0 0.0
    %6779 = vmatpush2.msra.mxu0 0.0
    %6780 = vmatprep.subr.mxu0 0.0
    %6781 = vmatpush2.msra.mxu0 0.0
    %6782 = vmatprep.subr.mxu0 0.0
    %6783 = vmatpush2.msra.mxu0 0.0
    %6784 = vmatprep.subr.mxu0 0.0
    %6785 = vmatpush2.msra.mxu0 0.0
    %6786 = vmatprep.subr.mxu0 0.0
    %6787 = vmatpush2.msra.mxu0 0.0
    %6788 = vmatprep.subr.mxu0 0.0
    %6789 = vmatpush2.msra.mxu0 0.0
    %6790 = vmatprep.subr.mxu0 0.0
    %6791 = vmatpush2.msra.mxu0 0.0
    %6792 = vmatprep.subr.mxu0 0.0
    %6793 = vmatpush2.msra.mxu0 0.0
    %6794 = vmatprep.subr.mxu0 0.0
    %6795 = vmatpush2.msra.mxu0 0.0
    %6796 = vmatprep.subr.mxu0 0.0
    %6797 = vmatpush2.msra.mxu0 0.0
    %6798 = vmatprep.subr.mxu0 0.0
    %6799 = vmatpush2.msra.mxu0 0.0
    %6800 = vmatprep.mubr.f32.mxu0 0.0
    %v6801 = vand.u32 %v2053, 4294901760
    %6802 = vmatmul.mubr.f32.gmra.mxu0 %v6801
    %v6803 = vpop.f32.mrf.mxu0
    %v6804 = vadd.f32 %v6730, %v6803
    %v6805 = vpop.f32.mrf.mxu0
    %v6806 = vadd.f32 %v6732, %v6805
    %6807 = vdwg.mxu0
    %6808 = vmatprep.subr.mxu0 0.0
    %6809 = vmatpush1.msra.mxu0 0.0
    %6810 = vmatprep.subr.mxu0 0.0
    %6811 = vmatpush1.msra.mxu0 0.0
    %6812 = vmatprep.subr.mxu0 0.0
    %6813 = vmatpush1.msra.mxu0 0.0
    %6814 = vmatprep.subr.mxu0 0.0
    %6815 = vmatpush1.msra.mxu0 0.0
    %6816 = vmatprep.subr.mxu0 0.0
    %6817 = vmatpush1.msra.mxu0 0.0
    %6818 = vmatprep.subr.mxu0 0.0
    %6819 = vmatpush1.msra.mxu0 0.0
    %6820 = vmatprep.subr.mxu0 0.0
    %6821 = vmatpush1.msra.mxu0 0.0
    %6822 = vmatprep.subr.mxu0 0.0
    %6823 = vmatpush1.msra.mxu0 0.0
    %6824 = vmatprep.subr.mxu0 0.0
    %6825 = vmatpush1.msra.mxu0 0.0
    %6826 = vmatprep.subr.mxu0 0.0
    %6827 = vmatpush1.msra.mxu0 0.0
    %6828 = vmatprep.subr.mxu0 0.0
    %6829 = vmatpush1.msra.mxu0 0.0
    %6830 = vmatprep.subr.mxu0 0.0
    %6831 = vmatpush1.msra.mxu0 0.0
    %6832 = vmatprep.subr.mxu0 0.0
    %6833 = vmatpush1.msra.mxu0 0.0
    %6834 = vmatprep.subr.mxu0 0.0
    %6835 = vmatpush1.msra.mxu0 0.0
    %6836 = vmatprep.subr.mxu0 0.0
    %6837 = vmatpush1.msra.mxu0 0.0
    %v6838 = vand.u32 %v5875, 4294901760
    %6839 = vmatprep.subr.mxu0 %v6838
    %v6840 = vand.u32 %v5874, 4294901760
    %6841 = vmatpush1.msra.mxu0 %v6840
    %6842 = vmatprep.subr.mxu0 0.0
    %6843 = vmatpush2.msra.mxu0 0.0
    %6844 = vmatprep.subr.mxu0 0.0
    %6845 = vmatpush2.msra.mxu0 0.0
    %6846 = vmatprep.subr.mxu0 0.0
    %6847 = vmatpush2.msra.mxu0 0.0
    %6848 = vmatprep.subr.mxu0 0.0
    %6849 = vmatpush2.msra.mxu0 0.0
    %6850 = vmatprep.subr.mxu0 0.0
    %6851 = vmatpush2.msra.mxu0 0.0
    %6852 = vmatprep.subr.mxu0 0.0
    %6853 = vmatpush2.msra.mxu0 0.0
    %6854 = vmatprep.subr.mxu0 0.0
    %6855 = vmatpush2.msra.mxu0 0.0
    %6856 = vmatprep.subr.mxu0 0.0
    %6857 = vmatpush2.msra.mxu0 0.0
    %6858 = vmatprep.subr.mxu0 0.0
    %6859 = vmatpush2.msra.mxu0 0.0
    %6860 = vmatprep.subr.mxu0 0.0
    %6861 = vmatpush2.msra.mxu0 0.0
    %6862 = vmatprep.subr.mxu0 0.0
    %6863 = vmatpush2.msra.mxu0 0.0
    %6864 = vmatprep.subr.mxu0 0.0
    %6865 = vmatpush2.msra.mxu0 0.0
    %6866 = vmatprep.subr.mxu0 0.0
    %6867 = vmatpush2.msra.mxu0 0.0
    %6868 = vmatprep.subr.mxu0 0.0
    %6869 = vmatpush2.msra.mxu0 0.0
    %6870 = vmatprep.subr.mxu0 0.0
    %6871 = vmatpush2.msra.mxu0 0.0
    %6872 = vmatprep.subr.mxu0 0.0
    %6873 = vmatpush2.msra.mxu0 0.0
    %6874 = vmatprep.mubr.f32.mxu0 0.0
    %v6875 = vand.u32 %v2053, 4294901760
    %v6876 = vsub.f32 %v2053, %v6875
    %v6877 = vand.u32 %v6876, 4294901760
    %v6878 = vsub.f32 %v6876, %v6877
    %v6879 = vand.u32 %v6878, 4294901760
    %6880 = vmatmul.mubr.f32.gmra.mxu0 %v6879
    %v6881 = vpop.f32.mrf.mxu0
    %v6882 = vadd.f32 %v2050, %v6881
    %v6883 = vpop.f32.mrf.mxu0
    %v6884 = vadd.f32 %v2050, %v6883
    %6885 = vdwg.mxu0
    %6886 = vmatprep.subr.mxu0 0.0
    %6887 = vmatpush1.msra.mxu0 0.0
    %6888 = vmatprep.subr.mxu0 0.0
    %6889 = vmatpush1.msra.mxu0 0.0
    %6890 = vmatprep.subr.mxu0 0.0
    %6891 = vmatpush1.msra.mxu0 0.0
    %6892 = vmatprep.subr.mxu0 0.0
    %6893 = vmatpush1.msra.mxu0 0.0
    %6894 = vmatprep.subr.mxu0 0.0
    %6895 = vmatpush1.msra.mxu0 0.0
    %6896 = vmatprep.subr.mxu0 0.0
    %6897 = vmatpush1.msra.mxu0 0.0
    %6898 = vmatprep.subr.mxu0 0.0
    %6899 = vmatpush1.msra.mxu0 0.0
    %6900 = vmatprep.subr.mxu0 0.0
    %6901 = vmatpush1.msra.mxu0 0.0
    %6902 = vmatprep.subr.mxu0 0.0
    %6903 = vmatpush1.msra.mxu0 0.0
    %6904 = vmatprep.subr.mxu0 0.0
    %6905 = vmatpush1.msra.mxu0 0.0
    %6906 = vmatprep.subr.mxu0 0.0
    %6907 = vmatpush1.msra.mxu0 0.0
    %6908 = vmatprep.subr.mxu0 0.0
    %6909 = vmatpush1.msra.mxu0 0.0
    %6910 = vmatprep.subr.mxu0 0.0
    %6911 = vmatpush1.msra.mxu0 0.0
    %6912 = vmatprep.subr.mxu0 0.0
    %6913 = vmatpush1.msra.mxu0 0.0
    %6914 = vmatprep.subr.mxu0 0.0
    %6915 = vmatpush1.msra.mxu0 0.0
    %v6916 = vand.u32 %v5875, 4294901760
    %v6917 = vsub.f32 %v5875, %v6916
    %v6918 = vand.u32 %v6917, 4294901760
    %v6919 = vsub.f32 %v6917, %v6918
    %v6920 = vand.u32 %v6919, 4294901760
    %6921 = vmatprep.subr.mxu0 %v6920
    %v6922 = vand.u32 %v5874, 4294901760
    %v6923 = vsub.f32 %v5874, %v6922
    %v6924 = vand.u32 %v6923, 4294901760
    %v6925 = vsub.f32 %v6923, %v6924
    %v6926 = vand.u32 %v6925, 4294901760
    %6927 = vmatpush1.msra.mxu0 %v6926
    %6928 = vmatprep.subr.mxu0 0.0
    %6929 = vmatpush2.msra.mxu0 0.0
    %6930 = vmatprep.subr.mxu0 0.0
    %6931 = vmatpush2.msra.mxu0 0.0
    %6932 = vmatprep.subr.mxu0 0.0
    %6933 = vmatpush2.msra.mxu0 0.0
    %6934 = vmatprep.subr.mxu0 0.0
    %6935 = vmatpush2.msra.mxu0 0.0
    %6936 = vmatprep.subr.mxu0 0.0
    %6937 = vmatpush2.msra.mxu0 0.0
    %6938 = vmatprep.subr.mxu0 0.0
    %6939 = vmatpush2.msra.mxu0 0.0
    %6940 = vmatprep.subr.mxu0 0.0
    %6941 = vmatpush2.msra.mxu0 0.0
    %6942 = vmatprep.subr.mxu0 0.0
    %6943 = vmatpush2.msra.mxu0 0.0
    %6944 = vmatprep.subr.mxu0 0.0
    %6945 = vmatpush2.msra.mxu0 0.0
    %6946 = vmatprep.subr.mxu0 0.0
    %6947 = vmatpush2.msra.mxu0 0.0
    %6948 = vmatprep.subr.mxu0 0.0
    %6949 = vmatpush2.msra.mxu0 0.0
    %6950 = vmatprep.subr.mxu0 0.0
    %6951 = vmatpush2.msra.mxu0 0.0
    %6952 = vmatprep.subr.mxu0 0.0
    %6953 = vmatpush2.msra.mxu0 0.0
    %6954 = vmatprep.subr.mxu0 0.0
    %6955 = vmatpush2.msra.mxu0 0.0
    %6956 = vmatprep.subr.mxu0 0.0
    %6957 = vmatpush2.msra.mxu0 0.0
    %6958 = vmatprep.subr.mxu0 0.0
    %6959 = vmatpush2.msra.mxu0 0.0
    %6960 = vmatprep.mubr.f32.mxu0 0.0
    %v6961 = vand.u32 %v2053, 4294901760
    %6962 = vmatmul.mubr.f32.gmra.mxu0 %v6961
    %v6963 = vpop.f32.mrf.mxu0
    %v6964 = vadd.f32 %v6882, %v6963
    %v6965 = vpop.f32.mrf.mxu0
    %v6966 = vadd.f32 %v6884, %v6965
    %6967 = vdwg.mxu0
    %6968 = vmatprep.subr.mxu0 0.0
    %6969 = vmatpush1.msra.mxu0 0.0
    %6970 = vmatprep.subr.mxu0 0.0
    %6971 = vmatpush1.msra.mxu0 0.0
    %6972 = vmatprep.subr.mxu0 0.0
    %6973 = vmatpush1.msra.mxu0 0.0
    %6974 = vmatprep.subr.mxu0 0.0
    %6975 = vmatpush1.msra.mxu0 0.0
    %6976 = vmatprep.subr.mxu0 0.0
    %6977 = vmatpush1.msra.mxu0 0.0
    %6978 = vmatprep.subr.mxu0 0.0
    %6979 = vmatpush1.msra.mxu0 0.0
    %6980 = vmatprep.subr.mxu0 0.0
    %6981 = vmatpush1.msra.mxu0 0.0
    %6982 = vmatprep.subr.mxu0 0.0
    %6983 = vmatpush1.msra.mxu0 0.0
    %6984 = vmatprep.subr.mxu0 0.0
    %6985 = vmatpush1.msra.mxu0 0.0
    %6986 = vmatprep.subr.mxu0 0.0
    %6987 = vmatpush1.msra.mxu0 0.0
    %6988 = vmatprep.subr.mxu0 0.0
    %6989 = vmatpush1.msra.mxu0 0.0
    %6990 = vmatprep.subr.mxu0 0.0
    %6991 = vmatpush1.msra.mxu0 0.0
    %6992 = vmatprep.subr.mxu0 0.0
    %6993 = vmatpush1.msra.mxu0 0.0
    %6994 = vmatprep.subr.mxu0 0.0
    %6995 = vmatpush1.msra.mxu0 0.0
    %6996 = vmatprep.subr.mxu0 0.0
    %6997 = vmatpush1.msra.mxu0 0.0
    %v6998 = vand.u32 %v5875, 4294901760
    %v6999 = vsub.f32 %v5875, %v6998
    %7000 = vmatprep.subr.mxu0 %v6999
    %v7001 = vand.u32 %v5874, 4294901760
    %v7002 = vsub.f32 %v5874, %v7001
    %7003 = vmatpush1.msra.mxu0 %v7002
    %7004 = vmatprep.subr.mxu0 0.0
    %7005 = vmatpush2.msra.mxu0 0.0
    %7006 = vmatprep.subr.mxu0 0.0
    %7007 = vmatpush2.msra.mxu0 0.0
    %7008 = vmatprep.subr.mxu0 0.0
    %7009 = vmatpush2.msra.mxu0 0.0
    %7010 = vmatprep.subr.mxu0 0.0
    %7011 = vmatpush2.msra.mxu0 0.0
    %7012 = vmatprep.subr.mxu0 0.0
    %7013 = vmatpush2.msra.mxu0 0.0
    %7014 = vmatprep.subr.mxu0 0.0
    %7015 = vmatpush2.msra.mxu0 0.0
    %7016 = vmatprep.subr.mxu0 0.0
    %7017 = vmatpush2.msra.mxu0 0.0
    %7018 = vmatprep.subr.mxu0 0.0
    %7019 = vmatpush2.msra.mxu0 0.0
    %7020 = vmatprep.subr.mxu0 0.0
    %7021 = vmatpush2.msra.mxu0 0.0
    %7022 = vmatprep.subr.mxu0 0.0
    %7023 = vmatpush2.msra.mxu0 0.0
    %7024 = vmatprep.subr.mxu0 0.0
    %7025 = vmatpush2.msra.mxu0 0.0
    %7026 = vmatprep.subr.mxu0 0.0
    %7027 = vmatpush2.msra.mxu0 0.0
    %7028 = vmatprep.subr.mxu0 0.0
    %7029 = vmatpush2.msra.mxu0 0.0
    %7030 = vmatprep.subr.mxu0 0.0
    %7031 = vmatpush2.msra.mxu0 0.0
    %7032 = vmatprep.subr.mxu0 0.0
    %7033 = vmatpush2.msra.mxu0 0.0
    %7034 = vmatprep.subr.mxu0 0.0
    %7035 = vmatpush2.msra.mxu0 0.0
    %7036 = vmatprep.mubr.f32.mxu0 0.0
    %v7037 = vand.u32 %v2053, 4294901760
    %v7038 = vsub.f32 %v2053, %v7037
    %7039 = vmatmul.mubr.f32.gmra.mxu0 %v7038
    %v7040 = vpop.f32.mrf.mxu0
    %v7041 = vadd.f32 %v6964, %v7040
    %v7042 = vpop.f32.mrf.mxu0
    %v7043 = vadd.f32 %v6966, %v7042
    %7044 = vdwg.mxu0
    %7045 = vmatprep.subr.mxu0 0.0
    %7046 = vmatpush1.msra.mxu0 0.0
    %7047 = vmatprep.subr.mxu0 0.0
    %7048 = vmatpush1.msra.mxu0 0.0
    %7049 = vmatprep.subr.mxu0 0.0
    %7050 = vmatpush1.msra.mxu0 0.0
    %7051 = vmatprep.subr.mxu0 0.0
    %7052 = vmatpush1.msra.mxu0 0.0
    %7053 = vmatprep.subr.mxu0 0.0
    %7054 = vmatpush1.msra.mxu0 0.0
    %7055 = vmatprep.subr.mxu0 0.0
    %7056 = vmatpush1.msra.mxu0 0.0
    %7057 = vmatprep.subr.mxu0 0.0
    %7058 = vmatpush1.msra.mxu0 0.0
    %7059 = vmatprep.subr.mxu0 0.0
    %7060 = vmatpush1.msra.mxu0 0.0
    %7061 = vmatprep.subr.mxu0 0.0
    %7062 = vmatpush1.msra.mxu0 0.0
    %7063 = vmatprep.subr.mxu0 0.0
    %7064 = vmatpush1.msra.mxu0 0.0
    %7065 = vmatprep.subr.mxu0 0.0
    %7066 = vmatpush1.msra.mxu0 0.0
    %7067 = vmatprep.subr.mxu0 0.0
    %7068 = vmatpush1.msra.mxu0 0.0
    %7069 = vmatprep.subr.mxu0 0.0
    %7070 = vmatpush1.msra.mxu0 0.0
    %7071 = vmatprep.subr.mxu0 0.0
    %7072 = vmatpush1.msra.mxu0 0.0
    %7073 = vmatprep.subr.mxu0 0.0
    %7074 = vmatpush1.msra.mxu0 0.0
    %v7075 = vand.u32 %v5875, 4294901760
    %7076 = vmatprep.subr.mxu0 %v7075
    %v7077 = vand.u32 %v5874, 4294901760
    %7078 = vmatpush1.msra.mxu0 %v7077
    %7079 = vmatprep.subr.mxu0 0.0
    %7080 = vmatpush2.msra.mxu0 0.0
    %7081 = vmatprep.subr.mxu0 0.0
    %7082 = vmatpush2.msra.mxu0 0.0
    %7083 = vmatprep.subr.mxu0 0.0
    %7084 = vmatpush2.msra.mxu0 0.0
    %7085 = vmatprep.subr.mxu0 0.0
    %7086 = vmatpush2.msra.mxu0 0.0
    %7087 = vmatprep.subr.mxu0 0.0
    %7088 = vmatpush2.msra.mxu0 0.0
    %7089 = vmatprep.subr.mxu0 0.0
    %7090 = vmatpush2.msra.mxu0 0.0
    %7091 = vmatprep.subr.mxu0 0.0
    %7092 = vmatpush2.msra.mxu0 0.0
    %7093 = vmatprep.subr.mxu0 0.0
    %7094 = vmatpush2.msra.mxu0 0.0
    %7095 = vmatprep.subr.mxu0 0.0
    %7096 = vmatpush2.msra.mxu0 0.0
    %7097 = vmatprep.subr.mxu0 0.0
    %7098 = vmatpush2.msra.mxu0 0.0
    %7099 = vmatprep.subr.mxu0 0.0
    %7100 = vmatpush2.msra.mxu0 0.0
    %7101 = vmatprep.subr.mxu0 0.0
    %7102 = vmatpush2.msra.mxu0 0.0
    %7103 = vmatprep.subr.mxu0 0.0
    %7104 = vmatpush2.msra.mxu0 0.0
    %7105 = vmatprep.subr.mxu0 0.0
    %7106 = vmatpush2.msra.mxu0 0.0
    %7107 = vmatprep.subr.mxu0 0.0
    %7108 = vmatpush2.msra.mxu0 0.0
    %7109 = vmatprep.subr.mxu0 0.0
    %7110 = vmatpush2.msra.mxu0 0.0
    %7111 = vmatprep.mubr.f32.mxu0 0.0
    %v7112 = vand.u32 %v2053, 4294901760
    %v7113 = vsub.f32 %v2053, %v7112
    %v7114 = vand.u32 %v7113, 4294901760
    %7115 = vmatmul.mubr.f32.gmra.mxu0 %v7114
    %v7116 = vpop.f32.mrf.mxu0
    %v7117 = vadd.f32 %v7041, %v7116
    %v7118 = vpop.f32.mrf.mxu0
    %v7119 = vadd.f32 %v7043, %v7118
    %7120 = vdwg.mxu0
    %7121 = vmatprep.subr.mxu0 0.0
    %7122 = vmatpush1.msra.mxu0 0.0
    %7123 = vmatprep.subr.mxu0 0.0
    %7124 = vmatpush1.msra.mxu0 0.0
    %7125 = vmatprep.subr.mxu0 0.0
    %7126 = vmatpush1.msra.mxu0 0.0
    %7127 = vmatprep.subr.mxu0 0.0
    %7128 = vmatpush1.msra.mxu0 0.0
    %7129 = vmatprep.subr.mxu0 0.0
    %7130 = vmatpush1.msra.mxu0 0.0
    %7131 = vmatprep.subr.mxu0 0.0
    %7132 = vmatpush1.msra.mxu0 0.0
    %7133 = vmatprep.subr.mxu0 0.0
    %7134 = vmatpush1.msra.mxu0 0.0
    %7135 = vmatprep.subr.mxu0 0.0
    %7136 = vmatpush1.msra.mxu0 0.0
    %7137 = vmatprep.subr.mxu0 0.0
    %7138 = vmatpush1.msra.mxu0 0.0
    %7139 = vmatprep.subr.mxu0 0.0
    %7140 = vmatpush1.msra.mxu0 0.0
    %7141 = vmatprep.subr.mxu0 0.0
    %7142 = vmatpush1.msra.mxu0 0.0
    %7143 = vmatprep.subr.mxu0 0.0
    %7144 = vmatpush1.msra.mxu0 0.0
    %7145 = vmatprep.subr.mxu0 0.0
    %7146 = vmatpush1.msra.mxu0 0.0
    %7147 = vmatprep.subr.mxu0 0.0
    %7148 = vmatpush1.msra.mxu0 0.0
    %7149 = vmatprep.subr.mxu0 0.0
    %7150 = vmatpush1.msra.mxu0 0.0
    %v7151 = vand.u32 %v5875, 4294901760
    %v7152 = vsub.f32 %v5875, %v7151
    %v7153 = vand.u32 %v7152, 4294901760
    %7154 = vmatprep.subr.mxu0 %v7153
    %v7155 = vand.u32 %v5874, 4294901760
    %v7156 = vsub.f32 %v5874, %v7155
    %v7157 = vand.u32 %v7156, 4294901760
    %7158 = vmatpush1.msra.mxu0 %v7157
    %7159 = vmatprep.subr.mxu0 0.0
    %7160 = vmatpush2.msra.mxu0 0.0
    %7161 = vmatprep.subr.mxu0 0.0
    %7162 = vmatpush2.msra.mxu0 0.0
    %7163 = vmatprep.subr.mxu0 0.0
    %7164 = vmatpush2.msra.mxu0 0.0
    %7165 = vmatprep.subr.mxu0 0.0
    %7166 = vmatpush2.msra.mxu0 0.0
    %7167 = vmatprep.subr.mxu0 0.0
    %7168 = vmatpush2.msra.mxu0 0.0
    %7169 = vmatprep.subr.mxu0 0.0
    %7170 = vmatpush2.msra.mxu0 0.0
    %7171 = vmatprep.subr.mxu0 0.0
    %7172 = vmatpush2.msra.mxu0 0.0
    %7173 = vmatprep.subr.mxu0 0.0
    %7174 = vmatpush2.msra.mxu0 0.0
    %7175 = vmatprep.subr.mxu0 0.0
    %7176 = vmatpush2.msra.mxu0 0.0
    %7177 = vmatprep.subr.mxu0 0.0
    %7178 = vmatpush2.msra.mxu0 0.0
    %7179 = vmatprep.subr.mxu0 0.0
    %7180 = vmatpush2.msra.mxu0 0.0
    %7181 = vmatprep.subr.mxu0 0.0
    %7182 = vmatpush2.msra.mxu0 0.0
    %7183 = vmatprep.subr.mxu0 0.0
    %7184 = vmatpush2.msra.mxu0 0.0
    %7185 = vmatprep.subr.mxu0 0.0
    %7186 = vmatpush2.msra.mxu0 0.0
    %7187 = vmatprep.subr.mxu0 0.0
    %7188 = vmatpush2.msra.mxu0 0.0
    %7189 = vmatprep.subr.mxu0 0.0
    %7190 = vmatpush2.msra.mxu0 0.0
    %7191 = vmatprep.mubr.f32.mxu0 0.0
    %v7192 = vand.u32 %v2053, 4294901760
    %7193 = vmatmul.mubr.f32.gmra.mxu0 %v7192
    %v7194 = vpop.f32.mrf.mxu0
    %v7195 = vadd.f32 %v7117, %v7194
    %v7196 = vpop.f32.mrf.mxu0
    %v7197 = vadd.f32 %v7119, %v7196
    %7198 = vdwg.mxu0
    %7199 = vmatprep.subr.mxu0 0.0
    %7200 = vmatpush1.msra.mxu0 0.0
    %7201 = vmatprep.subr.mxu0 0.0
    %7202 = vmatpush1.msra.mxu0 0.0
    %7203 = vmatprep.subr.mxu0 0.0
    %7204 = vmatpush1.msra.mxu0 0.0
    %7205 = vmatprep.subr.mxu0 0.0
    %7206 = vmatpush1.msra.mxu0 0.0
    %7207 = vmatprep.subr.mxu0 0.0
    %7208 = vmatpush1.msra.mxu0 0.0
    %7209 = vmatprep.subr.mxu0 0.0
    %7210 = vmatpush1.msra.mxu0 0.0
    %7211 = vmatprep.subr.mxu0 0.0
    %7212 = vmatpush1.msra.mxu0 0.0
    %7213 = vmatprep.subr.mxu0 0.0
    %7214 = vmatpush1.msra.mxu0 0.0
    %7215 = vmatprep.subr.mxu0 0.0
    %7216 = vmatpush1.msra.mxu0 0.0
    %7217 = vmatprep.subr.mxu0 0.0
    %7218 = vmatpush1.msra.mxu0 0.0
    %7219 = vmatprep.subr.mxu0 0.0
    %7220 = vmatpush1.msra.mxu0 0.0
    %7221 = vmatprep.subr.mxu0 0.0
    %7222 = vmatpush1.msra.mxu0 0.0
    %7223 = vmatprep.subr.mxu0 0.0
    %7224 = vmatpush1.msra.mxu0 0.0
    %7225 = vmatprep.subr.mxu0 0.0
    %7226 = vmatpush1.msra.mxu0 0.0
    %7227 = vmatprep.subr.mxu0 0.0
    %7228 = vmatpush1.msra.mxu0 0.0
    %v7229 = vand.u32 %v5875, 4294901760
    %7230 = vmatprep.subr.mxu0 %v7229
    %v7231 = vand.u32 %v5874, 4294901760
    %7232 = vmatpush1.msra.mxu0 %v7231
    %7233 = vmatprep.subr.mxu0 0.0
    %7234 = vmatpush2.msra.mxu0 0.0
    %7235 = vmatprep.subr.mxu0 0.0
    %7236 = vmatpush2.msra.mxu0 0.0
    %7237 = vmatprep.subr.mxu0 0.0
    %7238 = vmatpush2.msra.mxu0 0.0
    %7239 = vmatprep.subr.mxu0 0.0
    %7240 = vmatpush2.msra.mxu0 0.0
    %7241 = vmatprep.subr.mxu0 0.0
    %7242 = vmatpush2.msra.mxu0 0.0
    %7243 = vmatprep.subr.mxu0 0.0
    %7244 = vmatpush2.msra.mxu0 0.0
    %7245 = vmatprep.subr.mxu0 0.0
    %7246 = vmatpush2.msra.mxu0 0.0
    %7247 = vmatprep.subr.mxu0 0.0
    %7248 = vmatpush2.msra.mxu0 0.0
    %7249 = vmatprep.subr.mxu0 0.0
    %7250 = vmatpush2.msra.mxu0 0.0
    %7251 = vmatprep.subr.mxu0 0.0
    %7252 = vmatpush2.msra.mxu0 0.0
    %7253 = vmatprep.subr.mxu0 0.0
    %7254 = vmatpush2.msra.mxu0 0.0
    %7255 = vmatprep.subr.mxu0 0.0
    %7256 = vmatpush2.msra.mxu0 0.0
    %7257 = vmatprep.subr.mxu0 0.0
    %7258 = vmatpush2.msra.mxu0 0.0
    %7259 = vmatprep.subr.mxu0 0.0
    %7260 = vmatpush2.msra.mxu0 0.0
    %7261 = vmatprep.subr.mxu0 0.0
    %7262 = vmatpush2.msra.mxu0 0.0
    %7263 = vmatprep.subr.mxu0 0.0
    %7264 = vmatpush2.msra.mxu0 0.0
    %7265 = vmatprep.mubr.f32.mxu0 0.0
    %v7266 = vand.u32 %v2053, 4294901760
    %7267 = vmatmul.mubr.f32.gmra.mxu0 %v7266
    %v7268 = vpop.f32.mrf.mxu0
    %v7269 = vadd.f32 %v7195, %v7268
    %v7270 = vpop.f32.mrf.mxu0
    %v7271 = vadd.f32 %v7197, %v7270
    %7272 = vdwg.mxu0
    %7273 = vmatprep.subr.mxu0 0.0
    %7274 = vmatpush1.msra.mxu0 0.0
    %7275 = vmatprep.subr.mxu0 0.0
    %7276 = vmatpush1.msra.mxu0 0.0
    %7277 = vmatprep.subr.mxu0 0.0
    %7278 = vmatpush1.msra.mxu0 0.0
    %7279 = vmatprep.subr.mxu0 0.0
    %7280 = vmatpush1.msra.mxu0 0.0
    %7281 = vmatprep.subr.mxu0 0.0
    %7282 = vmatpush1.msra.mxu0 0.0
    %7283 = vmatprep.subr.mxu0 0.0
    %7284 = vmatpush1.msra.mxu0 0.0
    %7285 = vmatprep.subr.mxu0 0.0
    %7286 = vmatpush1.msra.mxu0 0.0
    %7287 = vmatprep.subr.mxu0 0.0
    %7288 = vmatpush1.msra.mxu0 0.0
    %7289 = vmatprep.subr.mxu0 0.0
    %7290 = vmatpush1.msra.mxu0 0.0
    %7291 = vmatprep.subr.mxu0 0.0
    %7292 = vmatpush1.msra.mxu0 0.0
    %7293 = vmatprep.subr.mxu0 0.0
    %7294 = vmatpush1.msra.mxu0 0.0
    %7295 = vmatprep.subr.mxu0 0.0
    %7296 = vmatpush1.msra.mxu0 0.0
    %7297 = vmatprep.subr.mxu0 0.0
    %7298 = vmatpush1.msra.mxu0 0.0
    %7299 = vmatprep.subr.mxu0 0.0
    %7300 = vmatpush1.msra.mxu0 0.0
    %7301 = vmatprep.subr.mxu0 0.0
    %7302 = vmatpush1.msra.mxu0 0.0
    %v7303 = vand.u32 %v5877, 4294901760
    %7304 = vmatprep.subr.mxu0 %v7303
    %v7305 = vand.u32 %v5876, 4294901760
    %7306 = vmatpush1.msra.mxu0 %v7305
    %7307 = vmatprep.subr.mxu0 0.0
    %7308 = vmatpush2.msra.mxu0 0.0
    %7309 = vmatprep.subr.mxu0 0.0
    %7310 = vmatpush2.msra.mxu0 0.0
    %7311 = vmatprep.subr.mxu0 0.0
    %7312 = vmatpush2.msra.mxu0 0.0
    %7313 = vmatprep.subr.mxu0 0.0
    %7314 = vmatpush2.msra.mxu0 0.0
    %7315 = vmatprep.subr.mxu0 0.0
    %7316 = vmatpush2.msra.mxu0 0.0
    %7317 = vmatprep.subr.mxu0 0.0
    %7318 = vmatpush2.msra.mxu0 0.0
    %7319 = vmatprep.subr.mxu0 0.0
    %7320 = vmatpush2.msra.mxu0 0.0
    %7321 = vmatprep.subr.mxu0 0.0
    %7322 = vmatpush2.msra.mxu0 0.0
    %7323 = vmatprep.subr.mxu0 0.0
    %7324 = vmatpush2.msra.mxu0 0.0
    %7325 = vmatprep.subr.mxu0 0.0
    %7326 = vmatpush2.msra.mxu0 0.0
    %7327 = vmatprep.subr.mxu0 0.0
    %7328 = vmatpush2.msra.mxu0 0.0
    %7329 = vmatprep.subr.mxu0 0.0
    %7330 = vmatpush2.msra.mxu0 0.0
    %7331 = vmatprep.subr.mxu0 0.0
    %7332 = vmatpush2.msra.mxu0 0.0
    %7333 = vmatprep.subr.mxu0 0.0
    %7334 = vmatpush2.msra.mxu0 0.0
    %7335 = vmatprep.subr.mxu0 0.0
    %7336 = vmatpush2.msra.mxu0 0.0
    %7337 = vmatprep.subr.mxu0 0.0
    %7338 = vmatpush2.msra.mxu0 0.0
    %7339 = vmatprep.mubr.f32.mxu0 0.0
    %v7340 = vand.u32 %v2053, 4294901760
    %v7341 = vsub.f32 %v2053, %v7340
    %v7342 = vand.u32 %v7341, 4294901760
    %v7343 = vsub.f32 %v7341, %v7342
    %v7344 = vand.u32 %v7343, 4294901760
    %7345 = vmatmul.mubr.f32.gmra.mxu0 %v7344
    %v7346 = vpop.f32.mrf.mxu0
    %v7347 = vadd.f32 %v2050, %v7346
    %v7348 = vpop.f32.mrf.mxu0
    %v7349 = vadd.f32 %v2050, %v7348
    %7350 = vdwg.mxu0
    %7351 = vmatprep.subr.mxu0 0.0
    %7352 = vmatpush1.msra.mxu0 0.0
    %7353 = vmatprep.subr.mxu0 0.0
    %7354 = vmatpush1.msra.mxu0 0.0
    %7355 = vmatprep.subr.mxu0 0.0
    %7356 = vmatpush1.msra.mxu0 0.0
    %7357 = vmatprep.subr.mxu0 0.0
    %7358 = vmatpush1.msra.mxu0 0.0
    %7359 = vmatprep.subr.mxu0 0.0
    %7360 = vmatpush1.msra.mxu0 0.0
    %7361 = vmatprep.subr.mxu0 0.0
    %7362 = vmatpush1.msra.mxu0 0.0
    %7363 = vmatprep.subr.mxu0 0.0
    %7364 = vmatpush1.msra.mxu0 0.0
    %7365 = vmatprep.subr.mxu0 0.0
    %7366 = vmatpush1.msra.mxu0 0.0
    %7367 = vmatprep.subr.mxu0 0.0
    %7368 = vmatpush1.msra.mxu0 0.0
    %7369 = vmatprep.subr.mxu0 0.0
    %7370 = vmatpush1.msra.mxu0 0.0
    %7371 = vmatprep.subr.mxu0 0.0
    %7372 = vmatpush1.msra.mxu0 0.0
    %7373 = vmatprep.subr.mxu0 0.0
    %7374 = vmatpush1.msra.mxu0 0.0
    %7375 = vmatprep.subr.mxu0 0.0
    %7376 = vmatpush1.msra.mxu0 0.0
    %7377 = vmatprep.subr.mxu0 0.0
    %7378 = vmatpush1.msra.mxu0 0.0
    %7379 = vmatprep.subr.mxu0 0.0
    %7380 = vmatpush1.msra.mxu0 0.0
    %v7381 = vand.u32 %v5877, 4294901760
    %v7382 = vsub.f32 %v5877, %v7381
    %v7383 = vand.u32 %v7382, 4294901760
    %v7384 = vsub.f32 %v7382, %v7383
    %v7385 = vand.u32 %v7384, 4294901760
    %7386 = vmatprep.subr.mxu0 %v7385
    %v7387 = vand.u32 %v5876, 4294901760
    %v7388 = vsub.f32 %v5876, %v7387
    %v7389 = vand.u32 %v7388, 4294901760
    %v7390 = vsub.f32 %v7388, %v7389
    %v7391 = vand.u32 %v7390, 4294901760
    %7392 = vmatpush1.msra.mxu0 %v7391
    %7393 = vmatprep.subr.mxu0 0.0
    %7394 = vmatpush2.msra.mxu0 0.0
    %7395 = vmatprep.subr.mxu0 0.0
    %7396 = vmatpush2.msra.mxu0 0.0
    %7397 = vmatprep.subr.mxu0 0.0
    %7398 = vmatpush2.msra.mxu0 0.0
    %7399 = vmatprep.subr.mxu0 0.0
    %7400 = vmatpush2.msra.mxu0 0.0
    %7401 = vmatprep.subr.mxu0 0.0
    %7402 = vmatpush2.msra.mxu0 0.0
    %7403 = vmatprep.subr.mxu0 0.0
    %7404 = vmatpush2.msra.mxu0 0.0
    %7405 = vmatprep.subr.mxu0 0.0
    %7406 = vmatpush2.msra.mxu0 0.0
    %7407 = vmatprep.subr.mxu0 0.0
    %7408 = vmatpush2.msra.mxu0 0.0
    %7409 = vmatprep.subr.mxu0 0.0
    %7410 = vmatpush2.msra.mxu0 0.0
    %7411 = vmatprep.subr.mxu0 0.0
    %7412 = vmatpush2.msra.mxu0 0.0
    %7413 = vmatprep.subr.mxu0 0.0
    %7414 = vmatpush2.msra.mxu0 0.0
    %7415 = vmatprep.subr.mxu0 0.0
    %7416 = vmatpush2.msra.mxu0 0.0
    %7417 = vmatprep.subr.mxu0 0.0
    %7418 = vmatpush2.msra.mxu0 0.0
    %7419 = vmatprep.subr.mxu0 0.0
    %7420 = vmatpush2.msra.mxu0 0.0
    %7421 = vmatprep.subr.mxu0 0.0
    %7422 = vmatpush2.msra.mxu0 0.0
    %7423 = vmatprep.subr.mxu0 0.0
    %7424 = vmatpush2.msra.mxu0 0.0
    %7425 = vmatprep.mubr.f32.mxu0 0.0
    %v7426 = vand.u32 %v2053, 4294901760
    %7427 = vmatmul.mubr.f32.gmra.mxu0 %v7426
    %v7428 = vpop.f32.mrf.mxu0
    %v7429 = vadd.f32 %v7347, %v7428
    %v7430 = vpop.f32.mrf.mxu0
    %v7431 = vadd.f32 %v7349, %v7430
    %7432 = vdwg.mxu0
    %7433 = vmatprep.subr.mxu0 0.0
    %7434 = vmatpush1.msra.mxu0 0.0
    %7435 = vmatprep.subr.mxu0 0.0
    %7436 = vmatpush1.msra.mxu0 0.0
    %7437 = vmatprep.subr.mxu0 0.0
    %7438 = vmatpush1.msra.mxu0 0.0
    %7439 = vmatprep.subr.mxu0 0.0
    %7440 = vmatpush1.msra.mxu0 0.0
    %7441 = vmatprep.subr.mxu0 0.0
    %7442 = vmatpush1.msra.mxu0 0.0
    %7443 = vmatprep.subr.mxu0 0.0
    %7444 = vmatpush1.msra.mxu0 0.0
    %7445 = vmatprep.subr.mxu0 0.0
    %7446 = vmatpush1.msra.mxu0 0.0
    %7447 = vmatprep.subr.mxu0 0.0
    %7448 = vmatpush1.msra.mxu0 0.0
    %7449 = vmatprep.subr.mxu0 0.0
    %7450 = vmatpush1.msra.mxu0 0.0
    %7451 = vmatprep.subr.mxu0 0.0
    %7452 = vmatpush1.msra.mxu0 0.0
    %7453 = vmatprep.subr.mxu0 0.0
    %7454 = vmatpush1.msra.mxu0 0.0
    %7455 = vmatprep.subr.mxu0 0.0
    %7456 = vmatpush1.msra.mxu0 0.0
    %7457 = vmatprep.subr.mxu0 0.0
    %7458 = vmatpush1.msra.mxu0 0.0
    %7459 = vmatprep.subr.mxu0 0.0
    %7460 = vmatpush1.msra.mxu0 0.0
    %7461 = vmatprep.subr.mxu0 0.0
    %7462 = vmatpush1.msra.mxu0 0.0
    %v7463 = vand.u32 %v5877, 4294901760
    %v7464 = vsub.f32 %v5877, %v7463
    %7465 = vmatprep.subr.mxu0 %v7464
    %v7466 = vand.u32 %v5876, 4294901760
    %v7467 = vsub.f32 %v5876, %v7466
    %7468 = vmatpush1.msra.mxu0 %v7467
    %7469 = vmatprep.subr.mxu0 0.0
    %7470 = vmatpush2.msra.mxu0 0.0
    %7471 = vmatprep.subr.mxu0 0.0
    %7472 = vmatpush2.msra.mxu0 0.0
    %7473 = vmatprep.subr.mxu0 0.0
    %7474 = vmatpush2.msra.mxu0 0.0
    %7475 = vmatprep.subr.mxu0 0.0
    %7476 = vmatpush2.msra.mxu0 0.0
    %7477 = vmatprep.subr.mxu0 0.0
    %7478 = vmatpush2.msra.mxu0 0.0
    %7479 = vmatprep.subr.mxu0 0.0
    %7480 = vmatpush2.msra.mxu0 0.0
    %7481 = vmatprep.subr.mxu0 0.0
    %7482 = vmatpush2.msra.mxu0 0.0
    %7483 = vmatprep.subr.mxu0 0.0
    %7484 = vmatpush2.msra.mxu0 0.0
    %7485 = vmatprep.subr.mxu0 0.0
    %7486 = vmatpush2.msra.mxu0 0.0
    %7487 = vmatprep.subr.mxu0 0.0
    %7488 = vmatpush2.msra.mxu0 0.0
    %7489 = vmatprep.subr.mxu0 0.0
    %7490 = vmatpush2.msra.mxu0 0.0
    %7491 = vmatprep.subr.mxu0 0.0
    %7492 = vmatpush2.msra.mxu0 0.0
    %7493 = vmatprep.subr.mxu0 0.0
    %7494 = vmatpush2.msra.mxu0 0.0
    %7495 = vmatprep.subr.mxu0 0.0
    %7496 = vmatpush2.msra.mxu0 0.0
    %7497 = vmatprep.subr.mxu0 0.0
    %7498 = vmatpush2.msra.mxu0 0.0
    %7499 = vmatprep.subr.mxu0 0.0
    %7500 = vmatpush2.msra.mxu0 0.0
    %7501 = vmatprep.mubr.f32.mxu0 0.0
    %v7502 = vand.u32 %v2053, 4294901760
    %v7503 = vsub.f32 %v2053, %v7502
    %7504 = vmatmul.mubr.f32.gmra.mxu0 %v7503
    %v7505 = vpop.f32.mrf.mxu0
    %v7506 = vadd.f32 %v7429, %v7505
    %v7507 = vpop.f32.mrf.mxu0
    %v7508 = vadd.f32 %v7431, %v7507
    %7509 = vdwg.mxu0
    %7510 = vmatprep.subr.mxu0 0.0
    %7511 = vmatpush1.msra.mxu0 0.0
    %7512 = vmatprep.subr.mxu0 0.0
    %7513 = vmatpush1.msra.mxu0 0.0
    %7514 = vmatprep.subr.mxu0 0.0
    %7515 = vmatpush1.msra.mxu0 0.0
    %7516 = vmatprep.subr.mxu0 0.0
    %7517 = vmatpush1.msra.mxu0 0.0
    %7518 = vmatprep.subr.mxu0 0.0
    %7519 = vmatpush1.msra.mxu0 0.0
    %7520 = vmatprep.subr.mxu0 0.0
    %7521 = vmatpush1.msra.mxu0 0.0
    %7522 = vmatprep.subr.mxu0 0.0
    %7523 = vmatpush1.msra.mxu0 0.0
    %7524 = vmatprep.subr.mxu0 0.0
    %7525 = vmatpush1.msra.mxu0 0.0
    %7526 = vmatprep.subr.mxu0 0.0
    %7527 = vmatpush1.msra.mxu0 0.0
    %7528 = vmatprep.subr.mxu0 0.0
    %7529 = vmatpush1.msra.mxu0 0.0
    %7530 = vmatprep.subr.mxu0 0.0
    %7531 = vmatpush1.msra.mxu0 0.0
    %7532 = vmatprep.subr.mxu0 0.0
    %7533 = vmatpush1.msra.mxu0 0.0
    %7534 = vmatprep.subr.mxu0 0.0
    %7535 = vmatpush1.msra.mxu0 0.0
    %7536 = vmatprep.subr.mxu0 0.0
    %7537 = vmatpush1.msra.mxu0 0.0
    %7538 = vmatprep.subr.mxu0 0.0
    %7539 = vmatpush1.msra.mxu0 0.0
    %v7540 = vand.u32 %v5877, 4294901760
    %7541 = vmatprep.subr.mxu0 %v7540
    %v7542 = vand.u32 %v5876, 4294901760
    %7543 = vmatpush1.msra.mxu0 %v7542
    %7544 = vmatprep.subr.mxu0 0.0
    %7545 = vmatpush2.msra.mxu0 0.0
    %7546 = vmatprep.subr.mxu0 0.0
    %7547 = vmatpush2.msra.mxu0 0.0
    %7548 = vmatprep.subr.mxu0 0.0
    %7549 = vmatpush2.msra.mxu0 0.0
    %7550 = vmatprep.subr.mxu0 0.0
    %7551 = vmatpush2.msra.mxu0 0.0
    %7552 = vmatprep.subr.mxu0 0.0
    %7553 = vmatpush2.msra.mxu0 0.0
    %7554 = vmatprep.subr.mxu0 0.0
    %7555 = vmatpush2.msra.mxu0 0.0
    %7556 = vmatprep.subr.mxu0 0.0
    %7557 = vmatpush2.msra.mxu0 0.0
    %7558 = vmatprep.subr.mxu0 0.0
    %7559 = vmatpush2.msra.mxu0 0.0
    %7560 = vmatprep.subr.mxu0 0.0
    %7561 = vmatpush2.msra.mxu0 0.0
    %7562 = vmatprep.subr.mxu0 0.0
    %7563 = vmatpush2.msra.mxu0 0.0
    %7564 = vmatprep.subr.mxu0 0.0
    %7565 = vmatpush2.msra.mxu0 0.0
    %7566 = vmatprep.subr.mxu0 0.0
    %7567 = vmatpush2.msra.mxu0 0.0
    %7568 = vmatprep.subr.mxu0 0.0
    %7569 = vmatpush2.msra.mxu0 0.0
    %7570 = vmatprep.subr.mxu0 0.0
    %7571 = vmatpush2.msra.mxu0 0.0
    %7572 = vmatprep.subr.mxu0 0.0
    %7573 = vmatpush2.msra.mxu0 0.0
    %7574 = vmatprep.subr.mxu0 0.0
    %7575 = vmatpush2.msra.mxu0 0.0
    %7576 = vmatprep.mubr.f32.mxu0 0.0
    %v7577 = vand.u32 %v2053, 4294901760
    %v7578 = vsub.f32 %v2053, %v7577
    %v7579 = vand.u32 %v7578, 4294901760
    %7580 = vmatmul.mubr.f32.gmra.mxu0 %v7579
    %v7581 = vpop.f32.mrf.mxu0
    %v7582 = vadd.f32 %v7506, %v7581
    %v7583 = vpop.f32.mrf.mxu0
    %v7584 = vadd.f32 %v7508, %v7583
    %7585 = vdwg.mxu0
    %7586 = vmatprep.subr.mxu0 0.0
    %7587 = vmatpush1.msra.mxu0 0.0
    %7588 = vmatprep.subr.mxu0 0.0
    %7589 = vmatpush1.msra.mxu0 0.0
    %7590 = vmatprep.subr.mxu0 0.0
    %7591 = vmatpush1.msra.mxu0 0.0
    %7592 = vmatprep.subr.mxu0 0.0
    %7593 = vmatpush1.msra.mxu0 0.0
    %7594 = vmatprep.subr.mxu0 0.0
    %7595 = vmatpush1.msra.mxu0 0.0
    %7596 = vmatprep.subr.mxu0 0.0
    %7597 = vmatpush1.msra.mxu0 0.0
    %7598 = vmatprep.subr.mxu0 0.0
    %7599 = vmatpush1.msra.mxu0 0.0
    %7600 = vmatprep.subr.mxu0 0.0
    %7601 = vmatpush1.msra.mxu0 0.0
    %7602 = vmatprep.subr.mxu0 0.0
    %7603 = vmatpush1.msra.mxu0 0.0
    %7604 = vmatprep.subr.mxu0 0.0
    %7605 = vmatpush1.msra.mxu0 0.0
    %7606 = vmatprep.subr.mxu0 0.0
    %7607 = vmatpush1.msra.mxu0 0.0
    %7608 = vmatprep.subr.mxu0 0.0
    %7609 = vmatpush1.msra.mxu0 0.0
    %7610 = vmatprep.subr.mxu0 0.0
    %7611 = vmatpush1.msra.mxu0 0.0
    %7612 = vmatprep.subr.mxu0 0.0
    %7613 = vmatpush1.msra.mxu0 0.0
    %7614 = vmatprep.subr.mxu0 0.0
    %7615 = vmatpush1.msra.mxu0 0.0
    %v7616 = vand.u32 %v5877, 4294901760
    %v7617 = vsub.f32 %v5877, %v7616
    %v7618 = vand.u32 %v7617, 4294901760
    %7619 = vmatprep.subr.mxu0 %v7618
    %v7620 = vand.u32 %v5876, 4294901760
    %v7621 = vsub.f32 %v5876, %v7620
    %v7622 = vand.u32 %v7621, 4294901760
    %7623 = vmatpush1.msra.mxu0 %v7622
    %7624 = vmatprep.subr.mxu0 0.0
    %7625 = vmatpush2.msra.mxu0 0.0
    %7626 = vmatprep.subr.mxu0 0.0
    %7627 = vmatpush2.msra.mxu0 0.0
    %7628 = vmatprep.subr.mxu0 0.0
    %7629 = vmatpush2.msra.mxu0 0.0
    %7630 = vmatprep.subr.mxu0 0.0
    %7631 = vmatpush2.msra.mxu0 0.0
    %7632 = vmatprep.subr.mxu0 0.0
    %7633 = vmatpush2.msra.mxu0 0.0
    %7634 = vmatprep.subr.mxu0 0.0
    %7635 = vmatpush2.msra.mxu0 0.0
    %7636 = vmatprep.subr.mxu0 0.0
    %7637 = vmatpush2.msra.mxu0 0.0
    %7638 = vmatprep.subr.mxu0 0.0
    %7639 = vmatpush2.msra.mxu0 0.0
    %7640 = vmatprep.subr.mxu0 0.0
    %7641 = vmatpush2.msra.mxu0 0.0
    %7642 = vmatprep.subr.mxu0 0.0
    %7643 = vmatpush2.msra.mxu0 0.0
    %7644 = vmatprep.subr.mxu0 0.0
    %7645 = vmatpush2.msra.mxu0 0.0
    %7646 = vmatprep.subr.mxu0 0.0
    %7647 = vmatpush2.msra.mxu0 0.0
    %7648 = vmatprep.subr.mxu0 0.0
    %7649 = vmatpush2.msra.mxu0 0.0
    %7650 = vmatprep.subr.mxu0 0.0
    %7651 = vmatpush2.msra.mxu0 0.0
    %7652 = vmatprep.subr.mxu0 0.0
    %7653 = vmatpush2.msra.mxu0 0.0
    %7654 = vmatprep.subr.mxu0 0.0
    %7655 = vmatpush2.msra.mxu0 0.0
    %7656 = vmatprep.mubr.f32.mxu0 0.0
    %v7657 = vand.u32 %v2053, 4294901760
    %7658 = vmatmul.mubr.f32.gmra.mxu0 %v7657
    %v7659 = vpop.f32.mrf.mxu0
    %v7660 = vadd.f32 %v7582, %v7659
    %v7661 = vpop.f32.mrf.mxu0
    %v7662 = vadd.f32 %v7584, %v7661
    %7663 = vdwg.mxu0
    %7664 = vmatprep.subr.mxu0 0.0
    %7665 = vmatpush1.msra.mxu0 0.0
    %7666 = vmatprep.subr.mxu0 0.0
    %7667 = vmatpush1.msra.mxu0 0.0
    %7668 = vmatprep.subr.mxu0 0.0
    %7669 = vmatpush1.msra.mxu0 0.0
    %7670 = vmatprep.subr.mxu0 0.0
    %7671 = vmatpush1.msra.mxu0 0.0
    %7672 = vmatprep.subr.mxu0 0.0
    %7673 = vmatpush1.msra.mxu0 0.0
    %7674 = vmatprep.subr.mxu0 0.0
    %7675 = vmatpush1.msra.mxu0 0.0
    %7676 = vmatprep.subr.mxu0 0.0
    %7677 = vmatpush1.msra.mxu0 0.0
    %7678 = vmatprep.subr.mxu0 0.0
    %7679 = vmatpush1.msra.mxu0 0.0
    %7680 = vmatprep.subr.mxu0 0.0
    %7681 = vmatpush1.msra.mxu0 0.0
    %7682 = vmatprep.subr.mxu0 0.0
    %7683 = vmatpush1.msra.mxu0 0.0
    %7684 = vmatprep.subr.mxu0 0.0
    %7685 = vmatpush1.msra.mxu0 0.0
    %7686 = vmatprep.subr.mxu0 0.0
    %7687 = vmatpush1.msra.mxu0 0.0
    %7688 = vmatprep.subr.mxu0 0.0
    %7689 = vmatpush1.msra.mxu0 0.0
    %7690 = vmatprep.subr.mxu0 0.0
    %7691 = vmatpush1.msra.mxu0 0.0
    %7692 = vmatprep.subr.mxu0 0.0
    %7693 = vmatpush1.msra.mxu0 0.0
    %v7694 = vand.u32 %v5877, 4294901760
    %7695 = vmatprep.subr.mxu0 %v7694
    %v7696 = vand.u32 %v5876, 4294901760
    %7697 = vmatpush1.msra.mxu0 %v7696
    %7698 = vmatprep.subr.mxu0 0.0
    %7699 = vmatpush2.msra.mxu0 0.0
    %7700 = vmatprep.subr.mxu0 0.0
    %7701 = vmatpush2.msra.mxu0 0.0
    %7702 = vmatprep.subr.mxu0 0.0
    %7703 = vmatpush2.msra.mxu0 0.0
    %7704 = vmatprep.subr.mxu0 0.0
    %7705 = vmatpush2.msra.mxu0 0.0
    %7706 = vmatprep.subr.mxu0 0.0
    %7707 = vmatpush2.msra.mxu0 0.0
    %7708 = vmatprep.subr.mxu0 0.0
    %7709 = vmatpush2.msra.mxu0 0.0
    %7710 = vmatprep.subr.mxu0 0.0
    %7711 = vmatpush2.msra.mxu0 0.0
    %7712 = vmatprep.subr.mxu0 0.0
    %7713 = vmatpush2.msra.mxu0 0.0
    %7714 = vmatprep.subr.mxu0 0.0
    %7715 = vmatpush2.msra.mxu0 0.0
    %7716 = vmatprep.subr.mxu0 0.0
    %7717 = vmatpush2.msra.mxu0 0.0
    %7718 = vmatprep.subr.mxu0 0.0
    %7719 = vmatpush2.msra.mxu0 0.0
    %7720 = vmatprep.subr.mxu0 0.0
    %7721 = vmatpush2.msra.mxu0 0.0
    %7722 = vmatprep.subr.mxu0 0.0
    %7723 = vmatpush2.msra.mxu0 0.0
    %7724 = vmatprep.subr.mxu0 0.0
    %7725 = vmatpush2.msra.mxu0 0.0
    %7726 = vmatprep.subr.mxu0 0.0
    %7727 = vmatpush2.msra.mxu0 0.0
    %7728 = vmatprep.subr.mxu0 0.0
    %7729 = vmatpush2.msra.mxu0 0.0
    %7730 = vmatprep.mubr.f32.mxu0 0.0
    %v7731 = vand.u32 %v2053, 4294901760
    %7732 = vmatmul.mubr.f32.gmra.mxu0 %v7731
    %v7733 = vpop.f32.mrf.mxu0
    %v7734 = vadd.f32 %v7660, %v7733
    %v7735 = vpop.f32.mrf.mxu0
    %v7736 = vadd.f32 %v7662, %v7735
    %7737 = vdwg.mxu0
    %s7738 = scalar_lea.vmem [#allocation8], 64
    %7739 = vst [vmem:[%s7738] sm:$0xff] %v6339
    %7740 = vst [vmem:[%s7738 + $0x8] sm:$0xff] %v6341
    %7741 = vst [vmem:[%s7738 + $0x10] sm:$0xff] %v6804
    %7742 = vst [vmem:[%s7738 + $0x18] sm:$0xff] %v6806
    %7743 = vst [vmem:[%s7738 + $0x20] sm:$0xff] %v7269
    %7744 = vst [vmem:[%s7738 + $0x28] sm:$0xff] %v7271
    %7745 = vst [vmem:[%s7738 + $0x30] sm:$0xff] %v7734
    %7746 = vst [vmem:[%s7738 + $0x38] sm:$0xff] %v7736
    // Predicated region
    $region42: #{tpu_custom_call.1} parent=1 // pred_check
      _
    $region43: #{tpu_custom_call.1} parent=1 // pred_check_branch
      %7748 = sbr.rel (0) target = $region45
    $region44: #{tpu_custom_call.1} parent=1 // pred_region
      %s7750 = ssub.s32 2048, 2048
      %7751 = vsyncadd [#allocation4], %s7750
      %s7752 = sshll.u32 [#allocation8], 4
      %s7753 = int_to_ptr.vmem [resolvable:$true] %s7752
      %7758 = dma.vmem_to_hbm [thread:$0]  %s7753, 2048, %s7, [#allocation4], 1024, 1024, 64
    $region45: #{tpu_custom_call.1} parent=1 // pred_fallthru
      _
    // Predicated region
    $region46: #{tpu_custom_call.1} parent=1 // pred_check
      _
    $region47: #{tpu_custom_call.1} parent=1 // pred_check_branch
      %7760 = sbr.rel (0) target = $region49
    $region48: #{tpu_custom_call.1} parent=1 // pred_region
      %7761 = dma.done [#allocation4], 2048
    $region49: #{tpu_custom_call.1} parent=1 // pred_fallthru
      _
    %7762 = vsyncpa [#allocation3], 1
    %7763 = vsyncpa [#allocation6], 1
    %7764 = vsyncpa [#allocation4], 1

</llo_original>
